<compile_context>
chip_gen: v5e
topology: v5e:2x2
jax: 0.10.0
libtpu: 0.0.40
codegen_flags: <defaults>
</compile_context>

<pallas_src>
import functools

import jax
import jax.numpy as jnp
from jax import lax
from jax.experimental import pallas as pl
from jax.experimental.pallas import tpu as pltpu


def _round_up(x, m):
    return ((x + m - 1) // m) * m


def _make_kernel(nb):
    """Fused whole-network kernel for one batch tile of `nb` samples."""
    RT = 6 * nb          # rows per (parity, i) group of the pooled conv1 output

    def kernel(sp1_ref, w1w_ref, b1_ref, w2w_ref, b2_ref,
               w1fc_ref, b1fc_ref, w2fc_ref, b2fc_ref,
               out_ref, h1s, sp2s, fc_in):
        f32 = jnp.float32

        # ----- conv1 (5x5, 1->16[pad]) folded with 2x2 max-pool + ReLU -------
        # The 4 pool offsets live in the 4x-wide weight -> lane-block max.
        z1 = jnp.dot(sp1_ref[...], w1w_ref[...],
                     preferred_element_type=f32)                  # (144*nb, 64)
        m1 = jnp.maximum(jnp.maximum(z1[:, 0:16], z1[:, 16:32]),
                         jnp.maximum(z1[:, 32:48], z1[:, 48:64]))
        h1 = jnp.maximum(m1 + b1_ref[...], 0.0)                   # (144*nb, 16)

        # Scatter into the parity-decomposed layout h1s[pi, i, j*nb+n, c]
        # (whole 8-aligned sublane groups) so conv2's im2col is pure slicing.
        for pi in range(4):
            for i in range(6):
                r0 = (pi * 6 + i) * RT
                h1s[pi, i, :, :] = h1[r0:r0 + RT, :]

        # ----- conv2 im2col: 36 dense 16-lane superpatch column slots --------
        # Channels padded to 16 -> every slot written completely, no zero-fill.
        for r in range(6):
            for s in range(6):
                pi = (r % 2) * 2 + (s % 2)
                i0, j0 = r // 2, s // 2
                col = (r * 6 + s) * 16
                sp2s[:, :, col:col + 16] = h1s[pi, i0:i0 + 4,
                                               nb * j0:nb * j0 + 4 * nb, :]

        # ----- conv2 (5x5, 16->32[pad]) + pool + ReLU: ONE merged matmul -----
        # conv2_drop / F.dropout are identity in eval mode.
        p2 = jnp.concatenate([sp2s[d] for d in range(4)],
                             axis=0).astype(w2w_ref.dtype)         # (16*nb, 576)
        z2 = jnp.dot(p2, w2w_ref[...],
                     preferred_element_type=f32)                   # (16*nb, 128)
        m2 = jnp.maximum(jnp.maximum(z2[:, 0:32], z2[:, 32:64]),
                         jnp.maximum(z2[:, 64:96], z2[:, 96:128]))
        h2 = jnp.maximum(m2 + b2_ref[...], 0.0)                    # (16*nb, 32)

        # ----- fc1: rearrange once to (nb, 512), ONE merged matmul -----------
        # Torch's NCHW flatten order is folded into the (512, 50) weight.
        for s in range(16):
            fc_in[:, 32 * s:32 * s + 32] = h2[s * nb:(s + 1) * nb, :]
        a1 = jnp.maximum(
            jnp.dot(fc_in[...].astype(w1fc_ref.dtype), w1fc_ref[...],
                    preferred_element_type=f32) + b1fc_ref[...], 0.0)  # (nb, 50)

        # ----- fc2 + log_softmax ---------------------------------------------
        z = jnp.dot(a1.astype(w2fc_ref.dtype), w2fc_ref[...],
                    preferred_element_type=f32) + b2fc_ref[...]        # (nb, 10)
        zmax = jnp.max(z, axis=-1, keepdims=True)
        lse = zmax + jnp.log(jnp.sum(jnp.exp(z - zmax), axis=-1, keepdims=True))
        out_ref[...] = (z - lse).astype(out_ref.dtype)

    return kernel


@functools.partial(jax.jit, static_argnames=("matmul_dtype",))
def net_forward(x_nchw, params, matmul_dtype=jnp.float32):
    """Full Net forward (eval-mode).

    matmul_dtype=jnp.bfloat16 trades a little accuracy for MXU throughput on
    v5e/v6e/v7x (all elementwise / bias / softmax math stays float32).
    """
    c1w, c1b, c2w, c2b, f1w, f1b, f2w, f2b = params
    N = x_nchw.shape[0]

    # Batch tile: multiple of 8 (sublane aligned), capped so per-step VMEM fits
    # comfortably under the default scoped limit on every generation.
    NB = min(32, _round_up(N, 8))
    G = (N + NB - 1) // NB
    Npad = G * NB

    x2 = x_nchw[:, 0, :, :].astype(jnp.float32)                 # (N, 28, 28)
    if Npad != N:
        x2 = jnp.pad(x2, ((0, Npad - N), (0, 0), (0, 0)))

    # ---- conv1 superpatch via 64 static strided slices (no XLA gather) ------
    # sp1[(g, pi, i, j, n), r1*6+s1] = x[g*NB+n, 4i + 2a + r1, 4j + 2b + s1],
    # pi = a*2 + b the pool parity of conv1's pooled output position.
    slabs = [[lax.slice(x2, (0, dr, dc), (Npad, dr + 21, dc + 21), (1, 4, 4))
              for dc in range(8)] for dr in range(8)]           # each (Npad,6,6)
    parity = []
    for a in range(2):
        for b in range(2):
            cols = [slabs[2 * a + r1][2 * b + s1]
                    for r1 in range(6) for s1 in range(6)]
            parity.append(jnp.stack(cols, axis=-1))             # (Npad, 6, 6, 36)
    sp1 = jnp.stack(parity, axis=1)                             # (Npad, 4, 6, 6, 36)
    sp1 = sp1.reshape(G, NB, 4, 6, 6, 36)
    sp1 = jnp.transpose(sp1, (0, 2, 3, 4, 1, 5)).reshape(G * 144 * NB, 36)
    sp1 = sp1.astype(matmul_dtype)

    # ---- pool-widened conv1 weight, output channels padded 10 -> 16 ---------
    w1s = jnp.pad(jnp.transpose(c1w[:, 0], (1, 2, 0)),          # (5,5,10)->(5,5,16)
                  ((0, 0), (0, 0), (0, 6)))
    w1wide = jnp.concatenate(
        [jnp.pad(w1s, ((dh, 1 - dh), (dw, 1 - dw), (0, 0))).reshape(36, 16)
         for dh in range(2) for dw in range(2)], axis=1).astype(matmul_dtype)
    b1p = jnp.pad(c1b, (0, 6)).reshape(1, 16).astype(jnp.float32)

    # ---- pool-widened conv2 weight, ci 10->16 and co 20->32 (576 x 128) -----
    w2s = jnp.pad(jnp.transpose(c2w, (2, 3, 1, 0)),             # (5,5,10,20)
                  ((0, 0), (0, 0), (0, 6), (0, 12)))            # (5,5,16,32)
    w2wide = jnp.concatenate(
        [jnp.pad(w2s, ((dh, 1 - dh), (dw, 1 - dw), (0, 0), (0, 0))).reshape(576, 32)
         for dh in range(2) for dw in range(2)], axis=1).astype(matmul_dtype)
    b2p = jnp.pad(c2b, (0, 12)).reshape(1, 32).astype(jnp.float32)

    # ---- fc1 weight stacked to match the in-kernel (NB, 512) activation -----
    # fc_in column s*32 + c  <->  torch flatten column c*16 + s  (s = h*4 + w)
    w1fc = jnp.zeros((16, 32, 50), jnp.float32)
    w1fc = w1fc.at[:, :20, :].set(
        jnp.transpose(f1w.reshape(50, 20, 16), (2, 1, 0)))
    w1fc = w1fc.reshape(512, 50).astype(matmul_dtype)
    b1fc = f1b.reshape(1, 50).astype(jnp.float32)
    w2fcT = f2w.T.astype(matmul_dtype)
    b2fc = f2b.reshape(1, 10).astype(jnp.float32)

    kernel = _make_kernel(NB)
    args = (sp1, w1wide, b1p, w2wide, b2p, w1fc, b1fc, w2fcT, b2fc)
    in_specs = ([pl.BlockSpec((144 * NB, 36), lambda g: (g, 0))] +
                [pl.BlockSpec(a.shape, lambda g: (0, 0)) for a in args[1:]])

    out = pl.pallas_call(
        kernel,
        out_shape=jax.ShapeDtypeStruct((Npad, 10), jnp.float32),
        grid=(G,),
        in_specs=in_specs,
        out_specs=pl.BlockSpec((NB, 10), lambda g: (g, 0)),
        scratch_shapes=[
            pltpu.VMEM((4, 6, 6 * NB, 16), jnp.float32),   # parity-decomposed h1
            pltpu.VMEM((4, 4 * NB, 576), jnp.float32),     # conv2 superpatch
            pltpu.VMEM((NB, 512), jnp.float32),            # fc1 input slab
        ],
        compiler_params=pltpu.CompilerParams(
            dimension_semantics=("parallel",)),
    )(*args)
    return out[:N]


# ----------------------------------------------------------------------------
# Pure-JAX reference (correctness self-check, f32 highest precision).
# ----------------------------------------------------------------------------
def reference(x_nchw, params):
    c1w, c1b, c2w, c2b, f1w, f1b, f2w, f2b = params

    def conv_block(x, w, bias):
        hwio = jnp.transpose(w, (2, 3, 1, 0))
        y = lax.conv_general_dilated(
            x, hwio, (1, 1), "VALID",
            dimension_numbers=("NHWC", "HWIO", "NHWC"),
            precision=lax.Precision.HIGHEST) + bias
        y = lax.reduce_window(y, -jnp.inf, lax.max,
                              (1, 2, 2, 1), (1, 2, 2, 1), "VALID")
        return jnp.maximum(y, 0.0)

    x = jnp.transpose(x_nchw, (0, 2, 3, 1))
    x = conv_block(x, c1w, c1b)
    x = conv_block(x, c2w, c2b)
    N = x.shape[0]
    flat = jnp.transpose(x, (0, 3, 1, 2)).reshape(N, 320)
    h = jnp.maximum(jnp.dot(flat, f1w.T, precision=lax.Precision.HIGHEST) + f1b, 0.0)
    z = jnp.dot(h, f2w.T, precision=lax.Precision.HIGHEST) + f2b
    return jax.nn.log_softmax(z, axis=-1)


def init_params(key):
    ks = jax.random.split(key, 8)
    n = jax.random.normal
    c1w = 0.10 * n(ks[0], (10, 1, 5, 5), jnp.float32)
    c1b = 0.10 * n(ks[1], (10,), jnp.float32)
    c2w = 0.05 * n(ks[2], (20, 10, 5, 5), jnp.float32)
    c2b = 0.10 * n(ks[3], (20,), jnp.float32)
    f1w = 0.05 * n(ks[4], (50, 320), jnp.float32)
    f1b = 0.10 * n(ks[5], (50,), jnp.float32)
    f2w = 0.10 * n(ks[6], (10, 50), jnp.float32)
    f2b = 0.10 * n(ks[7], (10,), jnp.float32)
    return (c1w, c1b, c2w, c2b, f1w, f1b, f2w, f2b)


if __name__ == "__main__":
    key = jax.random.PRNGKey(0)
    k_in, k_par = jax.random.split(key)
    params = init_params(k_par)
    # Module implies 28x28 single-channel input (so the flatten yields 320).
    x = jax.random.normal(k_in, (2, 1, 28, 28), jnp.float32)

    out = jax.block_until_ready(net_forward(x, params))
    ref = jax.block_until_ready(reference(x, params))

    assert out.shape == (2, 10)
    err = jnp.max(jnp.abs(out - ref))
    assert jnp.allclose(out, ref, atol=1e-3, rtol=1e-3), f"max abs err {err}"
    print("KERNEL_OK")
</pallas_src>

<mosaic_0001>
module attributes {stable_mosaic.version = 11 : i64} {
  func.func @kernel(%arg0: i32, %arg1: memref<1152x36xf32, #tpu.memory_space<vmem>>, %arg2: memref<36x64xf32, #tpu.memory_space<vmem>>, %arg3: memref<1x16xf32, #tpu.memory_space<vmem>>, %arg4: memref<576x128xf32, #tpu.memory_space<vmem>>, %arg5: memref<1x32xf32, #tpu.memory_space<vmem>>, %arg6: memref<512x50xf32, #tpu.memory_space<vmem>>, %arg7: memref<1x50xf32, #tpu.memory_space<vmem>>, %arg8: memref<50x10xf32, #tpu.memory_space<vmem>>, %arg9: memref<1x10xf32, #tpu.memory_space<vmem>>, %arg10: memref<8x10xf32, #tpu.memory_space<vmem>>, %arg11: memref<4x6x48x16xf32, #tpu.memory_space<vmem>>, %arg12: memref<4x32x576xf32, #tpu.memory_space<vmem>>, %arg13: memref<8x512xf32, #tpu.memory_space<vmem>>) attributes {dimension_semantics = [#tpu.dimension_semantics<parallel>], iteration_bounds = array<i64: 1>, scalar_prefetch = 0 : i64, scratch_operands = 3 : i64, tpu.core_type = #tpu.core_type<tc>, window_params = [{transform_indices = @transform_0, window_bounds = array<i64: 1152, 36>}, {pipeline_mode = #tpu.pipeline_mode<synchronous>, transform_indices = @transform_1, window_bounds = array<i64: 36, 64>}, {pipeline_mode = #tpu.pipeline_mode<synchronous>, transform_indices = @transform_2, window_bounds = array<i64: 1, 16>}, {pipeline_mode = #tpu.pipeline_mode<synchronous>, transform_indices = @transform_3, window_bounds = array<i64: 576, 128>}, {pipeline_mode = #tpu.pipeline_mode<synchronous>, transform_indices = @transform_4, window_bounds = array<i64: 1, 32>}, {pipeline_mode = #tpu.pipeline_mode<synchronous>, transform_indices = @transform_5, window_bounds = array<i64: 512, 50>}, {pipeline_mode = #tpu.pipeline_mode<synchronous>, transform_indices = @transform_6, window_bounds = array<i64: 1, 50>}, {pipeline_mode = #tpu.pipeline_mode<synchronous>, transform_indices = @transform_7, window_bounds = array<i64: 50, 10>}, {pipeline_mode = #tpu.pipeline_mode<synchronous>, transform_indices = @transform_8, window_bounds = array<i64: 1, 10>}, {transform_indices = @transform_9, window_bounds = array<i64: 8, 10>}]} {
    %c0 = arith.constant 0 : index
    %c0_0 = arith.constant 0 : index
    %0 = vector.load %arg1[%c0, %c0_0] : memref<1152x36xf32, #tpu.memory_space<vmem>>, vector<1152x36xf32>
    %c0_1 = arith.constant 0 : index
    %c0_2 = arith.constant 0 : index
    %1 = vector.load %arg2[%c0_1, %c0_2] : memref<36x64xf32, #tpu.memory_space<vmem>>, vector<36x64xf32>
    %cst = arith.constant dense<0.000000e+00> : vector<1152x64xf32>
    %2 = tpu.matmul %0, %1, %cst {dimension_numbers = #tpu.dot_dimension_numbers<[1], [0], [0], [1], [0, 0, 1, 1], [], []>} : vector<1152x36xf32>, vector<36x64xf32>, vector<1152x64xf32> -> vector<1152x64xf32>
    %3 = vector.extract_strided_slice %2 {offsets = [0, 0], sizes = [1152, 16], strides = [1, 1]} : vector<1152x64xf32> to vector<1152x16xf32>
    %4 = vector.extract_strided_slice %2 {offsets = [0, 16], sizes = [1152, 16], strides = [1, 1]} : vector<1152x64xf32> to vector<1152x16xf32>
    %5 = arith.maximumf %3, %4 : vector<1152x16xf32>
    %6 = vector.extract_strided_slice %2 {offsets = [0, 32], sizes = [1152, 16], strides = [1, 1]} : vector<1152x64xf32> to vector<1152x16xf32>
    %7 = vector.extract_strided_slice %2 {offsets = [0, 48], sizes = [1152, 16], strides = [1, 1]} : vector<1152x64xf32> to vector<1152x16xf32>
    %8 = arith.maximumf %6, %7 : vector<1152x16xf32>
    %9 = arith.maximumf %5, %8 : vector<1152x16xf32>
    %c0_3 = arith.constant 0 : index
    %c0_4 = arith.constant 0 : index
    %10 = vector.load %arg3[%c0_3, %c0_4] : memref<1x16xf32, #tpu.memory_space<vmem>>, vector<1x16xf32>
    %11 = vector.broadcast %10 : vector<1x16xf32> to vector<1152x16xf32>
    %12 = arith.addf %9, %11 : vector<1152x16xf32>
    %cst_5 = arith.constant 0.000000e+00 : f32
    %13 = vector.broadcast %cst_5 : f32 to vector<1152x16xf32>
    %14 = arith.maximumf %12, %13 : vector<1152x16xf32>
    %15 = vector.extract_strided_slice %14 {offsets = [0, 0], sizes = [48, 16], strides = [1, 1]} : vector<1152x16xf32> to vector<48x16xf32>
    %c0_6 = arith.constant 0 : index
    %c0_7 = arith.constant 0 : index
    %c0_8 = arith.constant 0 : index
    %c0_9 = arith.constant 0 : index
    %16 = vector.load %arg11[%c0_6, %c0_7, %c0_8, %c0_9] : memref<4x6x48x16xf32, #tpu.memory_space<vmem>>, vector<1x1x48x16xf32>
    %17 = vector.shape_cast %16 : vector<1x1x48x16xf32> to vector<48x16xf32>
    %18 = vector.shape_cast %15 : vector<48x16xf32> to vector<1x1x48x16xf32>
    tpu.vector_store %arg11[%c0_6, %c0_7, %c0_8, %c0_9], %18 {strides = array<i32>} : memref<4x6x48x16xf32, #tpu.memory_space<vmem>>, vector<1x1x48x16xf32>,
    %19 = vector.extract_strided_slice %14 {offsets = [48, 0], sizes = [48, 16], strides = [1, 1]} : vector<1152x16xf32> to vector<48x16xf32>
    %c0_10 = arith.constant 0 : index
    %c1 = arith.constant 1 : index
    %c0_11 = arith.constant 0 : index
    %c0_12 = arith.constant 0 : index
    %20 = vector.load %arg11[%c0_10, %c1, %c0_11, %c0_12] : memref<4x6x48x16xf32, #tpu.memory_space<vmem>>, vector<1x1x48x16xf32>
    %21 = vector.shape_cast %20 : vector<1x1x48x16xf32> to vector<48x16xf32>
    %22 = vector.shape_cast %19 : vector<48x16xf32> to vector<1x1x48x16xf32>
    tpu.vector_store %arg11[%c0_10, %c1, %c0_11, %c0_12], %22 {strides = array<i32>} : memref<4x6x48x16xf32, #tpu.memory_space<vmem>>, vector<1x1x48x16xf32>,
    %23 = vector.extract_strided_slice %14 {offsets = [96, 0], sizes = [48, 16], strides = [1, 1]} : vector<1152x16xf32> to vector<48x16xf32>
    %c0_13 = arith.constant 0 : index
    %c2 = arith.constant 2 : index
    %c0_14 = arith.constant 0 : index
    %c0_15 = arith.constant 0 : index
    %24 = vector.load %arg11[%c0_13, %c2, %c0_14, %c0_15] : memref<4x6x48x16xf32, #tpu.memory_space<vmem>>, vector<1x1x48x16xf32>
    %25 = vector.shape_cast %24 : vector<1x1x48x16xf32> to vector<48x16xf32>
    %26 = vector.shape_cast %23 : vector<48x16xf32> to vector<1x1x48x16xf32>
    tpu.vector_store %arg11[%c0_13, %c2, %c0_14, %c0_15], %26 {strides = array<i32>} : memref<4x6x48x16xf32, #tpu.memory_space<vmem>>, vector<1x1x48x16xf32>,
    %27 = vector.extract_strided_slice %14 {offsets = [144, 0], sizes = [48, 16], strides = [1, 1]} : vector<1152x16xf32> to vector<48x16xf32>
    %c0_16 = arith.constant 0 : index
    %c3 = arith.constant 3 : index
    %c0_17 = arith.constant 0 : index
    %c0_18 = arith.constant 0 : index
    %28 = vector.load %arg11[%c0_16, %c3, %c0_17, %c0_18] : memref<4x6x48x16xf32, #tpu.memory_space<vmem>>, vector<1x1x48x16xf32>
    %29 = vector.shape_cast %28 : vector<1x1x48x16xf32> to vector<48x16xf32>
    %30 = vector.shape_cast %27 : vector<48x16xf32> to vector<1x1x48x16xf32>
    tpu.vector_store %arg11[%c0_16, %c3, %c0_17, %c0_18], %30 {strides = array<i32>} : memref<4x6x48x16xf32, #tpu.memory_space<vmem>>, vector<1x1x48x16xf32>,
    %31 = vector.extract_strided_slice %14 {offsets = [192, 0], sizes = [48, 16], strides = [1, 1]} : vector<1152x16xf32> to vector<48x16xf32>
    %c0_19 = arith.constant 0 : index
    %c4 = arith.constant 4 : index
    %c0_20 = arith.constant 0 : index
    %c0_21 = arith.constant 0 : index
    %32 = vector.load %arg11[%c0_19, %c4, %c0_20, %c0_21] : memref<4x6x48x16xf32, #tpu.memory_space<vmem>>, vector<1x1x48x16xf32>
    %33 = vector.shape_cast %32 : vector<1x1x48x16xf32> to vector<48x16xf32>
    %34 = vector.shape_cast %31 : vector<48x16xf32> to vector<1x1x48x16xf32>
    tpu.vector_store %arg11[%c0_19, %c4, %c0_20, %c0_21], %34 {strides = array<i32>} : memref<4x6x48x16xf32, #tpu.memory_space<vmem>>, vector<1x1x48x16xf32>,
    %35 = vector.extract_strided_slice %14 {offsets = [240, 0], sizes = [48, 16], strides = [1, 1]} : vector<1152x16xf32> to vector<48x16xf32>
    %c0_22 = arith.constant 0 : index
    %c5 = arith.constant 5 : index
    %c0_23 = arith.constant 0 : index
    %c0_24 = arith.constant 0 : index
    %36 = vector.load %arg11[%c0_22, %c5, %c0_23, %c0_24] : memref<4x6x48x16xf32, #tpu.memory_space<vmem>>, vector<1x1x48x16xf32>
    %37 = vector.shape_cast %36 : vector<1x1x48x16xf32> to vector<48x16xf32>
    %38 = vector.shape_cast %35 : vector<48x16xf32> to vector<1x1x48x16xf32>
    tpu.vector_store %arg11[%c0_22, %c5, %c0_23, %c0_24], %38 {strides = array<i32>} : memref<4x6x48x16xf32, #tpu.memory_space<vmem>>, vector<1x1x48x16xf32>,
    %39 = vector.extract_strided_slice %14 {offsets = [288, 0], sizes = [48, 16], strides = [1, 1]} : vector<1152x16xf32> to vector<48x16xf32>
    %c1_25 = arith.constant 1 : index
    %c0_26 = arith.constant 0 : index
    %c0_27 = arith.constant 0 : index
    %c0_28 = arith.constant 0 : index
    %40 = vector.load %arg11[%c1_25, %c0_26, %c0_27, %c0_28] : memref<4x6x48x16xf32, #tpu.memory_space<vmem>>, vector<1x1x48x16xf32>
    %41 = vector.shape_cast %40 : vector<1x1x48x16xf32> to vector<48x16xf32>
    %42 = vector.shape_cast %39 : vector<48x16xf32> to vector<1x1x48x16xf32>
    tpu.vector_store %arg11[%c1_25, %c0_26, %c0_27, %c0_28], %42 {strides = array<i32>} : memref<4x6x48x16xf32, #tpu.memory_space<vmem>>, vector<1x1x48x16xf32>,
    %43 = vector.extract_strided_slice %14 {offsets = [336, 0], sizes = [48, 16], strides = [1, 1]} : vector<1152x16xf32> to vector<48x16xf32>
    %c1_29 = arith.constant 1 : index
    %c1_30 = arith.constant 1 : index
    %c0_31 = arith.constant 0 : index
    %c0_32 = arith.constant 0 : index
    %44 = vector.load %arg11[%c1_29, %c1_30, %c0_31, %c0_32] : memref<4x6x48x16xf32, #tpu.memory_space<vmem>>, vector<1x1x48x16xf32>
    %45 = vector.shape_cast %44 : vector<1x1x48x16xf32> to vector<48x16xf32>
    %46 = vector.shape_cast %43 : vector<48x16xf32> to vector<1x1x48x16xf32>
    tpu.vector_store %arg11[%c1_29, %c1_30, %c0_31, %c0_32], %46 {strides = array<i32>} : memref<4x6x48x16xf32, #tpu.memory_space<vmem>>, vector<1x1x48x16xf32>,
    %47 = vector.extract_strided_slice %14 {offsets = [384, 0], sizes = [48, 16], strides = [1, 1]} : vector<1152x16xf32> to vector<48x16xf32>
    %c1_33 = arith.constant 1 : index
    %c2_34 = arith.constant 2 : index
    %c0_35 = arith.constant 0 : index
    %c0_36 = arith.constant 0 : index
    %48 = vector.load %arg11[%c1_33, %c2_34, %c0_35, %c0_36] : memref<4x6x48x16xf32, #tpu.memory_space<vmem>>, vector<1x1x48x16xf32>
    %49 = vector.shape_cast %48 : vector<1x1x48x16xf32> to vector<48x16xf32>
    %50 = vector.shape_cast %47 : vector<48x16xf32> to vector<1x1x48x16xf32>
    tpu.vector_store %arg11[%c1_33, %c2_34, %c0_35, %c0_36], %50 {strides = array<i32>} : memref<4x6x48x16xf32, #tpu.memory_space<vmem>>, vector<1x1x48x16xf32>,
    %51 = vector.extract_strided_slice %14 {offsets = [432, 0], sizes = [48, 16], strides = [1, 1]} : vector<1152x16xf32> to vector<48x16xf32>
    %c1_37 = arith.constant 1 : index
    %c3_38 = arith.constant 3 : index
    %c0_39 = arith.constant 0 : index
    %c0_40 = arith.constant 0 : index
    %52 = vector.load %arg11[%c1_37, %c3_38, %c0_39, %c0_40] : memref<4x6x48x16xf32, #tpu.memory_space<vmem>>, vector<1x1x48x16xf32>
    %53 = vector.shape_cast %52 : vector<1x1x48x16xf32> to vector<48x16xf32>
    %54 = vector.shape_cast %51 : vector<48x16xf32> to vector<1x1x48x16xf32>
    tpu.vector_store %arg11[%c1_37, %c3_38, %c0_39, %c0_40], %54 {strides = array<i32>} : memref<4x6x48x16xf32, #tpu.memory_space<vmem>>, vector<1x1x48x16xf32>,
    %55 = vector.extract_strided_slice %14 {offsets = [480, 0], sizes = [48, 16], strides = [1, 1]} : vector<1152x16xf32> to vector<48x16xf32>
    %c1_41 = arith.constant 1 : index
    %c4_42 = arith.constant 4 : index
    %c0_43 = arith.constant 0 : index
    %c0_44 = arith.constant 0 : index
    %56 = vector.load %arg11[%c1_41, %c4_42, %c0_43, %c0_44] : memref<4x6x48x16xf32, #tpu.memory_space<vmem>>, vector<1x1x48x16xf32>
    %57 = vector.shape_cast %56 : vector<1x1x48x16xf32> to vector<48x16xf32>
    %58 = vector.shape_cast %55 : vector<48x16xf32> to vector<1x1x48x16xf32>
    tpu.vector_store %arg11[%c1_41, %c4_42, %c0_43, %c0_44], %58 {strides = array<i32>} : memref<4x6x48x16xf32, #tpu.memory_space<vmem>>, vector<1x1x48x16xf32>,
    %59 = vector.extract_strided_slice %14 {offsets = [528, 0], sizes = [48, 16], strides = [1, 1]} : vector<1152x16xf32> to vector<48x16xf32>
    %c1_45 = arith.constant 1 : index
    %c5_46 = arith.constant 5 : index
    %c0_47 = arith.constant 0 : index
    %c0_48 = arith.constant 0 : index
    %60 = vector.load %arg11[%c1_45, %c5_46, %c0_47, %c0_48] : memref<4x6x48x16xf32, #tpu.memory_space<vmem>>, vector<1x1x48x16xf32>
    %61 = vector.shape_cast %60 : vector<1x1x48x16xf32> to vector<48x16xf32>
    %62 = vector.shape_cast %59 : vector<48x16xf32> to vector<1x1x48x16xf32>
    tpu.vector_store %arg11[%c1_45, %c5_46, %c0_47, %c0_48], %62 {strides = array<i32>} : memref<4x6x48x16xf32, #tpu.memory_space<vmem>>, vector<1x1x48x16xf32>,
    %63 = vector.extract_strided_slice %14 {offsets = [576, 0], sizes = [48, 16], strides = [1, 1]} : vector<1152x16xf32> to vector<48x16xf32>
    %c2_49 = arith.constant 2 : index
    %c0_50 = arith.constant 0 : index
    %c0_51 = arith.constant 0 : index
    %c0_52 = arith.constant 0 : index
    %64 = vector.load %arg11[%c2_49, %c0_50, %c0_51, %c0_52] : memref<4x6x48x16xf32, #tpu.memory_space<vmem>>, vector<1x1x48x16xf32>
    %65 = vector.shape_cast %64 : vector<1x1x48x16xf32> to vector<48x16xf32>
    %66 = vector.shape_cast %63 : vector<48x16xf32> to vector<1x1x48x16xf32>
    tpu.vector_store %arg11[%c2_49, %c0_50, %c0_51, %c0_52], %66 {strides = array<i32>} : memref<4x6x48x16xf32, #tpu.memory_space<vmem>>, vector<1x1x48x16xf32>,
    %67 = vector.extract_strided_slice %14 {offsets = [624, 0], sizes = [48, 16], strides = [1, 1]} : vector<1152x16xf32> to vector<48x16xf32>
    %c2_53 = arith.constant 2 : index
    %c1_54 = arith.constant 1 : index
    %c0_55 = arith.constant 0 : index
    %c0_56 = arith.constant 0 : index
    %68 = vector.load %arg11[%c2_53, %c1_54, %c0_55, %c0_56] : memref<4x6x48x16xf32, #tpu.memory_space<vmem>>, vector<1x1x48x16xf32>
    %69 = vector.shape_cast %68 : vector<1x1x48x16xf32> to vector<48x16xf32>
    %70 = vector.shape_cast %67 : vector<48x16xf32> to vector<1x1x48x16xf32>
    tpu.vector_store %arg11[%c2_53, %c1_54, %c0_55, %c0_56], %70 {strides = array<i32>} : memref<4x6x48x16xf32, #tpu.memory_space<vmem>>, vector<1x1x48x16xf32>,
    %71 = vector.extract_strided_slice %14 {offsets = [672, 0], sizes = [48, 16], strides = [1, 1]} : vector<1152x16xf32> to vector<48x16xf32>
    %c2_57 = arith.constant 2 : index
    %c2_58 = arith.constant 2 : index
    %c0_59 = arith.constant 0 : index
    %c0_60 = arith.constant 0 : index
    %72 = vector.load %arg11[%c2_57, %c2_58, %c0_59, %c0_60] : memref<4x6x48x16xf32, #tpu.memory_space<vmem>>, vector<1x1x48x16xf32>
    %73 = vector.shape_cast %72 : vector<1x1x48x16xf32> to vector<48x16xf32>
    %74 = vector.shape_cast %71 : vector<48x16xf32> to vector<1x1x48x16xf32>
    tpu.vector_store %arg11[%c2_57, %c2_58, %c0_59, %c0_60], %74 {strides = array<i32>} : memref<4x6x48x16xf32, #tpu.memory_space<vmem>>, vector<1x1x48x16xf32>,
    %75 = vector.extract_strided_slice %14 {offsets = [720, 0], sizes = [48, 16], strides = [1, 1]} : vector<1152x16xf32> to vector<48x16xf32>
    %c2_61 = arith.constant 2 : index
    %c3_62 = arith.constant 3 : index
    %c0_63 = arith.constant 0 : index
    %c0_64 = arith.constant 0 : index
    %76 = vector.load %arg11[%c2_61, %c3_62, %c0_63, %c0_64] : memref<4x6x48x16xf32, #tpu.memory_space<vmem>>, vector<1x1x48x16xf32>
    %77 = vector.shape_cast %76 : vector<1x1x48x16xf32> to vector<48x16xf32>
    %78 = vector.shape_cast %75 : vector<48x16xf32> to vector<1x1x48x16xf32>
    tpu.vector_store %arg11[%c2_61, %c3_62, %c0_63, %c0_64], %78 {strides = array<i32>} : memref<4x6x48x16xf32, #tpu.memory_space<vmem>>, vector<1x1x48x16xf32>,
    %79 = vector.extract_strided_slice %14 {offsets = [768, 0], sizes = [48, 16], strides = [1, 1]} : vector<1152x16xf32> to vector<48x16xf32>
    %c2_65 = arith.constant 2 : index
    %c4_66 = arith.constant 4 : index
    %c0_67 = arith.constant 0 : index
    %c0_68 = arith.constant 0 : index
    %80 = vector.load %arg11[%c2_65, %c4_66, %c0_67, %c0_68] : memref<4x6x48x16xf32, #tpu.memory_space<vmem>>, vector<1x1x48x16xf32>
    %81 = vector.shape_cast %80 : vector<1x1x48x16xf32> to vector<48x16xf32>
    %82 = vector.shape_cast %79 : vector<48x16xf32> to vector<1x1x48x16xf32>
    tpu.vector_store %arg11[%c2_65, %c4_66, %c0_67, %c0_68], %82 {strides = array<i32>} : memref<4x6x48x16xf32, #tpu.memory_space<vmem>>, vector<1x1x48x16xf32>,
    %83 = vector.extract_strided_slice %14 {offsets = [816, 0], sizes = [48, 16], strides = [1, 1]} : vector<1152x16xf32> to vector<48x16xf32>
    %c2_69 = arith.constant 2 : index
    %c5_70 = arith.constant 5 : index
    %c0_71 = arith.constant 0 : index
    %c0_72 = arith.constant 0 : index
    %84 = vector.load %arg11[%c2_69, %c5_70, %c0_71, %c0_72] : memref<4x6x48x16xf32, #tpu.memory_space<vmem>>, vector<1x1x48x16xf32>
    %85 = vector.shape_cast %84 : vector<1x1x48x16xf32> to vector<48x16xf32>
    %86 = vector.shape_cast %83 : vector<48x16xf32> to vector<1x1x48x16xf32>
    tpu.vector_store %arg11[%c2_69, %c5_70, %c0_71, %c0_72], %86 {strides = array<i32>} : memref<4x6x48x16xf32, #tpu.memory_space<vmem>>, vector<1x1x48x16xf32>,
    %87 = vector.extract_strided_slice %14 {offsets = [864, 0], sizes = [48, 16], strides = [1, 1]} : vector<1152x16xf32> to vector<48x16xf32>
    %c3_73 = arith.constant 3 : index
    %c0_74 = arith.constant 0 : index
    %c0_75 = arith.constant 0 : index
    %c0_76 = arith.constant 0 : index
    %88 = vector.load %arg11[%c3_73, %c0_74, %c0_75, %c0_76] : memref<4x6x48x16xf32, #tpu.memory_space<vmem>>, vector<1x1x48x16xf32>
    %89 = vector.shape_cast %88 : vector<1x1x48x16xf32> to vector<48x16xf32>
    %90 = vector.shape_cast %87 : vector<48x16xf32> to vector<1x1x48x16xf32>
    tpu.vector_store %arg11[%c3_73, %c0_74, %c0_75, %c0_76], %90 {strides = array<i32>} : memref<4x6x48x16xf32, #tpu.memory_space<vmem>>, vector<1x1x48x16xf32>,
    %91 = vector.extract_strided_slice %14 {offsets = [912, 0], sizes = [48, 16], strides = [1, 1]} : vector<1152x16xf32> to vector<48x16xf32>
    %c3_77 = arith.constant 3 : index
    %c1_78 = arith.constant 1 : index
    %c0_79 = arith.constant 0 : index
    %c0_80 = arith.constant 0 : index
    %92 = vector.load %arg11[%c3_77, %c1_78, %c0_79, %c0_80] : memref<4x6x48x16xf32, #tpu.memory_space<vmem>>, vector<1x1x48x16xf32>
    %93 = vector.shape_cast %92 : vector<1x1x48x16xf32> to vector<48x16xf32>
    %94 = vector.shape_cast %91 : vector<48x16xf32> to vector<1x1x48x16xf32>
    tpu.vector_store %arg11[%c3_77, %c1_78, %c0_79, %c0_80], %94 {strides = array<i32>} : memref<4x6x48x16xf32, #tpu.memory_space<vmem>>, vector<1x1x48x16xf32>,
    %95 = vector.extract_strided_slice %14 {offsets = [960, 0], sizes = [48, 16], strides = [1, 1]} : vector<1152x16xf32> to vector<48x16xf32>
    %c3_81 = arith.constant 3 : index
    %c2_82 = arith.constant 2 : index
    %c0_83 = arith.constant 0 : index
    %c0_84 = arith.constant 0 : index
    %96 = vector.load %arg11[%c3_81, %c2_82, %c0_83, %c0_84] : memref<4x6x48x16xf32, #tpu.memory_space<vmem>>, vector<1x1x48x16xf32>
    %97 = vector.shape_cast %96 : vector<1x1x48x16xf32> to vector<48x16xf32>
    %98 = vector.shape_cast %95 : vector<48x16xf32> to vector<1x1x48x16xf32>
    tpu.vector_store %arg11[%c3_81, %c2_82, %c0_83, %c0_84], %98 {strides = array<i32>} : memref<4x6x48x16xf32, #tpu.memory_space<vmem>>, vector<1x1x48x16xf32>,
    %99 = vector.extract_strided_slice %14 {offsets = [1008, 0], sizes = [48, 16], strides = [1, 1]} : vector<1152x16xf32> to vector<48x16xf32>
    %c3_85 = arith.constant 3 : index
    %c3_86 = arith.constant 3 : index
    %c0_87 = arith.constant 0 : index
    %c0_88 = arith.constant 0 : index
    %100 = vector.load %arg11[%c3_85, %c3_86, %c0_87, %c0_88] : memref<4x6x48x16xf32, #tpu.memory_space<vmem>>, vector<1x1x48x16xf32>
    %101 = vector.shape_cast %100 : vector<1x1x48x16xf32> to vector<48x16xf32>
    %102 = vector.shape_cast %99 : vector<48x16xf32> to vector<1x1x48x16xf32>
    tpu.vector_store %arg11[%c3_85, %c3_86, %c0_87, %c0_88], %102 {strides = array<i32>} : memref<4x6x48x16xf32, #tpu.memory_space<vmem>>, vector<1x1x48x16xf32>,
    %103 = vector.extract_strided_slice %14 {offsets = [1056, 0], sizes = [48, 16], strides = [1, 1]} : vector<1152x16xf32> to vector<48x16xf32>
    %c3_89 = arith.constant 3 : index
    %c4_90 = arith.constant 4 : index
    %c0_91 = arith.constant 0 : index
    %c0_92 = arith.constant 0 : index
    %104 = vector.load %arg11[%c3_89, %c4_90, %c0_91, %c0_92] : memref<4x6x48x16xf32, #tpu.memory_space<vmem>>, vector<1x1x48x16xf32>
    %105 = vector.shape_cast %104 : vector<1x1x48x16xf32> to vector<48x16xf32>
    %106 = vector.shape_cast %103 : vector<48x16xf32> to vector<1x1x48x16xf32>
    tpu.vector_store %arg11[%c3_89, %c4_90, %c0_91, %c0_92], %106 {strides = array<i32>} : memref<4x6x48x16xf32, #tpu.memory_space<vmem>>, vector<1x1x48x16xf32>,
    %107 = vector.extract_strided_slice %14 {offsets = [1104, 0], sizes = [48, 16], strides = [1, 1]} : vector<1152x16xf32> to vector<48x16xf32>
    %c3_93 = arith.constant 3 : index
    %c5_94 = arith.constant 5 : index
    %c0_95 = arith.constant 0 : index
    %c0_96 = arith.constant 0 : index
    %108 = vector.load %arg11[%c3_93, %c5_94, %c0_95, %c0_96] : memref<4x6x48x16xf32, #tpu.memory_space<vmem>>, vector<1x1x48x16xf32>
    %109 = vector.shape_cast %108 : vector<1x1x48x16xf32> to vector<48x16xf32>
    %110 = vector.shape_cast %107 : vector<48x16xf32> to vector<1x1x48x16xf32>
    tpu.vector_store %arg11[%c3_93, %c5_94, %c0_95, %c0_96], %110 {strides = array<i32>} : memref<4x6x48x16xf32, #tpu.memory_space<vmem>>, vector<1x1x48x16xf32>,
    %c0_97 = arith.constant 0 : index
    %c0_98 = arith.constant 0 : index
    %c0_99 = arith.constant 0 : index
    %c0_100 = arith.constant 0 : index
    %111 = vector.load %arg11[%c0_97, %c0_98, %c0_99, %c0_100] : memref<4x6x48x16xf32, #tpu.memory_space<vmem>>, vector<1x4x32x16xf32>
    %112 = vector.shape_cast %111 : vector<1x4x32x16xf32> to vector<4x32x16xf32>
    %c0_101 = arith.constant 0 : index
    %c0_102 = arith.constant 0 : index
    %c0_103 = arith.constant 0 : index
    %113 = vector.load %arg12[%c0_101, %c0_102, %c0_103] : memref<4x32x576xf32, #tpu.memory_space<vmem>>, vector<4x32x16xf32>
    tpu.vector_store %arg12[%c0_101, %c0_102, %c0_103], %112 {strides = array<i32>} : memref<4x32x576xf32, #tpu.memory_space<vmem>>, vector<4x32x16xf32>,
    %c1_104 = arith.constant 1 : index
    %c0_105 = arith.constant 0 : index
    %c0_106 = arith.constant 0 : index
    %c0_107 = arith.constant 0 : index
    %114 = vector.load %arg11[%c1_104, %c0_105, %c0_106, %c0_107] : memref<4x6x48x16xf32, #tpu.memory_space<vmem>>, vector<1x4x32x16xf32>
    %115 = vector.shape_cast %114 : vector<1x4x32x16xf32> to vector<4x32x16xf32>
    %c0_108 = arith.constant 0 : index
    %c0_109 = arith.constant 0 : index
    %c16 = arith.constant 16 : index
    %116 = vector.load %arg12[%c0_108, %c0_109, %c16] : memref<4x32x576xf32, #tpu.memory_space<vmem>>, vector<4x32x16xf32>
    tpu.vector_store %arg12[%c0_108, %c0_109, %c16], %115 {strides = array<i32>} : memref<4x32x576xf32, #tpu.memory_space<vmem>>, vector<4x32x16xf32>,
    %c0_110 = arith.constant 0 : index
    %c0_111 = arith.constant 0 : index
    %c8 = arith.constant 8 : index
    %c0_112 = arith.constant 0 : index
    %117 = vector.load %arg11[%c0_110, %c0_111, %c8, %c0_112] : memref<4x6x48x16xf32, #tpu.memory_space<vmem>>, vector<1x4x32x16xf32>
    %118 = vector.shape_cast %117 : vector<1x4x32x16xf32> to vector<4x32x16xf32>
    %c0_113 = arith.constant 0 : index
    %c0_114 = arith.constant 0 : index
    %c32 = arith.constant 32 : index
    %119 = vector.load %arg12[%c0_113, %c0_114, %c32] : memref<4x32x576xf32, #tpu.memory_space<vmem>>, vector<4x32x16xf32>
    tpu.vector_store %arg12[%c0_113, %c0_114, %c32], %118 {strides = array<i32>} : memref<4x32x576xf32, #tpu.memory_space<vmem>>, vector<4x32x16xf32>,
    %c1_115 = arith.constant 1 : index
    %c0_116 = arith.constant 0 : index
    %c8_117 = arith.constant 8 : index
    %c0_118 = arith.constant 0 : index
    %120 = vector.load %arg11[%c1_115, %c0_116, %c8_117, %c0_118] : memref<4x6x48x16xf32, #tpu.memory_space<vmem>>, vector<1x4x32x16xf32>
    %121 = vector.shape_cast %120 : vector<1x4x32x16xf32> to vector<4x32x16xf32>
    %c0_119 = arith.constant 0 : index
    %c0_120 = arith.constant 0 : index
    %c48 = arith.constant 48 : index
    %122 = vector.load %arg12[%c0_119, %c0_120, %c48] : memref<4x32x576xf32, #tpu.memory_space<vmem>>, vector<4x32x16xf32>
    tpu.vector_store %arg12[%c0_119, %c0_120, %c48], %121 {strides = array<i32>} : memref<4x32x576xf32, #tpu.memory_space<vmem>>, vector<4x32x16xf32>,
    %c0_121 = arith.constant 0 : index
    %c0_122 = arith.constant 0 : index
    %c16_123 = arith.constant 16 : index
    %c0_124 = arith.constant 0 : index
    %123 = vector.load %arg11[%c0_121, %c0_122, %c16_123, %c0_124] : memref<4x6x48x16xf32, #tpu.memory_space<vmem>>, vector<1x4x32x16xf32>
    %124 = vector.shape_cast %123 : vector<1x4x32x16xf32> to vector<4x32x16xf32>
    %c0_125 = arith.constant 0 : index
    %c0_126 = arith.constant 0 : index
    %c64 = arith.constant 64 : index
    %125 = vector.load %arg12[%c0_125, %c0_126, %c64] : memref<4x32x576xf32, #tpu.memory_space<vmem>>, vector<4x32x16xf32>
    tpu.vector_store %arg12[%c0_125, %c0_126, %c64], %124 {strides = array<i32>} : memref<4x32x576xf32, #tpu.memory_space<vmem>>, vector<4x32x16xf32>,
    %c1_127 = arith.constant 1 : index
    %c0_128 = arith.constant 0 : index
    %c16_129 = arith.constant 16 : index
    %c0_130 = arith.constant 0 : index
    %126 = vector.load %arg11[%c1_127, %c0_128, %c16_129, %c0_130] : memref<4x6x48x16xf32, #tpu.memory_space<vmem>>, vector<1x4x32x16xf32>
    %127 = vector.shape_cast %126 : vector<1x4x32x16xf32> to vector<4x32x16xf32>
    %c0_131 = arith.constant 0 : index
    %c0_132 = arith.constant 0 : index
    %c80 = arith.constant 80 : index
    %128 = vector.load %arg12[%c0_131, %c0_132, %c80] : memref<4x32x576xf32, #tpu.memory_space<vmem>>, vector<4x32x16xf32>
    tpu.vector_store %arg12[%c0_131, %c0_132, %c80], %127 {strides = array<i32>} : memref<4x32x576xf32, #tpu.memory_space<vmem>>, vector<4x32x16xf32>,
    %c2_133 = arith.constant 2 : index
    %c0_134 = arith.constant 0 : index
    %c0_135 = arith.constant 0 : index
    %c0_136 = arith.constant 0 : index
    %129 = vector.load %arg11[%c2_133, %c0_134, %c0_135, %c0_136] : memref<4x6x48x16xf32, #tpu.memory_space<vmem>>, vector<1x4x32x16xf32>
    %130 = vector.shape_cast %129 : vector<1x4x32x16xf32> to vector<4x32x16xf32>
    %c0_137 = arith.constant 0 : index
    %c0_138 = arith.constant 0 : index
    %c96 = arith.constant 96 : index
    %131 = vector.load %arg12[%c0_137, %c0_138, %c96] : memref<4x32x576xf32, #tpu.memory_space<vmem>>, vector<4x32x16xf32>
    tpu.vector_store %arg12[%c0_137, %c0_138, %c96], %130 {strides = array<i32>} : memref<4x32x576xf32, #tpu.memory_space<vmem>>, vector<4x32x16xf32>,
    %c3_139 = arith.constant 3 : index
    %c0_140 = arith.constant 0 : index
    %c0_141 = arith.constant 0 : index
    %c0_142 = arith.constant 0 : index
    %132 = vector.load %arg11[%c3_139, %c0_140, %c0_141, %c0_142] : memref<4x6x48x16xf32, #tpu.memory_space<vmem>>, vector<1x4x32x16xf32>
    %133 = vector.shape_cast %132 : vector<1x4x32x16xf32> to vector<4x32x16xf32>
    %c0_143 = arith.constant 0 : index
    %c0_144 = arith.constant 0 : index
    %c112 = arith.constant 112 : index
    %134 = vector.load %arg12[%c0_143, %c0_144, %c112] : memref<4x32x576xf32, #tpu.memory_space<vmem>>, vector<4x32x16xf32>
    tpu.vector_store %arg12[%c0_143, %c0_144, %c112], %133 {strides = array<i32>} : memref<4x32x576xf32, #tpu.memory_space<vmem>>, vector<4x32x16xf32>,
    %c2_145 = arith.constant 2 : index
    %c0_146 = arith.constant 0 : index
    %c8_147 = arith.constant 8 : index
    %c0_148 = arith.constant 0 : index
    %135 = vector.load %arg11[%c2_145, %c0_146, %c8_147, %c0_148] : memref<4x6x48x16xf32, #tpu.memory_space<vmem>>, vector<1x4x32x16xf32>
    %136 = vector.shape_cast %135 : vector<1x4x32x16xf32> to vector<4x32x16xf32>
    %c0_149 = arith.constant 0 : index
    %c0_150 = arith.constant 0 : index
    %c128 = arith.constant 128 : index
    %137 = vector.load %arg12[%c0_149, %c0_150, %c128] : memref<4x32x576xf32, #tpu.memory_space<vmem>>, vector<4x32x16xf32>
    tpu.vector_store %arg12[%c0_149, %c0_150, %c128], %136 {strides = array<i32>} : memref<4x32x576xf32, #tpu.memory_space<vmem>>, vector<4x32x16xf32>,
    %c3_151 = arith.constant 3 : index
    %c0_152 = arith.constant 0 : index
    %c8_153 = arith.constant 8 : index
    %c0_154 = arith.constant 0 : index
    %138 = vector.load %arg11[%c3_151, %c0_152, %c8_153, %c0_154] : memref<4x6x48x16xf32, #tpu.memory_space<vmem>>, vector<1x4x32x16xf32>
    %139 = vector.shape_cast %138 : vector<1x4x32x16xf32> to vector<4x32x16xf32>
    %c0_155 = arith.constant 0 : index
    %c0_156 = arith.constant 0 : index
    %c144 = arith.constant 144 : index
    %140 = vector.load %arg12[%c0_155, %c0_156, %c144] : memref<4x32x576xf32, #tpu.memory_space<vmem>>, vector<4x32x16xf32>
    tpu.vector_store %arg12[%c0_155, %c0_156, %c144], %139 {strides = array<i32>} : memref<4x32x576xf32, #tpu.memory_space<vmem>>, vector<4x32x16xf32>,
    %c2_157 = arith.constant 2 : index
    %c0_158 = arith.constant 0 : index
    %c16_159 = arith.constant 16 : index
    %c0_160 = arith.constant 0 : index
    %141 = vector.load %arg11[%c2_157, %c0_158, %c16_159, %c0_160] : memref<4x6x48x16xf32, #tpu.memory_space<vmem>>, vector<1x4x32x16xf32>
    %142 = vector.shape_cast %141 : vector<1x4x32x16xf32> to vector<4x32x16xf32>
    %c0_161 = arith.constant 0 : index
    %c0_162 = arith.constant 0 : index
    %c160 = arith.constant 160 : index
    %143 = vector.load %arg12[%c0_161, %c0_162, %c160] : memref<4x32x576xf32, #tpu.memory_space<vmem>>, vector<4x32x16xf32>
    tpu.vector_store %arg12[%c0_161, %c0_162, %c160], %142 {strides = array<i32>} : memref<4x32x576xf32, #tpu.memory_space<vmem>>, vector<4x32x16xf32>,
    %c3_163 = arith.constant 3 : index
    %c0_164 = arith.constant 0 : index
    %c16_165 = arith.constant 16 : index
    %c0_166 = arith.constant 0 : index
    %144 = vector.load %arg11[%c3_163, %c0_164, %c16_165, %c0_166] : memref<4x6x48x16xf32, #tpu.memory_space<vmem>>, vector<1x4x32x16xf32>
    %145 = vector.shape_cast %144 : vector<1x4x32x16xf32> to vector<4x32x16xf32>
    %c0_167 = arith.constant 0 : index
    %c0_168 = arith.constant 0 : index
    %c176 = arith.constant 176 : index
    %146 = vector.load %arg12[%c0_167, %c0_168, %c176] : memref<4x32x576xf32, #tpu.memory_space<vmem>>, vector<4x32x16xf32>
    tpu.vector_store %arg12[%c0_167, %c0_168, %c176], %145 {strides = array<i32>} : memref<4x32x576xf32, #tpu.memory_space<vmem>>, vector<4x32x16xf32>,
    %c0_169 = arith.constant 0 : index
    %c1_170 = arith.constant 1 : index
    %c0_171 = arith.constant 0 : index
    %c0_172 = arith.constant 0 : index
    %147 = vector.load %arg11[%c0_169, %c1_170, %c0_171, %c0_172] : memref<4x6x48x16xf32, #tpu.memory_space<vmem>>, vector<1x4x32x16xf32>
    %148 = vector.shape_cast %147 : vector<1x4x32x16xf32> to vector<4x32x16xf32>
    %c0_173 = arith.constant 0 : index
    %c0_174 = arith.constant 0 : index
    %c192 = arith.constant 192 : index
    %149 = vector.load %arg12[%c0_173, %c0_174, %c192] : memref<4x32x576xf32, #tpu.memory_space<vmem>>, vector<4x32x16xf32>
    tpu.vector_store %arg12[%c0_173, %c0_174, %c192], %148 {strides = array<i32>} : memref<4x32x576xf32, #tpu.memory_space<vmem>>, vector<4x32x16xf32>,
    %c1_175 = arith.constant 1 : index
    %c1_176 = arith.constant 1 : index
    %c0_177 = arith.constant 0 : index
    %c0_178 = arith.constant 0 : index
    %150 = vector.load %arg11[%c1_175, %c1_176, %c0_177, %c0_178] : memref<4x6x48x16xf32, #tpu.memory_space<vmem>>, vector<1x4x32x16xf32>
    %151 = vector.shape_cast %150 : vector<1x4x32x16xf32> to vector<4x32x16xf32>
    %c0_179 = arith.constant 0 : index
    %c0_180 = arith.constant 0 : index
    %c208 = arith.constant 208 : index
    %152 = vector.load %arg12[%c0_179, %c0_180, %c208] : memref<4x32x576xf32, #tpu.memory_space<vmem>>, vector<4x32x16xf32>
    tpu.vector_store %arg12[%c0_179, %c0_180, %c208], %151 {strides = array<i32>} : memref<4x32x576xf32, #tpu.memory_space<vmem>>, vector<4x32x16xf32>,
    %c0_181 = arith.constant 0 : index
    %c1_182 = arith.constant 1 : index
    %c8_183 = arith.constant 8 : index
    %c0_184 = arith.constant 0 : index
    %153 = vector.load %arg11[%c0_181, %c1_182, %c8_183, %c0_184] : memref<4x6x48x16xf32, #tpu.memory_space<vmem>>, vector<1x4x32x16xf32>
    %154 = vector.shape_cast %153 : vector<1x4x32x16xf32> to vector<4x32x16xf32>
    %c0_185 = arith.constant 0 : index
    %c0_186 = arith.constant 0 : index
    %c224 = arith.constant 224 : index
    %155 = vector.load %arg12[%c0_185, %c0_186, %c224] : memref<4x32x576xf32, #tpu.memory_space<vmem>>, vector<4x32x16xf32>
    tpu.vector_store %arg12[%c0_185, %c0_186, %c224], %154 {strides = array<i32>} : memref<4x32x576xf32, #tpu.memory_space<vmem>>, vector<4x32x16xf32>,
    %c1_187 = arith.constant 1 : index
    %c1_188 = arith.constant 1 : index
    %c8_189 = arith.constant 8 : index
    %c0_190 = arith.constant 0 : index
    %156 = vector.load %arg11[%c1_187, %c1_188, %c8_189, %c0_190] : memref<4x6x48x16xf32, #tpu.memory_space<vmem>>, vector<1x4x32x16xf32>
    %157 = vector.shape_cast %156 : vector<1x4x32x16xf32> to vector<4x32x16xf32>
    %c0_191 = arith.constant 0 : index
    %c0_192 = arith.constant 0 : index
    %c240 = arith.constant 240 : index
    %158 = vector.load %arg12[%c0_191, %c0_192, %c240] : memref<4x32x576xf32, #tpu.memory_space<vmem>>, vector<4x32x16xf32>
    tpu.vector_store %arg12[%c0_191, %c0_192, %c240], %157 {strides = array<i32>} : memref<4x32x576xf32, #tpu.memory_space<vmem>>, vector<4x32x16xf32>,
    %c0_193 = arith.constant 0 : index
    %c1_194 = arith.constant 1 : index
    %c16_195 = arith.constant 16 : index
    %c0_196 = arith.constant 0 : index
    %159 = vector.load %arg11[%c0_193, %c1_194, %c16_195, %c0_196] : memref<4x6x48x16xf32, #tpu.memory_space<vmem>>, vector<1x4x32x16xf32>
    %160 = vector.shape_cast %159 : vector<1x4x32x16xf32> to vector<4x32x16xf32>
    %c0_197 = arith.constant 0 : index
    %c0_198 = arith.constant 0 : index
    %c256 = arith.constant 256 : index
    %161 = vector.load %arg12[%c0_197, %c0_198, %c256] : memref<4x32x576xf32, #tpu.memory_space<vmem>>, vector<4x32x16xf32>
    tpu.vector_store %arg12[%c0_197, %c0_198, %c256], %160 {strides = array<i32>} : memref<4x32x576xf32, #tpu.memory_space<vmem>>, vector<4x32x16xf32>,
    %c1_199 = arith.constant 1 : index
    %c1_200 = arith.constant 1 : index
    %c16_201 = arith.constant 16 : index
    %c0_202 = arith.constant 0 : index
    %162 = vector.load %arg11[%c1_199, %c1_200, %c16_201, %c0_202] : memref<4x6x48x16xf32, #tpu.memory_space<vmem>>, vector<1x4x32x16xf32>
    %163 = vector.shape_cast %162 : vector<1x4x32x16xf32> to vector<4x32x16xf32>
    %c0_203 = arith.constant 0 : index
    %c0_204 = arith.constant 0 : index
    %c272 = arith.constant 272 : index
    %164 = vector.load %arg12[%c0_203, %c0_204, %c272] : memref<4x32x576xf32, #tpu.memory_space<vmem>>, vector<4x32x16xf32>
    tpu.vector_store %arg12[%c0_203, %c0_204, %c272], %163 {strides = array<i32>} : memref<4x32x576xf32, #tpu.memory_space<vmem>>, vector<4x32x16xf32>,
    %c2_205 = arith.constant 2 : index
    %c1_206 = arith.constant 1 : index
    %c0_207 = arith.constant 0 : index
    %c0_208 = arith.constant 0 : index
    %165 = vector.load %arg11[%c2_205, %c1_206, %c0_207, %c0_208] : memref<4x6x48x16xf32, #tpu.memory_space<vmem>>, vector<1x4x32x16xf32>
    %166 = vector.shape_cast %165 : vector<1x4x32x16xf32> to vector<4x32x16xf32>
    %c0_209 = arith.constant 0 : index
    %c0_210 = arith.constant 0 : index
    %c288 = arith.constant 288 : index
    %167 = vector.load %arg12[%c0_209, %c0_210, %c288] : memref<4x32x576xf32, #tpu.memory_space<vmem>>, vector<4x32x16xf32>
    tpu.vector_store %arg12[%c0_209, %c0_210, %c288], %166 {strides = array<i32>} : memref<4x32x576xf32, #tpu.memory_space<vmem>>, vector<4x32x16xf32>,
    %c3_211 = arith.constant 3 : index
    %c1_212 = arith.constant 1 : index
    %c0_213 = arith.constant 0 : index
    %c0_214 = arith.constant 0 : index
    %168 = vector.load %arg11[%c3_211, %c1_212, %c0_213, %c0_214] : memref<4x6x48x16xf32, #tpu.memory_space<vmem>>, vector<1x4x32x16xf32>
    %169 = vector.shape_cast %168 : vector<1x4x32x16xf32> to vector<4x32x16xf32>
    %c0_215 = arith.constant 0 : index
    %c0_216 = arith.constant 0 : index
    %c304 = arith.constant 304 : index
    %170 = vector.load %arg12[%c0_215, %c0_216, %c304] : memref<4x32x576xf32, #tpu.memory_space<vmem>>, vector<4x32x16xf32>
    tpu.vector_store %arg12[%c0_215, %c0_216, %c304], %169 {strides = array<i32>} : memref<4x32x576xf32, #tpu.memory_space<vmem>>, vector<4x32x16xf32>,
    %c2_217 = arith.constant 2 : index
    %c1_218 = arith.constant 1 : index
    %c8_219 = arith.constant 8 : index
    %c0_220 = arith.constant 0 : index
    %171 = vector.load %arg11[%c2_217, %c1_218, %c8_219, %c0_220] : memref<4x6x48x16xf32, #tpu.memory_space<vmem>>, vector<1x4x32x16xf32>
    %172 = vector.shape_cast %171 : vector<1x4x32x16xf32> to vector<4x32x16xf32>
    %c0_221 = arith.constant 0 : index
    %c0_222 = arith.constant 0 : index
    %c320 = arith.constant 320 : index
    %173 = vector.load %arg12[%c0_221, %c0_222, %c320] : memref<4x32x576xf32, #tpu.memory_space<vmem>>, vector<4x32x16xf32>
    tpu.vector_store %arg12[%c0_221, %c0_222, %c320], %172 {strides = array<i32>} : memref<4x32x576xf32, #tpu.memory_space<vmem>>, vector<4x32x16xf32>,
    %c3_223 = arith.constant 3 : index
    %c1_224 = arith.constant 1 : index
    %c8_225 = arith.constant 8 : index
    %c0_226 = arith.constant 0 : index
    %174 = vector.load %arg11[%c3_223, %c1_224, %c8_225, %c0_226] : memref<4x6x48x16xf32, #tpu.memory_space<vmem>>, vector<1x4x32x16xf32>
    %175 = vector.shape_cast %174 : vector<1x4x32x16xf32> to vector<4x32x16xf32>
    %c0_227 = arith.constant 0 : index
    %c0_228 = arith.constant 0 : index
    %c336 = arith.constant 336 : index
    %176 = vector.load %arg12[%c0_227, %c0_228, %c336] : memref<4x32x576xf32, #tpu.memory_space<vmem>>, vector<4x32x16xf32>
    tpu.vector_store %arg12[%c0_227, %c0_228, %c336], %175 {strides = array<i32>} : memref<4x32x576xf32, #tpu.memory_space<vmem>>, vector<4x32x16xf32>,
    %c2_229 = arith.constant 2 : index
    %c1_230 = arith.constant 1 : index
    %c16_231 = arith.constant 16 : index
    %c0_232 = arith.constant 0 : index
    %177 = vector.load %arg11[%c2_229, %c1_230, %c16_231, %c0_232] : memref<4x6x48x16xf32, #tpu.memory_space<vmem>>, vector<1x4x32x16xf32>
    %178 = vector.shape_cast %177 : vector<1x4x32x16xf32> to vector<4x32x16xf32>
    %c0_233 = arith.constant 0 : index
    %c0_234 = arith.constant 0 : index
    %c352 = arith.constant 352 : index
    %179 = vector.load %arg12[%c0_233, %c0_234, %c352] : memref<4x32x576xf32, #tpu.memory_space<vmem>>, vector<4x32x16xf32>
    tpu.vector_store %arg12[%c0_233, %c0_234, %c352], %178 {strides = array<i32>} : memref<4x32x576xf32, #tpu.memory_space<vmem>>, vector<4x32x16xf32>,
    %c3_235 = arith.constant 3 : index
    %c1_236 = arith.constant 1 : index
    %c16_237 = arith.constant 16 : index
    %c0_238 = arith.constant 0 : index
    %180 = vector.load %arg11[%c3_235, %c1_236, %c16_237, %c0_238] : memref<4x6x48x16xf32, #tpu.memory_space<vmem>>, vector<1x4x32x16xf32>
    %181 = vector.shape_cast %180 : vector<1x4x32x16xf32> to vector<4x32x16xf32>
    %c0_239 = arith.constant 0 : index
    %c0_240 = arith.constant 0 : index
    %c368 = arith.constant 368 : index
    %182 = vector.load %arg12[%c0_239, %c0_240, %c368] : memref<4x32x576xf32, #tpu.memory_space<vmem>>, vector<4x32x16xf32>
    tpu.vector_store %arg12[%c0_239, %c0_240, %c368], %181 {strides = array<i32>} : memref<4x32x576xf32, #tpu.memory_space<vmem>>, vector<4x32x16xf32>,
    %c0_241 = arith.constant 0 : index
    %c2_242 = arith.constant 2 : index
    %c0_243 = arith.constant 0 : index
    %c0_244 = arith.constant 0 : index
    %183 = vector.load %arg11[%c0_241, %c2_242, %c0_243, %c0_244] : memref<4x6x48x16xf32, #tpu.memory_space<vmem>>, vector<1x4x32x16xf32>
    %184 = vector.shape_cast %183 : vector<1x4x32x16xf32> to vector<4x32x16xf32>
    %c0_245 = arith.constant 0 : index
    %c0_246 = arith.constant 0 : index
    %c384 = arith.constant 384 : index
    %185 = vector.load %arg12[%c0_245, %c0_246, %c384] : memref<4x32x576xf32, #tpu.memory_space<vmem>>, vector<4x32x16xf32>
    tpu.vector_store %arg12[%c0_245, %c0_246, %c384], %184 {strides = array<i32>} : memref<4x32x576xf32, #tpu.memory_space<vmem>>, vector<4x32x16xf32>,
    %c1_247 = arith.constant 1 : index
    %c2_248 = arith.constant 2 : index
    %c0_249 = arith.constant 0 : index
    %c0_250 = arith.constant 0 : index
    %186 = vector.load %arg11[%c1_247, %c2_248, %c0_249, %c0_250] : memref<4x6x48x16xf32, #tpu.memory_space<vmem>>, vector<1x4x32x16xf32>
    %187 = vector.shape_cast %186 : vector<1x4x32x16xf32> to vector<4x32x16xf32>
    %c0_251 = arith.constant 0 : index
    %c0_252 = arith.constant 0 : index
    %c400 = arith.constant 400 : index
    %188 = vector.load %arg12[%c0_251, %c0_252, %c400] : memref<4x32x576xf32, #tpu.memory_space<vmem>>, vector<4x32x16xf32>
    tpu.vector_store %arg12[%c0_251, %c0_252, %c400], %187 {strides = array<i32>} : memref<4x32x576xf32, #tpu.memory_space<vmem>>, vector<4x32x16xf32>,
    %c0_253 = arith.constant 0 : index
    %c2_254 = arith.constant 2 : index
    %c8_255 = arith.constant 8 : index
    %c0_256 = arith.constant 0 : index
    %189 = vector.load %arg11[%c0_253, %c2_254, %c8_255, %c0_256] : memref<4x6x48x16xf32, #tpu.memory_space<vmem>>, vector<1x4x32x16xf32>
    %190 = vector.shape_cast %189 : vector<1x4x32x16xf32> to vector<4x32x16xf32>
    %c0_257 = arith.constant 0 : index
    %c0_258 = arith.constant 0 : index
    %c416 = arith.constant 416 : index
    %191 = vector.load %arg12[%c0_257, %c0_258, %c416] : memref<4x32x576xf32, #tpu.memory_space<vmem>>, vector<4x32x16xf32>
    tpu.vector_store %arg12[%c0_257, %c0_258, %c416], %190 {strides = array<i32>} : memref<4x32x576xf32, #tpu.memory_space<vmem>>, vector<4x32x16xf32>,
    %c1_259 = arith.constant 1 : index
    %c2_260 = arith.constant 2 : index
    %c8_261 = arith.constant 8 : index
    %c0_262 = arith.constant 0 : index
    %192 = vector.load %arg11[%c1_259, %c2_260, %c8_261, %c0_262] : memref<4x6x48x16xf32, #tpu.memory_space<vmem>>, vector<1x4x32x16xf32>
    %193 = vector.shape_cast %192 : vector<1x4x32x16xf32> to vector<4x32x16xf32>
    %c0_263 = arith.constant 0 : index
    %c0_264 = arith.constant 0 : index
    %c432 = arith.constant 432 : index
    %194 = vector.load %arg12[%c0_263, %c0_264, %c432] : memref<4x32x576xf32, #tpu.memory_space<vmem>>, vector<4x32x16xf32>
    tpu.vector_store %arg12[%c0_263, %c0_264, %c432], %193 {strides = array<i32>} : memref<4x32x576xf32, #tpu.memory_space<vmem>>, vector<4x32x16xf32>,
    %c0_265 = arith.constant 0 : index
    %c2_266 = arith.constant 2 : index
    %c16_267 = arith.constant 16 : index
    %c0_268 = arith.constant 0 : index
    %195 = vector.load %arg11[%c0_265, %c2_266, %c16_267, %c0_268] : memref<4x6x48x16xf32, #tpu.memory_space<vmem>>, vector<1x4x32x16xf32>
    %196 = vector.shape_cast %195 : vector<1x4x32x16xf32> to vector<4x32x16xf32>
    %c0_269 = arith.constant 0 : index
    %c0_270 = arith.constant 0 : index
    %c448 = arith.constant 448 : index
    %197 = vector.load %arg12[%c0_269, %c0_270, %c448] : memref<4x32x576xf32, #tpu.memory_space<vmem>>, vector<4x32x16xf32>
    tpu.vector_store %arg12[%c0_269, %c0_270, %c448], %196 {strides = array<i32>} : memref<4x32x576xf32, #tpu.memory_space<vmem>>, vector<4x32x16xf32>,
    %c1_271 = arith.constant 1 : index
    %c2_272 = arith.constant 2 : index
    %c16_273 = arith.constant 16 : index
    %c0_274 = arith.constant 0 : index
    %198 = vector.load %arg11[%c1_271, %c2_272, %c16_273, %c0_274] : memref<4x6x48x16xf32, #tpu.memory_space<vmem>>, vector<1x4x32x16xf32>
    %199 = vector.shape_cast %198 : vector<1x4x32x16xf32> to vector<4x32x16xf32>
    %c0_275 = arith.constant 0 : index
    %c0_276 = arith.constant 0 : index
    %c464 = arith.constant 464 : index
    %200 = vector.load %arg12[%c0_275, %c0_276, %c464] : memref<4x32x576xf32, #tpu.memory_space<vmem>>, vector<4x32x16xf32>
    tpu.vector_store %arg12[%c0_275, %c0_276, %c464], %199 {strides = array<i32>} : memref<4x32x576xf32, #tpu.memory_space<vmem>>, vector<4x32x16xf32>,
    %c2_277 = arith.constant 2 : index
    %c2_278 = arith.constant 2 : index
    %c0_279 = arith.constant 0 : index
    %c0_280 = arith.constant 0 : index
    %201 = vector.load %arg11[%c2_277, %c2_278, %c0_279, %c0_280] : memref<4x6x48x16xf32, #tpu.memory_space<vmem>>, vector<1x4x32x16xf32>
    %202 = vector.shape_cast %201 : vector<1x4x32x16xf32> to vector<4x32x16xf32>
    %c0_281 = arith.constant 0 : index
    %c0_282 = arith.constant 0 : index
    %c480 = arith.constant 480 : index
    %203 = vector.load %arg12[%c0_281, %c0_282, %c480] : memref<4x32x576xf32, #tpu.memory_space<vmem>>, vector<4x32x16xf32>
    tpu.vector_store %arg12[%c0_281, %c0_282, %c480], %202 {strides = array<i32>} : memref<4x32x576xf32, #tpu.memory_space<vmem>>, vector<4x32x16xf32>,
    %c3_283 = arith.constant 3 : index
    %c2_284 = arith.constant 2 : index
    %c0_285 = arith.constant 0 : index
    %c0_286 = arith.constant 0 : index
    %204 = vector.load %arg11[%c3_283, %c2_284, %c0_285, %c0_286] : memref<4x6x48x16xf32, #tpu.memory_space<vmem>>, vector<1x4x32x16xf32>
    %205 = vector.shape_cast %204 : vector<1x4x32x16xf32> to vector<4x32x16xf32>
    %c0_287 = arith.constant 0 : index
    %c0_288 = arith.constant 0 : index
    %c496 = arith.constant 496 : index
    %206 = vector.load %arg12[%c0_287, %c0_288, %c496] : memref<4x32x576xf32, #tpu.memory_space<vmem>>, vector<4x32x16xf32>
    tpu.vector_store %arg12[%c0_287, %c0_288, %c496], %205 {strides = array<i32>} : memref<4x32x576xf32, #tpu.memory_space<vmem>>, vector<4x32x16xf32>,
    %c2_289 = arith.constant 2 : index
    %c2_290 = arith.constant 2 : index
    %c8_291 = arith.constant 8 : index
    %c0_292 = arith.constant 0 : index
    %207 = vector.load %arg11[%c2_289, %c2_290, %c8_291, %c0_292] : memref<4x6x48x16xf32, #tpu.memory_space<vmem>>, vector<1x4x32x16xf32>
    %208 = vector.shape_cast %207 : vector<1x4x32x16xf32> to vector<4x32x16xf32>
    %c0_293 = arith.constant 0 : index
    %c0_294 = arith.constant 0 : index
    %c512 = arith.constant 512 : index
    %209 = vector.load %arg12[%c0_293, %c0_294, %c512] : memref<4x32x576xf32, #tpu.memory_space<vmem>>, vector<4x32x16xf32>
    tpu.vector_store %arg12[%c0_293, %c0_294, %c512], %208 {strides = array<i32>} : memref<4x32x576xf32, #tpu.memory_space<vmem>>, vector<4x32x16xf32>,
    %c3_295 = arith.constant 3 : index
    %c2_296 = arith.constant 2 : index
    %c8_297 = arith.constant 8 : index
    %c0_298 = arith.constant 0 : index
    %210 = vector.load %arg11[%c3_295, %c2_296, %c8_297, %c0_298] : memref<4x6x48x16xf32, #tpu.memory_space<vmem>>, vector<1x4x32x16xf32>
    %211 = vector.shape_cast %210 : vector<1x4x32x16xf32> to vector<4x32x16xf32>
    %c0_299 = arith.constant 0 : index
    %c0_300 = arith.constant 0 : index
    %c528 = arith.constant 528 : index
    %212 = vector.load %arg12[%c0_299, %c0_300, %c528] : memref<4x32x576xf32, #tpu.memory_space<vmem>>, vector<4x32x16xf32>
    tpu.vector_store %arg12[%c0_299, %c0_300, %c528], %211 {strides = array<i32>} : memref<4x32x576xf32, #tpu.memory_space<vmem>>, vector<4x32x16xf32>,
    %c2_301 = arith.constant 2 : index
    %c2_302 = arith.constant 2 : index
    %c16_303 = arith.constant 16 : index
    %c0_304 = arith.constant 0 : index
    %213 = vector.load %arg11[%c2_301, %c2_302, %c16_303, %c0_304] : memref<4x6x48x16xf32, #tpu.memory_space<vmem>>, vector<1x4x32x16xf32>
    %214 = vector.shape_cast %213 : vector<1x4x32x16xf32> to vector<4x32x16xf32>
    %c0_305 = arith.constant 0 : index
    %c0_306 = arith.constant 0 : index
    %c544 = arith.constant 544 : index
    %215 = vector.load %arg12[%c0_305, %c0_306, %c544] : memref<4x32x576xf32, #tpu.memory_space<vmem>>, vector<4x32x16xf32>
    tpu.vector_store %arg12[%c0_305, %c0_306, %c544], %214 {strides = array<i32>} : memref<4x32x576xf32, #tpu.memory_space<vmem>>, vector<4x32x16xf32>,
    %c3_307 = arith.constant 3 : index
    %c2_308 = arith.constant 2 : index
    %c16_309 = arith.constant 16 : index
    %c0_310 = arith.constant 0 : index
    %216 = vector.load %arg11[%c3_307, %c2_308, %c16_309, %c0_310] : memref<4x6x48x16xf32, #tpu.memory_space<vmem>>, vector<1x4x32x16xf32>
    %217 = vector.shape_cast %216 : vector<1x4x32x16xf32> to vector<4x32x16xf32>
    %c0_311 = arith.constant 0 : index
    %c0_312 = arith.constant 0 : index
    %c560 = arith.constant 560 : index
    %218 = vector.load %arg12[%c0_311, %c0_312, %c560] : memref<4x32x576xf32, #tpu.memory_space<vmem>>, vector<4x32x16xf32>
    tpu.vector_store %arg12[%c0_311, %c0_312, %c560], %217 {strides = array<i32>} : memref<4x32x576xf32, #tpu.memory_space<vmem>>, vector<4x32x16xf32>,
    %c0_313 = arith.constant 0 : index
    %c0_314 = arith.constant 0 : index
    %c0_315 = arith.constant 0 : index
    %219 = vector.load %arg12[%c0_313, %c0_314, %c0_315] : memref<4x32x576xf32, #tpu.memory_space<vmem>>, vector<1x32x576xf32>
    %220 = vector.shape_cast %219 : vector<1x32x576xf32> to vector<32x576xf32>
    %c1_316 = arith.constant 1 : index
    %c0_317 = arith.constant 0 : index
    %c0_318 = arith.constant 0 : index
    %221 = vector.load %arg12[%c1_316, %c0_317, %c0_318] : memref<4x32x576xf32, #tpu.memory_space<vmem>>, vector<1x32x576xf32>
    %222 = vector.shape_cast %221 : vector<1x32x576xf32> to vector<32x576xf32>
    %c2_319 = arith.constant 2 : index
    %c0_320 = arith.constant 0 : index
    %c0_321 = arith.constant 0 : index
    %223 = vector.load %arg12[%c2_319, %c0_320, %c0_321] : memref<4x32x576xf32, #tpu.memory_space<vmem>>, vector<1x32x576xf32>
    %224 = vector.shape_cast %223 : vector<1x32x576xf32> to vector<32x576xf32>
    %c3_322 = arith.constant 3 : index
    %c0_323 = arith.constant 0 : index
    %c0_324 = arith.constant 0 : index
    %225 = vector.load %arg12[%c3_322, %c0_323, %c0_324] : memref<4x32x576xf32, #tpu.memory_space<vmem>>, vector<1x32x576xf32>
    %226 = vector.shape_cast %225 : vector<1x32x576xf32> to vector<32x576xf32>
    %227 = tpu.concatenate %220, %222, %224, %226 in 0 : vector<32x576xf32>, vector<32x576xf32>, vector<32x576xf32>, vector<32x576xf32> -> vector<128x576xf32>
    %c0_325 = arith.constant 0 : index
    %c0_326 = arith.constant 0 : index
    %228 = vector.load %arg4[%c0_325, %c0_326] : memref<576x128xf32, #tpu.memory_space<vmem>>, vector<576x128xf32>
    %cst_327 = arith.constant dense<0.000000e+00> : vector<128x128xf32>
    %229 = tpu.matmul %227, %228, %cst_327 {dimension_numbers = #tpu.dot_dimension_numbers<[1], [0], [0], [1], [0, 0, 1, 1], [], []>} : vector<128x576xf32>, vector<576x128xf32>, vector<128x128xf32> -> vector<128x128xf32>
    %230 = vector.extract_strided_slice %229 {offsets = [0, 0], sizes = [128, 32], strides = [1, 1]} : vector<128x128xf32> to vector<128x32xf32>
    %231 = vector.extract_strided_slice %229 {offsets = [0, 32], sizes = [128, 32], strides = [1, 1]} : vector<128x128xf32> to vector<128x32xf32>
    %232 = arith.maximumf %230, %231 : vector<128x32xf32>
    %233 = vector.extract_strided_slice %229 {offsets = [0, 64], sizes = [128, 32], strides = [1, 1]} : vector<128x128xf32> to vector<128x32xf32>
    %234 = vector.extract_strided_slice %229 {offsets = [0, 96], sizes = [128, 32], strides = [1, 1]} : vector<128x128xf32> to vector<128x32xf32>
    %235 = arith.maximumf %233, %234 : vector<128x32xf32>
    %236 = arith.maximumf %232, %235 : vector<128x32xf32>
    %c0_328 = arith.constant 0 : index
    %c0_329 = arith.constant 0 : index
    %237 = vector.load %arg5[%c0_328, %c0_329] : memref<1x32xf32, #tpu.memory_space<vmem>>, vector<1x32xf32>
    %238 = vector.broadcast %237 : vector<1x32xf32> to vector<128x32xf32>
    %239 = arith.addf %236, %238 : vector<128x32xf32>
    %cst_330 = arith.constant 0.000000e+00 : f32
    %240 = vector.broadcast %cst_330 : f32 to vector<128x32xf32>
    %241 = arith.maximumf %239, %240 : vector<128x32xf32>
    %242 = vector.extract_strided_slice %241 {offsets = [0, 0], sizes = [8, 32], strides = [1, 1]} : vector<128x32xf32> to vector<8x32xf32>
    %c0_331 = arith.constant 0 : index
    %c0_332 = arith.constant 0 : index
    %243 = vector.load %arg13[%c0_331, %c0_332] : memref<8x512xf32, #tpu.memory_space<vmem>>, vector<8x32xf32>
    tpu.vector_store %arg13[%c0_331, %c0_332], %242 {strides = array<i32>} : memref<8x512xf32, #tpu.memory_space<vmem>>, vector<8x32xf32>,
    %244 = vector.extract_strided_slice %241 {offsets = [8, 0], sizes = [8, 32], strides = [1, 1]} : vector<128x32xf32> to vector<8x32xf32>
    %c0_333 = arith.constant 0 : index
    %c32_334 = arith.constant 32 : index
    %245 = vector.load %arg13[%c0_333, %c32_334] : memref<8x512xf32, #tpu.memory_space<vmem>>, vector<8x32xf32>
    tpu.vector_store %arg13[%c0_333, %c32_334], %244 {strides = array<i32>} : memref<8x512xf32, #tpu.memory_space<vmem>>, vector<8x32xf32>,
    %246 = vector.extract_strided_slice %241 {offsets = [16, 0], sizes = [8, 32], strides = [1, 1]} : vector<128x32xf32> to vector<8x32xf32>
    %c0_335 = arith.constant 0 : index
    %c64_336 = arith.constant 64 : index
    %247 = vector.load %arg13[%c0_335, %c64_336] : memref<8x512xf32, #tpu.memory_space<vmem>>, vector<8x32xf32>
    tpu.vector_store %arg13[%c0_335, %c64_336], %246 {strides = array<i32>} : memref<8x512xf32, #tpu.memory_space<vmem>>, vector<8x32xf32>,
    %248 = vector.extract_strided_slice %241 {offsets = [24, 0], sizes = [8, 32], strides = [1, 1]} : vector<128x32xf32> to vector<8x32xf32>
    %c0_337 = arith.constant 0 : index
    %c96_338 = arith.constant 96 : index
    %249 = vector.load %arg13[%c0_337, %c96_338] : memref<8x512xf32, #tpu.memory_space<vmem>>, vector<8x32xf32>
    tpu.vector_store %arg13[%c0_337, %c96_338], %248 {strides = array<i32>} : memref<8x512xf32, #tpu.memory_space<vmem>>, vector<8x32xf32>,
    %250 = vector.extract_strided_slice %241 {offsets = [32, 0], sizes = [8, 32], strides = [1, 1]} : vector<128x32xf32> to vector<8x32xf32>
    %c0_339 = arith.constant 0 : index
    %c128_340 = arith.constant 128 : index
    %251 = vector.load %arg13[%c0_339, %c128_340] : memref<8x512xf32, #tpu.memory_space<vmem>>, vector<8x32xf32>
    tpu.vector_store %arg13[%c0_339, %c128_340], %250 {strides = array<i32>} : memref<8x512xf32, #tpu.memory_space<vmem>>, vector<8x32xf32>,
    %252 = vector.extract_strided_slice %241 {offsets = [40, 0], sizes = [8, 32], strides = [1, 1]} : vector<128x32xf32> to vector<8x32xf32>
    %c0_341 = arith.constant 0 : index
    %c160_342 = arith.constant 160 : index
    %253 = vector.load %arg13[%c0_341, %c160_342] : memref<8x512xf32, #tpu.memory_space<vmem>>, vector<8x32xf32>
    tpu.vector_store %arg13[%c0_341, %c160_342], %252 {strides = array<i32>} : memref<8x512xf32, #tpu.memory_space<vmem>>, vector<8x32xf32>,
    %254 = vector.extract_strided_slice %241 {offsets = [48, 0], sizes = [8, 32], strides = [1, 1]} : vector<128x32xf32> to vector<8x32xf32>
    %c0_343 = arith.constant 0 : index
    %c192_344 = arith.constant 192 : index
    %255 = vector.load %arg13[%c0_343, %c192_344] : memref<8x512xf32, #tpu.memory_space<vmem>>, vector<8x32xf32>
    tpu.vector_store %arg13[%c0_343, %c192_344], %254 {strides = array<i32>} : memref<8x512xf32, #tpu.memory_space<vmem>>, vector<8x32xf32>,
    %256 = vector.extract_strided_slice %241 {offsets = [56, 0], sizes = [8, 32], strides = [1, 1]} : vector<128x32xf32> to vector<8x32xf32>
    %c0_345 = arith.constant 0 : index
    %c224_346 = arith.constant 224 : index
    %257 = vector.load %arg13[%c0_345, %c224_346] : memref<8x512xf32, #tpu.memory_space<vmem>>, vector<8x32xf32>
    tpu.vector_store %arg13[%c0_345, %c224_346], %256 {strides = array<i32>} : memref<8x512xf32, #tpu.memory_space<vmem>>, vector<8x32xf32>,
    %258 = vector.extract_strided_slice %241 {offsets = [64, 0], sizes = [8, 32], strides = [1, 1]} : vector<128x32xf32> to vector<8x32xf32>
    %c0_347 = arith.constant 0 : index
    %c256_348 = arith.constant 256 : index
    %259 = vector.load %arg13[%c0_347, %c256_348] : memref<8x512xf32, #tpu.memory_space<vmem>>, vector<8x32xf32>
    tpu.vector_store %arg13[%c0_347, %c256_348], %258 {strides = array<i32>} : memref<8x512xf32, #tpu.memory_space<vmem>>, vector<8x32xf32>,
    %260 = vector.extract_strided_slice %241 {offsets = [72, 0], sizes = [8, 32], strides = [1, 1]} : vector<128x32xf32> to vector<8x32xf32>
    %c0_349 = arith.constant 0 : index
    %c288_350 = arith.constant 288 : index
    %261 = vector.load %arg13[%c0_349, %c288_350] : memref<8x512xf32, #tpu.memory_space<vmem>>, vector<8x32xf32>
    tpu.vector_store %arg13[%c0_349, %c288_350], %260 {strides = array<i32>} : memref<8x512xf32, #tpu.memory_space<vmem>>, vector<8x32xf32>,
    %262 = vector.extract_strided_slice %241 {offsets = [80, 0], sizes = [8, 32], strides = [1, 1]} : vector<128x32xf32> to vector<8x32xf32>
    %c0_351 = arith.constant 0 : index
    %c320_352 = arith.constant 320 : index
    %263 = vector.load %arg13[%c0_351, %c320_352] : memref<8x512xf32, #tpu.memory_space<vmem>>, vector<8x32xf32>
    tpu.vector_store %arg13[%c0_351, %c320_352], %262 {strides = array<i32>} : memref<8x512xf32, #tpu.memory_space<vmem>>, vector<8x32xf32>,
    %264 = vector.extract_strided_slice %241 {offsets = [88, 0], sizes = [8, 32], strides = [1, 1]} : vector<128x32xf32> to vector<8x32xf32>
    %c0_353 = arith.constant 0 : index
    %c352_354 = arith.constant 352 : index
    %265 = vector.load %arg13[%c0_353, %c352_354] : memref<8x512xf32, #tpu.memory_space<vmem>>, vector<8x32xf32>
    tpu.vector_store %arg13[%c0_353, %c352_354], %264 {strides = array<i32>} : memref<8x512xf32, #tpu.memory_space<vmem>>, vector<8x32xf32>,
    %266 = vector.extract_strided_slice %241 {offsets = [96, 0], sizes = [8, 32], strides = [1, 1]} : vector<128x32xf32> to vector<8x32xf32>
    %c0_355 = arith.constant 0 : index
    %c384_356 = arith.constant 384 : index
    %267 = vector.load %arg13[%c0_355, %c384_356] : memref<8x512xf32, #tpu.memory_space<vmem>>, vector<8x32xf32>
    tpu.vector_store %arg13[%c0_355, %c384_356], %266 {strides = array<i32>} : memref<8x512xf32, #tpu.memory_space<vmem>>, vector<8x32xf32>,
    %268 = vector.extract_strided_slice %241 {offsets = [104, 0], sizes = [8, 32], strides = [1, 1]} : vector<128x32xf32> to vector<8x32xf32>
    %c0_357 = arith.constant 0 : index
    %c416_358 = arith.constant 416 : index
    %269 = vector.load %arg13[%c0_357, %c416_358] : memref<8x512xf32, #tpu.memory_space<vmem>>, vector<8x32xf32>
    tpu.vector_store %arg13[%c0_357, %c416_358], %268 {strides = array<i32>} : memref<8x512xf32, #tpu.memory_space<vmem>>, vector<8x32xf32>,
    %270 = vector.extract_strided_slice %241 {offsets = [112, 0], sizes = [8, 32], strides = [1, 1]} : vector<128x32xf32> to vector<8x32xf32>
    %c0_359 = arith.constant 0 : index
    %c448_360 = arith.constant 448 : index
    %271 = vector.load %arg13[%c0_359, %c448_360] : memref<8x512xf32, #tpu.memory_space<vmem>>, vector<8x32xf32>
    tpu.vector_store %arg13[%c0_359, %c448_360], %270 {strides = array<i32>} : memref<8x512xf32, #tpu.memory_space<vmem>>, vector<8x32xf32>,
    %272 = vector.extract_strided_slice %241 {offsets = [120, 0], sizes = [8, 32], strides = [1, 1]} : vector<128x32xf32> to vector<8x32xf32>
    %c0_361 = arith.constant 0 : index
    %c480_362 = arith.constant 480 : index
    %273 = vector.load %arg13[%c0_361, %c480_362] : memref<8x512xf32, #tpu.memory_space<vmem>>, vector<8x32xf32>
    tpu.vector_store %arg13[%c0_361, %c480_362], %272 {strides = array<i32>} : memref<8x512xf32, #tpu.memory_space<vmem>>, vector<8x32xf32>,
    %c0_363 = arith.constant 0 : index
    %c0_364 = arith.constant 0 : index
    %274 = vector.load %arg13[%c0_363, %c0_364] : memref<8x512xf32, #tpu.memory_space<vmem>>, vector<8x512xf32>
    %c0_365 = arith.constant 0 : index
    %c0_366 = arith.constant 0 : index
    %275 = vector.load %arg6[%c0_365, %c0_366] : memref<512x50xf32, #tpu.memory_space<vmem>>, vector<512x50xf32>
    %cst_367 = arith.constant dense<0.000000e+00> : vector<8x50xf32>
    %276 = tpu.matmul %274, %275, %cst_367 {dimension_numbers = #tpu.dot_dimension_numbers<[1], [0], [0], [1], [0, 0, 1, 1], [], []>} : vector<8x512xf32>, vector<512x50xf32>, vector<8x50xf32> -> vector<8x50xf32>
    %c0_368 = arith.constant 0 : index
    %c0_369 = arith.constant 0 : index
    %277 = vector.load %arg7[%c0_368, %c0_369] : memref<1x50xf32, #tpu.memory_space<vmem>>, vector<1x50xf32>
    %278 = vector.broadcast %277 : vector<1x50xf32> to vector<8x50xf32>
    %279 = arith.addf %276, %278 : vector<8x50xf32>
    %cst_370 = arith.constant 0.000000e+00 : f32
    %280 = vector.broadcast %cst_370 : f32 to vector<8x50xf32>
    %281 = arith.maximumf %279, %280 : vector<8x50xf32>
    %c0_371 = arith.constant 0 : index
    %c0_372 = arith.constant 0 : index
    %282 = vector.load %arg8[%c0_371, %c0_372] : memref<50x10xf32, #tpu.memory_space<vmem>>, vector<50x10xf32>
    %cst_373 = arith.constant dense<0.000000e+00> : vector<8x10xf32>
    %283 = tpu.matmul %281, %282, %cst_373 {dimension_numbers = #tpu.dot_dimension_numbers<[1], [0], [0], [1], [0, 0, 1, 1], [], []>} : vector<8x50xf32>, vector<50x10xf32>, vector<8x10xf32> -> vector<8x10xf32>
    %c0_374 = arith.constant 0 : index
    %c0_375 = arith.constant 0 : index
    %284 = vector.load %arg9[%c0_374, %c0_375] : memref<1x10xf32, #tpu.memory_space<vmem>>, vector<1x10xf32>
    %285 = vector.broadcast %284 : vector<1x10xf32> to vector<8x10xf32>
    %286 = arith.addf %283, %285 : vector<8x10xf32>
    %cst_376 = arith.constant dense<0xFF800000> : vector<8xf32>
    %287 = vector.multi_reduction <maximumf>, %286, %cst_376 [1] : vector<8x10xf32> to vector<8xf32>
    %288 = vector.shape_cast %287 : vector<8xf32> to vector<8x1xf32>
    %289 = vector.broadcast %288 : vector<8x1xf32> to vector<8x10xf32>
    %290 = arith.subf %286, %289 : vector<8x10xf32>
    %291 = math.exp %290 : vector<8x10xf32>
    %cst_377 = arith.constant dense<0.000000e+00> : vector<8xf32>
    %292 = vector.multi_reduction <add>, %291, %cst_377 [1] : vector<8x10xf32> to vector<8xf32>
    %293 = vector.shape_cast %292 : vector<8xf32> to vector<8x1xf32>
    %294 = math.log %293 : vector<8x1xf32>
    %295 = arith.addf %288, %294 : vector<8x1xf32>
    %296 = vector.broadcast %295 : vector<8x1xf32> to vector<8x10xf32>
    %297 = arith.subf %286, %296 : vector<8x10xf32>
    %c0_378 = arith.constant 0 : index
    %c0_379 = arith.constant 0 : index
    %298 = vector.load %arg10[%c0_378, %c0_379] : memref<8x10xf32, #tpu.memory_space<vmem>>, vector<8x10xf32>
    tpu.vector_store %arg10[%c0_378, %c0_379], %297 {strides = array<i32>} : memref<8x10xf32, #tpu.memory_space<vmem>>, vector<8x10xf32>,
    return
  }
  func.func @transform_0(%arg0: i32) -> (i32, i32) {
    %c0_i32 = arith.constant 0 : i32
    %c0_i32_0 = arith.constant 0 : i32
    return %arg0, %c0_i32 : i32, i32
  }
  func.func @transform_1(%arg0: i32) -> (i32, i32) {
    %c0_i32 = arith.constant 0 : i32
    %c0_i32_0 = arith.constant 0 : i32
    %c0_i32_1 = arith.constant 0 : i32
    return %c0_i32, %c0_i32_0 : i32, i32
  }
  func.func @transform_2(%arg0: i32) -> (i32, i32) {
    %c0_i32 = arith.constant 0 : i32
    %c0_i32_0 = arith.constant 0 : i32
    %c0_i32_1 = arith.constant 0 : i32
    return %c0_i32, %c0_i32_0 : i32, i32
  }
  func.func @transform_3(%arg0: i32) -> (i32, i32) {
    %c0_i32 = arith.constant 0 : i32
    %c0_i32_0 = arith.constant 0 : i32
    %c0_i32_1 = arith.constant 0 : i32
    return %c0_i32, %c0_i32_0 : i32, i32
  }
  func.func @transform_4(%arg0: i32) -> (i32, i32) {
    %c0_i32 = arith.constant 0 : i32
    %c0_i32_0 = arith.constant 0 : i32
    %c0_i32_1 = arith.constant 0 : i32
    return %c0_i32, %c0_i32_0 : i32, i32
  }
  func.func @transform_5(%arg0: i32) -> (i32, i32) {
    %c0_i32 = arith.constant 0 : i32
    %c0_i32_0 = arith.constant 0 : i32
    %c0_i32_1 = arith.constant 0 : i32
    return %c0_i32, %c0_i32_0 : i32, i32
  }
  func.func @transform_6(%arg0: i32) -> (i32, i32) {
    %c0_i32 = arith.constant 0 : i32
    %c0_i32_0 = arith.constant 0 : i32
    %c0_i32_1 = arith.constant 0 : i32
    return %c0_i32, %c0_i32_0 : i32, i32
  }
  func.func @transform_7(%arg0: i32) -> (i32, i32) {
    %c0_i32 = arith.constant 0 : i32
    %c0_i32_0 = arith.constant 0 : i32
    %c0_i32_1 = arith.constant 0 : i32
    return %c0_i32, %c0_i32_0 : i32, i32
  }
  func.func @transform_8(%arg0: i32) -> (i32, i32) {
    %c0_i32 = arith.constant 0 : i32
    %c0_i32_0 = arith.constant 0 : i32
    %c0_i32_1 = arith.constant 0 : i32
    return %c0_i32, %c0_i32_0 : i32, i32
  }
  func.func @transform_9(%arg0: i32) -> (i32, i32) {
    %c0_i32 = arith.constant 0 : i32
    %c0_i32_0 = arith.constant 0 : i32
    return %arg0, %c0_i32 : i32, i32
  }
}

</mosaic_0001>

<llo_original>
// kernel: net_forward.1
$region0: #{net_forward.1}
  #allocation0 [shape = 'u32[]', space=smem, size = 0x4, offset = 0x4, fixed_abs, tag = 'smem constant byte address 0x4 - core index']
  #allocation1 [shape = 'u32[72,128]{1,0:T(1,128)}', space=vmem, size = 0x9000, scoped, tag = 'internal scratch']
  #allocation2 [shape = 'f32[4,6,48,16]{3,2,1,0:T(8,128)}', space=vmem, size = 0x90000, scoped, tag = 'scratch operand']
  #allocation3 [shape = 'f32[4,32,576]{2,1,0:T(8,128)}', space=vmem, size = 0x50000, scoped, tag = 'scratch operand']
  #allocation4 [shape = 'f32[8,512]{1,0:T(8,128)}', space=vmem, size = 0x4000, scoped, tag = 'scratch operand']
  %s0 = inlined_call_operand.vmem [shape: f32[1152,36], index: 0, kind: input, shape index: {}]
  %s1 = inlined_call_operand.vmem [shape: f32[36,64], index: 1, kind: input, shape index: {}]
  %s2 = inlined_call_operand.vmem [shape: f32[1,16], index: 2, kind: input, shape index: {}]
  %s3 = inlined_call_operand.vmem [shape: f32[576,128], index: 3, kind: input, shape index: {}]
  %s4 = inlined_call_operand.vmem [shape: f32[1,32], index: 4, kind: input, shape index: {}]
  %s5 = inlined_call_operand.vmem [shape: f32[512,50], index: 5, kind: input, shape index: {}]
  %s6 = inlined_call_operand.vmem [shape: f32[1,50], index: 6, kind: input, shape index: {}]
  %s7 = inlined_call_operand.vmem [shape: f32[50,10], index: 7, kind: input, shape index: {}]
  %s8 = inlined_call_operand.vmem [shape: f32[1,10], index: 8, kind: input, shape index: {}]
  %s9 = inlined_call_operand.vmem [shape: f32[8,10], index: 9, kind: output, shape index: {}]
  %s10 = sld [smem:[#allocation0]]
  $region46: #{net_forward.1} parent=0
    _
  %s12 = ssub.s32 1, %s10
  %s13 = scalar_select 0, %s12, %s10
  // Predicated region
  $region2: #{net_forward.1} parent=0 // pred_check
    _
  $region3: #{net_forward.1} parent=0 // pred_check_branch
    %15 = sbr.rel (0) target = $region5
  $region4: #{net_forward.1} parent=0 // pred_region
    _
  $region5: #{net_forward.1} parent=0 // pred_fallthru
    _
  // Predicated region
  $region6: #{net_forward.1} parent=0 // pred_check
    _
  $region7: #{net_forward.1} parent=0 // pred_check_branch
    %17 = sbr.rel (0) target = $region9
  $region8: #{net_forward.1} parent=0 // pred_region
    _
  $region9: #{net_forward.1} parent=0 // pred_fallthru
    _
  // Predicated region
  $region10: #{net_forward.1} parent=0 // pred_check
    _
  $region11: #{net_forward.1} parent=0 // pred_check_branch
    %19 = sbr.rel (0) target = $region13
  $region12: #{net_forward.1} parent=0 // pred_region
    _
  $region13: #{net_forward.1} parent=0 // pred_fallthru
    _
  // Predicated region
  $region14: #{net_forward.1} parent=0 // pred_check
    _
  $region15: #{net_forward.1} parent=0 // pred_check_branch
    %21 = sbr.rel (0) target = $region17
  $region16: #{net_forward.1} parent=0 // pred_region
    _
  $region17: #{net_forward.1} parent=0 // pred_fallthru
    _
  // Predicated region
  $region18: #{net_forward.1} parent=0 // pred_check
    _
  $region19: #{net_forward.1} parent=0 // pred_check_branch
    %23 = sbr.rel (0) target = $region21
  $region20: #{net_forward.1} parent=0 // pred_region
    _
  $region21: #{net_forward.1} parent=0 // pred_fallthru
    _
  // Predicated region
  $region22: #{net_forward.1} parent=0 // pred_check
    _
  $region23: #{net_forward.1} parent=0 // pred_check_branch
    %25 = sbr.rel (0) target = $region25
  $region24: #{net_forward.1} parent=0 // pred_region
    _
  $region25: #{net_forward.1} parent=0 // pred_fallthru
    _
  // Predicated region
  $region26: #{net_forward.1} parent=0 // pred_check
    _
  $region27: #{net_forward.1} parent=0 // pred_check_branch
    %27 = sbr.rel (0) target = $region29
  $region28: #{net_forward.1} parent=0 // pred_region
    _
  $region29: #{net_forward.1} parent=0 // pred_fallthru
    _
  // Predicated region
  $region30: #{net_forward.1} parent=0 // pred_check
    _
  $region31: #{net_forward.1} parent=0 // pred_check_branch
    %29 = sbr.rel (0) target = $region33
  $region32: #{net_forward.1} parent=0 // pred_region
    _
  $region33: #{net_forward.1} parent=0 // pred_fallthru
    _
  // Predicated region
  $region34: #{net_forward.1} parent=0 // pred_check
    _
  $region35: #{net_forward.1} parent=0 // pred_check_branch
    %31 = sbr.rel (0) target = $region37
  $region36: #{net_forward.1} parent=0 // pred_region
    _
  $region37: #{net_forward.1} parent=0 // pred_fallthru
    _
  %v32 = vld [vmem:[%s0] sm:$0xff]
  %v33 = vld [vmem:[%s0 + $0x8] sm:$0xff]
  %v34 = vld [vmem:[%s0 + $0x10] sm:$0xff]
  %v35 = vld [vmem:[%s0 + $0x18] sm:$0xff]
  %v36 = vld [vmem:[%s0 + $0x20] sm:$0xff]
  %v37 = vld [vmem:[%s0 + $0x28] sm:$0xff]
  %v38 = vld [vmem:[%s0 + $0x30] sm:$0xff]
  %v39 = vld [vmem:[%s0 + $0x38] sm:$0xff]
  %v40 = vld [vmem:[%s0 + $0x40] sm:$0xff]
  %v41 = vld [vmem:[%s0 + $0x48] sm:$0xff]
  %v42 = vld [vmem:[%s0 + $0x50] sm:$0xff]
  %v43 = vld [vmem:[%s0 + $0x58] sm:$0xff]
  %v44 = vld [vmem:[%s0 + $0x60] sm:$0xff]
  %v45 = vld [vmem:[%s0 + $0x68] sm:$0xff]
  %v46 = vld [vmem:[%s0 + $0x70] sm:$0xff]
  %v47 = vld [vmem:[%s0 + $0x78] sm:$0xff]
  %v48 = vld [vmem:[%s0 + $0x80] sm:$0xff]
  %v49 = vld [vmem:[%s0 + $0x88] sm:$0xff]
  %v50 = vld [vmem:[%s0 + $0x90] sm:$0xff]
  %v51 = vld [vmem:[%s0 + $0x98] sm:$0xff]
  %v52 = vld [vmem:[%s0 + $0xa0] sm:$0xff]
  %v53 = vld [vmem:[%s0 + $0xa8] sm:$0xff]
  %v54 = vld [vmem:[%s0 + $0xb0] sm:$0xff]
  %v55 = vld [vmem:[%s0 + $0xb8] sm:$0xff]
  %v56 = vld [vmem:[%s0 + $0xc0] sm:$0xff]
  %v57 = vld [vmem:[%s0 + $0xc8] sm:$0xff]
  %v58 = vld [vmem:[%s0 + $0xd0] sm:$0xff]
  %v59 = vld [vmem:[%s0 + $0xd8] sm:$0xff]
  %v60 = vld [vmem:[%s0 + $0xe0] sm:$0xff]
  %v61 = vld [vmem:[%s0 + $0xe8] sm:$0xff]
  %v62 = vld [vmem:[%s0 + $0xf0] sm:$0xff]
  %v63 = vld [vmem:[%s0 + $0xf8] sm:$0xff]
  %v64 = vld [vmem:[%s0 + $0x100] sm:$0xff]
  %v65 = vld [vmem:[%s0 + $0x108] sm:$0xff]
  %v66 = vld [vmem:[%s0 + $0x110] sm:$0xff]
  %v67 = vld [vmem:[%s0 + $0x118] sm:$0xff]
  %v68 = vld [vmem:[%s0 + $0x120] sm:$0xff]
  %v69 = vld [vmem:[%s0 + $0x128] sm:$0xff]
  %v70 = vld [vmem:[%s0 + $0x130] sm:$0xff]
  %v71 = vld [vmem:[%s0 + $0x138] sm:$0xff]
  %v72 = vld [vmem:[%s0 + $0x140] sm:$0xff]
  %v73 = vld [vmem:[%s0 + $0x148] sm:$0xff]
  %v74 = vld [vmem:[%s0 + $0x150] sm:$0xff]
  %v75 = vld [vmem:[%s0 + $0x158] sm:$0xff]
  %v76 = vld [vmem:[%s0 + $0x160] sm:$0xff]
  %v77 = vld [vmem:[%s0 + $0x168] sm:$0xff]
  %v78 = vld [vmem:[%s0 + $0x170] sm:$0xff]
  %v79 = vld [vmem:[%s0 + $0x178] sm:$0xff]
  %v80 = vld [vmem:[%s0 + $0x180] sm:$0xff]
  %v81 = vld [vmem:[%s0 + $0x188] sm:$0xff]
  %v82 = vld [vmem:[%s0 + $0x190] sm:$0xff]
  %v83 = vld [vmem:[%s0 + $0x198] sm:$0xff]
  %v84 = vld [vmem:[%s0 + $0x1a0] sm:$0xff]
  %v85 = vld [vmem:[%s0 + $0x1a8] sm:$0xff]
  %v86 = vld [vmem:[%s0 + $0x1b0] sm:$0xff]
  %v87 = vld [vmem:[%s0 + $0x1b8] sm:$0xff]
  %v88 = vld [vmem:[%s0 + $0x1c0] sm:$0xff]
  %v89 = vld [vmem:[%s0 + $0x1c8] sm:$0xff]
  %v90 = vld [vmem:[%s0 + $0x1d0] sm:$0xff]
  %v91 = vld [vmem:[%s0 + $0x1d8] sm:$0xff]
  %v92 = vld [vmem:[%s0 + $0x1e0] sm:$0xff]
  %v93 = vld [vmem:[%s0 + $0x1e8] sm:$0xff]
  %v94 = vld [vmem:[%s0 + $0x1f0] sm:$0xff]
  %v95 = vld [vmem:[%s0 + $0x1f8] sm:$0xff]
  %v96 = vld [vmem:[%s0 + $0x200] sm:$0xff]
  %v97 = vld [vmem:[%s0 + $0x208] sm:$0xff]
  %v98 = vld [vmem:[%s0 + $0x210] sm:$0xff]
  %v99 = vld [vmem:[%s0 + $0x218] sm:$0xff]
  %v100 = vld [vmem:[%s0 + $0x220] sm:$0xff]
  %v101 = vld [vmem:[%s0 + $0x228] sm:$0xff]
  %v102 = vld [vmem:[%s0 + $0x230] sm:$0xff]
  %v103 = vld [vmem:[%s0 + $0x238] sm:$0xff]
  %v104 = vld [vmem:[%s0 + $0x240] sm:$0xff]
  %v105 = vld [vmem:[%s0 + $0x248] sm:$0xff]
  %v106 = vld [vmem:[%s0 + $0x250] sm:$0xff]
  %v107 = vld [vmem:[%s0 + $0x258] sm:$0xff]
  %v108 = vld [vmem:[%s0 + $0x260] sm:$0xff]
  %v109 = vld [vmem:[%s0 + $0x268] sm:$0xff]
  %v110 = vld [vmem:[%s0 + $0x270] sm:$0xff]
  %v111 = vld [vmem:[%s0 + $0x278] sm:$0xff]
  %v112 = vld [vmem:[%s0 + $0x280] sm:$0xff]
  %v113 = vld [vmem:[%s0 + $0x288] sm:$0xff]
  %v114 = vld [vmem:[%s0 + $0x290] sm:$0xff]
  %v115 = vld [vmem:[%s0 + $0x298] sm:$0xff]
  %v116 = vld [vmem:[%s0 + $0x2a0] sm:$0xff]
  %v117 = vld [vmem:[%s0 + $0x2a8] sm:$0xff]
  %v118 = vld [vmem:[%s0 + $0x2b0] sm:$0xff]
  %v119 = vld [vmem:[%s0 + $0x2b8] sm:$0xff]
  %v120 = vld [vmem:[%s0 + $0x2c0] sm:$0xff]
  %v121 = vld [vmem:[%s0 + $0x2c8] sm:$0xff]
  %v122 = vld [vmem:[%s0 + $0x2d0] sm:$0xff]
  %v123 = vld [vmem:[%s0 + $0x2d8] sm:$0xff]
  %v124 = vld [vmem:[%s0 + $0x2e0] sm:$0xff]
  %v125 = vld [vmem:[%s0 + $0x2e8] sm:$0xff]
  %v126 = vld [vmem:[%s0 + $0x2f0] sm:$0xff]
  %v127 = vld [vmem:[%s0 + $0x2f8] sm:$0xff]
  %v128 = vld [vmem:[%s0 + $0x300] sm:$0xff]
  %v129 = vld [vmem:[%s0 + $0x308] sm:$0xff]
  %v130 = vld [vmem:[%s0 + $0x310] sm:$0xff]
  %v131 = vld [vmem:[%s0 + $0x318] sm:$0xff]
  %v132 = vld [vmem:[%s0 + $0x320] sm:$0xff]
  %v133 = vld [vmem:[%s0 + $0x328] sm:$0xff]
  %v134 = vld [vmem:[%s0 + $0x330] sm:$0xff]
  %v135 = vld [vmem:[%s0 + $0x338] sm:$0xff]
  %v136 = vld [vmem:[%s0 + $0x340] sm:$0xff]
  %v137 = vld [vmem:[%s0 + $0x348] sm:$0xff]
  %v138 = vld [vmem:[%s0 + $0x350] sm:$0xff]
  %v139 = vld [vmem:[%s0 + $0x358] sm:$0xff]
  %v140 = vld [vmem:[%s0 + $0x360] sm:$0xff]
  %v141 = vld [vmem:[%s0 + $0x368] sm:$0xff]
  %v142 = vld [vmem:[%s0 + $0x370] sm:$0xff]
  %v143 = vld [vmem:[%s0 + $0x378] sm:$0xff]
  %v144 = vld [vmem:[%s0 + $0x380] sm:$0xff]
  %v145 = vld [vmem:[%s0 + $0x388] sm:$0xff]
  %v146 = vld [vmem:[%s0 + $0x390] sm:$0xff]
  %v147 = vld [vmem:[%s0 + $0x398] sm:$0xff]
  %v148 = vld [vmem:[%s0 + $0x3a0] sm:$0xff]
  %v149 = vld [vmem:[%s0 + $0x3a8] sm:$0xff]
  %v150 = vld [vmem:[%s0 + $0x3b0] sm:$0xff]
  %v151 = vld [vmem:[%s0 + $0x3b8] sm:$0xff]
  %v152 = vld [vmem:[%s0 + $0x3c0] sm:$0xff]
  %v153 = vld [vmem:[%s0 + $0x3c8] sm:$0xff]
  %v154 = vld [vmem:[%s0 + $0x3d0] sm:$0xff]
  %v155 = vld [vmem:[%s0 + $0x3d8] sm:$0xff]
  %v156 = vld [vmem:[%s0 + $0x3e0] sm:$0xff]
  %v157 = vld [vmem:[%s0 + $0x3e8] sm:$0xff]
  %v158 = vld [vmem:[%s0 + $0x3f0] sm:$0xff]
  %v159 = vld [vmem:[%s0 + $0x3f8] sm:$0xff]
  %v160 = vld [vmem:[%s0 + $0x400] sm:$0xff]
  %v161 = vld [vmem:[%s0 + $0x408] sm:$0xff]
  %v162 = vld [vmem:[%s0 + $0x410] sm:$0xff]
  %v163 = vld [vmem:[%s0 + $0x418] sm:$0xff]
  %v164 = vld [vmem:[%s0 + $0x420] sm:$0xff]
  %v165 = vld [vmem:[%s0 + $0x428] sm:$0xff]
  %v166 = vld [vmem:[%s0 + $0x430] sm:$0xff]
  %v167 = vld [vmem:[%s0 + $0x438] sm:$0xff]
  %v168 = vld [vmem:[%s0 + $0x440] sm:$0xff]
  %v169 = vld [vmem:[%s0 + $0x448] sm:$0xff]
  %v170 = vld [vmem:[%s0 + $0x450] sm:$0xff]
  %v171 = vld [vmem:[%s0 + $0x458] sm:$0xff]
  %v172 = vld [vmem:[%s0 + $0x460] sm:$0xff]
  %v173 = vld [vmem:[%s0 + $0x468] sm:$0xff]
  %v174 = vld [vmem:[%s0 + $0x470] sm:$0xff]
  %v175 = vld [vmem:[%s0 + $0x478] sm:$0xff]
  %v176 = vld [vmem:[%s1] sm:$0xff]
  %v177 = vld [vmem:[%s1 + $0x8] sm:$0xff]
  %v178 = vld [vmem:[%s1 + $0x10] sm:$0xff]
  %v179 = vld [vmem:[%s1 + $0x18] sm:$0xff]
  %v180 = vld [vmem:[%s1 + $0x20] sm:$0xf]
  %vm181 = vcmask 293888
  %v183 = vsel %vm181, %v32, 0
  %v186 = vsel %vm181, %v33, 0
  %v189 = vsel %vm181, %v34, 0
  %v192 = vsel %vm181, %v35, 0
  %v195 = vsel %vm181, %v36, 0
  %v198 = vsel %vm181, %v37, 0
  %v201 = vsel %vm181, %v38, 0
  %v204 = vsel %vm181, %v39, 0
  %v207 = vsel %vm181, %v40, 0
  %v210 = vsel %vm181, %v41, 0
  %v213 = vsel %vm181, %v42, 0
  %v216 = vsel %vm181, %v43, 0
  %v219 = vsel %vm181, %v44, 0
  %v222 = vsel %vm181, %v45, 0
  %v225 = vsel %vm181, %v46, 0
  %v228 = vsel %vm181, %v47, 0
  %v231 = vsel %vm181, %v48, 0
  %v234 = vsel %vm181, %v49, 0
  %v237 = vsel %vm181, %v50, 0
  %v240 = vsel %vm181, %v51, 0
  %v243 = vsel %vm181, %v52, 0
  %v246 = vsel %vm181, %v53, 0
  %v249 = vsel %vm181, %v54, 0
  %v252 = vsel %vm181, %v55, 0
  %v255 = vsel %vm181, %v56, 0
  %v258 = vsel %vm181, %v57, 0
  %v261 = vsel %vm181, %v58, 0
  %v264 = vsel %vm181, %v59, 0
  %v267 = vsel %vm181, %v60, 0
  %v270 = vsel %vm181, %v61, 0
  %v273 = vsel %vm181, %v62, 0
  %v276 = vsel %vm181, %v63, 0
  %v279 = vsel %vm181, %v64, 0
  %v282 = vsel %vm181, %v65, 0
  %v285 = vsel %vm181, %v66, 0
  %v288 = vsel %vm181, %v67, 0
  %v291 = vsel %vm181, %v68, 0
  %v294 = vsel %vm181, %v69, 0
  %v297 = vsel %vm181, %v70, 0
  %v300 = vsel %vm181, %v71, 0
  %v303 = vsel %vm181, %v72, 0
  %v306 = vsel %vm181, %v73, 0
  %v309 = vsel %vm181, %v74, 0
  %v312 = vsel %vm181, %v75, 0
  %v315 = vsel %vm181, %v76, 0
  %v318 = vsel %vm181, %v77, 0
  %v321 = vsel %vm181, %v78, 0
  %v324 = vsel %vm181, %v79, 0
  %v327 = vsel %vm181, %v80, 0
  %v330 = vsel %vm181, %v81, 0
  %v333 = vsel %vm181, %v82, 0
  %v336 = vsel %vm181, %v83, 0
  %v339 = vsel %vm181, %v84, 0
  %v342 = vsel %vm181, %v85, 0
  %v345 = vsel %vm181, %v86, 0
  %v348 = vsel %vm181, %v87, 0
  %v351 = vsel %vm181, %v88, 0
  %v354 = vsel %vm181, %v89, 0
  %v357 = vsel %vm181, %v90, 0
  %v360 = vsel %vm181, %v91, 0
  %v363 = vsel %vm181, %v92, 0
  %v366 = vsel %vm181, %v93, 0
  %v369 = vsel %vm181, %v94, 0
  %v372 = vsel %vm181, %v95, 0
  %v375 = vsel %vm181, %v96, 0
  %v378 = vsel %vm181, %v97, 0
  %v381 = vsel %vm181, %v98, 0
  %v384 = vsel %vm181, %v99, 0
  %v387 = vsel %vm181, %v100, 0
  %v390 = vsel %vm181, %v101, 0
  %v393 = vsel %vm181, %v102, 0
  %v396 = vsel %vm181, %v103, 0
  %v399 = vsel %vm181, %v104, 0
  %v402 = vsel %vm181, %v105, 0
  %v405 = vsel %vm181, %v106, 0
  %v408 = vsel %vm181, %v107, 0
  %v411 = vsel %vm181, %v108, 0
  %v414 = vsel %vm181, %v109, 0
  %v417 = vsel %vm181, %v110, 0
  %v420 = vsel %vm181, %v111, 0
  %v423 = vsel %vm181, %v112, 0
  %v426 = vsel %vm181, %v113, 0
  %v429 = vsel %vm181, %v114, 0
  %v432 = vsel %vm181, %v115, 0
  %v435 = vsel %vm181, %v116, 0
  %v438 = vsel %vm181, %v117, 0
  %v441 = vsel %vm181, %v118, 0
  %v444 = vsel %vm181, %v119, 0
  %v447 = vsel %vm181, %v120, 0
  %v450 = vsel %vm181, %v121, 0
  %v453 = vsel %vm181, %v122, 0
  %v456 = vsel %vm181, %v123, 0
  %v459 = vsel %vm181, %v124, 0
  %v462 = vsel %vm181, %v125, 0
  %v465 = vsel %vm181, %v126, 0
  %v468 = vsel %vm181, %v127, 0
  %v471 = vsel %vm181, %v128, 0
  %v474 = vsel %vm181, %v129, 0
  %v477 = vsel %vm181, %v130, 0
  %v480 = vsel %vm181, %v131, 0
  %v483 = vsel %vm181, %v132, 0
  %v486 = vsel %vm181, %v133, 0
  %v489 = vsel %vm181, %v134, 0
  %v492 = vsel %vm181, %v135, 0
  %v495 = vsel %vm181, %v136, 0
  %v498 = vsel %vm181, %v137, 0
  %v501 = vsel %vm181, %v138, 0
  %v504 = vsel %vm181, %v139, 0
  %v507 = vsel %vm181, %v140, 0
  %v510 = vsel %vm181, %v141, 0
  %v513 = vsel %vm181, %v142, 0
  %v516 = vsel %vm181, %v143, 0
  %v519 = vsel %vm181, %v144, 0
  %v522 = vsel %vm181, %v145, 0
  %v525 = vsel %vm181, %v146, 0
  %v528 = vsel %vm181, %v147, 0
  %v531 = vsel %vm181, %v148, 0
  %v534 = vsel %vm181, %v149, 0
  %v537 = vsel %vm181, %v150, 0
  %v540 = vsel %vm181, %v151, 0
  %v543 = vsel %vm181, %v152, 0
  %v546 = vsel %vm181, %v153, 0
  %v549 = vsel %vm181, %v154, 0
  %v552 = vsel %vm181, %v155, 0
  %v555 = vsel %vm181, %v156, 0
  %v558 = vsel %vm181, %v157, 0
  %v561 = vsel %vm181, %v158, 0
  %v564 = vsel %vm181, %v159, 0
  %v567 = vsel %vm181, %v160, 0
  %v570 = vsel %vm181, %v161, 0
  %v573 = vsel %vm181, %v162, 0
  %v576 = vsel %vm181, %v163, 0
  %v579 = vsel %vm181, %v164, 0
  %v582 = vsel %vm181, %v165, 0
  %v585 = vsel %vm181, %v166, 0
  %v588 = vsel %vm181, %v167, 0
  %v591 = vsel %vm181, %v168, 0
  %v594 = vsel %vm181, %v169, 0
  %v597 = vsel %vm181, %v170, 0
  %v600 = vsel %vm181, %v171, 0
  %v603 = vsel %vm181, %v172, 0
  %v606 = vsel %vm181, %v173, 0
  %v609 = vsel %vm181, %v174, 0
  %v612 = vsel %vm181, %v175, 0
  %vm614 = vcmask 1043456
  %v616 = vsel %vm614, %v180, 0
  %618 = vmatpush.msra.mxu0 0.0
  %619 = vmatpush.msra.mxu0 0.0
  %620 = vmatpush.msra.mxu0 0.0
  %621 = vmatpush.msra.mxu0 0.0
  %622 = vmatpush.msra.mxu0 0.0
  %623 = vmatpush.msra.mxu0 0.0
  %624 = vmatpush.msra.mxu0 0.0
  %625 = vmatpush.msra.mxu0 0.0
  %626 = vmatpush.msra.mxu0 0.0
  %627 = vmatpush.msra.mxu0 0.0
  %628 = vmatpush.msra.mxu0 0.0
  %629 = vmatpush.msra.mxu0 %v616
  %630 = vmatpush.msra.mxu0 %v179
  %631 = vmatpush.msra.mxu0 %v178
  %632 = vmatpush.msra.mxu0 %v177
  %633 = vmatpush.msra.mxu0 %v176
  %634 = vmatmul.f32.gmra.mxu0 %v183
  %v635 = vpop.f32.mrf.mxu0
  %v636 = vadd.f32 0.0, %v635
  %637 = vmatmul.f32.gmra.mxu0 %v186
  %v638 = vpop.f32.mrf.mxu0
  %v639 = vadd.f32 0.0, %v638
  %640 = vmatmul.f32.gmra.mxu0 %v189
  %v641 = vpop.f32.mrf.mxu0
  %v642 = vadd.f32 0.0, %v641
  %643 = vmatmul.f32.gmra.mxu0 %v192
  %v644 = vpop.f32.mrf.mxu0
  %v645 = vadd.f32 0.0, %v644
  %646 = vmatmul.f32.gmra.mxu0 %v195
  %v647 = vpop.f32.mrf.mxu0
  %v648 = vadd.f32 0.0, %v647
  %649 = vmatmul.f32.gmra.mxu0 %v198
  %v650 = vpop.f32.mrf.mxu0
  %v651 = vadd.f32 0.0, %v650
  %652 = vmatmul.f32.gmra.mxu0 %v201
  %v653 = vpop.f32.mrf.mxu0
  %v654 = vadd.f32 0.0, %v653
  %655 = vmatmul.f32.gmra.mxu0 %v204
  %v656 = vpop.f32.mrf.mxu0
  %v657 = vadd.f32 0.0, %v656
  %658 = vmatmul.f32.gmra.mxu0 %v207
  %v659 = vpop.f32.mrf.mxu0
  %v660 = vadd.f32 0.0, %v659
  %661 = vmatmul.f32.gmra.mxu0 %v210
  %v662 = vpop.f32.mrf.mxu0
  %v663 = vadd.f32 0.0, %v662
  %664 = vmatmul.f32.gmra.mxu0 %v213
  %v665 = vpop.f32.mrf.mxu0
  %v666 = vadd.f32 0.0, %v665
  %667 = vmatmul.f32.gmra.mxu0 %v216
  %v668 = vpop.f32.mrf.mxu0
  %v669 = vadd.f32 0.0, %v668
  %670 = vmatmul.f32.gmra.mxu0 %v219
  %v671 = vpop.f32.mrf.mxu0
  %v672 = vadd.f32 0.0, %v671
  %673 = vmatmul.f32.gmra.mxu0 %v222
  %v674 = vpop.f32.mrf.mxu0
  %v675 = vadd.f32 0.0, %v674
  %676 = vmatmul.f32.gmra.mxu0 %v225
  %v677 = vpop.f32.mrf.mxu0
  %v678 = vadd.f32 0.0, %v677
  %679 = vmatmul.f32.gmra.mxu0 %v228
  %v680 = vpop.f32.mrf.mxu0
  %v681 = vadd.f32 0.0, %v680
  %682 = vmatmul.f32.gmra.mxu0 %v231
  %v683 = vpop.f32.mrf.mxu0
  %v684 = vadd.f32 0.0, %v683
  %685 = vmatmul.f32.gmra.mxu0 %v234
  %v686 = vpop.f32.mrf.mxu0
  %v687 = vadd.f32 0.0, %v686
  %688 = vmatmul.f32.gmra.mxu0 %v237
  %v689 = vpop.f32.mrf.mxu0
  %v690 = vadd.f32 0.0, %v689
  %691 = vmatmul.f32.gmra.mxu0 %v240
  %v692 = vpop.f32.mrf.mxu0
  %v693 = vadd.f32 0.0, %v692
  %694 = vmatmul.f32.gmra.mxu0 %v243
  %v695 = vpop.f32.mrf.mxu0
  %v696 = vadd.f32 0.0, %v695
  %697 = vmatmul.f32.gmra.mxu0 %v246
  %v698 = vpop.f32.mrf.mxu0
  %v699 = vadd.f32 0.0, %v698
  %700 = vmatmul.f32.gmra.mxu0 %v249
  %v701 = vpop.f32.mrf.mxu0
  %v702 = vadd.f32 0.0, %v701
  %703 = vmatmul.f32.gmra.mxu0 %v252
  %v704 = vpop.f32.mrf.mxu0
  %v705 = vadd.f32 0.0, %v704
  %706 = vmatmul.f32.gmra.mxu0 %v255
  %v707 = vpop.f32.mrf.mxu0
  %v708 = vadd.f32 0.0, %v707
  %709 = vmatmul.f32.gmra.mxu0 %v258
  %v710 = vpop.f32.mrf.mxu0
  %v711 = vadd.f32 0.0, %v710
  %712 = vmatmul.f32.gmra.mxu0 %v261
  %v713 = vpop.f32.mrf.mxu0
  %v714 = vadd.f32 0.0, %v713
  %715 = vmatmul.f32.gmra.mxu0 %v264
  %v716 = vpop.f32.mrf.mxu0
  %v717 = vadd.f32 0.0, %v716
  %718 = vmatmul.f32.gmra.mxu0 %v267
  %v719 = vpop.f32.mrf.mxu0
  %v720 = vadd.f32 0.0, %v719
  %721 = vmatmul.f32.gmra.mxu0 %v270
  %v722 = vpop.f32.mrf.mxu0
  %v723 = vadd.f32 0.0, %v722
  %724 = vmatmul.f32.gmra.mxu0 %v273
  %v725 = vpop.f32.mrf.mxu0
  %v726 = vadd.f32 0.0, %v725
  %727 = vmatmul.f32.gmra.mxu0 %v276
  %v728 = vpop.f32.mrf.mxu0
  %v729 = vadd.f32 0.0, %v728
  %730 = vmatmul.f32.gmra.mxu0 %v279
  %v731 = vpop.f32.mrf.mxu0
  %v732 = vadd.f32 0.0, %v731
  %733 = vmatmul.f32.gmra.mxu0 %v282
  %v734 = vpop.f32.mrf.mxu0
  %v735 = vadd.f32 0.0, %v734
  %736 = vmatmul.f32.gmra.mxu0 %v285
  %v737 = vpop.f32.mrf.mxu0
  %v738 = vadd.f32 0.0, %v737
  %739 = vmatmul.f32.gmra.mxu0 %v288
  %v740 = vpop.f32.mrf.mxu0
  %v741 = vadd.f32 0.0, %v740
  %742 = vmatmul.f32.gmra.mxu0 %v291
  %v743 = vpop.f32.mrf.mxu0
  %v744 = vadd.f32 0.0, %v743
  %745 = vmatmul.f32.gmra.mxu0 %v294
  %v746 = vpop.f32.mrf.mxu0
  %v747 = vadd.f32 0.0, %v746
  %748 = vmatmul.f32.gmra.mxu0 %v297
  %v749 = vpop.f32.mrf.mxu0
  %v750 = vadd.f32 0.0, %v749
  %751 = vmatmul.f32.gmra.mxu0 %v300
  %v752 = vpop.f32.mrf.mxu0
  %v753 = vadd.f32 0.0, %v752
  %754 = vmatmul.f32.gmra.mxu0 %v303
  %v755 = vpop.f32.mrf.mxu0
  %v756 = vadd.f32 0.0, %v755
  %757 = vmatmul.f32.gmra.mxu0 %v306
  %v758 = vpop.f32.mrf.mxu0
  %v759 = vadd.f32 0.0, %v758
  %760 = vmatmul.f32.gmra.mxu0 %v309
  %v761 = vpop.f32.mrf.mxu0
  %v762 = vadd.f32 0.0, %v761
  %763 = vmatmul.f32.gmra.mxu0 %v312
  %v764 = vpop.f32.mrf.mxu0
  %v765 = vadd.f32 0.0, %v764
  %766 = vmatmul.f32.gmra.mxu0 %v315
  %v767 = vpop.f32.mrf.mxu0
  %v768 = vadd.f32 0.0, %v767
  %769 = vmatmul.f32.gmra.mxu0 %v318
  %v770 = vpop.f32.mrf.mxu0
  %v771 = vadd.f32 0.0, %v770
  %772 = vmatmul.f32.gmra.mxu0 %v321
  %v773 = vpop.f32.mrf.mxu0
  %v774 = vadd.f32 0.0, %v773
  %775 = vmatmul.f32.gmra.mxu0 %v324
  %v776 = vpop.f32.mrf.mxu0
  %v777 = vadd.f32 0.0, %v776
  %778 = vmatmul.f32.gmra.mxu0 %v327
  %v779 = vpop.f32.mrf.mxu0
  %v780 = vadd.f32 0.0, %v779
  %781 = vmatmul.f32.gmra.mxu0 %v330
  %v782 = vpop.f32.mrf.mxu0
  %v783 = vadd.f32 0.0, %v782
  %784 = vmatmul.f32.gmra.mxu0 %v333
  %v785 = vpop.f32.mrf.mxu0
  %v786 = vadd.f32 0.0, %v785
  %787 = vmatmul.f32.gmra.mxu0 %v336
  %v788 = vpop.f32.mrf.mxu0
  %v789 = vadd.f32 0.0, %v788
  %790 = vmatmul.f32.gmra.mxu0 %v339
  %v791 = vpop.f32.mrf.mxu0
  %v792 = vadd.f32 0.0, %v791
  %793 = vmatmul.f32.gmra.mxu0 %v342
  %v794 = vpop.f32.mrf.mxu0
  %v795 = vadd.f32 0.0, %v794
  %796 = vmatmul.f32.gmra.mxu0 %v345
  %v797 = vpop.f32.mrf.mxu0
  %v798 = vadd.f32 0.0, %v797
  %799 = vmatmul.f32.gmra.mxu0 %v348
  %v800 = vpop.f32.mrf.mxu0
  %v801 = vadd.f32 0.0, %v800
  %802 = vmatmul.f32.gmra.mxu0 %v351
  %v803 = vpop.f32.mrf.mxu0
  %v804 = vadd.f32 0.0, %v803
  %805 = vmatmul.f32.gmra.mxu0 %v354
  %v806 = vpop.f32.mrf.mxu0
  %v807 = vadd.f32 0.0, %v806
  %808 = vmatmul.f32.gmra.mxu0 %v357
  %v809 = vpop.f32.mrf.mxu0
  %v810 = vadd.f32 0.0, %v809
  %811 = vmatmul.f32.gmra.mxu0 %v360
  %v812 = vpop.f32.mrf.mxu0
  %v813 = vadd.f32 0.0, %v812
  %814 = vmatmul.f32.gmra.mxu0 %v363
  %v815 = vpop.f32.mrf.mxu0
  %v816 = vadd.f32 0.0, %v815
  %817 = vmatmul.f32.gmra.mxu0 %v366
  %v818 = vpop.f32.mrf.mxu0
  %v819 = vadd.f32 0.0, %v818
  %820 = vmatmul.f32.gmra.mxu0 %v369
  %v821 = vpop.f32.mrf.mxu0
  %v822 = vadd.f32 0.0, %v821
  %823 = vmatmul.f32.gmra.mxu0 %v372
  %v824 = vpop.f32.mrf.mxu0
  %v825 = vadd.f32 0.0, %v824
  %826 = vmatmul.f32.gmra.mxu0 %v375
  %v827 = vpop.f32.mrf.mxu0
  %v828 = vadd.f32 0.0, %v827
  %829 = vmatmul.f32.gmra.mxu0 %v378
  %v830 = vpop.f32.mrf.mxu0
  %v831 = vadd.f32 0.0, %v830
  %832 = vmatmul.f32.gmra.mxu0 %v381
  %v833 = vpop.f32.mrf.mxu0
  %v834 = vadd.f32 0.0, %v833
  %835 = vmatmul.f32.gmra.mxu0 %v384
  %v836 = vpop.f32.mrf.mxu0
  %v837 = vadd.f32 0.0, %v836
  %838 = vmatmul.f32.gmra.mxu0 %v387
  %v839 = vpop.f32.mrf.mxu0
  %v840 = vadd.f32 0.0, %v839
  %841 = vmatmul.f32.gmra.mxu0 %v390
  %v842 = vpop.f32.mrf.mxu0
  %v843 = vadd.f32 0.0, %v842
  %844 = vmatmul.f32.gmra.mxu0 %v393
  %v845 = vpop.f32.mrf.mxu0
  %v846 = vadd.f32 0.0, %v845
  %847 = vmatmul.f32.gmra.mxu0 %v396
  %v848 = vpop.f32.mrf.mxu0
  %v849 = vadd.f32 0.0, %v848
  %850 = vmatmul.f32.gmra.mxu0 %v399
  %v851 = vpop.f32.mrf.mxu0
  %v852 = vadd.f32 0.0, %v851
  %853 = vmatmul.f32.gmra.mxu0 %v402
  %v854 = vpop.f32.mrf.mxu0
  %v855 = vadd.f32 0.0, %v854
  %856 = vmatmul.f32.gmra.mxu0 %v405
  %v857 = vpop.f32.mrf.mxu0
  %v858 = vadd.f32 0.0, %v857
  %859 = vmatmul.f32.gmra.mxu0 %v408
  %v860 = vpop.f32.mrf.mxu0
  %v861 = vadd.f32 0.0, %v860
  %862 = vmatmul.f32.gmra.mxu0 %v411
  %v863 = vpop.f32.mrf.mxu0
  %v864 = vadd.f32 0.0, %v863
  %865 = vmatmul.f32.gmra.mxu0 %v414
  %v866 = vpop.f32.mrf.mxu0
  %v867 = vadd.f32 0.0, %v866
  %868 = vmatmul.f32.gmra.mxu0 %v417
  %v869 = vpop.f32.mrf.mxu0
  %v870 = vadd.f32 0.0, %v869
  %871 = vmatmul.f32.gmra.mxu0 %v420
  %v872 = vpop.f32.mrf.mxu0
  %v873 = vadd.f32 0.0, %v872
  %874 = vmatmul.f32.gmra.mxu0 %v423
  %v875 = vpop.f32.mrf.mxu0
  %v876 = vadd.f32 0.0, %v875
  %877 = vmatmul.f32.gmra.mxu0 %v426
  %v878 = vpop.f32.mrf.mxu0
  %v879 = vadd.f32 0.0, %v878
  %880 = vmatmul.f32.gmra.mxu0 %v429
  %v881 = vpop.f32.mrf.mxu0
  %v882 = vadd.f32 0.0, %v881
  %883 = vmatmul.f32.gmra.mxu0 %v432
  %v884 = vpop.f32.mrf.mxu0
  %v885 = vadd.f32 0.0, %v884
  %886 = vmatmul.f32.gmra.mxu0 %v435
  %v887 = vpop.f32.mrf.mxu0
  %v888 = vadd.f32 0.0, %v887
  %889 = vmatmul.f32.gmra.mxu0 %v438
  %v890 = vpop.f32.mrf.mxu0
  %v891 = vadd.f32 0.0, %v890
  %892 = vmatmul.f32.gmra.mxu0 %v441
  %v893 = vpop.f32.mrf.mxu0
  %v894 = vadd.f32 0.0, %v893
  %895 = vmatmul.f32.gmra.mxu0 %v444
  %v896 = vpop.f32.mrf.mxu0
  %v897 = vadd.f32 0.0, %v896
  %898 = vmatmul.f32.gmra.mxu0 %v447
  %v899 = vpop.f32.mrf.mxu0
  %v900 = vadd.f32 0.0, %v899
  %901 = vmatmul.f32.gmra.mxu0 %v450
  %v902 = vpop.f32.mrf.mxu0
  %v903 = vadd.f32 0.0, %v902
  %904 = vmatmul.f32.gmra.mxu0 %v453
  %v905 = vpop.f32.mrf.mxu0
  %v906 = vadd.f32 0.0, %v905
  %907 = vmatmul.f32.gmra.mxu0 %v456
  %v908 = vpop.f32.mrf.mxu0
  %v909 = vadd.f32 0.0, %v908
  %910 = vmatmul.f32.gmra.mxu0 %v459
  %v911 = vpop.f32.mrf.mxu0
  %v912 = vadd.f32 0.0, %v911
  %913 = vmatmul.f32.gmra.mxu0 %v462
  %v914 = vpop.f32.mrf.mxu0
  %v915 = vadd.f32 0.0, %v914
  %916 = vmatmul.f32.gmra.mxu0 %v465
  %v917 = vpop.f32.mrf.mxu0
  %v918 = vadd.f32 0.0, %v917
  %919 = vmatmul.f32.gmra.mxu0 %v468
  %v920 = vpop.f32.mrf.mxu0
  %v921 = vadd.f32 0.0, %v920
  %922 = vmatmul.f32.gmra.mxu0 %v471
  %v923 = vpop.f32.mrf.mxu0
  %v924 = vadd.f32 0.0, %v923
  %925 = vmatmul.f32.gmra.mxu0 %v474
  %v926 = vpop.f32.mrf.mxu0
  %v927 = vadd.f32 0.0, %v926
  %928 = vmatmul.f32.gmra.mxu0 %v477
  %v929 = vpop.f32.mrf.mxu0
  %v930 = vadd.f32 0.0, %v929
  %931 = vmatmul.f32.gmra.mxu0 %v480
  %v932 = vpop.f32.mrf.mxu0
  %v933 = vadd.f32 0.0, %v932
  %934 = vmatmul.f32.gmra.mxu0 %v483
  %v935 = vpop.f32.mrf.mxu0
  %v936 = vadd.f32 0.0, %v935
  %937 = vmatmul.f32.gmra.mxu0 %v486
  %v938 = vpop.f32.mrf.mxu0
  %v939 = vadd.f32 0.0, %v938
  %940 = vmatmul.f32.gmra.mxu0 %v489
  %v941 = vpop.f32.mrf.mxu0
  %v942 = vadd.f32 0.0, %v941
  %943 = vmatmul.f32.gmra.mxu0 %v492
  %v944 = vpop.f32.mrf.mxu0
  %v945 = vadd.f32 0.0, %v944
  %946 = vmatmul.f32.gmra.mxu0 %v495
  %v947 = vpop.f32.mrf.mxu0
  %v948 = vadd.f32 0.0, %v947
  %949 = vmatmul.f32.gmra.mxu0 %v498
  %v950 = vpop.f32.mrf.mxu0
  %v951 = vadd.f32 0.0, %v950
  %952 = vmatmul.f32.gmra.mxu0 %v501
  %v953 = vpop.f32.mrf.mxu0
  %v954 = vadd.f32 0.0, %v953
  %955 = vmatmul.f32.gmra.mxu0 %v504
  %v956 = vpop.f32.mrf.mxu0
  %v957 = vadd.f32 0.0, %v956
  %958 = vmatmul.f32.gmra.mxu0 %v507
  %v959 = vpop.f32.mrf.mxu0
  %v960 = vadd.f32 0.0, %v959
  %961 = vmatmul.f32.gmra.mxu0 %v510
  %v962 = vpop.f32.mrf.mxu0
  %v963 = vadd.f32 0.0, %v962
  %964 = vmatmul.f32.gmra.mxu0 %v513
  %v965 = vpop.f32.mrf.mxu0
  %v966 = vadd.f32 0.0, %v965
  %967 = vmatmul.f32.gmra.mxu0 %v516
  %v968 = vpop.f32.mrf.mxu0
  %v969 = vadd.f32 0.0, %v968
  %970 = vmatmul.f32.gmra.mxu0 %v519
  %v971 = vpop.f32.mrf.mxu0
  %v972 = vadd.f32 0.0, %v971
  %973 = vmatmul.f32.gmra.mxu0 %v522
  %v974 = vpop.f32.mrf.mxu0
  %v975 = vadd.f32 0.0, %v974
  %976 = vmatmul.f32.gmra.mxu0 %v525
  %v977 = vpop.f32.mrf.mxu0
  %v978 = vadd.f32 0.0, %v977
  %979 = vmatmul.f32.gmra.mxu0 %v528
  %v980 = vpop.f32.mrf.mxu0
  %v981 = vadd.f32 0.0, %v980
  %982 = vmatmul.f32.gmra.mxu0 %v531
  %v983 = vpop.f32.mrf.mxu0
  %v984 = vadd.f32 0.0, %v983
  %985 = vmatmul.f32.gmra.mxu0 %v534
  %v986 = vpop.f32.mrf.mxu0
  %v987 = vadd.f32 0.0, %v986
  %988 = vmatmul.f32.gmra.mxu0 %v537
  %v989 = vpop.f32.mrf.mxu0
  %v990 = vadd.f32 0.0, %v989
  %991 = vmatmul.f32.gmra.mxu0 %v540
  %v992 = vpop.f32.mrf.mxu0
  %v993 = vadd.f32 0.0, %v992
  %994 = vmatmul.f32.gmra.mxu0 %v543
  %v995 = vpop.f32.mrf.mxu0
  %v996 = vadd.f32 0.0, %v995
  %997 = vmatmul.f32.gmra.mxu0 %v546
  %v998 = vpop.f32.mrf.mxu0
  %v999 = vadd.f32 0.0, %v998
  %1000 = vmatmul.f32.gmra.mxu0 %v549
  %v1001 = vpop.f32.mrf.mxu0
  %v1002 = vadd.f32 0.0, %v1001
  %1003 = vmatmul.f32.gmra.mxu0 %v552
  %v1004 = vpop.f32.mrf.mxu0
  %v1005 = vadd.f32 0.0, %v1004
  %1006 = vmatmul.f32.gmra.mxu0 %v555
  %v1007 = vpop.f32.mrf.mxu0
  %v1008 = vadd.f32 0.0, %v1007
  %1009 = vmatmul.f32.gmra.mxu0 %v558
  %v1010 = vpop.f32.mrf.mxu0
  %v1011 = vadd.f32 0.0, %v1010
  %1012 = vmatmul.f32.gmra.mxu0 %v561
  %v1013 = vpop.f32.mrf.mxu0
  %v1014 = vadd.f32 0.0, %v1013
  %1015 = vmatmul.f32.gmra.mxu0 %v564
  %v1016 = vpop.f32.mrf.mxu0
  %v1017 = vadd.f32 0.0, %v1016
  %1018 = vmatmul.f32.gmra.mxu0 %v567
  %v1019 = vpop.f32.mrf.mxu0
  %v1020 = vadd.f32 0.0, %v1019
  %1021 = vmatmul.f32.gmra.mxu0 %v570
  %v1022 = vpop.f32.mrf.mxu0
  %v1023 = vadd.f32 0.0, %v1022
  %1024 = vmatmul.f32.gmra.mxu0 %v573
  %v1025 = vpop.f32.mrf.mxu0
  %v1026 = vadd.f32 0.0, %v1025
  %1027 = vmatmul.f32.gmra.mxu0 %v576
  %v1028 = vpop.f32.mrf.mxu0
  %v1029 = vadd.f32 0.0, %v1028
  %1030 = vmatmul.f32.gmra.mxu0 %v579
  %v1031 = vpop.f32.mrf.mxu0
  %v1032 = vadd.f32 0.0, %v1031
  %1033 = vmatmul.f32.gmra.mxu0 %v582
  %v1034 = vpop.f32.mrf.mxu0
  %v1035 = vadd.f32 0.0, %v1034
  %1036 = vmatmul.f32.gmra.mxu0 %v585
  %v1037 = vpop.f32.mrf.mxu0
  %v1038 = vadd.f32 0.0, %v1037
  %1039 = vmatmul.f32.gmra.mxu0 %v588
  %v1040 = vpop.f32.mrf.mxu0
  %v1041 = vadd.f32 0.0, %v1040
  %1042 = vmatmul.f32.gmra.mxu0 %v591
  %v1043 = vpop.f32.mrf.mxu0
  %v1044 = vadd.f32 0.0, %v1043
  %1045 = vmatmul.f32.gmra.mxu0 %v594
  %v1046 = vpop.f32.mrf.mxu0
  %v1047 = vadd.f32 0.0, %v1046
  %1048 = vmatmul.f32.gmra.mxu0 %v597
  %v1049 = vpop.f32.mrf.mxu0
  %v1050 = vadd.f32 0.0, %v1049
  %1051 = vmatmul.f32.gmra.mxu0 %v600
  %v1052 = vpop.f32.mrf.mxu0
  %v1053 = vadd.f32 0.0, %v1052
  %1054 = vmatmul.f32.gmra.mxu0 %v603
  %v1055 = vpop.f32.mrf.mxu0
  %v1056 = vadd.f32 0.0, %v1055
  %1057 = vmatmul.f32.gmra.mxu0 %v606
  %v1058 = vpop.f32.mrf.mxu0
  %v1059 = vadd.f32 0.0, %v1058
  %1060 = vmatmul.f32.gmra.mxu0 %v609
  %v1061 = vpop.f32.mrf.mxu0
  %v1062 = vadd.f32 0.0, %v1061
  %1063 = vmatmul.f32.gmra.mxu0 %v612
  %v1064 = vpop.f32.mrf.mxu0
  %v1065 = vadd.f32 0.0, %v1064
  %1066 = vdwg.mxu0
  %1211 = vrot.lane.b32.xlu0 %v636, 112
  %v1212 = vpop.permute.xlu0 %1211
  %1213 = vrot.lane.b32.xlu0 %v639, 112
  %v1214 = vpop.permute.xlu0 %1213
  %1215 = vrot.lane.b32.xlu0 %v642, 112
  %v1216 = vpop.permute.xlu0 %1215
  %1217 = vrot.lane.b32.xlu0 %v645, 112
  %v1218 = vpop.permute.xlu0 %1217
  %1219 = vrot.lane.b32.xlu0 %v648, 112
  %v1220 = vpop.permute.xlu0 %1219
  %1221 = vrot.lane.b32.xlu0 %v651, 112
  %v1222 = vpop.permute.xlu0 %1221
  %1223 = vrot.lane.b32.xlu0 %v654, 112
  %v1224 = vpop.permute.xlu0 %1223
  %1225 = vrot.lane.b32.xlu0 %v657, 112
  %v1226 = vpop.permute.xlu0 %1225
  %1227 = vrot.lane.b32.xlu0 %v660, 112
  %v1228 = vpop.permute.xlu0 %1227
  %1229 = vrot.lane.b32.xlu0 %v663, 112
  %v1230 = vpop.permute.xlu0 %1229
  %1231 = vrot.lane.b32.xlu0 %v666, 112
  %v1232 = vpop.permute.xlu0 %1231
  %1233 = vrot.lane.b32.xlu0 %v669, 112
  %v1234 = vpop.permute.xlu0 %1233
  %1235 = vrot.lane.b32.xlu0 %v672, 112
  %v1236 = vpop.permute.xlu0 %1235
  %1237 = vrot.lane.b32.xlu0 %v675, 112
  %v1238 = vpop.permute.xlu0 %1237
  %1239 = vrot.lane.b32.xlu0 %v678, 112
  %v1240 = vpop.permute.xlu0 %1239
  %1241 = vrot.lane.b32.xlu0 %v681, 112
  %v1242 = vpop.permute.xlu0 %1241
  %1243 = vrot.lane.b32.xlu0 %v684, 112
  %v1244 = vpop.permute.xlu0 %1243
  %1245 = vrot.lane.b32.xlu0 %v687, 112
  %v1246 = vpop.permute.xlu0 %1245
  %1247 = vrot.lane.b32.xlu0 %v690, 112
  %v1248 = vpop.permute.xlu0 %1247
  %1249 = vrot.lane.b32.xlu0 %v693, 112
  %v1250 = vpop.permute.xlu0 %1249
  %1251 = vrot.lane.b32.xlu0 %v696, 112
  %v1252 = vpop.permute.xlu0 %1251
  %1253 = vrot.lane.b32.xlu0 %v699, 112
  %v1254 = vpop.permute.xlu0 %1253
  %1255 = vrot.lane.b32.xlu0 %v702, 112
  %v1256 = vpop.permute.xlu0 %1255
  %1257 = vrot.lane.b32.xlu0 %v705, 112
  %v1258 = vpop.permute.xlu0 %1257
  %1259 = vrot.lane.b32.xlu0 %v708, 112
  %v1260 = vpop.permute.xlu0 %1259
  %1261 = vrot.lane.b32.xlu0 %v711, 112
  %v1262 = vpop.permute.xlu0 %1261
  %1263 = vrot.lane.b32.xlu0 %v714, 112
  %v1264 = vpop.permute.xlu0 %1263
  %1265 = vrot.lane.b32.xlu0 %v717, 112
  %v1266 = vpop.permute.xlu0 %1265
  %1267 = vrot.lane.b32.xlu0 %v720, 112
  %v1268 = vpop.permute.xlu0 %1267
  %1269 = vrot.lane.b32.xlu0 %v723, 112
  %v1270 = vpop.permute.xlu0 %1269
  %1271 = vrot.lane.b32.xlu0 %v726, 112
  %v1272 = vpop.permute.xlu0 %1271
  %1273 = vrot.lane.b32.xlu0 %v729, 112
  %v1274 = vpop.permute.xlu0 %1273
  %1275 = vrot.lane.b32.xlu0 %v732, 112
  %v1276 = vpop.permute.xlu0 %1275
  %1277 = vrot.lane.b32.xlu0 %v735, 112
  %v1278 = vpop.permute.xlu0 %1277
  %1279 = vrot.lane.b32.xlu0 %v738, 112
  %v1280 = vpop.permute.xlu0 %1279
  %1281 = vrot.lane.b32.xlu0 %v741, 112
  %v1282 = vpop.permute.xlu0 %1281
  %1283 = vrot.lane.b32.xlu0 %v744, 112
  %v1284 = vpop.permute.xlu0 %1283
  %1285 = vrot.lane.b32.xlu0 %v747, 112
  %v1286 = vpop.permute.xlu0 %1285
  %1287 = vrot.lane.b32.xlu0 %v750, 112
  %v1288 = vpop.permute.xlu0 %1287
  %1289 = vrot.lane.b32.xlu0 %v753, 112
  %v1290 = vpop.permute.xlu0 %1289
  %1291 = vrot.lane.b32.xlu0 %v756, 112
  %v1292 = vpop.permute.xlu0 %1291
  %1293 = vrot.lane.b32.xlu0 %v759, 112
  %v1294 = vpop.permute.xlu0 %1293
  %1295 = vrot.lane.b32.xlu0 %v762, 112
  %v1296 = vpop.permute.xlu0 %1295
  %1297 = vrot.lane.b32.xlu0 %v765, 112
  %v1298 = vpop.permute.xlu0 %1297
  %1299 = vrot.lane.b32.xlu0 %v768, 112
  %v1300 = vpop.permute.xlu0 %1299
  %1301 = vrot.lane.b32.xlu0 %v771, 112
  %v1302 = vpop.permute.xlu0 %1301
  %1303 = vrot.lane.b32.xlu0 %v774, 112
  %v1304 = vpop.permute.xlu0 %1303
  %1305 = vrot.lane.b32.xlu0 %v777, 112
  %v1306 = vpop.permute.xlu0 %1305
  %1307 = vrot.lane.b32.xlu0 %v780, 112
  %v1308 = vpop.permute.xlu0 %1307
  %1309 = vrot.lane.b32.xlu0 %v783, 112
  %v1310 = vpop.permute.xlu0 %1309
  %1311 = vrot.lane.b32.xlu0 %v786, 112
  %v1312 = vpop.permute.xlu0 %1311
  %1313 = vrot.lane.b32.xlu0 %v789, 112
  %v1314 = vpop.permute.xlu0 %1313
  %1315 = vrot.lane.b32.xlu0 %v792, 112
  %v1316 = vpop.permute.xlu0 %1315
  %1317 = vrot.lane.b32.xlu0 %v795, 112
  %v1318 = vpop.permute.xlu0 %1317
  %1319 = vrot.lane.b32.xlu0 %v798, 112
  %v1320 = vpop.permute.xlu0 %1319
  %1321 = vrot.lane.b32.xlu0 %v801, 112
  %v1322 = vpop.permute.xlu0 %1321
  %1323 = vrot.lane.b32.xlu0 %v804, 112
  %v1324 = vpop.permute.xlu0 %1323
  %1325 = vrot.lane.b32.xlu0 %v807, 112
  %v1326 = vpop.permute.xlu0 %1325
  %1327 = vrot.lane.b32.xlu0 %v810, 112
  %v1328 = vpop.permute.xlu0 %1327
  %1329 = vrot.lane.b32.xlu0 %v813, 112
  %v1330 = vpop.permute.xlu0 %1329
  %1331 = vrot.lane.b32.xlu0 %v816, 112
  %v1332 = vpop.permute.xlu0 %1331
  %1333 = vrot.lane.b32.xlu0 %v819, 112
  %v1334 = vpop.permute.xlu0 %1333
  %1335 = vrot.lane.b32.xlu0 %v822, 112
  %v1336 = vpop.permute.xlu0 %1335
  %1337 = vrot.lane.b32.xlu0 %v825, 112
  %v1338 = vpop.permute.xlu0 %1337
  %1339 = vrot.lane.b32.xlu0 %v828, 112
  %v1340 = vpop.permute.xlu0 %1339
  %1341 = vrot.lane.b32.xlu0 %v831, 112
  %v1342 = vpop.permute.xlu0 %1341
  %1343 = vrot.lane.b32.xlu0 %v834, 112
  %v1344 = vpop.permute.xlu0 %1343
  %1345 = vrot.lane.b32.xlu0 %v837, 112
  %v1346 = vpop.permute.xlu0 %1345
  %1347 = vrot.lane.b32.xlu0 %v840, 112
  %v1348 = vpop.permute.xlu0 %1347
  %1349 = vrot.lane.b32.xlu0 %v843, 112
  %v1350 = vpop.permute.xlu0 %1349
  %1351 = vrot.lane.b32.xlu0 %v846, 112
  %v1352 = vpop.permute.xlu0 %1351
  %1353 = vrot.lane.b32.xlu0 %v849, 112
  %v1354 = vpop.permute.xlu0 %1353
  %1355 = vrot.lane.b32.xlu0 %v852, 112
  %v1356 = vpop.permute.xlu0 %1355
  %1357 = vrot.lane.b32.xlu0 %v855, 112
  %v1358 = vpop.permute.xlu0 %1357
  %1359 = vrot.lane.b32.xlu0 %v858, 112
  %v1360 = vpop.permute.xlu0 %1359
  %1361 = vrot.lane.b32.xlu0 %v861, 112
  %v1362 = vpop.permute.xlu0 %1361
  %1363 = vrot.lane.b32.xlu0 %v864, 112
  %v1364 = vpop.permute.xlu0 %1363
  %1365 = vrot.lane.b32.xlu0 %v867, 112
  %v1366 = vpop.permute.xlu0 %1365
  %1367 = vrot.lane.b32.xlu0 %v870, 112
  %v1368 = vpop.permute.xlu0 %1367
  %1369 = vrot.lane.b32.xlu0 %v873, 112
  %v1370 = vpop.permute.xlu0 %1369
  %1371 = vrot.lane.b32.xlu0 %v876, 112
  %v1372 = vpop.permute.xlu0 %1371
  %1373 = vrot.lane.b32.xlu0 %v879, 112
  %v1374 = vpop.permute.xlu0 %1373
  %1375 = vrot.lane.b32.xlu0 %v882, 112
  %v1376 = vpop.permute.xlu0 %1375
  %1377 = vrot.lane.b32.xlu0 %v885, 112
  %v1378 = vpop.permute.xlu0 %1377
  %1379 = vrot.lane.b32.xlu0 %v888, 112
  %v1380 = vpop.permute.xlu0 %1379
  %1381 = vrot.lane.b32.xlu0 %v891, 112
  %v1382 = vpop.permute.xlu0 %1381
  %1383 = vrot.lane.b32.xlu0 %v894, 112
  %v1384 = vpop.permute.xlu0 %1383
  %1385 = vrot.lane.b32.xlu0 %v897, 112
  %v1386 = vpop.permute.xlu0 %1385
  %1387 = vrot.lane.b32.xlu0 %v900, 112
  %v1388 = vpop.permute.xlu0 %1387
  %1389 = vrot.lane.b32.xlu0 %v903, 112
  %v1390 = vpop.permute.xlu0 %1389
  %1391 = vrot.lane.b32.xlu0 %v906, 112
  %v1392 = vpop.permute.xlu0 %1391
  %1393 = vrot.lane.b32.xlu0 %v909, 112
  %v1394 = vpop.permute.xlu0 %1393
  %1395 = vrot.lane.b32.xlu0 %v912, 112
  %v1396 = vpop.permute.xlu0 %1395
  %1397 = vrot.lane.b32.xlu0 %v915, 112
  %v1398 = vpop.permute.xlu0 %1397
  %1399 = vrot.lane.b32.xlu0 %v918, 112
  %v1400 = vpop.permute.xlu0 %1399
  %1401 = vrot.lane.b32.xlu0 %v921, 112
  %v1402 = vpop.permute.xlu0 %1401
  %1403 = vrot.lane.b32.xlu0 %v924, 112
  %v1404 = vpop.permute.xlu0 %1403
  %1405 = vrot.lane.b32.xlu0 %v927, 112
  %v1406 = vpop.permute.xlu0 %1405
  %1407 = vrot.lane.b32.xlu0 %v930, 112
  %v1408 = vpop.permute.xlu0 %1407
  %1409 = vrot.lane.b32.xlu0 %v933, 112
  %v1410 = vpop.permute.xlu0 %1409
  %1411 = vrot.lane.b32.xlu0 %v936, 112
  %v1412 = vpop.permute.xlu0 %1411
  %1413 = vrot.lane.b32.xlu0 %v939, 112
  %v1414 = vpop.permute.xlu0 %1413
  %1415 = vrot.lane.b32.xlu0 %v942, 112
  %v1416 = vpop.permute.xlu0 %1415
  %1417 = vrot.lane.b32.xlu0 %v945, 112
  %v1418 = vpop.permute.xlu0 %1417
  %1419 = vrot.lane.b32.xlu0 %v948, 112
  %v1420 = vpop.permute.xlu0 %1419
  %1421 = vrot.lane.b32.xlu0 %v951, 112
  %v1422 = vpop.permute.xlu0 %1421
  %1423 = vrot.lane.b32.xlu0 %v954, 112
  %v1424 = vpop.permute.xlu0 %1423
  %1425 = vrot.lane.b32.xlu0 %v957, 112
  %v1426 = vpop.permute.xlu0 %1425
  %1427 = vrot.lane.b32.xlu0 %v960, 112
  %v1428 = vpop.permute.xlu0 %1427
  %1429 = vrot.lane.b32.xlu0 %v963, 112
  %v1430 = vpop.permute.xlu0 %1429
  %1431 = vrot.lane.b32.xlu0 %v966, 112
  %v1432 = vpop.permute.xlu0 %1431
  %1433 = vrot.lane.b32.xlu0 %v969, 112
  %v1434 = vpop.permute.xlu0 %1433
  %1435 = vrot.lane.b32.xlu0 %v972, 112
  %v1436 = vpop.permute.xlu0 %1435
  %1437 = vrot.lane.b32.xlu0 %v975, 112
  %v1438 = vpop.permute.xlu0 %1437
  %1439 = vrot.lane.b32.xlu0 %v978, 112
  %v1440 = vpop.permute.xlu0 %1439
  %1441 = vrot.lane.b32.xlu0 %v981, 112
  %v1442 = vpop.permute.xlu0 %1441
  %1443 = vrot.lane.b32.xlu0 %v984, 112
  %v1444 = vpop.permute.xlu0 %1443
  %1445 = vrot.lane.b32.xlu0 %v987, 112
  %v1446 = vpop.permute.xlu0 %1445
  %1447 = vrot.lane.b32.xlu0 %v990, 112
  %v1448 = vpop.permute.xlu0 %1447
  %1449 = vrot.lane.b32.xlu0 %v993, 112
  %v1450 = vpop.permute.xlu0 %1449
  %1451 = vrot.lane.b32.xlu0 %v996, 112
  %v1452 = vpop.permute.xlu0 %1451
  %1453 = vrot.lane.b32.xlu0 %v999, 112
  %v1454 = vpop.permute.xlu0 %1453
  %1455 = vrot.lane.b32.xlu0 %v1002, 112
  %v1456 = vpop.permute.xlu0 %1455
  %1457 = vrot.lane.b32.xlu0 %v1005, 112
  %v1458 = vpop.permute.xlu0 %1457
  %1459 = vrot.lane.b32.xlu0 %v1008, 112
  %v1460 = vpop.permute.xlu0 %1459
  %1461 = vrot.lane.b32.xlu0 %v1011, 112
  %v1462 = vpop.permute.xlu0 %1461
  %1463 = vrot.lane.b32.xlu0 %v1014, 112
  %v1464 = vpop.permute.xlu0 %1463
  %1465 = vrot.lane.b32.xlu0 %v1017, 112
  %v1466 = vpop.permute.xlu0 %1465
  %1467 = vrot.lane.b32.xlu0 %v1020, 112
  %v1468 = vpop.permute.xlu0 %1467
  %1469 = vrot.lane.b32.xlu0 %v1023, 112
  %v1470 = vpop.permute.xlu0 %1469
  %1471 = vrot.lane.b32.xlu0 %v1026, 112
  %v1472 = vpop.permute.xlu0 %1471
  %1473 = vrot.lane.b32.xlu0 %v1029, 112
  %v1474 = vpop.permute.xlu0 %1473
  %1475 = vrot.lane.b32.xlu0 %v1032, 112
  %v1476 = vpop.permute.xlu0 %1475
  %1477 = vrot.lane.b32.xlu0 %v1035, 112
  %v1478 = vpop.permute.xlu0 %1477
  %1479 = vrot.lane.b32.xlu0 %v1038, 112
  %v1480 = vpop.permute.xlu0 %1479
  %1481 = vrot.lane.b32.xlu0 %v1041, 112
  %v1482 = vpop.permute.xlu0 %1481
  %1483 = vrot.lane.b32.xlu0 %v1044, 112
  %v1484 = vpop.permute.xlu0 %1483
  %1485 = vrot.lane.b32.xlu0 %v1047, 112
  %v1486 = vpop.permute.xlu0 %1485
  %1487 = vrot.lane.b32.xlu0 %v1050, 112
  %v1488 = vpop.permute.xlu0 %1487
  %1489 = vrot.lane.b32.xlu0 %v1053, 112
  %v1490 = vpop.permute.xlu0 %1489
  %1491 = vrot.lane.b32.xlu0 %v1056, 112
  %v1492 = vpop.permute.xlu0 %1491
  %1493 = vrot.lane.b32.xlu0 %v1059, 112
  %v1494 = vpop.permute.xlu0 %1493
  %1495 = vrot.lane.b32.xlu0 %v1062, 112
  %v1496 = vpop.permute.xlu0 %1495
  %1497 = vrot.lane.b32.xlu0 %v1065, 112
  %v1498 = vpop.permute.xlu0 %1497
  %v1643 = vmax.f32 %v636, %v1212
  %v1644 = vmax.f32 %v639, %v1214
  %v1645 = vmax.f32 %v642, %v1216
  %v1646 = vmax.f32 %v645, %v1218
  %v1647 = vmax.f32 %v648, %v1220
  %v1648 = vmax.f32 %v651, %v1222
  %v1649 = vmax.f32 %v654, %v1224
  %v1650 = vmax.f32 %v657, %v1226
  %v1651 = vmax.f32 %v660, %v1228
  %v1652 = vmax.f32 %v663, %v1230
  %v1653 = vmax.f32 %v666, %v1232
  %v1654 = vmax.f32 %v669, %v1234
  %v1655 = vmax.f32 %v672, %v1236
  %v1656 = vmax.f32 %v675, %v1238
  %v1657 = vmax.f32 %v678, %v1240
  %v1658 = vmax.f32 %v681, %v1242
  %v1659 = vmax.f32 %v684, %v1244
  %v1660 = vmax.f32 %v687, %v1246
  %v1661 = vmax.f32 %v690, %v1248
  %v1662 = vmax.f32 %v693, %v1250
  %v1663 = vmax.f32 %v696, %v1252
  %v1664 = vmax.f32 %v699, %v1254
  %v1665 = vmax.f32 %v702, %v1256
  %v1666 = vmax.f32 %v705, %v1258
  %v1667 = vmax.f32 %v708, %v1260
  %v1668 = vmax.f32 %v711, %v1262
  %v1669 = vmax.f32 %v714, %v1264
  %v1670 = vmax.f32 %v717, %v1266
  %v1671 = vmax.f32 %v720, %v1268
  %v1672 = vmax.f32 %v723, %v1270
  %v1673 = vmax.f32 %v726, %v1272
  %v1674 = vmax.f32 %v729, %v1274
  %v1675 = vmax.f32 %v732, %v1276
  %v1676 = vmax.f32 %v735, %v1278
  %v1677 = vmax.f32 %v738, %v1280
  %v1678 = vmax.f32 %v741, %v1282
  %v1679 = vmax.f32 %v744, %v1284
  %v1680 = vmax.f32 %v747, %v1286
  %v1681 = vmax.f32 %v750, %v1288
  %v1682 = vmax.f32 %v753, %v1290
  %v1683 = vmax.f32 %v756, %v1292
  %v1684 = vmax.f32 %v759, %v1294
  %v1685 = vmax.f32 %v762, %v1296
  %v1686 = vmax.f32 %v765, %v1298
  %v1687 = vmax.f32 %v768, %v1300
  %v1688 = vmax.f32 %v771, %v1302
  %v1689 = vmax.f32 %v774, %v1304
  %v1690 = vmax.f32 %v777, %v1306
  %v1691 = vmax.f32 %v780, %v1308
  %v1692 = vmax.f32 %v783, %v1310
  %v1693 = vmax.f32 %v786, %v1312
  %v1694 = vmax.f32 %v789, %v1314
  %v1695 = vmax.f32 %v792, %v1316
  %v1696 = vmax.f32 %v795, %v1318
  %v1697 = vmax.f32 %v798, %v1320
  %v1698 = vmax.f32 %v801, %v1322
  %v1699 = vmax.f32 %v804, %v1324
  %v1700 = vmax.f32 %v807, %v1326
  %v1701 = vmax.f32 %v810, %v1328
  %v1702 = vmax.f32 %v813, %v1330
  %v1703 = vmax.f32 %v816, %v1332
  %v1704 = vmax.f32 %v819, %v1334
  %v1705 = vmax.f32 %v822, %v1336
  %v1706 = vmax.f32 %v825, %v1338
  %v1707 = vmax.f32 %v828, %v1340
  %v1708 = vmax.f32 %v831, %v1342
  %v1709 = vmax.f32 %v834, %v1344
  %v1710 = vmax.f32 %v837, %v1346
  %v1711 = vmax.f32 %v840, %v1348
  %v1712 = vmax.f32 %v843, %v1350
  %v1713 = vmax.f32 %v846, %v1352
  %v1714 = vmax.f32 %v849, %v1354
  %v1715 = vmax.f32 %v852, %v1356
  %v1716 = vmax.f32 %v855, %v1358
  %v1717 = vmax.f32 %v858, %v1360
  %v1718 = vmax.f32 %v861, %v1362
  %v1719 = vmax.f32 %v864, %v1364
  %v1720 = vmax.f32 %v867, %v1366
  %v1721 = vmax.f32 %v870, %v1368
  %v1722 = vmax.f32 %v873, %v1370
  %v1723 = vmax.f32 %v876, %v1372
  %v1724 = vmax.f32 %v879, %v1374
  %v1725 = vmax.f32 %v882, %v1376
  %v1726 = vmax.f32 %v885, %v1378
  %v1727 = vmax.f32 %v888, %v1380
  %v1728 = vmax.f32 %v891, %v1382
  %v1729 = vmax.f32 %v894, %v1384
  %v1730 = vmax.f32 %v897, %v1386
  %v1731 = vmax.f32 %v900, %v1388
  %v1732 = vmax.f32 %v903, %v1390
  %v1733 = vmax.f32 %v906, %v1392
  %v1734 = vmax.f32 %v909, %v1394
  %v1735 = vmax.f32 %v912, %v1396
  %v1736 = vmax.f32 %v915, %v1398
  %v1737 = vmax.f32 %v918, %v1400
  %v1738 = vmax.f32 %v921, %v1402
  %v1739 = vmax.f32 %v924, %v1404
  %v1740 = vmax.f32 %v927, %v1406
  %v1741 = vmax.f32 %v930, %v1408
  %v1742 = vmax.f32 %v933, %v1410
  %v1743 = vmax.f32 %v936, %v1412
  %v1744 = vmax.f32 %v939, %v1414
  %v1745 = vmax.f32 %v942, %v1416
  %v1746 = vmax.f32 %v945, %v1418
  %v1747 = vmax.f32 %v948, %v1420
  %v1748 = vmax.f32 %v951, %v1422
  %v1749 = vmax.f32 %v954, %v1424
  %v1750 = vmax.f32 %v957, %v1426
  %v1751 = vmax.f32 %v960, %v1428
  %v1752 = vmax.f32 %v963, %v1430
  %v1753 = vmax.f32 %v966, %v1432
  %v1754 = vmax.f32 %v969, %v1434
  %v1755 = vmax.f32 %v972, %v1436
  %v1756 = vmax.f32 %v975, %v1438
  %v1757 = vmax.f32 %v978, %v1440
  %v1758 = vmax.f32 %v981, %v1442
  %v1759 = vmax.f32 %v984, %v1444
  %v1760 = vmax.f32 %v987, %v1446
  %v1761 = vmax.f32 %v990, %v1448
  %v1762 = vmax.f32 %v993, %v1450
  %v1763 = vmax.f32 %v996, %v1452
  %v1764 = vmax.f32 %v999, %v1454
  %v1765 = vmax.f32 %v1002, %v1456
  %v1766 = vmax.f32 %v1005, %v1458
  %v1767 = vmax.f32 %v1008, %v1460
  %v1768 = vmax.f32 %v1011, %v1462
  %v1769 = vmax.f32 %v1014, %v1464
  %v1770 = vmax.f32 %v1017, %v1466
  %v1771 = vmax.f32 %v1020, %v1468
  %v1772 = vmax.f32 %v1023, %v1470
  %v1773 = vmax.f32 %v1026, %v1472
  %v1774 = vmax.f32 %v1029, %v1474
  %v1775 = vmax.f32 %v1032, %v1476
  %v1776 = vmax.f32 %v1035, %v1478
  %v1777 = vmax.f32 %v1038, %v1480
  %v1778 = vmax.f32 %v1041, %v1482
  %v1779 = vmax.f32 %v1044, %v1484
  %v1780 = vmax.f32 %v1047, %v1486
  %v1781 = vmax.f32 %v1050, %v1488
  %v1782 = vmax.f32 %v1053, %v1490
  %v1783 = vmax.f32 %v1056, %v1492
  %v1784 = vmax.f32 %v1059, %v1494
  %v1785 = vmax.f32 %v1062, %v1496
  %v1786 = vmax.f32 %v1065, %v1498
  %1931 = vrot.lane.b32.xlu0 %v1643, 96
  %v1932 = vpop.permute.xlu0 %1931
  %1933 = vrot.lane.b32.xlu0 %v1644, 96
  %v1934 = vpop.permute.xlu0 %1933
  %1935 = vrot.lane.b32.xlu0 %v1645, 96
  %v1936 = vpop.permute.xlu0 %1935
  %1937 = vrot.lane.b32.xlu0 %v1646, 96
  %v1938 = vpop.permute.xlu0 %1937
  %1939 = vrot.lane.b32.xlu0 %v1647, 96
  %v1940 = vpop.permute.xlu0 %1939
  %1941 = vrot.lane.b32.xlu0 %v1648, 96
  %v1942 = vpop.permute.xlu0 %1941
  %1943 = vrot.lane.b32.xlu0 %v1649, 96
  %v1944 = vpop.permute.xlu0 %1943
  %1945 = vrot.lane.b32.xlu0 %v1650, 96
  %v1946 = vpop.permute.xlu0 %1945
  %1947 = vrot.lane.b32.xlu0 %v1651, 96
  %v1948 = vpop.permute.xlu0 %1947
  %1949 = vrot.lane.b32.xlu0 %v1652, 96
  %v1950 = vpop.permute.xlu0 %1949
  %1951 = vrot.lane.b32.xlu0 %v1653, 96
  %v1952 = vpop.permute.xlu0 %1951
  %1953 = vrot.lane.b32.xlu0 %v1654, 96
  %v1954 = vpop.permute.xlu0 %1953
  %1955 = vrot.lane.b32.xlu0 %v1655, 96
  %v1956 = vpop.permute.xlu0 %1955
  %1957 = vrot.lane.b32.xlu0 %v1656, 96
  %v1958 = vpop.permute.xlu0 %1957
  %1959 = vrot.lane.b32.xlu0 %v1657, 96
  %v1960 = vpop.permute.xlu0 %1959
  %1961 = vrot.lane.b32.xlu0 %v1658, 96
  %v1962 = vpop.permute.xlu0 %1961
  %1963 = vrot.lane.b32.xlu0 %v1659, 96
  %v1964 = vpop.permute.xlu0 %1963
  %1965 = vrot.lane.b32.xlu0 %v1660, 96
  %v1966 = vpop.permute.xlu0 %1965
  %1967 = vrot.lane.b32.xlu0 %v1661, 96
  %v1968 = vpop.permute.xlu0 %1967
  %1969 = vrot.lane.b32.xlu0 %v1662, 96
  %v1970 = vpop.permute.xlu0 %1969
  %1971 = vrot.lane.b32.xlu0 %v1663, 96
  %v1972 = vpop.permute.xlu0 %1971
  %1973 = vrot.lane.b32.xlu0 %v1664, 96
  %v1974 = vpop.permute.xlu0 %1973
  %1975 = vrot.lane.b32.xlu0 %v1665, 96
  %v1976 = vpop.permute.xlu0 %1975
  %1977 = vrot.lane.b32.xlu0 %v1666, 96
  %v1978 = vpop.permute.xlu0 %1977
  %1979 = vrot.lane.b32.xlu0 %v1667, 96
  %v1980 = vpop.permute.xlu0 %1979
  %1981 = vrot.lane.b32.xlu0 %v1668, 96
  %v1982 = vpop.permute.xlu0 %1981
  %1983 = vrot.lane.b32.xlu0 %v1669, 96
  %v1984 = vpop.permute.xlu0 %1983
  %1985 = vrot.lane.b32.xlu0 %v1670, 96
  %v1986 = vpop.permute.xlu0 %1985
  %1987 = vrot.lane.b32.xlu0 %v1671, 96
  %v1988 = vpop.permute.xlu0 %1987
  %1989 = vrot.lane.b32.xlu0 %v1672, 96
  %v1990 = vpop.permute.xlu0 %1989
  %1991 = vrot.lane.b32.xlu0 %v1673, 96
  %v1992 = vpop.permute.xlu0 %1991
  %1993 = vrot.lane.b32.xlu0 %v1674, 96
  %v1994 = vpop.permute.xlu0 %1993
  %1995 = vrot.lane.b32.xlu0 %v1675, 96
  %v1996 = vpop.permute.xlu0 %1995
  %1997 = vrot.lane.b32.xlu0 %v1676, 96
  %v1998 = vpop.permute.xlu0 %1997
  %1999 = vrot.lane.b32.xlu0 %v1677, 96
  %v2000 = vpop.permute.xlu0 %1999
  %2001 = vrot.lane.b32.xlu0 %v1678, 96
  %v2002 = vpop.permute.xlu0 %2001
  %2003 = vrot.lane.b32.xlu0 %v1679, 96
  %v2004 = vpop.permute.xlu0 %2003
  %2005 = vrot.lane.b32.xlu0 %v1680, 96
  %v2006 = vpop.permute.xlu0 %2005
  %2007 = vrot.lane.b32.xlu0 %v1681, 96
  %v2008 = vpop.permute.xlu0 %2007
  %2009 = vrot.lane.b32.xlu0 %v1682, 96
  %v2010 = vpop.permute.xlu0 %2009
  %2011 = vrot.lane.b32.xlu0 %v1683, 96
  %v2012 = vpop.permute.xlu0 %2011
  %2013 = vrot.lane.b32.xlu0 %v1684, 96
  %v2014 = vpop.permute.xlu0 %2013
  %2015 = vrot.lane.b32.xlu0 %v1685, 96
  %v2016 = vpop.permute.xlu0 %2015
  %2017 = vrot.lane.b32.xlu0 %v1686, 96
  %v2018 = vpop.permute.xlu0 %2017
  %2019 = vrot.lane.b32.xlu0 %v1687, 96
  %v2020 = vpop.permute.xlu0 %2019
  %2021 = vrot.lane.b32.xlu0 %v1688, 96
  %v2022 = vpop.permute.xlu0 %2021
  %2023 = vrot.lane.b32.xlu0 %v1689, 96
  %v2024 = vpop.permute.xlu0 %2023
  %2025 = vrot.lane.b32.xlu0 %v1690, 96
  %v2026 = vpop.permute.xlu0 %2025
  %2027 = vrot.lane.b32.xlu0 %v1691, 96
  %v2028 = vpop.permute.xlu0 %2027
  %2029 = vrot.lane.b32.xlu0 %v1692, 96
  %v2030 = vpop.permute.xlu0 %2029
  %2031 = vrot.lane.b32.xlu0 %v1693, 96
  %v2032 = vpop.permute.xlu0 %2031
  %2033 = vrot.lane.b32.xlu0 %v1694, 96
  %v2034 = vpop.permute.xlu0 %2033
  %2035 = vrot.lane.b32.xlu0 %v1695, 96
  %v2036 = vpop.permute.xlu0 %2035
  %2037 = vrot.lane.b32.xlu0 %v1696, 96
  %v2038 = vpop.permute.xlu0 %2037
  %2039 = vrot.lane.b32.xlu0 %v1697, 96
  %v2040 = vpop.permute.xlu0 %2039
  %2041 = vrot.lane.b32.xlu0 %v1698, 96
  %v2042 = vpop.permute.xlu0 %2041
  %2043 = vrot.lane.b32.xlu0 %v1699, 96
  %v2044 = vpop.permute.xlu0 %2043
  %2045 = vrot.lane.b32.xlu0 %v1700, 96
  %v2046 = vpop.permute.xlu0 %2045
  %2047 = vrot.lane.b32.xlu0 %v1701, 96
  %v2048 = vpop.permute.xlu0 %2047
  %2049 = vrot.lane.b32.xlu0 %v1702, 96
  %v2050 = vpop.permute.xlu0 %2049
  %2051 = vrot.lane.b32.xlu0 %v1703, 96
  %v2052 = vpop.permute.xlu0 %2051
  %2053 = vrot.lane.b32.xlu0 %v1704, 96
  %v2054 = vpop.permute.xlu0 %2053
  %2055 = vrot.lane.b32.xlu0 %v1705, 96
  %v2056 = vpop.permute.xlu0 %2055
  %2057 = vrot.lane.b32.xlu0 %v1706, 96
  %v2058 = vpop.permute.xlu0 %2057
  %2059 = vrot.lane.b32.xlu0 %v1707, 96
  %v2060 = vpop.permute.xlu0 %2059
  %2061 = vrot.lane.b32.xlu0 %v1708, 96
  %v2062 = vpop.permute.xlu0 %2061
  %2063 = vrot.lane.b32.xlu0 %v1709, 96
  %v2064 = vpop.permute.xlu0 %2063
  %2065 = vrot.lane.b32.xlu0 %v1710, 96
  %v2066 = vpop.permute.xlu0 %2065
  %2067 = vrot.lane.b32.xlu0 %v1711, 96
  %v2068 = vpop.permute.xlu0 %2067
  %2069 = vrot.lane.b32.xlu0 %v1712, 96
  %v2070 = vpop.permute.xlu0 %2069
  %2071 = vrot.lane.b32.xlu0 %v1713, 96
  %v2072 = vpop.permute.xlu0 %2071
  %2073 = vrot.lane.b32.xlu0 %v1714, 96
  %v2074 = vpop.permute.xlu0 %2073
  %2075 = vrot.lane.b32.xlu0 %v1715, 96
  %v2076 = vpop.permute.xlu0 %2075
  %2077 = vrot.lane.b32.xlu0 %v1716, 96
  %v2078 = vpop.permute.xlu0 %2077
  %2079 = vrot.lane.b32.xlu0 %v1717, 96
  %v2080 = vpop.permute.xlu0 %2079
  %2081 = vrot.lane.b32.xlu0 %v1718, 96
  %v2082 = vpop.permute.xlu0 %2081
  %2083 = vrot.lane.b32.xlu0 %v1719, 96
  %v2084 = vpop.permute.xlu0 %2083
  %2085 = vrot.lane.b32.xlu0 %v1720, 96
  %v2086 = vpop.permute.xlu0 %2085
  %2087 = vrot.lane.b32.xlu0 %v1721, 96
  %v2088 = vpop.permute.xlu0 %2087
  %2089 = vrot.lane.b32.xlu0 %v1722, 96
  %v2090 = vpop.permute.xlu0 %2089
  %2091 = vrot.lane.b32.xlu0 %v1723, 96
  %v2092 = vpop.permute.xlu0 %2091
  %2093 = vrot.lane.b32.xlu0 %v1724, 96
  %v2094 = vpop.permute.xlu0 %2093
  %2095 = vrot.lane.b32.xlu0 %v1725, 96
  %v2096 = vpop.permute.xlu0 %2095
  %2097 = vrot.lane.b32.xlu0 %v1726, 96
  %v2098 = vpop.permute.xlu0 %2097
  %2099 = vrot.lane.b32.xlu0 %v1727, 96
  %v2100 = vpop.permute.xlu0 %2099
  %2101 = vrot.lane.b32.xlu0 %v1728, 96
  %v2102 = vpop.permute.xlu0 %2101
  %2103 = vrot.lane.b32.xlu0 %v1729, 96
  %v2104 = vpop.permute.xlu0 %2103
  %2105 = vrot.lane.b32.xlu0 %v1730, 96
  %v2106 = vpop.permute.xlu0 %2105
  %2107 = vrot.lane.b32.xlu0 %v1731, 96
  %v2108 = vpop.permute.xlu0 %2107
  %2109 = vrot.lane.b32.xlu0 %v1732, 96
  %v2110 = vpop.permute.xlu0 %2109
  %2111 = vrot.lane.b32.xlu0 %v1733, 96
  %v2112 = vpop.permute.xlu0 %2111
  %2113 = vrot.lane.b32.xlu0 %v1734, 96
  %v2114 = vpop.permute.xlu0 %2113
  %2115 = vrot.lane.b32.xlu0 %v1735, 96
  %v2116 = vpop.permute.xlu0 %2115
  %2117 = vrot.lane.b32.xlu0 %v1736, 96
  %v2118 = vpop.permute.xlu0 %2117
  %2119 = vrot.lane.b32.xlu0 %v1737, 96
  %v2120 = vpop.permute.xlu0 %2119
  %2121 = vrot.lane.b32.xlu0 %v1738, 96
  %v2122 = vpop.permute.xlu0 %2121
  %2123 = vrot.lane.b32.xlu0 %v1739, 96
  %v2124 = vpop.permute.xlu0 %2123
  %2125 = vrot.lane.b32.xlu0 %v1740, 96
  %v2126 = vpop.permute.xlu0 %2125
  %2127 = vrot.lane.b32.xlu0 %v1741, 96
  %v2128 = vpop.permute.xlu0 %2127
  %2129 = vrot.lane.b32.xlu0 %v1742, 96
  %v2130 = vpop.permute.xlu0 %2129
  %2131 = vrot.lane.b32.xlu0 %v1743, 96
  %v2132 = vpop.permute.xlu0 %2131
  %2133 = vrot.lane.b32.xlu0 %v1744, 96
  %v2134 = vpop.permute.xlu0 %2133
  %2135 = vrot.lane.b32.xlu0 %v1745, 96
  %v2136 = vpop.permute.xlu0 %2135
  %2137 = vrot.lane.b32.xlu0 %v1746, 96
  %v2138 = vpop.permute.xlu0 %2137
  %2139 = vrot.lane.b32.xlu0 %v1747, 96
  %v2140 = vpop.permute.xlu0 %2139
  %2141 = vrot.lane.b32.xlu0 %v1748, 96
  %v2142 = vpop.permute.xlu0 %2141
  %2143 = vrot.lane.b32.xlu0 %v1749, 96
  %v2144 = vpop.permute.xlu0 %2143
  %2145 = vrot.lane.b32.xlu0 %v1750, 96
  %v2146 = vpop.permute.xlu0 %2145
  %2147 = vrot.lane.b32.xlu0 %v1751, 96
  %v2148 = vpop.permute.xlu0 %2147
  %2149 = vrot.lane.b32.xlu0 %v1752, 96
  %v2150 = vpop.permute.xlu0 %2149
  %2151 = vrot.lane.b32.xlu0 %v1753, 96
  %v2152 = vpop.permute.xlu0 %2151
  %2153 = vrot.lane.b32.xlu0 %v1754, 96
  %v2154 = vpop.permute.xlu0 %2153
  %2155 = vrot.lane.b32.xlu0 %v1755, 96
  %v2156 = vpop.permute.xlu0 %2155
  %2157 = vrot.lane.b32.xlu0 %v1756, 96
  %v2158 = vpop.permute.xlu0 %2157
  %2159 = vrot.lane.b32.xlu0 %v1757, 96
  %v2160 = vpop.permute.xlu0 %2159
  %2161 = vrot.lane.b32.xlu0 %v1758, 96
  %v2162 = vpop.permute.xlu0 %2161
  %2163 = vrot.lane.b32.xlu0 %v1759, 96
  %v2164 = vpop.permute.xlu0 %2163
  %2165 = vrot.lane.b32.xlu0 %v1760, 96
  %v2166 = vpop.permute.xlu0 %2165
  %2167 = vrot.lane.b32.xlu0 %v1761, 96
  %v2168 = vpop.permute.xlu0 %2167
  %2169 = vrot.lane.b32.xlu0 %v1762, 96
  %v2170 = vpop.permute.xlu0 %2169
  %2171 = vrot.lane.b32.xlu0 %v1763, 96
  %v2172 = vpop.permute.xlu0 %2171
  %2173 = vrot.lane.b32.xlu0 %v1764, 96
  %v2174 = vpop.permute.xlu0 %2173
  %2175 = vrot.lane.b32.xlu0 %v1765, 96
  %v2176 = vpop.permute.xlu0 %2175
  %2177 = vrot.lane.b32.xlu0 %v1766, 96
  %v2178 = vpop.permute.xlu0 %2177
  %2179 = vrot.lane.b32.xlu0 %v1767, 96
  %v2180 = vpop.permute.xlu0 %2179
  %2181 = vrot.lane.b32.xlu0 %v1768, 96
  %v2182 = vpop.permute.xlu0 %2181
  %2183 = vrot.lane.b32.xlu0 %v1769, 96
  %v2184 = vpop.permute.xlu0 %2183
  %2185 = vrot.lane.b32.xlu0 %v1770, 96
  %v2186 = vpop.permute.xlu0 %2185
  %2187 = vrot.lane.b32.xlu0 %v1771, 96
  %v2188 = vpop.permute.xlu0 %2187
  %2189 = vrot.lane.b32.xlu0 %v1772, 96
  %v2190 = vpop.permute.xlu0 %2189
  %2191 = vrot.lane.b32.xlu0 %v1773, 96
  %v2192 = vpop.permute.xlu0 %2191
  %2193 = vrot.lane.b32.xlu0 %v1774, 96
  %v2194 = vpop.permute.xlu0 %2193
  %2195 = vrot.lane.b32.xlu0 %v1775, 96
  %v2196 = vpop.permute.xlu0 %2195
  %2197 = vrot.lane.b32.xlu0 %v1776, 96
  %v2198 = vpop.permute.xlu0 %2197
  %2199 = vrot.lane.b32.xlu0 %v1777, 96
  %v2200 = vpop.permute.xlu0 %2199
  %2201 = vrot.lane.b32.xlu0 %v1778, 96
  %v2202 = vpop.permute.xlu0 %2201
  %2203 = vrot.lane.b32.xlu0 %v1779, 96
  %v2204 = vpop.permute.xlu0 %2203
  %2205 = vrot.lane.b32.xlu0 %v1780, 96
  %v2206 = vpop.permute.xlu0 %2205
  %2207 = vrot.lane.b32.xlu0 %v1781, 96
  %v2208 = vpop.permute.xlu0 %2207
  %2209 = vrot.lane.b32.xlu0 %v1782, 96
  %v2210 = vpop.permute.xlu0 %2209
  %2211 = vrot.lane.b32.xlu0 %v1783, 96
  %v2212 = vpop.permute.xlu0 %2211
  %2213 = vrot.lane.b32.xlu0 %v1784, 96
  %v2214 = vpop.permute.xlu0 %2213
  %2215 = vrot.lane.b32.xlu0 %v1785, 96
  %v2216 = vpop.permute.xlu0 %2215
  %2217 = vrot.lane.b32.xlu0 %v1786, 96
  %v2218 = vpop.permute.xlu0 %2217
  %v2363 = vmax.f32 %v1643, %v1932
  %v2364 = vmax.f32 %v1644, %v1934
  %v2365 = vmax.f32 %v1645, %v1936
  %v2366 = vmax.f32 %v1646, %v1938
  %v2367 = vmax.f32 %v1647, %v1940
  %v2368 = vmax.f32 %v1648, %v1942
  %v2369 = vmax.f32 %v1649, %v1944
  %v2370 = vmax.f32 %v1650, %v1946
  %v2371 = vmax.f32 %v1651, %v1948
  %v2372 = vmax.f32 %v1652, %v1950
  %v2373 = vmax.f32 %v1653, %v1952
  %v2374 = vmax.f32 %v1654, %v1954
  %v2375 = vmax.f32 %v1655, %v1956
  %v2376 = vmax.f32 %v1656, %v1958
  %v2377 = vmax.f32 %v1657, %v1960
  %v2378 = vmax.f32 %v1658, %v1962
  %v2379 = vmax.f32 %v1659, %v1964
  %v2380 = vmax.f32 %v1660, %v1966
  %v2381 = vmax.f32 %v1661, %v1968
  %v2382 = vmax.f32 %v1662, %v1970
  %v2383 = vmax.f32 %v1663, %v1972
  %v2384 = vmax.f32 %v1664, %v1974
  %v2385 = vmax.f32 %v1665, %v1976
  %v2386 = vmax.f32 %v1666, %v1978
  %v2387 = vmax.f32 %v1667, %v1980
  %v2388 = vmax.f32 %v1668, %v1982
  %v2389 = vmax.f32 %v1669, %v1984
  %v2390 = vmax.f32 %v1670, %v1986
  %v2391 = vmax.f32 %v1671, %v1988
  %v2392 = vmax.f32 %v1672, %v1990
  %v2393 = vmax.f32 %v1673, %v1992
  %v2394 = vmax.f32 %v1674, %v1994
  %v2395 = vmax.f32 %v1675, %v1996
  %v2396 = vmax.f32 %v1676, %v1998
  %v2397 = vmax.f32 %v1677, %v2000
  %v2398 = vmax.f32 %v1678, %v2002
  %v2399 = vmax.f32 %v1679, %v2004
  %v2400 = vmax.f32 %v1680, %v2006
  %v2401 = vmax.f32 %v1681, %v2008
  %v2402 = vmax.f32 %v1682, %v2010
  %v2403 = vmax.f32 %v1683, %v2012
  %v2404 = vmax.f32 %v1684, %v2014
  %v2405 = vmax.f32 %v1685, %v2016
  %v2406 = vmax.f32 %v1686, %v2018
  %v2407 = vmax.f32 %v1687, %v2020
  %v2408 = vmax.f32 %v1688, %v2022
  %v2409 = vmax.f32 %v1689, %v2024
  %v2410 = vmax.f32 %v1690, %v2026
  %v2411 = vmax.f32 %v1691, %v2028
  %v2412 = vmax.f32 %v1692, %v2030
  %v2413 = vmax.f32 %v1693, %v2032
  %v2414 = vmax.f32 %v1694, %v2034
  %v2415 = vmax.f32 %v1695, %v2036
  %v2416 = vmax.f32 %v1696, %v2038
  %v2417 = vmax.f32 %v1697, %v2040
  %v2418 = vmax.f32 %v1698, %v2042
  %v2419 = vmax.f32 %v1699, %v2044
  %v2420 = vmax.f32 %v1700, %v2046
  %v2421 = vmax.f32 %v1701, %v2048
  %v2422 = vmax.f32 %v1702, %v2050
  %v2423 = vmax.f32 %v1703, %v2052
  %v2424 = vmax.f32 %v1704, %v2054
  %v2425 = vmax.f32 %v1705, %v2056
  %v2426 = vmax.f32 %v1706, %v2058
  %v2427 = vmax.f32 %v1707, %v2060
  %v2428 = vmax.f32 %v1708, %v2062
  %v2429 = vmax.f32 %v1709, %v2064
  %v2430 = vmax.f32 %v1710, %v2066
  %v2431 = vmax.f32 %v1711, %v2068
  %v2432 = vmax.f32 %v1712, %v2070
  %v2433 = vmax.f32 %v1713, %v2072
  %v2434 = vmax.f32 %v1714, %v2074
  %v2435 = vmax.f32 %v1715, %v2076
  %v2436 = vmax.f32 %v1716, %v2078
  %v2437 = vmax.f32 %v1717, %v2080
  %v2438 = vmax.f32 %v1718, %v2082
  %v2439 = vmax.f32 %v1719, %v2084
  %v2440 = vmax.f32 %v1720, %v2086
  %v2441 = vmax.f32 %v1721, %v2088
  %v2442 = vmax.f32 %v1722, %v2090
  %v2443 = vmax.f32 %v1723, %v2092
  %v2444 = vmax.f32 %v1724, %v2094
  %v2445 = vmax.f32 %v1725, %v2096
  %v2446 = vmax.f32 %v1726, %v2098
  %v2447 = vmax.f32 %v1727, %v2100
  %v2448 = vmax.f32 %v1728, %v2102
  %v2449 = vmax.f32 %v1729, %v2104
  %v2450 = vmax.f32 %v1730, %v2106
  %v2451 = vmax.f32 %v1731, %v2108
  %v2452 = vmax.f32 %v1732, %v2110
  %v2453 = vmax.f32 %v1733, %v2112
  %v2454 = vmax.f32 %v1734, %v2114
  %v2455 = vmax.f32 %v1735, %v2116
  %v2456 = vmax.f32 %v1736, %v2118
  %v2457 = vmax.f32 %v1737, %v2120
  %v2458 = vmax.f32 %v1738, %v2122
  %v2459 = vmax.f32 %v1739, %v2124
  %v2460 = vmax.f32 %v1740, %v2126
  %v2461 = vmax.f32 %v1741, %v2128
  %v2462 = vmax.f32 %v1742, %v2130
  %v2463 = vmax.f32 %v1743, %v2132
  %v2464 = vmax.f32 %v1744, %v2134
  %v2465 = vmax.f32 %v1745, %v2136
  %v2466 = vmax.f32 %v1746, %v2138
  %v2467 = vmax.f32 %v1747, %v2140
  %v2468 = vmax.f32 %v1748, %v2142
  %v2469 = vmax.f32 %v1749, %v2144
  %v2470 = vmax.f32 %v1750, %v2146
  %v2471 = vmax.f32 %v1751, %v2148
  %v2472 = vmax.f32 %v1752, %v2150
  %v2473 = vmax.f32 %v1753, %v2152
  %v2474 = vmax.f32 %v1754, %v2154
  %v2475 = vmax.f32 %v1755, %v2156
  %v2476 = vmax.f32 %v1756, %v2158
  %v2477 = vmax.f32 %v1757, %v2160
  %v2478 = vmax.f32 %v1758, %v2162
  %v2479 = vmax.f32 %v1759, %v2164
  %v2480 = vmax.f32 %v1760, %v2166
  %v2481 = vmax.f32 %v1761, %v2168
  %v2482 = vmax.f32 %v1762, %v2170
  %v2483 = vmax.f32 %v1763, %v2172
  %v2484 = vmax.f32 %v1764, %v2174
  %v2485 = vmax.f32 %v1765, %v2176
  %v2486 = vmax.f32 %v1766, %v2178
  %v2487 = vmax.f32 %v1767, %v2180
  %v2488 = vmax.f32 %v1768, %v2182
  %v2489 = vmax.f32 %v1769, %v2184
  %v2490 = vmax.f32 %v1770, %v2186
  %v2491 = vmax.f32 %v1771, %v2188
  %v2492 = vmax.f32 %v1772, %v2190
  %v2493 = vmax.f32 %v1773, %v2192
  %v2494 = vmax.f32 %v1774, %v2194
  %v2495 = vmax.f32 %v1775, %v2196
  %v2496 = vmax.f32 %v1776, %v2198
  %v2497 = vmax.f32 %v1777, %v2200
  %v2498 = vmax.f32 %v1778, %v2202
  %v2499 = vmax.f32 %v1779, %v2204
  %v2500 = vmax.f32 %v1780, %v2206
  %v2501 = vmax.f32 %v1781, %v2208
  %v2502 = vmax.f32 %v1782, %v2210
  %v2503 = vmax.f32 %v1783, %v2212
  %v2504 = vmax.f32 %v1784, %v2214
  %v2505 = vmax.f32 %v1785, %v2216
  %v2506 = vmax.f32 %v1786, %v2218
  %v2507 = vld [vmem:[%s2] sm:$0x1]
  %v2509 = vperm.slane %v2507, 0
  %v2511 = vadd.f32 %v2363, %v2509
  %v2512 = vadd.f32 %v2364, %v2509
  %v2513 = vadd.f32 %v2365, %v2509
  %v2514 = vadd.f32 %v2366, %v2509
  %v2515 = vadd.f32 %v2367, %v2509
  %v2516 = vadd.f32 %v2368, %v2509
  %v2517 = vadd.f32 %v2369, %v2509
  %v2518 = vadd.f32 %v2370, %v2509
  %v2519 = vadd.f32 %v2371, %v2509
  %v2520 = vadd.f32 %v2372, %v2509
  %v2521 = vadd.f32 %v2373, %v2509
  %v2522 = vadd.f32 %v2374, %v2509
  %v2523 = vadd.f32 %v2375, %v2509
  %v2524 = vadd.f32 %v2376, %v2509
  %v2525 = vadd.f32 %v2377, %v2509
  %v2526 = vadd.f32 %v2378, %v2509
  %v2527 = vadd.f32 %v2379, %v2509
  %v2528 = vadd.f32 %v2380, %v2509
  %v2529 = vadd.f32 %v2381, %v2509
  %v2530 = vadd.f32 %v2382, %v2509
  %v2531 = vadd.f32 %v2383, %v2509
  %v2532 = vadd.f32 %v2384, %v2509
  %v2533 = vadd.f32 %v2385, %v2509
  %v2534 = vadd.f32 %v2386, %v2509
  %v2535 = vadd.f32 %v2387, %v2509
  %v2536 = vadd.f32 %v2388, %v2509
  %v2537 = vadd.f32 %v2389, %v2509
  %v2538 = vadd.f32 %v2390, %v2509
  %v2539 = vadd.f32 %v2391, %v2509
  %v2540 = vadd.f32 %v2392, %v2509
  %v2541 = vadd.f32 %v2393, %v2509
  %v2542 = vadd.f32 %v2394, %v2509
  %v2543 = vadd.f32 %v2395, %v2509
  %v2544 = vadd.f32 %v2396, %v2509
  %v2545 = vadd.f32 %v2397, %v2509
  %v2546 = vadd.f32 %v2398, %v2509
  %v2547 = vadd.f32 %v2399, %v2509
  %v2548 = vadd.f32 %v2400, %v2509
  %v2549 = vadd.f32 %v2401, %v2509
  %v2550 = vadd.f32 %v2402, %v2509
  %v2551 = vadd.f32 %v2403, %v2509
  %v2552 = vadd.f32 %v2404, %v2509
  %v2553 = vadd.f32 %v2405, %v2509
  %v2554 = vadd.f32 %v2406, %v2509
  %v2555 = vadd.f32 %v2407, %v2509
  %v2556 = vadd.f32 %v2408, %v2509
  %v2557 = vadd.f32 %v2409, %v2509
  %v2558 = vadd.f32 %v2410, %v2509
  %v2559 = vadd.f32 %v2411, %v2509
  %v2560 = vadd.f32 %v2412, %v2509
  %v2561 = vadd.f32 %v2413, %v2509
  %v2562 = vadd.f32 %v2414, %v2509
  %v2563 = vadd.f32 %v2415, %v2509
  %v2564 = vadd.f32 %v2416, %v2509
  %v2565 = vadd.f32 %v2417, %v2509
  %v2566 = vadd.f32 %v2418, %v2509
  %v2567 = vadd.f32 %v2419, %v2509
  %v2568 = vadd.f32 %v2420, %v2509
  %v2569 = vadd.f32 %v2421, %v2509
  %v2570 = vadd.f32 %v2422, %v2509
  %v2571 = vadd.f32 %v2423, %v2509
  %v2572 = vadd.f32 %v2424, %v2509
  %v2573 = vadd.f32 %v2425, %v2509
  %v2574 = vadd.f32 %v2426, %v2509
  %v2575 = vadd.f32 %v2427, %v2509
  %v2576 = vadd.f32 %v2428, %v2509
  %v2577 = vadd.f32 %v2429, %v2509
  %v2578 = vadd.f32 %v2430, %v2509
  %v2579 = vadd.f32 %v2431, %v2509
  %v2580 = vadd.f32 %v2432, %v2509
  %v2581 = vadd.f32 %v2433, %v2509
  %v2582 = vadd.f32 %v2434, %v2509
  %v2583 = vadd.f32 %v2435, %v2509
  %v2584 = vadd.f32 %v2436, %v2509
  %v2585 = vadd.f32 %v2437, %v2509
  %v2586 = vadd.f32 %v2438, %v2509
  %v2587 = vadd.f32 %v2439, %v2509
  %v2588 = vadd.f32 %v2440, %v2509
  %v2589 = vadd.f32 %v2441, %v2509
  %v2590 = vadd.f32 %v2442, %v2509
  %v2591 = vadd.f32 %v2443, %v2509
  %v2592 = vadd.f32 %v2444, %v2509
  %v2593 = vadd.f32 %v2445, %v2509
  %v2594 = vadd.f32 %v2446, %v2509
  %v2595 = vadd.f32 %v2447, %v2509
  %v2596 = vadd.f32 %v2448, %v2509
  %v2597 = vadd.f32 %v2449, %v2509
  %v2598 = vadd.f32 %v2450, %v2509
  %v2599 = vadd.f32 %v2451, %v2509
  %v2600 = vadd.f32 %v2452, %v2509
  %v2601 = vadd.f32 %v2453, %v2509
  %v2602 = vadd.f32 %v2454, %v2509
  %v2603 = vadd.f32 %v2455, %v2509
  %v2604 = vadd.f32 %v2456, %v2509
  %v2605 = vadd.f32 %v2457, %v2509
  %v2606 = vadd.f32 %v2458, %v2509
  %v2607 = vadd.f32 %v2459, %v2509
  %v2608 = vadd.f32 %v2460, %v2509
  %v2609 = vadd.f32 %v2461, %v2509
  %v2610 = vadd.f32 %v2462, %v2509
  %v2611 = vadd.f32 %v2463, %v2509
  %v2612 = vadd.f32 %v2464, %v2509
  %v2613 = vadd.f32 %v2465, %v2509
  %v2614 = vadd.f32 %v2466, %v2509
  %v2615 = vadd.f32 %v2467, %v2509
  %v2616 = vadd.f32 %v2468, %v2509
  %v2617 = vadd.f32 %v2469, %v2509
  %v2618 = vadd.f32 %v2470, %v2509
  %v2619 = vadd.f32 %v2471, %v2509
  %v2620 = vadd.f32 %v2472, %v2509
  %v2621 = vadd.f32 %v2473, %v2509
  %v2622 = vadd.f32 %v2474, %v2509
  %v2623 = vadd.f32 %v2475, %v2509
  %v2624 = vadd.f32 %v2476, %v2509
  %v2625 = vadd.f32 %v2477, %v2509
  %v2626 = vadd.f32 %v2478, %v2509
  %v2627 = vadd.f32 %v2479, %v2509
  %v2628 = vadd.f32 %v2480, %v2509
  %v2629 = vadd.f32 %v2481, %v2509
  %v2630 = vadd.f32 %v2482, %v2509
  %v2631 = vadd.f32 %v2483, %v2509
  %v2632 = vadd.f32 %v2484, %v2509
  %v2633 = vadd.f32 %v2485, %v2509
  %v2634 = vadd.f32 %v2486, %v2509
  %v2635 = vadd.f32 %v2487, %v2509
  %v2636 = vadd.f32 %v2488, %v2509
  %v2637 = vadd.f32 %v2489, %v2509
  %v2638 = vadd.f32 %v2490, %v2509
  %v2639 = vadd.f32 %v2491, %v2509
  %v2640 = vadd.f32 %v2492, %v2509
  %v2641 = vadd.f32 %v2493, %v2509
  %v2642 = vadd.f32 %v2494, %v2509
  %v2643 = vadd.f32 %v2495, %v2509
  %v2644 = vadd.f32 %v2496, %v2509
  %v2645 = vadd.f32 %v2497, %v2509
  %v2646 = vadd.f32 %v2498, %v2509
  %v2647 = vadd.f32 %v2499, %v2509
  %v2648 = vadd.f32 %v2500, %v2509
  %v2649 = vadd.f32 %v2501, %v2509
  %v2650 = vadd.f32 %v2502, %v2509
  %v2651 = vadd.f32 %v2503, %v2509
  %v2652 = vadd.f32 %v2504, %v2509
  %v2653 = vadd.f32 %v2505, %v2509
  %v2654 = vadd.f32 %v2506, %v2509
  %v2655 = vmax.f32 %v2511, 0.0
  %v2656 = vmax.f32 %v2512, 0.0
  %v2657 = vmax.f32 %v2513, 0.0
  %v2658 = vmax.f32 %v2514, 0.0
  %v2659 = vmax.f32 %v2515, 0.0
  %v2660 = vmax.f32 %v2516, 0.0
  %v2661 = vmax.f32 %v2517, 0.0
  %v2662 = vmax.f32 %v2518, 0.0
  %v2663 = vmax.f32 %v2519, 0.0
  %v2664 = vmax.f32 %v2520, 0.0
  %v2665 = vmax.f32 %v2521, 0.0
  %v2666 = vmax.f32 %v2522, 0.0
  %v2667 = vmax.f32 %v2523, 0.0
  %v2668 = vmax.f32 %v2524, 0.0
  %v2669 = vmax.f32 %v2525, 0.0
  %v2670 = vmax.f32 %v2526, 0.0
  %v2671 = vmax.f32 %v2527, 0.0
  %v2672 = vmax.f32 %v2528, 0.0
  %v2673 = vmax.f32 %v2529, 0.0
  %v2674 = vmax.f32 %v2530, 0.0
  %v2675 = vmax.f32 %v2531, 0.0
  %v2676 = vmax.f32 %v2532, 0.0
  %v2677 = vmax.f32 %v2533, 0.0
  %v2678 = vmax.f32 %v2534, 0.0
  %v2679 = vmax.f32 %v2535, 0.0
  %v2680 = vmax.f32 %v2536, 0.0
  %v2681 = vmax.f32 %v2537, 0.0
  %v2682 = vmax.f32 %v2538, 0.0
  %v2683 = vmax.f32 %v2539, 0.0
  %v2684 = vmax.f32 %v2540, 0.0
  %v2685 = vmax.f32 %v2541, 0.0
  %v2686 = vmax.f32 %v2542, 0.0
  %v2687 = vmax.f32 %v2543, 0.0
  %v2688 = vmax.f32 %v2544, 0.0
  %v2689 = vmax.f32 %v2545, 0.0
  %v2690 = vmax.f32 %v2546, 0.0
  %v2691 = vmax.f32 %v2547, 0.0
  %v2692 = vmax.f32 %v2548, 0.0
  %v2693 = vmax.f32 %v2549, 0.0
  %v2694 = vmax.f32 %v2550, 0.0
  %v2695 = vmax.f32 %v2551, 0.0
  %v2696 = vmax.f32 %v2552, 0.0
  %v2697 = vmax.f32 %v2553, 0.0
  %v2698 = vmax.f32 %v2554, 0.0
  %v2699 = vmax.f32 %v2555, 0.0
  %v2700 = vmax.f32 %v2556, 0.0
  %v2701 = vmax.f32 %v2557, 0.0
  %v2702 = vmax.f32 %v2558, 0.0
  %v2703 = vmax.f32 %v2559, 0.0
  %v2704 = vmax.f32 %v2560, 0.0
  %v2705 = vmax.f32 %v2561, 0.0
  %v2706 = vmax.f32 %v2562, 0.0
  %v2707 = vmax.f32 %v2563, 0.0
  %v2708 = vmax.f32 %v2564, 0.0
  %v2709 = vmax.f32 %v2565, 0.0
  %v2710 = vmax.f32 %v2566, 0.0
  %v2711 = vmax.f32 %v2567, 0.0
  %v2712 = vmax.f32 %v2568, 0.0
  %v2713 = vmax.f32 %v2569, 0.0
  %v2714 = vmax.f32 %v2570, 0.0
  %v2715 = vmax.f32 %v2571, 0.0
  %v2716 = vmax.f32 %v2572, 0.0
  %v2717 = vmax.f32 %v2573, 0.0
  %v2718 = vmax.f32 %v2574, 0.0
  %v2719 = vmax.f32 %v2575, 0.0
  %v2720 = vmax.f32 %v2576, 0.0
  %v2721 = vmax.f32 %v2577, 0.0
  %v2722 = vmax.f32 %v2578, 0.0
  %v2723 = vmax.f32 %v2579, 0.0
  %v2724 = vmax.f32 %v2580, 0.0
  %v2725 = vmax.f32 %v2581, 0.0
  %v2726 = vmax.f32 %v2582, 0.0
  %v2727 = vmax.f32 %v2583, 0.0
  %v2728 = vmax.f32 %v2584, 0.0
  %v2729 = vmax.f32 %v2585, 0.0
  %v2730 = vmax.f32 %v2586, 0.0
  %v2731 = vmax.f32 %v2587, 0.0
  %v2732 = vmax.f32 %v2588, 0.0
  %v2733 = vmax.f32 %v2589, 0.0
  %v2734 = vmax.f32 %v2590, 0.0
  %v2735 = vmax.f32 %v2591, 0.0
  %v2736 = vmax.f32 %v2592, 0.0
  %v2737 = vmax.f32 %v2593, 0.0
  %v2738 = vmax.f32 %v2594, 0.0
  %v2739 = vmax.f32 %v2595, 0.0
  %v2740 = vmax.f32 %v2596, 0.0
  %v2741 = vmax.f32 %v2597, 0.0
  %v2742 = vmax.f32 %v2598, 0.0
  %v2743 = vmax.f32 %v2599, 0.0
  %v2744 = vmax.f32 %v2600, 0.0
  %v2745 = vmax.f32 %v2601, 0.0
  %v2746 = vmax.f32 %v2602, 0.0
  %v2747 = vmax.f32 %v2603, 0.0
  %v2748 = vmax.f32 %v2604, 0.0
  %v2749 = vmax.f32 %v2605, 0.0
  %v2750 = vmax.f32 %v2606, 0.0
  %v2751 = vmax.f32 %v2607, 0.0
  %v2752 = vmax.f32 %v2608, 0.0
  %v2753 = vmax.f32 %v2609, 0.0
  %v2754 = vmax.f32 %v2610, 0.0
  %v2755 = vmax.f32 %v2611, 0.0
  %v2756 = vmax.f32 %v2612, 0.0
  %v2757 = vmax.f32 %v2613, 0.0
  %v2758 = vmax.f32 %v2614, 0.0
  %v2759 = vmax.f32 %v2615, 0.0
  %v2760 = vmax.f32 %v2616, 0.0
  %v2761 = vmax.f32 %v2617, 0.0
  %v2762 = vmax.f32 %v2618, 0.0
  %v2763 = vmax.f32 %v2619, 0.0
  %v2764 = vmax.f32 %v2620, 0.0
  %v2765 = vmax.f32 %v2621, 0.0
  %v2766 = vmax.f32 %v2622, 0.0
  %v2767 = vmax.f32 %v2623, 0.0
  %v2768 = vmax.f32 %v2624, 0.0
  %v2769 = vmax.f32 %v2625, 0.0
  %v2770 = vmax.f32 %v2626, 0.0
  %v2771 = vmax.f32 %v2627, 0.0
  %v2772 = vmax.f32 %v2628, 0.0
  %v2773 = vmax.f32 %v2629, 0.0
  %v2774 = vmax.f32 %v2630, 0.0
  %v2775 = vmax.f32 %v2631, 0.0
  %v2776 = vmax.f32 %v2632, 0.0
  %v2777 = vmax.f32 %v2633, 0.0
  %v2778 = vmax.f32 %v2634, 0.0
  %v2779 = vmax.f32 %v2635, 0.0
  %v2780 = vmax.f32 %v2636, 0.0
  %v2781 = vmax.f32 %v2637, 0.0
  %v2782 = vmax.f32 %v2638, 0.0
  %v2783 = vmax.f32 %v2639, 0.0
  %v2784 = vmax.f32 %v2640, 0.0
  %v2785 = vmax.f32 %v2641, 0.0
  %v2786 = vmax.f32 %v2642, 0.0
  %v2787 = vmax.f32 %v2643, 0.0
  %v2788 = vmax.f32 %v2644, 0.0
  %v2789 = vmax.f32 %v2645, 0.0
  %v2790 = vmax.f32 %v2646, 0.0
  %v2791 = vmax.f32 %v2647, 0.0
  %v2792 = vmax.f32 %v2648, 0.0
  %v2793 = vmax.f32 %v2649, 0.0
  %v2794 = vmax.f32 %v2650, 0.0
  %v2795 = vmax.f32 %v2651, 0.0
  %v2796 = vmax.f32 %v2652, 0.0
  %v2797 = vmax.f32 %v2653, 0.0
  %v2798 = vmax.f32 %v2654, 0.0
  %vm2799 = vcmask 130048
  %2800 = vst.msk [vmem:[#allocation2] sm:$0xff] %vm2799, %v2655
  %2801 = vst.msk [vmem:[#allocation2 + $0x8] sm:$0xff] %vm2799, %v2656
  %2802 = vst.msk [vmem:[#allocation2 + $0x10] sm:$0xff] %vm2799, %v2657
  %2803 = vst.msk [vmem:[#allocation2 + $0x18] sm:$0xff] %vm2799, %v2658
  %2804 = vst.msk [vmem:[#allocation2 + $0x20] sm:$0xff] %vm2799, %v2659
  %2805 = vst.msk [vmem:[#allocation2 + $0x28] sm:$0xff] %vm2799, %v2660
  %s2806 = scalar_lea.vmem [#allocation2], 48
  %2807 = vst.msk [vmem:[%s2806] sm:$0xff] %vm2799, %v2661
  %2808 = vst.msk [vmem:[%s2806 + $0x8] sm:$0xff] %vm2799, %v2662
  %2809 = vst.msk [vmem:[%s2806 + $0x10] sm:$0xff] %vm2799, %v2663
  %2810 = vst.msk [vmem:[%s2806 + $0x18] sm:$0xff] %vm2799, %v2664
  %2811 = vst.msk [vmem:[%s2806 + $0x20] sm:$0xff] %vm2799, %v2665
  %2812 = vst.msk [vmem:[%s2806 + $0x28] sm:$0xff] %vm2799, %v2666
  %s2813 = scalar_lea.vmem [#allocation2], 96
  %2814 = vst.msk [vmem:[%s2813] sm:$0xff] %vm2799, %v2667
  %2815 = vst.msk [vmem:[%s2813 + $0x8] sm:$0xff] %vm2799, %v2668
  %2816 = vst.msk [vmem:[%s2813 + $0x10] sm:$0xff] %vm2799, %v2669
  %2817 = vst.msk [vmem:[%s2813 + $0x18] sm:$0xff] %vm2799, %v2670
  %2818 = vst.msk [vmem:[%s2813 + $0x20] sm:$0xff] %vm2799, %v2671
  %2819 = vst.msk [vmem:[%s2813 + $0x28] sm:$0xff] %vm2799, %v2672
  %s2820 = scalar_lea.vmem [#allocation2], 144
  %2821 = vst.msk [vmem:[%s2820] sm:$0xff] %vm2799, %v2673
  %2822 = vst.msk [vmem:[%s2820 + $0x8] sm:$0xff] %vm2799, %v2674
  %2823 = vst.msk [vmem:[%s2820 + $0x10] sm:$0xff] %vm2799, %v2675
  %2824 = vst.msk [vmem:[%s2820 + $0x18] sm:$0xff] %vm2799, %v2676
  %2825 = vst.msk [vmem:[%s2820 + $0x20] sm:$0xff] %vm2799, %v2677
  %2826 = vst.msk [vmem:[%s2820 + $0x28] sm:$0xff] %vm2799, %v2678
  %s2827 = scalar_lea.vmem [#allocation2], 192
  %2828 = vst.msk [vmem:[%s2827] sm:$0xff] %vm2799, %v2679
  %2829 = vst.msk [vmem:[%s2827 + $0x8] sm:$0xff] %vm2799, %v2680
  %2830 = vst.msk [vmem:[%s2827 + $0x10] sm:$0xff] %vm2799, %v2681
  %2831 = vst.msk [vmem:[%s2827 + $0x18] sm:$0xff] %vm2799, %v2682
  %2832 = vst.msk [vmem:[%s2827 + $0x20] sm:$0xff] %vm2799, %v2683
  %2833 = vst.msk [vmem:[%s2827 + $0x28] sm:$0xff] %vm2799, %v2684
  %s2834 = scalar_lea.vmem [#allocation2], 240
  %2835 = vst.msk [vmem:[%s2834] sm:$0xff] %vm2799, %v2685
  %2836 = vst.msk [vmem:[%s2834 + $0x8] sm:$0xff] %vm2799, %v2686
  %2837 = vst.msk [vmem:[%s2834 + $0x10] sm:$0xff] %vm2799, %v2687
  %2838 = vst.msk [vmem:[%s2834 + $0x18] sm:$0xff] %vm2799, %v2688
  %2839 = vst.msk [vmem:[%s2834 + $0x20] sm:$0xff] %vm2799, %v2689
  %2840 = vst.msk [vmem:[%s2834 + $0x28] sm:$0xff] %vm2799, %v2690
  %s2841 = scalar_lea.vmem [#allocation2], 288
  %2842 = vst.msk [vmem:[%s2841] sm:$0xff] %vm2799, %v2691
  %2843 = vst.msk [vmem:[%s2841 + $0x8] sm:$0xff] %vm2799, %v2692
  %2844 = vst.msk [vmem:[%s2841 + $0x10] sm:$0xff] %vm2799, %v2693
  %2845 = vst.msk [vmem:[%s2841 + $0x18] sm:$0xff] %vm2799, %v2694
  %2846 = vst.msk [vmem:[%s2841 + $0x20] sm:$0xff] %vm2799, %v2695
  %2847 = vst.msk [vmem:[%s2841 + $0x28] sm:$0xff] %vm2799, %v2696
  %s2848 = scalar_lea.vmem [#allocation2], 336
  %2849 = vst.msk [vmem:[%s2848] sm:$0xff] %vm2799, %v2697
  %2850 = vst.msk [vmem:[%s2848 + $0x8] sm:$0xff] %vm2799, %v2698
  %2851 = vst.msk [vmem:[%s2848 + $0x10] sm:$0xff] %vm2799, %v2699
  %2852 = vst.msk [vmem:[%s2848 + $0x18] sm:$0xff] %vm2799, %v2700
  %2853 = vst.msk [vmem:[%s2848 + $0x20] sm:$0xff] %vm2799, %v2701
  %2854 = vst.msk [vmem:[%s2848 + $0x28] sm:$0xff] %vm2799, %v2702
  %s2855 = scalar_lea.vmem [#allocation2], 384
  %2856 = vst.msk [vmem:[%s2855] sm:$0xff] %vm2799, %v2703
  %2857 = vst.msk [vmem:[%s2855 + $0x8] sm:$0xff] %vm2799, %v2704
  %2858 = vst.msk [vmem:[%s2855 + $0x10] sm:$0xff] %vm2799, %v2705
  %2859 = vst.msk [vmem:[%s2855 + $0x18] sm:$0xff] %vm2799, %v2706
  %2860 = vst.msk [vmem:[%s2855 + $0x20] sm:$0xff] %vm2799, %v2707
  %2861 = vst.msk [vmem:[%s2855 + $0x28] sm:$0xff] %vm2799, %v2708
  %s2862 = scalar_lea.vmem [#allocation2], 432
  %2863 = vst.msk [vmem:[%s2862] sm:$0xff] %vm2799, %v2709
  %2864 = vst.msk [vmem:[%s2862 + $0x8] sm:$0xff] %vm2799, %v2710
  %2865 = vst.msk [vmem:[%s2862 + $0x10] sm:$0xff] %vm2799, %v2711
  %2866 = vst.msk [vmem:[%s2862 + $0x18] sm:$0xff] %vm2799, %v2712
  %2867 = vst.msk [vmem:[%s2862 + $0x20] sm:$0xff] %vm2799, %v2713
  %2868 = vst.msk [vmem:[%s2862 + $0x28] sm:$0xff] %vm2799, %v2714
  %s2869 = scalar_lea.vmem [#allocation2], 480
  %2870 = vst.msk [vmem:[%s2869] sm:$0xff] %vm2799, %v2715
  %2871 = vst.msk [vmem:[%s2869 + $0x8] sm:$0xff] %vm2799, %v2716
  %2872 = vst.msk [vmem:[%s2869 + $0x10] sm:$0xff] %vm2799, %v2717
  %2873 = vst.msk [vmem:[%s2869 + $0x18] sm:$0xff] %vm2799, %v2718
  %2874 = vst.msk [vmem:[%s2869 + $0x20] sm:$0xff] %vm2799, %v2719
  %2875 = vst.msk [vmem:[%s2869 + $0x28] sm:$0xff] %vm2799, %v2720
  %s2876 = scalar_lea.vmem [#allocation2], 528
  %2877 = vst.msk [vmem:[%s2876] sm:$0xff] %vm2799, %v2721
  %2878 = vst.msk [vmem:[%s2876 + $0x8] sm:$0xff] %vm2799, %v2722
  %2879 = vst.msk [vmem:[%s2876 + $0x10] sm:$0xff] %vm2799, %v2723
  %2880 = vst.msk [vmem:[%s2876 + $0x18] sm:$0xff] %vm2799, %v2724
  %2881 = vst.msk [vmem:[%s2876 + $0x20] sm:$0xff] %vm2799, %v2725
  %2882 = vst.msk [vmem:[%s2876 + $0x28] sm:$0xff] %vm2799, %v2726
  %s2883 = scalar_lea.vmem [#allocation2], 576
  %2884 = vst.msk [vmem:[%s2883] sm:$0xff] %vm2799, %v2727
  %2885 = vst.msk [vmem:[%s2883 + $0x8] sm:$0xff] %vm2799, %v2728
  %2886 = vst.msk [vmem:[%s2883 + $0x10] sm:$0xff] %vm2799, %v2729
  %2887 = vst.msk [vmem:[%s2883 + $0x18] sm:$0xff] %vm2799, %v2730
  %2888 = vst.msk [vmem:[%s2883 + $0x20] sm:$0xff] %vm2799, %v2731
  %2889 = vst.msk [vmem:[%s2883 + $0x28] sm:$0xff] %vm2799, %v2732
  %s2890 = scalar_lea.vmem [#allocation2], 624
  %2891 = vst.msk [vmem:[%s2890] sm:$0xff] %vm2799, %v2733
  %2892 = vst.msk [vmem:[%s2890 + $0x8] sm:$0xff] %vm2799, %v2734
  %2893 = vst.msk [vmem:[%s2890 + $0x10] sm:$0xff] %vm2799, %v2735
  %2894 = vst.msk [vmem:[%s2890 + $0x18] sm:$0xff] %vm2799, %v2736
  %2895 = vst.msk [vmem:[%s2890 + $0x20] sm:$0xff] %vm2799, %v2737
  %2896 = vst.msk [vmem:[%s2890 + $0x28] sm:$0xff] %vm2799, %v2738
  %s2897 = scalar_lea.vmem [#allocation2], 672
  %2898 = vst.msk [vmem:[%s2897] sm:$0xff] %vm2799, %v2739
  %2899 = vst.msk [vmem:[%s2897 + $0x8] sm:$0xff] %vm2799, %v2740
  %2900 = vst.msk [vmem:[%s2897 + $0x10] sm:$0xff] %vm2799, %v2741
  %2901 = vst.msk [vmem:[%s2897 + $0x18] sm:$0xff] %vm2799, %v2742
  %2902 = vst.msk [vmem:[%s2897 + $0x20] sm:$0xff] %vm2799, %v2743
  %2903 = vst.msk [vmem:[%s2897 + $0x28] sm:$0xff] %vm2799, %v2744
  %s2904 = scalar_lea.vmem [#allocation2], 720
  %2905 = vst.msk [vmem:[%s2904] sm:$0xff] %vm2799, %v2745
  %2906 = vst.msk [vmem:[%s2904 + $0x8] sm:$0xff] %vm2799, %v2746
  %2907 = vst.msk [vmem:[%s2904 + $0x10] sm:$0xff] %vm2799, %v2747
  %2908 = vst.msk [vmem:[%s2904 + $0x18] sm:$0xff] %vm2799, %v2748
  %2909 = vst.msk [vmem:[%s2904 + $0x20] sm:$0xff] %vm2799, %v2749
  %2910 = vst.msk [vmem:[%s2904 + $0x28] sm:$0xff] %vm2799, %v2750
  %s2911 = scalar_lea.vmem [#allocation2], 768
  %2912 = vst.msk [vmem:[%s2911] sm:$0xff] %vm2799, %v2751
  %2913 = vst.msk [vmem:[%s2911 + $0x8] sm:$0xff] %vm2799, %v2752
  %2914 = vst.msk [vmem:[%s2911 + $0x10] sm:$0xff] %vm2799, %v2753
  %2915 = vst.msk [vmem:[%s2911 + $0x18] sm:$0xff] %vm2799, %v2754
  %2916 = vst.msk [vmem:[%s2911 + $0x20] sm:$0xff] %vm2799, %v2755
  %2917 = vst.msk [vmem:[%s2911 + $0x28] sm:$0xff] %vm2799, %v2756
  %s2918 = scalar_lea.vmem [#allocation2], 816
  %2919 = vst.msk [vmem:[%s2918] sm:$0xff] %vm2799, %v2757
  %2920 = vst.msk [vmem:[%s2918 + $0x8] sm:$0xff] %vm2799, %v2758
  %2921 = vst.msk [vmem:[%s2918 + $0x10] sm:$0xff] %vm2799, %v2759
  %2922 = vst.msk [vmem:[%s2918 + $0x18] sm:$0xff] %vm2799, %v2760
  %2923 = vst.msk [vmem:[%s2918 + $0x20] sm:$0xff] %vm2799, %v2761
  %2924 = vst.msk [vmem:[%s2918 + $0x28] sm:$0xff] %vm2799, %v2762
  %s2925 = scalar_lea.vmem [#allocation2], 864
  %2926 = vst.msk [vmem:[%s2925] sm:$0xff] %vm2799, %v2763
  %2927 = vst.msk [vmem:[%s2925 + $0x8] sm:$0xff] %vm2799, %v2764
  %2928 = vst.msk [vmem:[%s2925 + $0x10] sm:$0xff] %vm2799, %v2765
  %2929 = vst.msk [vmem:[%s2925 + $0x18] sm:$0xff] %vm2799, %v2766
  %2930 = vst.msk [vmem:[%s2925 + $0x20] sm:$0xff] %vm2799, %v2767
  %2931 = vst.msk [vmem:[%s2925 + $0x28] sm:$0xff] %vm2799, %v2768
  %s2932 = scalar_lea.vmem [#allocation2], 912
  %2933 = vst.msk [vmem:[%s2932] sm:$0xff] %vm2799, %v2769
  %2934 = vst.msk [vmem:[%s2932 + $0x8] sm:$0xff] %vm2799, %v2770
  %2935 = vst.msk [vmem:[%s2932 + $0x10] sm:$0xff] %vm2799, %v2771
  %2936 = vst.msk [vmem:[%s2932 + $0x18] sm:$0xff] %vm2799, %v2772
  %2937 = vst.msk [vmem:[%s2932 + $0x20] sm:$0xff] %vm2799, %v2773
  %2938 = vst.msk [vmem:[%s2932 + $0x28] sm:$0xff] %vm2799, %v2774
  %s2939 = scalar_lea.vmem [#allocation2], 960
  %2940 = vst.msk [vmem:[%s2939] sm:$0xff] %vm2799, %v2775
  %2941 = vst.msk [vmem:[%s2939 + $0x8] sm:$0xff] %vm2799, %v2776
  %2942 = vst.msk [vmem:[%s2939 + $0x10] sm:$0xff] %vm2799, %v2777
  %2943 = vst.msk [vmem:[%s2939 + $0x18] sm:$0xff] %vm2799, %v2778
  %2944 = vst.msk [vmem:[%s2939 + $0x20] sm:$0xff] %vm2799, %v2779
  %2945 = vst.msk [vmem:[%s2939 + $0x28] sm:$0xff] %vm2799, %v2780
  %s2946 = scalar_lea.vmem [#allocation2], 1008
  %2947 = vst.msk [vmem:[%s2946] sm:$0xff] %vm2799, %v2781
  %2948 = vst.msk [vmem:[%s2946 + $0x8] sm:$0xff] %vm2799, %v2782
  %2949 = vst.msk [vmem:[%s2946 + $0x10] sm:$0xff] %vm2799, %v2783
  %2950 = vst.msk [vmem:[%s2946 + $0x18] sm:$0xff] %vm2799, %v2784
  %2951 = vst.msk [vmem:[%s2946 + $0x20] sm:$0xff] %vm2799, %v2785
  %2952 = vst.msk [vmem:[%s2946 + $0x28] sm:$0xff] %vm2799, %v2786
  %s2953 = scalar_lea.vmem [#allocation2], 1056
  %2954 = vst.msk [vmem:[%s2953] sm:$0xff] %vm2799, %v2787
  %2955 = vst.msk [vmem:[%s2953 + $0x8] sm:$0xff] %vm2799, %v2788
  %2956 = vst.msk [vmem:[%s2953 + $0x10] sm:$0xff] %vm2799, %v2789
  %2957 = vst.msk [vmem:[%s2953 + $0x18] sm:$0xff] %vm2799, %v2790
  %2958 = vst.msk [vmem:[%s2953 + $0x20] sm:$0xff] %vm2799, %v2791
  %2959 = vst.msk [vmem:[%s2953 + $0x28] sm:$0xff] %vm2799, %v2792
  %s2960 = scalar_lea.vmem [#allocation2], 1104
  %2961 = vst.msk [vmem:[%s2960] sm:$0xff] %vm2799, %v2793
  %2962 = vst.msk [vmem:[%s2960 + $0x8] sm:$0xff] %vm2799, %v2794
  %2963 = vst.msk [vmem:[%s2960 + $0x10] sm:$0xff] %vm2799, %v2795
  %2964 = vst.msk [vmem:[%s2960 + $0x18] sm:$0xff] %vm2799, %v2796
  %2965 = vst.msk [vmem:[%s2960 + $0x20] sm:$0xff] %vm2799, %v2797
  %2966 = vst.msk [vmem:[%s2960 + $0x28] sm:$0xff] %vm2799, %v2798
  %v2967 = vld [vmem:[#allocation2] sm:$0xff]
  %v2968 = vld [vmem:[#allocation2 + $0x8] sm:$0xff]
  %v2969 = vld [vmem:[#allocation2 + $0x10] sm:$0xff]
  %v2970 = vld [vmem:[#allocation2 + $0x18] sm:$0xff]
  %v2971 = vld [vmem:[#allocation2 + $0x30] sm:$0xff]
  %v2972 = vld [vmem:[#allocation2 + $0x38] sm:$0xff]
  %v2973 = vld [vmem:[#allocation2 + $0x40] sm:$0xff]
  %v2974 = vld [vmem:[#allocation2 + $0x48] sm:$0xff]
  %v2975 = vld [vmem:[#allocation2 + $0x60] sm:$0xff]
  %v2976 = vld [vmem:[#allocation2 + $0x68] sm:$0xff]
  %v2977 = vld [vmem:[#allocation2 + $0x70] sm:$0xff]
  %v2978 = vld [vmem:[#allocation2 + $0x78] sm:$0xff]
  %v2979 = vld [vmem:[#allocation2 + $0x90] sm:$0xff]
  %v2980 = vld [vmem:[#allocation2 + $0x98] sm:$0xff]
  %v2981 = vld [vmem:[#allocation2 + $0xa0] sm:$0xff]
  %v2982 = vld [vmem:[#allocation2 + $0xa8] sm:$0xff]
  %2983 = vst.msk [vmem:[#allocation3] sm:$0xff] %vm2799, %v2967
  %2984 = vst.msk [vmem:[#allocation3 + $0x28] sm:$0xff] %vm2799, %v2968
  %2985 = vst.msk [vmem:[#allocation3 + $0x50] sm:$0xff] %vm2799, %v2969
  %2986 = vst.msk [vmem:[#allocation3 + $0x78] sm:$0xff] %vm2799, %v2970
  %2987 = vst.msk [vmem:[#allocation3 + $0xa0] sm:$0xff] %vm2799, %v2971
  %2988 = vst.msk [vmem:[#allocation3 + $0xc8] sm:$0xff] %vm2799, %v2972
  %2989 = vst.msk [vmem:[#allocation3 + $0xf0] sm:$0xff] %vm2799, %v2973
  %2990 = vst.msk [vmem:[#allocation3 + $0x118] sm:$0xff] %vm2799, %v2974
  %2991 = vst.msk [vmem:[#allocation3 + $0x140] sm:$0xff] %vm2799, %v2975
  %2992 = vst.msk [vmem:[#allocation3 + $0x168] sm:$0xff] %vm2799, %v2976
  %2993 = vst.msk [vmem:[#allocation3 + $0x190] sm:$0xff] %vm2799, %v2977
  %2994 = vst.msk [vmem:[#allocation3 + $0x1b8] sm:$0xff] %vm2799, %v2978
  %2995 = vst.msk [vmem:[#allocation3 + $0x1e0] sm:$0xff] %vm2799, %v2979
  %2996 = vst.msk [vmem:[#allocation3 + $0x208] sm:$0xff] %vm2799, %v2980
  %2997 = vst.msk [vmem:[#allocation3 + $0x230] sm:$0xff] %vm2799, %v2981
  %2998 = vst.msk [vmem:[#allocation3 + $0x258] sm:$0xff] %vm2799, %v2982
  %v2999 = vld [vmem:[%s2841] sm:$0xff]
  %v3000 = vld [vmem:[%s2841 + $0x8] sm:$0xff]
  %v3001 = vld [vmem:[%s2841 + $0x10] sm:$0xff]
  %v3002 = vld [vmem:[%s2841 + $0x18] sm:$0xff]
  %v3003 = vld [vmem:[%s2841 + $0x30] sm:$0xff]
  %v3004 = vld [vmem:[%s2841 + $0x38] sm:$0xff]
  %v3005 = vld [vmem:[%s2841 + $0x40] sm:$0xff]
  %v3006 = vld [vmem:[%s2841 + $0x48] sm:$0xff]
  %v3007 = vld [vmem:[%s2841 + $0x60] sm:$0xff]
  %v3008 = vld [vmem:[%s2841 + $0x68] sm:$0xff]
  %v3009 = vld [vmem:[%s2841 + $0x70] sm:$0xff]
  %v3010 = vld [vmem:[%s2841 + $0x78] sm:$0xff]
  %v3011 = vld [vmem:[%s2841 + $0x90] sm:$0xff]
  %v3012 = vld [vmem:[%s2841 + $0x98] sm:$0xff]
  %v3013 = vld [vmem:[%s2841 + $0xa0] sm:$0xff]
  %v3014 = vld [vmem:[%s2841 + $0xa8] sm:$0xff]
  %3031 = vrot.lane.b32.xlu0 %v2999, 16
  %v3032 = vpop.permute.xlu0 %3031
  %3033 = vrot.lane.b32.xlu0 %v3000, 16
  %v3034 = vpop.permute.xlu0 %3033
  %3035 = vrot.lane.b32.xlu0 %v3001, 16
  %v3036 = vpop.permute.xlu0 %3035
  %3037 = vrot.lane.b32.xlu0 %v3002, 16
  %v3038 = vpop.permute.xlu0 %3037
  %3039 = vrot.lane.b32.xlu0 %v3003, 16
  %v3040 = vpop.permute.xlu0 %3039
  %3041 = vrot.lane.b32.xlu0 %v3004, 16
  %v3042 = vpop.permute.xlu0 %3041
  %3043 = vrot.lane.b32.xlu0 %v3005, 16
  %v3044 = vpop.permute.xlu0 %3043
  %3045 = vrot.lane.b32.xlu0 %v3006, 16
  %v3046 = vpop.permute.xlu0 %3045
  %3047 = vrot.lane.b32.xlu0 %v3007, 16
  %v3048 = vpop.permute.xlu0 %3047
  %3049 = vrot.lane.b32.xlu0 %v3008, 16
  %v3050 = vpop.permute.xlu0 %3049
  %3051 = vrot.lane.b32.xlu0 %v3009, 16
  %v3052 = vpop.permute.xlu0 %3051
  %3053 = vrot.lane.b32.xlu0 %v3010, 16
  %v3054 = vpop.permute.xlu0 %3053
  %3055 = vrot.lane.b32.xlu0 %v3011, 16
  %v3056 = vpop.permute.xlu0 %3055
  %3057 = vrot.lane.b32.xlu0 %v3012, 16
  %v3058 = vpop.permute.xlu0 %3057
  %3059 = vrot.lane.b32.xlu0 %v3013, 16
  %v3060 = vpop.permute.xlu0 %3059
  %3061 = vrot.lane.b32.xlu0 %v3014, 16
  %v3062 = vpop.permute.xlu0 %3061
  %vm3079 = vcmask 261248
  %3080 = vst.msk [vmem:[#allocation3] sm:$0xff] %vm3079, %v3032
  %3081 = vst.msk [vmem:[#allocation3 + $0x28] sm:$0xff] %vm3079, %v3034
  %3082 = vst.msk [vmem:[#allocation3 + $0x50] sm:$0xff] %vm3079, %v3036
  %3083 = vst.msk [vmem:[#allocation3 + $0x78] sm:$0xff] %vm3079, %v3038
  %3084 = vst.msk [vmem:[#allocation3 + $0xa0] sm:$0xff] %vm3079, %v3040
  %3085 = vst.msk [vmem:[#allocation3 + $0xc8] sm:$0xff] %vm3079, %v3042
  %3086 = vst.msk [vmem:[#allocation3 + $0xf0] sm:$0xff] %vm3079, %v3044
  %3087 = vst.msk [vmem:[#allocation3 + $0x118] sm:$0xff] %vm3079, %v3046
  %3088 = vst.msk [vmem:[#allocation3 + $0x140] sm:$0xff] %vm3079, %v3048
  %3089 = vst.msk [vmem:[#allocation3 + $0x168] sm:$0xff] %vm3079, %v3050
  %3090 = vst.msk [vmem:[#allocation3 + $0x190] sm:$0xff] %vm3079, %v3052
  %3091 = vst.msk [vmem:[#allocation3 + $0x1b8] sm:$0xff] %vm3079, %v3054
  %3092 = vst.msk [vmem:[#allocation3 + $0x1e0] sm:$0xff] %vm3079, %v3056
  %3093 = vst.msk [vmem:[#allocation3 + $0x208] sm:$0xff] %vm3079, %v3058
  %3094 = vst.msk [vmem:[#allocation3 + $0x230] sm:$0xff] %vm3079, %v3060
  %3095 = vst.msk [vmem:[#allocation3 + $0x258] sm:$0xff] %vm3079, %v3062
  %v3096 = vld [vmem:[#allocation2 + $0x8] sm:$0xff]
  %v3097 = vld [vmem:[#allocation2 + $0x10] sm:$0xff]
  %v3098 = vld [vmem:[#allocation2 + $0x18] sm:$0xff]
  %v3099 = vld [vmem:[#allocation2 + $0x20] sm:$0xff]
  %v3100 = vld [vmem:[#allocation2 + $0x38] sm:$0xff]
  %v3101 = vld [vmem:[#allocation2 + $0x40] sm:$0xff]
  %v3102 = vld [vmem:[#allocation2 + $0x48] sm:$0xff]
  %v3103 = vld [vmem:[#allocation2 + $0x50] sm:$0xff]
  %v3104 = vld [vmem:[#allocation2 + $0x68] sm:$0xff]
  %v3105 = vld [vmem:[#allocation2 + $0x70] sm:$0xff]
  %v3106 = vld [vmem:[#allocation2 + $0x78] sm:$0xff]
  %v3107 = vld [vmem:[#allocation2 + $0x80] sm:$0xff]
  %v3108 = vld [vmem:[#allocation2 + $0x98] sm:$0xff]
  %v3109 = vld [vmem:[#allocation2 + $0xa0] sm:$0xff]
  %v3110 = vld [vmem:[#allocation2 + $0xa8] sm:$0xff]
  %v3111 = vld [vmem:[#allocation2 + $0xb0] sm:$0xff]
  %3128 = vrot.lane.b32.xlu0 %v3096, 32
  %v3129 = vpop.permute.xlu0 %3128
  %3130 = vrot.lane.b32.xlu0 %v3097, 32
  %v3131 = vpop.permute.xlu0 %3130
  %3132 = vrot.lane.b32.xlu0 %v3098, 32
  %v3133 = vpop.permute.xlu0 %3132
  %3134 = vrot.lane.b32.xlu0 %v3099, 32
  %v3135 = vpop.permute.xlu0 %3134
  %3136 = vrot.lane.b32.xlu0 %v3100, 32
  %v3137 = vpop.permute.xlu0 %3136
  %3138 = vrot.lane.b32.xlu0 %v3101, 32
  %v3139 = vpop.permute.xlu0 %3138
  %3140 = vrot.lane.b32.xlu0 %v3102, 32
  %v3141 = vpop.permute.xlu0 %3140
  %3142 = vrot.lane.b32.xlu0 %v3103, 32
  %v3143 = vpop.permute.xlu0 %3142
  %3144 = vrot.lane.b32.xlu0 %v3104, 32
  %v3145 = vpop.permute.xlu0 %3144
  %3146 = vrot.lane.b32.xlu0 %v3105, 32
  %v3147 = vpop.permute.xlu0 %3146
  %3148 = vrot.lane.b32.xlu0 %v3106, 32
  %v3149 = vpop.permute.xlu0 %3148
  %3150 = vrot.lane.b32.xlu0 %v3107, 32
  %v3151 = vpop.permute.xlu0 %3150
  %3152 = vrot.lane.b32.xlu0 %v3108, 32
  %v3153 = vpop.permute.xlu0 %3152
  %3154 = vrot.lane.b32.xlu0 %v3109, 32
  %v3155 = vpop.permute.xlu0 %3154
  %3156 = vrot.lane.b32.xlu0 %v3110, 32
  %v3157 = vpop.permute.xlu0 %3156
  %3158 = vrot.lane.b32.xlu0 %v3111, 32
  %v3159 = vpop.permute.xlu0 %3158
  %vm3176 = vcmask 392448
  %3177 = vst.msk [vmem:[#allocation3] sm:$0xff] %vm3176, %v3129
  %3178 = vst.msk [vmem:[#allocation3 + $0x28] sm:$0xff] %vm3176, %v3131
  %3179 = vst.msk [vmem:[#allocation3 + $0x50] sm:$0xff] %vm3176, %v3133
  %3180 = vst.msk [vmem:[#allocation3 + $0x78] sm:$0xff] %vm3176, %v3135
  %3181 = vst.msk [vmem:[#allocation3 + $0xa0] sm:$0xff] %vm3176, %v3137
  %3182 = vst.msk [vmem:[#allocation3 + $0xc8] sm:$0xff] %vm3176, %v3139
  %3183 = vst.msk [vmem:[#allocation3 + $0xf0] sm:$0xff] %vm3176, %v3141
  %3184 = vst.msk [vmem:[#allocation3 + $0x118] sm:$0xff] %vm3176, %v3143
  %3185 = vst.msk [vmem:[#allocation3 + $0x140] sm:$0xff] %vm3176, %v3145
  %3186 = vst.msk [vmem:[#allocation3 + $0x168] sm:$0xff] %vm3176, %v3147
  %3187 = vst.msk [vmem:[#allocation3 + $0x190] sm:$0xff] %vm3176, %v3149
  %3188 = vst.msk [vmem:[#allocation3 + $0x1b8] sm:$0xff] %vm3176, %v3151
  %3189 = vst.msk [vmem:[#allocation3 + $0x1e0] sm:$0xff] %vm3176, %v3153
  %3190 = vst.msk [vmem:[#allocation3 + $0x208] sm:$0xff] %vm3176, %v3155
  %3191 = vst.msk [vmem:[#allocation3 + $0x230] sm:$0xff] %vm3176, %v3157
  %3192 = vst.msk [vmem:[#allocation3 + $0x258] sm:$0xff] %vm3176, %v3159
  %v3193 = vld [vmem:[%s2841 + $0x8] sm:$0xff]
  %v3194 = vld [vmem:[%s2841 + $0x10] sm:$0xff]
  %v3195 = vld [vmem:[%s2841 + $0x18] sm:$0xff]
  %v3196 = vld [vmem:[%s2841 + $0x20] sm:$0xff]
  %v3197 = vld [vmem:[%s2841 + $0x38] sm:$0xff]
  %v3198 = vld [vmem:[%s2841 + $0x40] sm:$0xff]
  %v3199 = vld [vmem:[%s2841 + $0x48] sm:$0xff]
  %v3200 = vld [vmem:[%s2841 + $0x50] sm:$0xff]
  %v3201 = vld [vmem:[%s2841 + $0x68] sm:$0xff]
  %v3202 = vld [vmem:[%s2841 + $0x70] sm:$0xff]
  %v3203 = vld [vmem:[%s2841 + $0x78] sm:$0xff]
  %v3204 = vld [vmem:[%s2841 + $0x80] sm:$0xff]
  %v3205 = vld [vmem:[%s2841 + $0x98] sm:$0xff]
  %v3206 = vld [vmem:[%s2841 + $0xa0] sm:$0xff]
  %v3207 = vld [vmem:[%s2841 + $0xa8] sm:$0xff]
  %v3208 = vld [vmem:[%s2841 + $0xb0] sm:$0xff]
  %3225 = vrot.lane.b32.xlu0 %v3193, 48
  %v3226 = vpop.permute.xlu0 %3225
  %3227 = vrot.lane.b32.xlu0 %v3194, 48
  %v3228 = vpop.permute.xlu0 %3227
  %3229 = vrot.lane.b32.xlu0 %v3195, 48
  %v3230 = vpop.permute.xlu0 %3229
  %3231 = vrot.lane.b32.xlu0 %v3196, 48
  %v3232 = vpop.permute.xlu0 %3231
  %3233 = vrot.lane.b32.xlu0 %v3197, 48
  %v3234 = vpop.permute.xlu0 %3233
  %3235 = vrot.lane.b32.xlu0 %v3198, 48
  %v3236 = vpop.permute.xlu0 %3235
  %3237 = vrot.lane.b32.xlu0 %v3199, 48
  %v3238 = vpop.permute.xlu0 %3237
  %3239 = vrot.lane.b32.xlu0 %v3200, 48
  %v3240 = vpop.permute.xlu0 %3239
  %3241 = vrot.lane.b32.xlu0 %v3201, 48
  %v3242 = vpop.permute.xlu0 %3241
  %3243 = vrot.lane.b32.xlu0 %v3202, 48
  %v3244 = vpop.permute.xlu0 %3243
  %3245 = vrot.lane.b32.xlu0 %v3203, 48
  %v3246 = vpop.permute.xlu0 %3245
  %3247 = vrot.lane.b32.xlu0 %v3204, 48
  %v3248 = vpop.permute.xlu0 %3247
  %3249 = vrot.lane.b32.xlu0 %v3205, 48
  %v3250 = vpop.permute.xlu0 %3249
  %3251 = vrot.lane.b32.xlu0 %v3206, 48
  %v3252 = vpop.permute.xlu0 %3251
  %3253 = vrot.lane.b32.xlu0 %v3207, 48
  %v3254 = vpop.permute.xlu0 %3253
  %3255 = vrot.lane.b32.xlu0 %v3208, 48
  %v3256 = vpop.permute.xlu0 %3255
  %vm3273 = vcmask 523648
  %3274 = vst.msk [vmem:[#allocation3] sm:$0xff] %vm3273, %v3226
  %3275 = vst.msk [vmem:[#allocation3 + $0x28] sm:$0xff] %vm3273, %v3228
  %3276 = vst.msk [vmem:[#allocation3 + $0x50] sm:$0xff] %vm3273, %v3230
  %3277 = vst.msk [vmem:[#allocation3 + $0x78] sm:$0xff] %vm3273, %v3232
  %3278 = vst.msk [vmem:[#allocation3 + $0xa0] sm:$0xff] %vm3273, %v3234
  %3279 = vst.msk [vmem:[#allocation3 + $0xc8] sm:$0xff] %vm3273, %v3236
  %3280 = vst.msk [vmem:[#allocation3 + $0xf0] sm:$0xff] %vm3273, %v3238
  %3281 = vst.msk [vmem:[#allocation3 + $0x118] sm:$0xff] %vm3273, %v3240
  %3282 = vst.msk [vmem:[#allocation3 + $0x140] sm:$0xff] %vm3273, %v3242
  %3283 = vst.msk [vmem:[#allocation3 + $0x168] sm:$0xff] %vm3273, %v3244
  %3284 = vst.msk [vmem:[#allocation3 + $0x190] sm:$0xff] %vm3273, %v3246
  %3285 = vst.msk [vmem:[#allocation3 + $0x1b8] sm:$0xff] %vm3273, %v3248
  %3286 = vst.msk [vmem:[#allocation3 + $0x1e0] sm:$0xff] %vm3273, %v3250
  %3287 = vst.msk [vmem:[#allocation3 + $0x208] sm:$0xff] %vm3273, %v3252
  %3288 = vst.msk [vmem:[#allocation3 + $0x230] sm:$0xff] %vm3273, %v3254
  %3289 = vst.msk [vmem:[#allocation3 + $0x258] sm:$0xff] %vm3273, %v3256
  %v3290 = vld [vmem:[#allocation2 + $0x10] sm:$0xff]
  %v3291 = vld [vmem:[#allocation2 + $0x18] sm:$0xff]
  %v3292 = vld [vmem:[#allocation2 + $0x20] sm:$0xff]
  %v3293 = vld [vmem:[#allocation2 + $0x28] sm:$0xff]
  %v3294 = vld [vmem:[#allocation2 + $0x40] sm:$0xff]
  %v3295 = vld [vmem:[#allocation2 + $0x48] sm:$0xff]
  %v3296 = vld [vmem:[#allocation2 + $0x50] sm:$0xff]
  %v3297 = vld [vmem:[#allocation2 + $0x58] sm:$0xff]
  %v3298 = vld [vmem:[#allocation2 + $0x70] sm:$0xff]
  %v3299 = vld [vmem:[#allocation2 + $0x78] sm:$0xff]
  %v3300 = vld [vmem:[#allocation2 + $0x80] sm:$0xff]
  %v3301 = vld [vmem:[#allocation2 + $0x88] sm:$0xff]
  %v3302 = vld [vmem:[#allocation2 + $0xa0] sm:$0xff]
  %v3303 = vld [vmem:[#allocation2 + $0xa8] sm:$0xff]
  %v3304 = vld [vmem:[#allocation2 + $0xb0] sm:$0xff]
  %v3305 = vld [vmem:[#allocation2 + $0xb8] sm:$0xff]
  %3322 = vrot.lane.b32.xlu0 %v3290, 64
  %v3323 = vpop.permute.xlu0 %3322
  %3324 = vrot.lane.b32.xlu0 %v3291, 64
  %v3325 = vpop.permute.xlu0 %3324
  %3326 = vrot.lane.b32.xlu0 %v3292, 64
  %v3327 = vpop.permute.xlu0 %3326
  %3328 = vrot.lane.b32.xlu0 %v3293, 64
  %v3329 = vpop.permute.xlu0 %3328
  %3330 = vrot.lane.b32.xlu0 %v3294, 64
  %v3331 = vpop.permute.xlu0 %3330
  %3332 = vrot.lane.b32.xlu0 %v3295, 64
  %v3333 = vpop.permute.xlu0 %3332
  %3334 = vrot.lane.b32.xlu0 %v3296, 64
  %v3335 = vpop.permute.xlu0 %3334
  %3336 = vrot.lane.b32.xlu0 %v3297, 64
  %v3337 = vpop.permute.xlu0 %3336
  %3338 = vrot.lane.b32.xlu0 %v3298, 64
  %v3339 = vpop.permute.xlu0 %3338
  %3340 = vrot.lane.b32.xlu0 %v3299, 64
  %v3341 = vpop.permute.xlu0 %3340
  %3342 = vrot.lane.b32.xlu0 %v3300, 64
  %v3343 = vpop.permute.xlu0 %3342
  %3344 = vrot.lane.b32.xlu0 %v3301, 64
  %v3345 = vpop.permute.xlu0 %3344
  %3346 = vrot.lane.b32.xlu0 %v3302, 64
  %v3347 = vpop.permute.xlu0 %3346
  %3348 = vrot.lane.b32.xlu0 %v3303, 64
  %v3349 = vpop.permute.xlu0 %3348
  %3350 = vrot.lane.b32.xlu0 %v3304, 64
  %v3351 = vpop.permute.xlu0 %3350
  %3352 = vrot.lane.b32.xlu0 %v3305, 64
  %v3353 = vpop.permute.xlu0 %3352
  %vm3370 = vcmask 654848
  %3371 = vst.msk [vmem:[#allocation3] sm:$0xff] %vm3370, %v3323
  %3372 = vst.msk [vmem:[#allocation3 + $0x28] sm:$0xff] %vm3370, %v3325
  %3373 = vst.msk [vmem:[#allocation3 + $0x50] sm:$0xff] %vm3370, %v3327
  %3374 = vst.msk [vmem:[#allocation3 + $0x78] sm:$0xff] %vm3370, %v3329
  %3375 = vst.msk [vmem:[#allocation3 + $0xa0] sm:$0xff] %vm3370, %v3331
  %3376 = vst.msk [vmem:[#allocation3 + $0xc8] sm:$0xff] %vm3370, %v3333
  %3377 = vst.msk [vmem:[#allocation3 + $0xf0] sm:$0xff] %vm3370, %v3335
  %3378 = vst.msk [vmem:[#allocation3 + $0x118] sm:$0xff] %vm3370, %v3337
  %3379 = vst.msk [vmem:[#allocation3 + $0x140] sm:$0xff] %vm3370, %v3339
  %3380 = vst.msk [vmem:[#allocation3 + $0x168] sm:$0xff] %vm3370, %v3341
  %3381 = vst.msk [vmem:[#allocation3 + $0x190] sm:$0xff] %vm3370, %v3343
  %3382 = vst.msk [vmem:[#allocation3 + $0x1b8] sm:$0xff] %vm3370, %v3345
  %3383 = vst.msk [vmem:[#allocation3 + $0x1e0] sm:$0xff] %vm3370, %v3347
  %3384 = vst.msk [vmem:[#allocation3 + $0x208] sm:$0xff] %vm3370, %v3349
  %3385 = vst.msk [vmem:[#allocation3 + $0x230] sm:$0xff] %vm3370, %v3351
  %3386 = vst.msk [vmem:[#allocation3 + $0x258] sm:$0xff] %vm3370, %v3353
  %v3387 = vld [vmem:[%s2841 + $0x10] sm:$0xff]
  %v3388 = vld [vmem:[%s2841 + $0x18] sm:$0xff]
  %v3389 = vld [vmem:[%s2841 + $0x20] sm:$0xff]
  %v3390 = vld [vmem:[%s2841 + $0x28] sm:$0xff]
  %v3391 = vld [vmem:[%s2841 + $0x40] sm:$0xff]
  %v3392 = vld [vmem:[%s2841 + $0x48] sm:$0xff]
  %v3393 = vld [vmem:[%s2841 + $0x50] sm:$0xff]
  %v3394 = vld [vmem:[%s2841 + $0x58] sm:$0xff]
  %v3395 = vld [vmem:[%s2841 + $0x70] sm:$0xff]
  %v3396 = vld [vmem:[%s2841 + $0x78] sm:$0xff]
  %v3397 = vld [vmem:[%s2841 + $0x80] sm:$0xff]
  %v3398 = vld [vmem:[%s2841 + $0x88] sm:$0xff]
  %v3399 = vld [vmem:[%s2841 + $0xa0] sm:$0xff]
  %v3400 = vld [vmem:[%s2841 + $0xa8] sm:$0xff]
  %v3401 = vld [vmem:[%s2841 + $0xb0] sm:$0xff]
  %v3402 = vld [vmem:[%s2841 + $0xb8] sm:$0xff]
  %3419 = vrot.lane.b32.xlu0 %v3387, 80
  %v3420 = vpop.permute.xlu0 %3419
  %3421 = vrot.lane.b32.xlu0 %v3388, 80
  %v3422 = vpop.permute.xlu0 %3421
  %3423 = vrot.lane.b32.xlu0 %v3389, 80
  %v3424 = vpop.permute.xlu0 %3423
  %3425 = vrot.lane.b32.xlu0 %v3390, 80
  %v3426 = vpop.permute.xlu0 %3425
  %3427 = vrot.lane.b32.xlu0 %v3391, 80
  %v3428 = vpop.permute.xlu0 %3427
  %3429 = vrot.lane.b32.xlu0 %v3392, 80
  %v3430 = vpop.permute.xlu0 %3429
  %3431 = vrot.lane.b32.xlu0 %v3393, 80
  %v3432 = vpop.permute.xlu0 %3431
  %3433 = vrot.lane.b32.xlu0 %v3394, 80
  %v3434 = vpop.permute.xlu0 %3433
  %3435 = vrot.lane.b32.xlu0 %v3395, 80
  %v3436 = vpop.permute.xlu0 %3435
  %3437 = vrot.lane.b32.xlu0 %v3396, 80
  %v3438 = vpop.permute.xlu0 %3437
  %3439 = vrot.lane.b32.xlu0 %v3397, 80
  %v3440 = vpop.permute.xlu0 %3439
  %3441 = vrot.lane.b32.xlu0 %v3398, 80
  %v3442 = vpop.permute.xlu0 %3441
  %3443 = vrot.lane.b32.xlu0 %v3399, 80
  %v3444 = vpop.permute.xlu0 %3443
  %3445 = vrot.lane.b32.xlu0 %v3400, 80
  %v3446 = vpop.permute.xlu0 %3445
  %3447 = vrot.lane.b32.xlu0 %v3401, 80
  %v3448 = vpop.permute.xlu0 %3447
  %3449 = vrot.lane.b32.xlu0 %v3402, 80
  %v3450 = vpop.permute.xlu0 %3449
  %vm3467 = vcmask 786048
  %3468 = vst.msk [vmem:[#allocation3] sm:$0xff] %vm3467, %v3420
  %3469 = vst.msk [vmem:[#allocation3 + $0x28] sm:$0xff] %vm3467, %v3422
  %3470 = vst.msk [vmem:[#allocation3 + $0x50] sm:$0xff] %vm3467, %v3424
  %3471 = vst.msk [vmem:[#allocation3 + $0x78] sm:$0xff] %vm3467, %v3426
  %3472 = vst.msk [vmem:[#allocation3 + $0xa0] sm:$0xff] %vm3467, %v3428
  %3473 = vst.msk [vmem:[#allocation3 + $0xc8] sm:$0xff] %vm3467, %v3430
  %3474 = vst.msk [vmem:[#allocation3 + $0xf0] sm:$0xff] %vm3467, %v3432
  %3475 = vst.msk [vmem:[#allocation3 + $0x118] sm:$0xff] %vm3467, %v3434
  %3476 = vst.msk [vmem:[#allocation3 + $0x140] sm:$0xff] %vm3467, %v3436
  %3477 = vst.msk [vmem:[#allocation3 + $0x168] sm:$0xff] %vm3467, %v3438
  %3478 = vst.msk [vmem:[#allocation3 + $0x190] sm:$0xff] %vm3467, %v3440
  %3479 = vst.msk [vmem:[#allocation3 + $0x1b8] sm:$0xff] %vm3467, %v3442
  %3480 = vst.msk [vmem:[#allocation3 + $0x1e0] sm:$0xff] %vm3467, %v3444
  %3481 = vst.msk [vmem:[#allocation3 + $0x208] sm:$0xff] %vm3467, %v3446
  %3482 = vst.msk [vmem:[#allocation3 + $0x230] sm:$0xff] %vm3467, %v3448
  %3483 = vst.msk [vmem:[#allocation3 + $0x258] sm:$0xff] %vm3467, %v3450
  %v3484 = vld [vmem:[%s2883] sm:$0xff]
  %v3485 = vld [vmem:[%s2883 + $0x8] sm:$0xff]
  %v3486 = vld [vmem:[%s2883 + $0x10] sm:$0xff]
  %v3487 = vld [vmem:[%s2883 + $0x18] sm:$0xff]
  %v3488 = vld [vmem:[%s2883 + $0x30] sm:$0xff]
  %v3489 = vld [vmem:[%s2883 + $0x38] sm:$0xff]
  %v3490 = vld [vmem:[%s2883 + $0x40] sm:$0xff]
  %v3491 = vld [vmem:[%s2883 + $0x48] sm:$0xff]
  %v3492 = vld [vmem:[%s2883 + $0x60] sm:$0xff]
  %v3493 = vld [vmem:[%s2883 + $0x68] sm:$0xff]
  %v3494 = vld [vmem:[%s2883 + $0x70] sm:$0xff]
  %v3495 = vld [vmem:[%s2883 + $0x78] sm:$0xff]
  %v3496 = vld [vmem:[%s2883 + $0x90] sm:$0xff]
  %v3497 = vld [vmem:[%s2883 + $0x98] sm:$0xff]
  %v3498 = vld [vmem:[%s2883 + $0xa0] sm:$0xff]
  %v3499 = vld [vmem:[%s2883 + $0xa8] sm:$0xff]
  %3516 = vrot.lane.b32.xlu0 %v3484, 96
  %v3517 = vpop.permute.xlu0 %3516
  %3518 = vrot.lane.b32.xlu0 %v3485, 96
  %v3519 = vpop.permute.xlu0 %3518
  %3520 = vrot.lane.b32.xlu0 %v3486, 96
  %v3521 = vpop.permute.xlu0 %3520
  %3522 = vrot.lane.b32.xlu0 %v3487, 96
  %v3523 = vpop.permute.xlu0 %3522
  %3524 = vrot.lane.b32.xlu0 %v3488, 96
  %v3525 = vpop.permute.xlu0 %3524
  %3526 = vrot.lane.b32.xlu0 %v3489, 96
  %v3527 = vpop.permute.xlu0 %3526
  %3528 = vrot.lane.b32.xlu0 %v3490, 96
  %v3529 = vpop.permute.xlu0 %3528
  %3530 = vrot.lane.b32.xlu0 %v3491, 96
  %v3531 = vpop.permute.xlu0 %3530
  %3532 = vrot.lane.b32.xlu0 %v3492, 96
  %v3533 = vpop.permute.xlu0 %3532
  %3534 = vrot.lane.b32.xlu0 %v3493, 96
  %v3535 = vpop.permute.xlu0 %3534
  %3536 = vrot.lane.b32.xlu0 %v3494, 96
  %v3537 = vpop.permute.xlu0 %3536
  %3538 = vrot.lane.b32.xlu0 %v3495, 96
  %v3539 = vpop.permute.xlu0 %3538
  %3540 = vrot.lane.b32.xlu0 %v3496, 96
  %v3541 = vpop.permute.xlu0 %3540
  %3542 = vrot.lane.b32.xlu0 %v3497, 96
  %v3543 = vpop.permute.xlu0 %3542
  %3544 = vrot.lane.b32.xlu0 %v3498, 96
  %v3545 = vpop.permute.xlu0 %3544
  %3546 = vrot.lane.b32.xlu0 %v3499, 96
  %v3547 = vpop.permute.xlu0 %3546
  %vm3564 = vcmask 917248
  %3565 = vst.msk [vmem:[#allocation3] sm:$0xff] %vm3564, %v3517
  %3566 = vst.msk [vmem:[#allocation3 + $0x28] sm:$0xff] %vm3564, %v3519
  %3567 = vst.msk [vmem:[#allocation3 + $0x50] sm:$0xff] %vm3564, %v3521
  %3568 = vst.msk [vmem:[#allocation3 + $0x78] sm:$0xff] %vm3564, %v3523
  %3569 = vst.msk [vmem:[#allocation3 + $0xa0] sm:$0xff] %vm3564, %v3525
  %3570 = vst.msk [vmem:[#allocation3 + $0xc8] sm:$0xff] %vm3564, %v3527
  %3571 = vst.msk [vmem:[#allocation3 + $0xf0] sm:$0xff] %vm3564, %v3529
  %3572 = vst.msk [vmem:[#allocation3 + $0x118] sm:$0xff] %vm3564, %v3531
  %3573 = vst.msk [vmem:[#allocation3 + $0x140] sm:$0xff] %vm3564, %v3533
  %3574 = vst.msk [vmem:[#allocation3 + $0x168] sm:$0xff] %vm3564, %v3535
  %3575 = vst.msk [vmem:[#allocation3 + $0x190] sm:$0xff] %vm3564, %v3537
  %3576 = vst.msk [vmem:[#allocation3 + $0x1b8] sm:$0xff] %vm3564, %v3539
  %3577 = vst.msk [vmem:[#allocation3 + $0x1e0] sm:$0xff] %vm3564, %v3541
  %3578 = vst.msk [vmem:[#allocation3 + $0x208] sm:$0xff] %vm3564, %v3543
  %3579 = vst.msk [vmem:[#allocation3 + $0x230] sm:$0xff] %vm3564, %v3545
  %3580 = vst.msk [vmem:[#allocation3 + $0x258] sm:$0xff] %vm3564, %v3547
  %v3581 = vld [vmem:[%s2925] sm:$0xff]
  %v3582 = vld [vmem:[%s2925 + $0x8] sm:$0xff]
  %v3583 = vld [vmem:[%s2925 + $0x10] sm:$0xff]
  %v3584 = vld [vmem:[%s2925 + $0x18] sm:$0xff]
  %v3585 = vld [vmem:[%s2925 + $0x30] sm:$0xff]
  %v3586 = vld [vmem:[%s2925 + $0x38] sm:$0xff]
  %v3587 = vld [vmem:[%s2925 + $0x40] sm:$0xff]
  %v3588 = vld [vmem:[%s2925 + $0x48] sm:$0xff]
  %v3589 = vld [vmem:[%s2925 + $0x60] sm:$0xff]
  %v3590 = vld [vmem:[%s2925 + $0x68] sm:$0xff]
  %v3591 = vld [vmem:[%s2925 + $0x70] sm:$0xff]
  %v3592 = vld [vmem:[%s2925 + $0x78] sm:$0xff]
  %v3593 = vld [vmem:[%s2925 + $0x90] sm:$0xff]
  %v3594 = vld [vmem:[%s2925 + $0x98] sm:$0xff]
  %v3595 = vld [vmem:[%s2925 + $0xa0] sm:$0xff]
  %v3596 = vld [vmem:[%s2925 + $0xa8] sm:$0xff]
  %3613 = vrot.lane.b32.xlu0 %v3581, 112
  %v3614 = vpop.permute.xlu0 %3613
  %3615 = vrot.lane.b32.xlu0 %v3582, 112
  %v3616 = vpop.permute.xlu0 %3615
  %3617 = vrot.lane.b32.xlu0 %v3583, 112
  %v3618 = vpop.permute.xlu0 %3617
  %3619 = vrot.lane.b32.xlu0 %v3584, 112
  %v3620 = vpop.permute.xlu0 %3619
  %3621 = vrot.lane.b32.xlu0 %v3585, 112
  %v3622 = vpop.permute.xlu0 %3621
  %3623 = vrot.lane.b32.xlu0 %v3586, 112
  %v3624 = vpop.permute.xlu0 %3623
  %3625 = vrot.lane.b32.xlu0 %v3587, 112
  %v3626 = vpop.permute.xlu0 %3625
  %3627 = vrot.lane.b32.xlu0 %v3588, 112
  %v3628 = vpop.permute.xlu0 %3627
  %3629 = vrot.lane.b32.xlu0 %v3589, 112
  %v3630 = vpop.permute.xlu0 %3629
  %3631 = vrot.lane.b32.xlu0 %v3590, 112
  %v3632 = vpop.permute.xlu0 %3631
  %3633 = vrot.lane.b32.xlu0 %v3591, 112
  %v3634 = vpop.permute.xlu0 %3633
  %3635 = vrot.lane.b32.xlu0 %v3592, 112
  %v3636 = vpop.permute.xlu0 %3635
  %3637 = vrot.lane.b32.xlu0 %v3593, 112
  %v3638 = vpop.permute.xlu0 %3637
  %3639 = vrot.lane.b32.xlu0 %v3594, 112
  %v3640 = vpop.permute.xlu0 %3639
  %3641 = vrot.lane.b32.xlu0 %v3595, 112
  %v3642 = vpop.permute.xlu0 %3641
  %3643 = vrot.lane.b32.xlu0 %v3596, 112
  %v3644 = vpop.permute.xlu0 %3643
  %vm3661 = vcmask 1048448
  %3662 = vst.msk [vmem:[#allocation3] sm:$0xff] %vm3661, %v3614
  %3663 = vst.msk [vmem:[#allocation3 + $0x28] sm:$0xff] %vm3661, %v3616
  %3664 = vst.msk [vmem:[#allocation3 + $0x50] sm:$0xff] %vm3661, %v3618
  %3665 = vst.msk [vmem:[#allocation3 + $0x78] sm:$0xff] %vm3661, %v3620
  %3666 = vst.msk [vmem:[#allocation3 + $0xa0] sm:$0xff] %vm3661, %v3622
  %3667 = vst.msk [vmem:[#allocation3 + $0xc8] sm:$0xff] %vm3661, %v3624
  %3668 = vst.msk [vmem:[#allocation3 + $0xf0] sm:$0xff] %vm3661, %v3626
  %3669 = vst.msk [vmem:[#allocation3 + $0x118] sm:$0xff] %vm3661, %v3628
  %3670 = vst.msk [vmem:[#allocation3 + $0x140] sm:$0xff] %vm3661, %v3630
  %3671 = vst.msk [vmem:[#allocation3 + $0x168] sm:$0xff] %vm3661, %v3632
  %3672 = vst.msk [vmem:[#allocation3 + $0x190] sm:$0xff] %vm3661, %v3634
  %3673 = vst.msk [vmem:[#allocation3 + $0x1b8] sm:$0xff] %vm3661, %v3636
  %3674 = vst.msk [vmem:[#allocation3 + $0x1e0] sm:$0xff] %vm3661, %v3638
  %3675 = vst.msk [vmem:[#allocation3 + $0x208] sm:$0xff] %vm3661, %v3640
  %3676 = vst.msk [vmem:[#allocation3 + $0x230] sm:$0xff] %vm3661, %v3642
  %3677 = vst.msk [vmem:[#allocation3 + $0x258] sm:$0xff] %vm3661, %v3644
  %v3678 = vld [vmem:[%s2883 + $0x8] sm:$0xff]
  %v3679 = vld [vmem:[%s2883 + $0x10] sm:$0xff]
  %v3680 = vld [vmem:[%s2883 + $0x18] sm:$0xff]
  %v3681 = vld [vmem:[%s2883 + $0x20] sm:$0xff]
  %v3682 = vld [vmem:[%s2883 + $0x38] sm:$0xff]
  %v3683 = vld [vmem:[%s2883 + $0x40] sm:$0xff]
  %v3684 = vld [vmem:[%s2883 + $0x48] sm:$0xff]
  %v3685 = vld [vmem:[%s2883 + $0x50] sm:$0xff]
  %v3686 = vld [vmem:[%s2883 + $0x68] sm:$0xff]
  %v3687 = vld [vmem:[%s2883 + $0x70] sm:$0xff]
  %v3688 = vld [vmem:[%s2883 + $0x78] sm:$0xff]
  %v3689 = vld [vmem:[%s2883 + $0x80] sm:$0xff]
  %v3690 = vld [vmem:[%s2883 + $0x98] sm:$0xff]
  %v3691 = vld [vmem:[%s2883 + $0xa0] sm:$0xff]
  %v3692 = vld [vmem:[%s2883 + $0xa8] sm:$0xff]
  %v3693 = vld [vmem:[%s2883 + $0xb0] sm:$0xff]
  %3694 = vst.msk [vmem:[#allocation3 + $0x8] sm:$0xff] %vm2799, %v3678
  %3695 = vst.msk [vmem:[#allocation3 + $0x30] sm:$0xff] %vm2799, %v3679
  %3696 = vst.msk [vmem:[#allocation3 + $0x58] sm:$0xff] %vm2799, %v3680
  %3697 = vst.msk [vmem:[#allocation3 + $0x80] sm:$0xff] %vm2799, %v3681
  %3698 = vst.msk [vmem:[#allocation3 + $0xa8] sm:$0xff] %vm2799, %v3682
  %3699 = vst.msk [vmem:[#allocation3 + $0xd0] sm:$0xff] %vm2799, %v3683
  %3700 = vst.msk [vmem:[#allocation3 + $0xf8] sm:$0xff] %vm2799, %v3684
  %3701 = vst.msk [vmem:[#allocation3 + $0x120] sm:$0xff] %vm2799, %v3685
  %3702 = vst.msk [vmem:[#allocation3 + $0x148] sm:$0xff] %vm2799, %v3686
  %3703 = vst.msk [vmem:[#allocation3 + $0x170] sm:$0xff] %vm2799, %v3687
  %3704 = vst.msk [vmem:[#allocation3 + $0x198] sm:$0xff] %vm2799, %v3688
  %3705 = vst.msk [vmem:[#allocation3 + $0x1c0] sm:$0xff] %vm2799, %v3689
  %3706 = vst.msk [vmem:[#allocation3 + $0x1e8] sm:$0xff] %vm2799, %v3690
  %3707 = vst.msk [vmem:[#allocation3 + $0x210] sm:$0xff] %vm2799, %v3691
  %3708 = vst.msk [vmem:[#allocation3 + $0x238] sm:$0xff] %vm2799, %v3692
  %3709 = vst.msk [vmem:[#allocation3 + $0x260] sm:$0xff] %vm2799, %v3693
  %v3710 = vld [vmem:[%s2925 + $0x8] sm:$0xff]
  %v3711 = vld [vmem:[%s2925 + $0x10] sm:$0xff]
  %v3712 = vld [vmem:[%s2925 + $0x18] sm:$0xff]
  %v3713 = vld [vmem:[%s2925 + $0x20] sm:$0xff]
  %v3714 = vld [vmem:[%s2925 + $0x38] sm:$0xff]
  %v3715 = vld [vmem:[%s2925 + $0x40] sm:$0xff]
  %v3716 = vld [vmem:[%s2925 + $0x48] sm:$0xff]
  %v3717 = vld [vmem:[%s2925 + $0x50] sm:$0xff]
  %v3718 = vld [vmem:[%s2925 + $0x68] sm:$0xff]
  %v3719 = vld [vmem:[%s2925 + $0x70] sm:$0xff]
  %v3720 = vld [vmem:[%s2925 + $0x78] sm:$0xff]
  %v3721 = vld [vmem:[%s2925 + $0x80] sm:$0xff]
  %v3722 = vld [vmem:[%s2925 + $0x98] sm:$0xff]
  %v3723 = vld [vmem:[%s2925 + $0xa0] sm:$0xff]
  %v3724 = vld [vmem:[%s2925 + $0xa8] sm:$0xff]
  %v3725 = vld [vmem:[%s2925 + $0xb0] sm:$0xff]
  %3742 = vrot.lane.b32.xlu0 %v3710, 16
  %v3743 = vpop.permute.xlu0 %3742
  %3744 = vrot.lane.b32.xlu0 %v3711, 16
  %v3745 = vpop.permute.xlu0 %3744
  %3746 = vrot.lane.b32.xlu0 %v3712, 16
  %v3747 = vpop.permute.xlu0 %3746
  %3748 = vrot.lane.b32.xlu0 %v3713, 16
  %v3749 = vpop.permute.xlu0 %3748
  %3750 = vrot.lane.b32.xlu0 %v3714, 16
  %v3751 = vpop.permute.xlu0 %3750
  %3752 = vrot.lane.b32.xlu0 %v3715, 16
  %v3753 = vpop.permute.xlu0 %3752
  %3754 = vrot.lane.b32.xlu0 %v3716, 16
  %v3755 = vpop.permute.xlu0 %3754
  %3756 = vrot.lane.b32.xlu0 %v3717, 16
  %v3757 = vpop.permute.xlu0 %3756
  %3758 = vrot.lane.b32.xlu0 %v3718, 16
  %v3759 = vpop.permute.xlu0 %3758
  %3760 = vrot.lane.b32.xlu0 %v3719, 16
  %v3761 = vpop.permute.xlu0 %3760
  %3762 = vrot.lane.b32.xlu0 %v3720, 16
  %v3763 = vpop.permute.xlu0 %3762
  %3764 = vrot.lane.b32.xlu0 %v3721, 16
  %v3765 = vpop.permute.xlu0 %3764
  %3766 = vrot.lane.b32.xlu0 %v3722, 16
  %v3767 = vpop.permute.xlu0 %3766
  %3768 = vrot.lane.b32.xlu0 %v3723, 16
  %v3769 = vpop.permute.xlu0 %3768
  %3770 = vrot.lane.b32.xlu0 %v3724, 16
  %v3771 = vpop.permute.xlu0 %3770
  %3772 = vrot.lane.b32.xlu0 %v3725, 16
  %v3773 = vpop.permute.xlu0 %3772
  %3790 = vst.msk [vmem:[#allocation3 + $0x8] sm:$0xff] %vm3079, %v3743
  %3791 = vst.msk [vmem:[#allocation3 + $0x30] sm:$0xff] %vm3079, %v3745
  %3792 = vst.msk [vmem:[#allocation3 + $0x58] sm:$0xff] %vm3079, %v3747
  %3793 = vst.msk [vmem:[#allocation3 + $0x80] sm:$0xff] %vm3079, %v3749
  %3794 = vst.msk [vmem:[#allocation3 + $0xa8] sm:$0xff] %vm3079, %v3751
  %3795 = vst.msk [vmem:[#allocation3 + $0xd0] sm:$0xff] %vm3079, %v3753
  %3796 = vst.msk [vmem:[#allocation3 + $0xf8] sm:$0xff] %vm3079, %v3755
  %3797 = vst.msk [vmem:[#allocation3 + $0x120] sm:$0xff] %vm3079, %v3757
  %3798 = vst.msk [vmem:[#allocation3 + $0x148] sm:$0xff] %vm3079, %v3759
  %3799 = vst.msk [vmem:[#allocation3 + $0x170] sm:$0xff] %vm3079, %v3761
  %3800 = vst.msk [vmem:[#allocation3 + $0x198] sm:$0xff] %vm3079, %v3763
  %3801 = vst.msk [vmem:[#allocation3 + $0x1c0] sm:$0xff] %vm3079, %v3765
  %3802 = vst.msk [vmem:[#allocation3 + $0x1e8] sm:$0xff] %vm3079, %v3767
  %3803 = vst.msk [vmem:[#allocation3 + $0x210] sm:$0xff] %vm3079, %v3769
  %3804 = vst.msk [vmem:[#allocation3 + $0x238] sm:$0xff] %vm3079, %v3771
  %3805 = vst.msk [vmem:[#allocation3 + $0x260] sm:$0xff] %vm3079, %v3773
  %v3806 = vld [vmem:[%s2883 + $0x10] sm:$0xff]
  %v3807 = vld [vmem:[%s2883 + $0x18] sm:$0xff]
  %v3808 = vld [vmem:[%s2883 + $0x20] sm:$0xff]
  %v3809 = vld [vmem:[%s2883 + $0x28] sm:$0xff]
  %v3810 = vld [vmem:[%s2883 + $0x40] sm:$0xff]
  %v3811 = vld [vmem:[%s2883 + $0x48] sm:$0xff]
  %v3812 = vld [vmem:[%s2883 + $0x50] sm:$0xff]
  %v3813 = vld [vmem:[%s2883 + $0x58] sm:$0xff]
  %v3814 = vld [vmem:[%s2883 + $0x70] sm:$0xff]
  %v3815 = vld [vmem:[%s2883 + $0x78] sm:$0xff]
  %v3816 = vld [vmem:[%s2883 + $0x80] sm:$0xff]
  %v3817 = vld [vmem:[%s2883 + $0x88] sm:$0xff]
  %v3818 = vld [vmem:[%s2883 + $0xa0] sm:$0xff]
  %v3819 = vld [vmem:[%s2883 + $0xa8] sm:$0xff]
  %v3820 = vld [vmem:[%s2883 + $0xb0] sm:$0xff]
  %v3821 = vld [vmem:[%s2883 + $0xb8] sm:$0xff]
  %3838 = vrot.lane.b32.xlu0 %v3806, 32
  %v3839 = vpop.permute.xlu0 %3838
  %3840 = vrot.lane.b32.xlu0 %v3807, 32
  %v3841 = vpop.permute.xlu0 %3840
  %3842 = vrot.lane.b32.xlu0 %v3808, 32
  %v3843 = vpop.permute.xlu0 %3842
  %3844 = vrot.lane.b32.xlu0 %v3809, 32
  %v3845 = vpop.permute.xlu0 %3844
  %3846 = vrot.lane.b32.xlu0 %v3810, 32
  %v3847 = vpop.permute.xlu0 %3846
  %3848 = vrot.lane.b32.xlu0 %v3811, 32
  %v3849 = vpop.permute.xlu0 %3848
  %3850 = vrot.lane.b32.xlu0 %v3812, 32
  %v3851 = vpop.permute.xlu0 %3850
  %3852 = vrot.lane.b32.xlu0 %v3813, 32
  %v3853 = vpop.permute.xlu0 %3852
  %3854 = vrot.lane.b32.xlu0 %v3814, 32
  %v3855 = vpop.permute.xlu0 %3854
  %3856 = vrot.lane.b32.xlu0 %v3815, 32
  %v3857 = vpop.permute.xlu0 %3856
  %3858 = vrot.lane.b32.xlu0 %v3816, 32
  %v3859 = vpop.permute.xlu0 %3858
  %3860 = vrot.lane.b32.xlu0 %v3817, 32
  %v3861 = vpop.permute.xlu0 %3860
  %3862 = vrot.lane.b32.xlu0 %v3818, 32
  %v3863 = vpop.permute.xlu0 %3862
  %3864 = vrot.lane.b32.xlu0 %v3819, 32
  %v3865 = vpop.permute.xlu0 %3864
  %3866 = vrot.lane.b32.xlu0 %v3820, 32
  %v3867 = vpop.permute.xlu0 %3866
  %3868 = vrot.lane.b32.xlu0 %v3821, 32
  %v3869 = vpop.permute.xlu0 %3868
  %3886 = vst.msk [vmem:[#allocation3 + $0x8] sm:$0xff] %vm3176, %v3839
  %3887 = vst.msk [vmem:[#allocation3 + $0x30] sm:$0xff] %vm3176, %v3841
  %3888 = vst.msk [vmem:[#allocation3 + $0x58] sm:$0xff] %vm3176, %v3843
  %3889 = vst.msk [vmem:[#allocation3 + $0x80] sm:$0xff] %vm3176, %v3845
  %3890 = vst.msk [vmem:[#allocation3 + $0xa8] sm:$0xff] %vm3176, %v3847
  %3891 = vst.msk [vmem:[#allocation3 + $0xd0] sm:$0xff] %vm3176, %v3849
  %3892 = vst.msk [vmem:[#allocation3 + $0xf8] sm:$0xff] %vm3176, %v3851
  %3893 = vst.msk [vmem:[#allocation3 + $0x120] sm:$0xff] %vm3176, %v3853
  %3894 = vst.msk [vmem:[#allocation3 + $0x148] sm:$0xff] %vm3176, %v3855
  %3895 = vst.msk [vmem:[#allocation3 + $0x170] sm:$0xff] %vm3176, %v3857
  %3896 = vst.msk [vmem:[#allocation3 + $0x198] sm:$0xff] %vm3176, %v3859
  %3897 = vst.msk [vmem:[#allocation3 + $0x1c0] sm:$0xff] %vm3176, %v3861
  %3898 = vst.msk [vmem:[#allocation3 + $0x1e8] sm:$0xff] %vm3176, %v3863
  %3899 = vst.msk [vmem:[#allocation3 + $0x210] sm:$0xff] %vm3176, %v3865
  %3900 = vst.msk [vmem:[#allocation3 + $0x238] sm:$0xff] %vm3176, %v3867
  %3901 = vst.msk [vmem:[#allocation3 + $0x260] sm:$0xff] %vm3176, %v3869
  %v3902 = vld [vmem:[%s2925 + $0x10] sm:$0xff]
  %v3903 = vld [vmem:[%s2925 + $0x18] sm:$0xff]
  %v3904 = vld [vmem:[%s2925 + $0x20] sm:$0xff]
  %v3905 = vld [vmem:[%s2925 + $0x28] sm:$0xff]
  %v3906 = vld [vmem:[%s2925 + $0x40] sm:$0xff]
  %v3907 = vld [vmem:[%s2925 + $0x48] sm:$0xff]
  %v3908 = vld [vmem:[%s2925 + $0x50] sm:$0xff]
  %v3909 = vld [vmem:[%s2925 + $0x58] sm:$0xff]
  %v3910 = vld [vmem:[%s2925 + $0x70] sm:$0xff]
  %v3911 = vld [vmem:[%s2925 + $0x78] sm:$0xff]
  %v3912 = vld [vmem:[%s2925 + $0x80] sm:$0xff]
  %v3913 = vld [vmem:[%s2925 + $0x88] sm:$0xff]
  %v3914 = vld [vmem:[%s2925 + $0xa0] sm:$0xff]
  %v3915 = vld [vmem:[%s2925 + $0xa8] sm:$0xff]
  %v3916 = vld [vmem:[%s2925 + $0xb0] sm:$0xff]
  %v3917 = vld [vmem:[%s2925 + $0xb8] sm:$0xff]
  %3934 = vrot.lane.b32.xlu0 %v3902, 48
  %v3935 = vpop.permute.xlu0 %3934
  %3936 = vrot.lane.b32.xlu0 %v3903, 48
  %v3937 = vpop.permute.xlu0 %3936
  %3938 = vrot.lane.b32.xlu0 %v3904, 48
  %v3939 = vpop.permute.xlu0 %3938
  %3940 = vrot.lane.b32.xlu0 %v3905, 48
  %v3941 = vpop.permute.xlu0 %3940
  %3942 = vrot.lane.b32.xlu0 %v3906, 48
  %v3943 = vpop.permute.xlu0 %3942
  %3944 = vrot.lane.b32.xlu0 %v3907, 48
  %v3945 = vpop.permute.xlu0 %3944
  %3946 = vrot.lane.b32.xlu0 %v3908, 48
  %v3947 = vpop.permute.xlu0 %3946
  %3948 = vrot.lane.b32.xlu0 %v3909, 48
  %v3949 = vpop.permute.xlu0 %3948
  %3950 = vrot.lane.b32.xlu0 %v3910, 48
  %v3951 = vpop.permute.xlu0 %3950
  %3952 = vrot.lane.b32.xlu0 %v3911, 48
  %v3953 = vpop.permute.xlu0 %3952
  %3954 = vrot.lane.b32.xlu0 %v3912, 48
  %v3955 = vpop.permute.xlu0 %3954
  %3956 = vrot.lane.b32.xlu0 %v3913, 48
  %v3957 = vpop.permute.xlu0 %3956
  %3958 = vrot.lane.b32.xlu0 %v3914, 48
  %v3959 = vpop.permute.xlu0 %3958
  %3960 = vrot.lane.b32.xlu0 %v3915, 48
  %v3961 = vpop.permute.xlu0 %3960
  %3962 = vrot.lane.b32.xlu0 %v3916, 48
  %v3963 = vpop.permute.xlu0 %3962
  %3964 = vrot.lane.b32.xlu0 %v3917, 48
  %v3965 = vpop.permute.xlu0 %3964
  %3982 = vst.msk [vmem:[#allocation3 + $0x8] sm:$0xff] %vm3273, %v3935
  %3983 = vst.msk [vmem:[#allocation3 + $0x30] sm:$0xff] %vm3273, %v3937
  %3984 = vst.msk [vmem:[#allocation3 + $0x58] sm:$0xff] %vm3273, %v3939
  %3985 = vst.msk [vmem:[#allocation3 + $0x80] sm:$0xff] %vm3273, %v3941
  %3986 = vst.msk [vmem:[#allocation3 + $0xa8] sm:$0xff] %vm3273, %v3943
  %3987 = vst.msk [vmem:[#allocation3 + $0xd0] sm:$0xff] %vm3273, %v3945
  %3988 = vst.msk [vmem:[#allocation3 + $0xf8] sm:$0xff] %vm3273, %v3947
  %3989 = vst.msk [vmem:[#allocation3 + $0x120] sm:$0xff] %vm3273, %v3949
  %3990 = vst.msk [vmem:[#allocation3 + $0x148] sm:$0xff] %vm3273, %v3951
  %3991 = vst.msk [vmem:[#allocation3 + $0x170] sm:$0xff] %vm3273, %v3953
  %3992 = vst.msk [vmem:[#allocation3 + $0x198] sm:$0xff] %vm3273, %v3955
  %3993 = vst.msk [vmem:[#allocation3 + $0x1c0] sm:$0xff] %vm3273, %v3957
  %3994 = vst.msk [vmem:[#allocation3 + $0x1e8] sm:$0xff] %vm3273, %v3959
  %3995 = vst.msk [vmem:[#allocation3 + $0x210] sm:$0xff] %vm3273, %v3961
  %3996 = vst.msk [vmem:[#allocation3 + $0x238] sm:$0xff] %vm3273, %v3963
  %3997 = vst.msk [vmem:[#allocation3 + $0x260] sm:$0xff] %vm3273, %v3965
  %v3998 = vld [vmem:[%s2806] sm:$0xff]
  %v3999 = vld [vmem:[%s2806 + $0x8] sm:$0xff]
  %v4000 = vld [vmem:[%s2806 + $0x10] sm:$0xff]
  %v4001 = vld [vmem:[%s2806 + $0x18] sm:$0xff]
  %v4002 = vld [vmem:[%s2806 + $0x30] sm:$0xff]
  %v4003 = vld [vmem:[%s2806 + $0x38] sm:$0xff]
  %v4004 = vld [vmem:[%s2806 + $0x40] sm:$0xff]
  %v4005 = vld [vmem:[%s2806 + $0x48] sm:$0xff]
  %v4006 = vld [vmem:[%s2806 + $0x60] sm:$0xff]
  %v4007 = vld [vmem:[%s2806 + $0x68] sm:$0xff]
  %v4008 = vld [vmem:[%s2806 + $0x70] sm:$0xff]
  %v4009 = vld [vmem:[%s2806 + $0x78] sm:$0xff]
  %v4010 = vld [vmem:[%s2806 + $0x90] sm:$0xff]
  %v4011 = vld [vmem:[%s2806 + $0x98] sm:$0xff]
  %v4012 = vld [vmem:[%s2806 + $0xa0] sm:$0xff]
  %v4013 = vld [vmem:[%s2806 + $0xa8] sm:$0xff]
  %4030 = vrot.lane.b32.xlu0 %v3998, 64
  %v4031 = vpop.permute.xlu0 %4030
  %4032 = vrot.lane.b32.xlu0 %v3999, 64
  %v4033 = vpop.permute.xlu0 %4032
  %4034 = vrot.lane.b32.xlu0 %v4000, 64
  %v4035 = vpop.permute.xlu0 %4034
  %4036 = vrot.lane.b32.xlu0 %v4001, 64
  %v4037 = vpop.permute.xlu0 %4036
  %4038 = vrot.lane.b32.xlu0 %v4002, 64
  %v4039 = vpop.permute.xlu0 %4038
  %4040 = vrot.lane.b32.xlu0 %v4003, 64
  %v4041 = vpop.permute.xlu0 %4040
  %4042 = vrot.lane.b32.xlu0 %v4004, 64
  %v4043 = vpop.permute.xlu0 %4042
  %4044 = vrot.lane.b32.xlu0 %v4005, 64
  %v4045 = vpop.permute.xlu0 %4044
  %4046 = vrot.lane.b32.xlu0 %v4006, 64
  %v4047 = vpop.permute.xlu0 %4046
  %4048 = vrot.lane.b32.xlu0 %v4007, 64
  %v4049 = vpop.permute.xlu0 %4048
  %4050 = vrot.lane.b32.xlu0 %v4008, 64
  %v4051 = vpop.permute.xlu0 %4050
  %4052 = vrot.lane.b32.xlu0 %v4009, 64
  %v4053 = vpop.permute.xlu0 %4052
  %4054 = vrot.lane.b32.xlu0 %v4010, 64
  %v4055 = vpop.permute.xlu0 %4054
  %4056 = vrot.lane.b32.xlu0 %v4011, 64
  %v4057 = vpop.permute.xlu0 %4056
  %4058 = vrot.lane.b32.xlu0 %v4012, 64
  %v4059 = vpop.permute.xlu0 %4058
  %4060 = vrot.lane.b32.xlu0 %v4013, 64
  %v4061 = vpop.permute.xlu0 %4060
  %4078 = vst.msk [vmem:[#allocation3 + $0x8] sm:$0xff] %vm3370, %v4031
  %4079 = vst.msk [vmem:[#allocation3 + $0x30] sm:$0xff] %vm3370, %v4033
  %4080 = vst.msk [vmem:[#allocation3 + $0x58] sm:$0xff] %vm3370, %v4035
  %4081 = vst.msk [vmem:[#allocation3 + $0x80] sm:$0xff] %vm3370, %v4037
  %4082 = vst.msk [vmem:[#allocation3 + $0xa8] sm:$0xff] %vm3370, %v4039
  %4083 = vst.msk [vmem:[#allocation3 + $0xd0] sm:$0xff] %vm3370, %v4041
  %4084 = vst.msk [vmem:[#allocation3 + $0xf8] sm:$0xff] %vm3370, %v4043
  %4085 = vst.msk [vmem:[#allocation3 + $0x120] sm:$0xff] %vm3370, %v4045
  %4086 = vst.msk [vmem:[#allocation3 + $0x148] sm:$0xff] %vm3370, %v4047
  %4087 = vst.msk [vmem:[#allocation3 + $0x170] sm:$0xff] %vm3370, %v4049
  %4088 = vst.msk [vmem:[#allocation3 + $0x198] sm:$0xff] %vm3370, %v4051
  %4089 = vst.msk [vmem:[#allocation3 + $0x1c0] sm:$0xff] %vm3370, %v4053
  %4090 = vst.msk [vmem:[#allocation3 + $0x1e8] sm:$0xff] %vm3370, %v4055
  %4091 = vst.msk [vmem:[#allocation3 + $0x210] sm:$0xff] %vm3370, %v4057
  %4092 = vst.msk [vmem:[#allocation3 + $0x238] sm:$0xff] %vm3370, %v4059
  %4093 = vst.msk [vmem:[#allocation3 + $0x260] sm:$0xff] %vm3370, %v4061
  %v4094 = vld [vmem:[%s2848] sm:$0xff]
  %v4095 = vld [vmem:[%s2848 + $0x8] sm:$0xff]
  %v4096 = vld [vmem:[%s2848 + $0x10] sm:$0xff]
  %v4097 = vld [vmem:[%s2848 + $0x18] sm:$0xff]
  %v4098 = vld [vmem:[%s2848 + $0x30] sm:$0xff]
  %v4099 = vld [vmem:[%s2848 + $0x38] sm:$0xff]
  %v4100 = vld [vmem:[%s2848 + $0x40] sm:$0xff]
  %v4101 = vld [vmem:[%s2848 + $0x48] sm:$0xff]
  %v4102 = vld [vmem:[%s2848 + $0x60] sm:$0xff]
  %v4103 = vld [vmem:[%s2848 + $0x68] sm:$0xff]
  %v4104 = vld [vmem:[%s2848 + $0x70] sm:$0xff]
  %v4105 = vld [vmem:[%s2848 + $0x78] sm:$0xff]
  %v4106 = vld [vmem:[%s2848 + $0x90] sm:$0xff]
  %v4107 = vld [vmem:[%s2848 + $0x98] sm:$0xff]
  %v4108 = vld [vmem:[%s2848 + $0xa0] sm:$0xff]
  %v4109 = vld [vmem:[%s2848 + $0xa8] sm:$0xff]
  %4126 = vrot.lane.b32.xlu0 %v4094, 80
  %v4127 = vpop.permute.xlu0 %4126
  %4128 = vrot.lane.b32.xlu0 %v4095, 80
  %v4129 = vpop.permute.xlu0 %4128
  %4130 = vrot.lane.b32.xlu0 %v4096, 80
  %v4131 = vpop.permute.xlu0 %4130
  %4132 = vrot.lane.b32.xlu0 %v4097, 80
  %v4133 = vpop.permute.xlu0 %4132
  %4134 = vrot.lane.b32.xlu0 %v4098, 80
  %v4135 = vpop.permute.xlu0 %4134
  %4136 = vrot.lane.b32.xlu0 %v4099, 80
  %v4137 = vpop.permute.xlu0 %4136
  %4138 = vrot.lane.b32.xlu0 %v4100, 80
  %v4139 = vpop.permute.xlu0 %4138
  %4140 = vrot.lane.b32.xlu0 %v4101, 80
  %v4141 = vpop.permute.xlu0 %4140
  %4142 = vrot.lane.b32.xlu0 %v4102, 80
  %v4143 = vpop.permute.xlu0 %4142
  %4144 = vrot.lane.b32.xlu0 %v4103, 80
  %v4145 = vpop.permute.xlu0 %4144
  %4146 = vrot.lane.b32.xlu0 %v4104, 80
  %v4147 = vpop.permute.xlu0 %4146
  %4148 = vrot.lane.b32.xlu0 %v4105, 80
  %v4149 = vpop.permute.xlu0 %4148
  %4150 = vrot.lane.b32.xlu0 %v4106, 80
  %v4151 = vpop.permute.xlu0 %4150
  %4152 = vrot.lane.b32.xlu0 %v4107, 80
  %v4153 = vpop.permute.xlu0 %4152
  %4154 = vrot.lane.b32.xlu0 %v4108, 80
  %v4155 = vpop.permute.xlu0 %4154
  %4156 = vrot.lane.b32.xlu0 %v4109, 80
  %v4157 = vpop.permute.xlu0 %4156
  %4174 = vst.msk [vmem:[#allocation3 + $0x8] sm:$0xff] %vm3467, %v4127
  %4175 = vst.msk [vmem:[#allocation3 + $0x30] sm:$0xff] %vm3467, %v4129
  %4176 = vst.msk [vmem:[#allocation3 + $0x58] sm:$0xff] %vm3467, %v4131
  %4177 = vst.msk [vmem:[#allocation3 + $0x80] sm:$0xff] %vm3467, %v4133
  %4178 = vst.msk [vmem:[#allocation3 + $0xa8] sm:$0xff] %vm3467, %v4135
  %4179 = vst.msk [vmem:[#allocation3 + $0xd0] sm:$0xff] %vm3467, %v4137
  %4180 = vst.msk [vmem:[#allocation3 + $0xf8] sm:$0xff] %vm3467, %v4139
  %4181 = vst.msk [vmem:[#allocation3 + $0x120] sm:$0xff] %vm3467, %v4141
  %4182 = vst.msk [vmem:[#allocation3 + $0x148] sm:$0xff] %vm3467, %v4143
  %4183 = vst.msk [vmem:[#allocation3 + $0x170] sm:$0xff] %vm3467, %v4145
  %4184 = vst.msk [vmem:[#allocation3 + $0x198] sm:$0xff] %vm3467, %v4147
  %4185 = vst.msk [vmem:[#allocation3 + $0x1c0] sm:$0xff] %vm3467, %v4149
  %4186 = vst.msk [vmem:[#allocation3 + $0x1e8] sm:$0xff] %vm3467, %v4151
  %4187 = vst.msk [vmem:[#allocation3 + $0x210] sm:$0xff] %vm3467, %v4153
  %4188 = vst.msk [vmem:[#allocation3 + $0x238] sm:$0xff] %vm3467, %v4155
  %4189 = vst.msk [vmem:[#allocation3 + $0x260] sm:$0xff] %vm3467, %v4157
  %v4190 = vld [vmem:[%s2806 + $0x8] sm:$0xff]
  %v4191 = vld [vmem:[%s2806 + $0x10] sm:$0xff]
  %v4192 = vld [vmem:[%s2806 + $0x18] sm:$0xff]
  %v4193 = vld [vmem:[%s2806 + $0x20] sm:$0xff]
  %v4194 = vld [vmem:[%s2806 + $0x38] sm:$0xff]
  %v4195 = vld [vmem:[%s2806 + $0x40] sm:$0xff]
  %v4196 = vld [vmem:[%s2806 + $0x48] sm:$0xff]
  %v4197 = vld [vmem:[%s2806 + $0x50] sm:$0xff]
  %v4198 = vld [vmem:[%s2806 + $0x68] sm:$0xff]
  %v4199 = vld [vmem:[%s2806 + $0x70] sm:$0xff]
  %v4200 = vld [vmem:[%s2806 + $0x78] sm:$0xff]
  %v4201 = vld [vmem:[%s2806 + $0x80] sm:$0xff]
  %v4202 = vld [vmem:[%s2806 + $0x98] sm:$0xff]
  %v4203 = vld [vmem:[%s2806 + $0xa0] sm:$0xff]
  %v4204 = vld [vmem:[%s2806 + $0xa8] sm:$0xff]
  %v4205 = vld [vmem:[%s2806 + $0xb0] sm:$0xff]
  %4222 = vrot.lane.b32.xlu0 %v4190, 96
  %v4223 = vpop.permute.xlu0 %4222
  %4224 = vrot.lane.b32.xlu0 %v4191, 96
  %v4225 = vpop.permute.xlu0 %4224
  %4226 = vrot.lane.b32.xlu0 %v4192, 96
  %v4227 = vpop.permute.xlu0 %4226
  %4228 = vrot.lane.b32.xlu0 %v4193, 96
  %v4229 = vpop.permute.xlu0 %4228
  %4230 = vrot.lane.b32.xlu0 %v4194, 96
  %v4231 = vpop.permute.xlu0 %4230
  %4232 = vrot.lane.b32.xlu0 %v4195, 96
  %v4233 = vpop.permute.xlu0 %4232
  %4234 = vrot.lane.b32.xlu0 %v4196, 96
  %v4235 = vpop.permute.xlu0 %4234
  %4236 = vrot.lane.b32.xlu0 %v4197, 96
  %v4237 = vpop.permute.xlu0 %4236
  %4238 = vrot.lane.b32.xlu0 %v4198, 96
  %v4239 = vpop.permute.xlu0 %4238
  %4240 = vrot.lane.b32.xlu0 %v4199, 96
  %v4241 = vpop.permute.xlu0 %4240
  %4242 = vrot.lane.b32.xlu0 %v4200, 96
  %v4243 = vpop.permute.xlu0 %4242
  %4244 = vrot.lane.b32.xlu0 %v4201, 96
  %v4245 = vpop.permute.xlu0 %4244
  %4246 = vrot.lane.b32.xlu0 %v4202, 96
  %v4247 = vpop.permute.xlu0 %4246
  %4248 = vrot.lane.b32.xlu0 %v4203, 96
  %v4249 = vpop.permute.xlu0 %4248
  %4250 = vrot.lane.b32.xlu0 %v4204, 96
  %v4251 = vpop.permute.xlu0 %4250
  %4252 = vrot.lane.b32.xlu0 %v4205, 96
  %v4253 = vpop.permute.xlu0 %4252
  %4270 = vst.msk [vmem:[#allocation3 + $0x8] sm:$0xff] %vm3564, %v4223
  %4271 = vst.msk [vmem:[#allocation3 + $0x30] sm:$0xff] %vm3564, %v4225
  %4272 = vst.msk [vmem:[#allocation3 + $0x58] sm:$0xff] %vm3564, %v4227
  %4273 = vst.msk [vmem:[#allocation3 + $0x80] sm:$0xff] %vm3564, %v4229
  %4274 = vst.msk [vmem:[#allocation3 + $0xa8] sm:$0xff] %vm3564, %v4231
  %4275 = vst.msk [vmem:[#allocation3 + $0xd0] sm:$0xff] %vm3564, %v4233
  %4276 = vst.msk [vmem:[#allocation3 + $0xf8] sm:$0xff] %vm3564, %v4235
  %4277 = vst.msk [vmem:[#allocation3 + $0x120] sm:$0xff] %vm3564, %v4237
  %4278 = vst.msk [vmem:[#allocation3 + $0x148] sm:$0xff] %vm3564, %v4239
  %4279 = vst.msk [vmem:[#allocation3 + $0x170] sm:$0xff] %vm3564, %v4241
  %4280 = vst.msk [vmem:[#allocation3 + $0x198] sm:$0xff] %vm3564, %v4243
  %4281 = vst.msk [vmem:[#allocation3 + $0x1c0] sm:$0xff] %vm3564, %v4245
  %4282 = vst.msk [vmem:[#allocation3 + $0x1e8] sm:$0xff] %vm3564, %v4247
  %4283 = vst.msk [vmem:[#allocation3 + $0x210] sm:$0xff] %vm3564, %v4249
  %4284 = vst.msk [vmem:[#allocation3 + $0x238] sm:$0xff] %vm3564, %v4251
  %4285 = vst.msk [vmem:[#allocation3 + $0x260] sm:$0xff] %vm3564, %v4253
  %v4286 = vld [vmem:[%s2848 + $0x8] sm:$0xff]
  %v4287 = vld [vmem:[%s2848 + $0x10] sm:$0xff]
  %v4288 = vld [vmem:[%s2848 + $0x18] sm:$0xff]
  %v4289 = vld [vmem:[%s2848 + $0x20] sm:$0xff]
  %v4290 = vld [vmem:[%s2848 + $0x38] sm:$0xff]
  %v4291 = vld [vmem:[%s2848 + $0x40] sm:$0xff]
  %v4292 = vld [vmem:[%s2848 + $0x48] sm:$0xff]
  %v4293 = vld [vmem:[%s2848 + $0x50] sm:$0xff]
  %v4294 = vld [vmem:[%s2848 + $0x68] sm:$0xff]
  %v4295 = vld [vmem:[%s2848 + $0x70] sm:$0xff]
  %v4296 = vld [vmem:[%s2848 + $0x78] sm:$0xff]
  %v4297 = vld [vmem:[%s2848 + $0x80] sm:$0xff]
  %v4298 = vld [vmem:[%s2848 + $0x98] sm:$0xff]
  %v4299 = vld [vmem:[%s2848 + $0xa0] sm:$0xff]
  %v4300 = vld [vmem:[%s2848 + $0xa8] sm:$0xff]
  %v4301 = vld [vmem:[%s2848 + $0xb0] sm:$0xff]
  %4318 = vrot.lane.b32.xlu0 %v4286, 112
  %v4319 = vpop.permute.xlu0 %4318
  %4320 = vrot.lane.b32.xlu0 %v4287, 112
  %v4321 = vpop.permute.xlu0 %4320
  %4322 = vrot.lane.b32.xlu0 %v4288, 112
  %v4323 = vpop.permute.xlu0 %4322
  %4324 = vrot.lane.b32.xlu0 %v4289, 112
  %v4325 = vpop.permute.xlu0 %4324
  %4326 = vrot.lane.b32.xlu0 %v4290, 112
  %v4327 = vpop.permute.xlu0 %4326
  %4328 = vrot.lane.b32.xlu0 %v4291, 112
  %v4329 = vpop.permute.xlu0 %4328
  %4330 = vrot.lane.b32.xlu0 %v4292, 112
  %v4331 = vpop.permute.xlu0 %4330
  %4332 = vrot.lane.b32.xlu0 %v4293, 112
  %v4333 = vpop.permute.xlu0 %4332
  %4334 = vrot.lane.b32.xlu0 %v4294, 112
  %v4335 = vpop.permute.xlu0 %4334
  %4336 = vrot.lane.b32.xlu0 %v4295, 112
  %v4337 = vpop.permute.xlu0 %4336
  %4338 = vrot.lane.b32.xlu0 %v4296, 112
  %v4339 = vpop.permute.xlu0 %4338
  %4340 = vrot.lane.b32.xlu0 %v4297, 112
  %v4341 = vpop.permute.xlu0 %4340
  %4342 = vrot.lane.b32.xlu0 %v4298, 112
  %v4343 = vpop.permute.xlu0 %4342
  %4344 = vrot.lane.b32.xlu0 %v4299, 112
  %v4345 = vpop.permute.xlu0 %4344
  %4346 = vrot.lane.b32.xlu0 %v4300, 112
  %v4347 = vpop.permute.xlu0 %4346
  %4348 = vrot.lane.b32.xlu0 %v4301, 112
  %v4349 = vpop.permute.xlu0 %4348
  %4366 = vst.msk [vmem:[#allocation3 + $0x8] sm:$0xff] %vm3661, %v4319
  %4367 = vst.msk [vmem:[#allocation3 + $0x30] sm:$0xff] %vm3661, %v4321
  %4368 = vst.msk [vmem:[#allocation3 + $0x58] sm:$0xff] %vm3661, %v4323
  %4369 = vst.msk [vmem:[#allocation3 + $0x80] sm:$0xff] %vm3661, %v4325
  %4370 = vst.msk [vmem:[#allocation3 + $0xa8] sm:$0xff] %vm3661, %v4327
  %4371 = vst.msk [vmem:[#allocation3 + $0xd0] sm:$0xff] %vm3661, %v4329
  %4372 = vst.msk [vmem:[#allocation3 + $0xf8] sm:$0xff] %vm3661, %v4331
  %4373 = vst.msk [vmem:[#allocation3 + $0x120] sm:$0xff] %vm3661, %v4333
  %4374 = vst.msk [vmem:[#allocation3 + $0x148] sm:$0xff] %vm3661, %v4335
  %4375 = vst.msk [vmem:[#allocation3 + $0x170] sm:$0xff] %vm3661, %v4337
  %4376 = vst.msk [vmem:[#allocation3 + $0x198] sm:$0xff] %vm3661, %v4339
  %4377 = vst.msk [vmem:[#allocation3 + $0x1c0] sm:$0xff] %vm3661, %v4341
  %4378 = vst.msk [vmem:[#allocation3 + $0x1e8] sm:$0xff] %vm3661, %v4343
  %4379 = vst.msk [vmem:[#allocation3 + $0x210] sm:$0xff] %vm3661, %v4345
  %4380 = vst.msk [vmem:[#allocation3 + $0x238] sm:$0xff] %vm3661, %v4347
  %4381 = vst.msk [vmem:[#allocation3 + $0x260] sm:$0xff] %vm3661, %v4349
  %v4382 = vld [vmem:[%s2806 + $0x10] sm:$0xff]
  %v4383 = vld [vmem:[%s2806 + $0x18] sm:$0xff]
  %v4384 = vld [vmem:[%s2806 + $0x20] sm:$0xff]
  %v4385 = vld [vmem:[%s2806 + $0x28] sm:$0xff]
  %v4386 = vld [vmem:[%s2806 + $0x40] sm:$0xff]
  %v4387 = vld [vmem:[%s2806 + $0x48] sm:$0xff]
  %v4388 = vld [vmem:[%s2806 + $0x50] sm:$0xff]
  %v4389 = vld [vmem:[%s2806 + $0x58] sm:$0xff]
  %v4390 = vld [vmem:[%s2806 + $0x70] sm:$0xff]
  %v4391 = vld [vmem:[%s2806 + $0x78] sm:$0xff]
  %v4392 = vld [vmem:[%s2806 + $0x80] sm:$0xff]
  %v4393 = vld [vmem:[%s2806 + $0x88] sm:$0xff]
  %v4394 = vld [vmem:[%s2806 + $0xa0] sm:$0xff]
  %v4395 = vld [vmem:[%s2806 + $0xa8] sm:$0xff]
  %v4396 = vld [vmem:[%s2806 + $0xb0] sm:$0xff]
  %v4397 = vld [vmem:[%s2806 + $0xb8] sm:$0xff]
  %4398 = vst.msk [vmem:[#allocation3 + $0x10] sm:$0xff] %vm2799, %v4382
  %4399 = vst.msk [vmem:[#allocation3 + $0x38] sm:$0xff] %vm2799, %v4383
  %4400 = vst.msk [vmem:[#allocation3 + $0x60] sm:$0xff] %vm2799, %v4384
  %4401 = vst.msk [vmem:[#allocation3 + $0x88] sm:$0xff] %vm2799, %v4385
  %4402 = vst.msk [vmem:[#allocation3 + $0xb0] sm:$0xff] %vm2799, %v4386
  %4403 = vst.msk [vmem:[#allocation3 + $0xd8] sm:$0xff] %vm2799, %v4387
  %4404 = vst.msk [vmem:[#allocation3 + $0x100] sm:$0xff] %vm2799, %v4388
  %4405 = vst.msk [vmem:[#allocation3 + $0x128] sm:$0xff] %vm2799, %v4389
  %4406 = vst.msk [vmem:[#allocation3 + $0x150] sm:$0xff] %vm2799, %v4390
  %4407 = vst.msk [vmem:[#allocation3 + $0x178] sm:$0xff] %vm2799, %v4391
  %4408 = vst.msk [vmem:[#allocation3 + $0x1a0] sm:$0xff] %vm2799, %v4392
  %4409 = vst.msk [vmem:[#allocation3 + $0x1c8] sm:$0xff] %vm2799, %v4393
  %4410 = vst.msk [vmem:[#allocation3 + $0x1f0] sm:$0xff] %vm2799, %v4394
  %4411 = vst.msk [vmem:[#allocation3 + $0x218] sm:$0xff] %vm2799, %v4395
  %4412 = vst.msk [vmem:[#allocation3 + $0x240] sm:$0xff] %vm2799, %v4396
  %4413 = vst.msk [vmem:[#allocation3 + $0x268] sm:$0xff] %vm2799, %v4397
  %v4414 = vld [vmem:[%s2848 + $0x10] sm:$0xff]
  %v4415 = vld [vmem:[%s2848 + $0x18] sm:$0xff]
  %v4416 = vld [vmem:[%s2848 + $0x20] sm:$0xff]
  %v4417 = vld [vmem:[%s2848 + $0x28] sm:$0xff]
  %v4418 = vld [vmem:[%s2848 + $0x40] sm:$0xff]
  %v4419 = vld [vmem:[%s2848 + $0x48] sm:$0xff]
  %v4420 = vld [vmem:[%s2848 + $0x50] sm:$0xff]
  %v4421 = vld [vmem:[%s2848 + $0x58] sm:$0xff]
  %v4422 = vld [vmem:[%s2848 + $0x70] sm:$0xff]
  %v4423 = vld [vmem:[%s2848 + $0x78] sm:$0xff]
  %v4424 = vld [vmem:[%s2848 + $0x80] sm:$0xff]
  %v4425 = vld [vmem:[%s2848 + $0x88] sm:$0xff]
  %v4426 = vld [vmem:[%s2848 + $0xa0] sm:$0xff]
  %v4427 = vld [vmem:[%s2848 + $0xa8] sm:$0xff]
  %v4428 = vld [vmem:[%s2848 + $0xb0] sm:$0xff]
  %v4429 = vld [vmem:[%s2848 + $0xb8] sm:$0xff]
  %4446 = vrot.lane.b32.xlu0 %v4414, 16
  %v4447 = vpop.permute.xlu0 %4446
  %4448 = vrot.lane.b32.xlu0 %v4415, 16
  %v4449 = vpop.permute.xlu0 %4448
  %4450 = vrot.lane.b32.xlu0 %v4416, 16
  %v4451 = vpop.permute.xlu0 %4450
  %4452 = vrot.lane.b32.xlu0 %v4417, 16
  %v4453 = vpop.permute.xlu0 %4452
  %4454 = vrot.lane.b32.xlu0 %v4418, 16
  %v4455 = vpop.permute.xlu0 %4454
  %4456 = vrot.lane.b32.xlu0 %v4419, 16
  %v4457 = vpop.permute.xlu0 %4456
  %4458 = vrot.lane.b32.xlu0 %v4420, 16
  %v4459 = vpop.permute.xlu0 %4458
  %4460 = vrot.lane.b32.xlu0 %v4421, 16
  %v4461 = vpop.permute.xlu0 %4460
  %4462 = vrot.lane.b32.xlu0 %v4422, 16
  %v4463 = vpop.permute.xlu0 %4462
  %4464 = vrot.lane.b32.xlu0 %v4423, 16
  %v4465 = vpop.permute.xlu0 %4464
  %4466 = vrot.lane.b32.xlu0 %v4424, 16
  %v4467 = vpop.permute.xlu0 %4466
  %4468 = vrot.lane.b32.xlu0 %v4425, 16
  %v4469 = vpop.permute.xlu0 %4468
  %4470 = vrot.lane.b32.xlu0 %v4426, 16
  %v4471 = vpop.permute.xlu0 %4470
  %4472 = vrot.lane.b32.xlu0 %v4427, 16
  %v4473 = vpop.permute.xlu0 %4472
  %4474 = vrot.lane.b32.xlu0 %v4428, 16
  %v4475 = vpop.permute.xlu0 %4474
  %4476 = vrot.lane.b32.xlu0 %v4429, 16
  %v4477 = vpop.permute.xlu0 %4476
  %4494 = vst.msk [vmem:[#allocation3 + $0x10] sm:$0xff] %vm3079, %v4447
  %4495 = vst.msk [vmem:[#allocation3 + $0x38] sm:$0xff] %vm3079, %v4449
  %4496 = vst.msk [vmem:[#allocation3 + $0x60] sm:$0xff] %vm3079, %v4451
  %4497 = vst.msk [vmem:[#allocation3 + $0x88] sm:$0xff] %vm3079, %v4453
  %4498 = vst.msk [vmem:[#allocation3 + $0xb0] sm:$0xff] %vm3079, %v4455
  %4499 = vst.msk [vmem:[#allocation3 + $0xd8] sm:$0xff] %vm3079, %v4457
  %4500 = vst.msk [vmem:[#allocation3 + $0x100] sm:$0xff] %vm3079, %v4459
  %4501 = vst.msk [vmem:[#allocation3 + $0x128] sm:$0xff] %vm3079, %v4461
  %4502 = vst.msk [vmem:[#allocation3 + $0x150] sm:$0xff] %vm3079, %v4463
  %4503 = vst.msk [vmem:[#allocation3 + $0x178] sm:$0xff] %vm3079, %v4465
  %4504 = vst.msk [vmem:[#allocation3 + $0x1a0] sm:$0xff] %vm3079, %v4467
  %4505 = vst.msk [vmem:[#allocation3 + $0x1c8] sm:$0xff] %vm3079, %v4469
  %4506 = vst.msk [vmem:[#allocation3 + $0x1f0] sm:$0xff] %vm3079, %v4471
  %4507 = vst.msk [vmem:[#allocation3 + $0x218] sm:$0xff] %vm3079, %v4473
  %4508 = vst.msk [vmem:[#allocation3 + $0x240] sm:$0xff] %vm3079, %v4475
  %4509 = vst.msk [vmem:[#allocation3 + $0x268] sm:$0xff] %vm3079, %v4477
  %v4510 = vld [vmem:[%s2890] sm:$0xff]
  %v4511 = vld [vmem:[%s2890 + $0x8] sm:$0xff]
  %v4512 = vld [vmem:[%s2890 + $0x10] sm:$0xff]
  %v4513 = vld [vmem:[%s2890 + $0x18] sm:$0xff]
  %v4514 = vld [vmem:[%s2890 + $0x30] sm:$0xff]
  %v4515 = vld [vmem:[%s2890 + $0x38] sm:$0xff]
  %v4516 = vld [vmem:[%s2890 + $0x40] sm:$0xff]
  %v4517 = vld [vmem:[%s2890 + $0x48] sm:$0xff]
  %v4518 = vld [vmem:[%s2890 + $0x60] sm:$0xff]
  %v4519 = vld [vmem:[%s2890 + $0x68] sm:$0xff]
  %v4520 = vld [vmem:[%s2890 + $0x70] sm:$0xff]
  %v4521 = vld [vmem:[%s2890 + $0x78] sm:$0xff]
  %v4522 = vld [vmem:[%s2890 + $0x90] sm:$0xff]
  %v4523 = vld [vmem:[%s2890 + $0x98] sm:$0xff]
  %v4524 = vld [vmem:[%s2890 + $0xa0] sm:$0xff]
  %v4525 = vld [vmem:[%s2890 + $0xa8] sm:$0xff]
  %4542 = vrot.lane.b32.xlu0 %v4510, 32
  %v4543 = vpop.permute.xlu0 %4542
  %4544 = vrot.lane.b32.xlu0 %v4511, 32
  %v4545 = vpop.permute.xlu0 %4544
  %4546 = vrot.lane.b32.xlu0 %v4512, 32
  %v4547 = vpop.permute.xlu0 %4546
  %4548 = vrot.lane.b32.xlu0 %v4513, 32
  %v4549 = vpop.permute.xlu0 %4548
  %4550 = vrot.lane.b32.xlu0 %v4514, 32
  %v4551 = vpop.permute.xlu0 %4550
  %4552 = vrot.lane.b32.xlu0 %v4515, 32
  %v4553 = vpop.permute.xlu0 %4552
  %4554 = vrot.lane.b32.xlu0 %v4516, 32
  %v4555 = vpop.permute.xlu0 %4554
  %4556 = vrot.lane.b32.xlu0 %v4517, 32
  %v4557 = vpop.permute.xlu0 %4556
  %4558 = vrot.lane.b32.xlu0 %v4518, 32
  %v4559 = vpop.permute.xlu0 %4558
  %4560 = vrot.lane.b32.xlu0 %v4519, 32
  %v4561 = vpop.permute.xlu0 %4560
  %4562 = vrot.lane.b32.xlu0 %v4520, 32
  %v4563 = vpop.permute.xlu0 %4562
  %4564 = vrot.lane.b32.xlu0 %v4521, 32
  %v4565 = vpop.permute.xlu0 %4564
  %4566 = vrot.lane.b32.xlu0 %v4522, 32
  %v4567 = vpop.permute.xlu0 %4566
  %4568 = vrot.lane.b32.xlu0 %v4523, 32
  %v4569 = vpop.permute.xlu0 %4568
  %4570 = vrot.lane.b32.xlu0 %v4524, 32
  %v4571 = vpop.permute.xlu0 %4570
  %4572 = vrot.lane.b32.xlu0 %v4525, 32
  %v4573 = vpop.permute.xlu0 %4572
  %4590 = vst.msk [vmem:[#allocation3 + $0x10] sm:$0xff] %vm3176, %v4543
  %4591 = vst.msk [vmem:[#allocation3 + $0x38] sm:$0xff] %vm3176, %v4545
  %4592 = vst.msk [vmem:[#allocation3 + $0x60] sm:$0xff] %vm3176, %v4547
  %4593 = vst.msk [vmem:[#allocation3 + $0x88] sm:$0xff] %vm3176, %v4549
  %4594 = vst.msk [vmem:[#allocation3 + $0xb0] sm:$0xff] %vm3176, %v4551
  %4595 = vst.msk [vmem:[#allocation3 + $0xd8] sm:$0xff] %vm3176, %v4553
  %4596 = vst.msk [vmem:[#allocation3 + $0x100] sm:$0xff] %vm3176, %v4555
  %4597 = vst.msk [vmem:[#allocation3 + $0x128] sm:$0xff] %vm3176, %v4557
  %4598 = vst.msk [vmem:[#allocation3 + $0x150] sm:$0xff] %vm3176, %v4559
  %4599 = vst.msk [vmem:[#allocation3 + $0x178] sm:$0xff] %vm3176, %v4561
  %4600 = vst.msk [vmem:[#allocation3 + $0x1a0] sm:$0xff] %vm3176, %v4563
  %4601 = vst.msk [vmem:[#allocation3 + $0x1c8] sm:$0xff] %vm3176, %v4565
  %4602 = vst.msk [vmem:[#allocation3 + $0x1f0] sm:$0xff] %vm3176, %v4567
  %4603 = vst.msk [vmem:[#allocation3 + $0x218] sm:$0xff] %vm3176, %v4569
  %4604 = vst.msk [vmem:[#allocation3 + $0x240] sm:$0xff] %vm3176, %v4571
  %4605 = vst.msk [vmem:[#allocation3 + $0x268] sm:$0xff] %vm3176, %v4573
  %v4606 = vld [vmem:[%s2932] sm:$0xff]
  %v4607 = vld [vmem:[%s2932 + $0x8] sm:$0xff]
  %v4608 = vld [vmem:[%s2932 + $0x10] sm:$0xff]
  %v4609 = vld [vmem:[%s2932 + $0x18] sm:$0xff]
  %v4610 = vld [vmem:[%s2932 + $0x30] sm:$0xff]
  %v4611 = vld [vmem:[%s2932 + $0x38] sm:$0xff]
  %v4612 = vld [vmem:[%s2932 + $0x40] sm:$0xff]
  %v4613 = vld [vmem:[%s2932 + $0x48] sm:$0xff]
  %v4614 = vld [vmem:[%s2932 + $0x60] sm:$0xff]
  %v4615 = vld [vmem:[%s2932 + $0x68] sm:$0xff]
  %v4616 = vld [vmem:[%s2932 + $0x70] sm:$0xff]
  %v4617 = vld [vmem:[%s2932 + $0x78] sm:$0xff]
  %v4618 = vld [vmem:[%s2932 + $0x90] sm:$0xff]
  %v4619 = vld [vmem:[%s2932 + $0x98] sm:$0xff]
  %v4620 = vld [vmem:[%s2932 + $0xa0] sm:$0xff]
  %v4621 = vld [vmem:[%s2932 + $0xa8] sm:$0xff]
  %4638 = vrot.lane.b32.xlu0 %v4606, 48
  %v4639 = vpop.permute.xlu0 %4638
  %4640 = vrot.lane.b32.xlu0 %v4607, 48
  %v4641 = vpop.permute.xlu0 %4640
  %4642 = vrot.lane.b32.xlu0 %v4608, 48
  %v4643 = vpop.permute.xlu0 %4642
  %4644 = vrot.lane.b32.xlu0 %v4609, 48
  %v4645 = vpop.permute.xlu0 %4644
  %4646 = vrot.lane.b32.xlu0 %v4610, 48
  %v4647 = vpop.permute.xlu0 %4646
  %4648 = vrot.lane.b32.xlu0 %v4611, 48
  %v4649 = vpop.permute.xlu0 %4648
  %4650 = vrot.lane.b32.xlu0 %v4612, 48
  %v4651 = vpop.permute.xlu0 %4650
  %4652 = vrot.lane.b32.xlu0 %v4613, 48
  %v4653 = vpop.permute.xlu0 %4652
  %4654 = vrot.lane.b32.xlu0 %v4614, 48
  %v4655 = vpop.permute.xlu0 %4654
  %4656 = vrot.lane.b32.xlu0 %v4615, 48
  %v4657 = vpop.permute.xlu0 %4656
  %4658 = vrot.lane.b32.xlu0 %v4616, 48
  %v4659 = vpop.permute.xlu0 %4658
  %4660 = vrot.lane.b32.xlu0 %v4617, 48
  %v4661 = vpop.permute.xlu0 %4660
  %4662 = vrot.lane.b32.xlu0 %v4618, 48
  %v4663 = vpop.permute.xlu0 %4662
  %4664 = vrot.lane.b32.xlu0 %v4619, 48
  %v4665 = vpop.permute.xlu0 %4664
  %4666 = vrot.lane.b32.xlu0 %v4620, 48
  %v4667 = vpop.permute.xlu0 %4666
  %4668 = vrot.lane.b32.xlu0 %v4621, 48
  %v4669 = vpop.permute.xlu0 %4668
  %4686 = vst.msk [vmem:[#allocation3 + $0x10] sm:$0xff] %vm3273, %v4639
  %4687 = vst.msk [vmem:[#allocation3 + $0x38] sm:$0xff] %vm3273, %v4641
  %4688 = vst.msk [vmem:[#allocation3 + $0x60] sm:$0xff] %vm3273, %v4643
  %4689 = vst.msk [vmem:[#allocation3 + $0x88] sm:$0xff] %vm3273, %v4645
  %4690 = vst.msk [vmem:[#allocation3 + $0xb0] sm:$0xff] %vm3273, %v4647
  %4691 = vst.msk [vmem:[#allocation3 + $0xd8] sm:$0xff] %vm3273, %v4649
  %4692 = vst.msk [vmem:[#allocation3 + $0x100] sm:$0xff] %vm3273, %v4651
  %4693 = vst.msk [vmem:[#allocation3 + $0x128] sm:$0xff] %vm3273, %v4653
  %4694 = vst.msk [vmem:[#allocation3 + $0x150] sm:$0xff] %vm3273, %v4655
  %4695 = vst.msk [vmem:[#allocation3 + $0x178] sm:$0xff] %vm3273, %v4657
  %4696 = vst.msk [vmem:[#allocation3 + $0x1a0] sm:$0xff] %vm3273, %v4659
  %4697 = vst.msk [vmem:[#allocation3 + $0x1c8] sm:$0xff] %vm3273, %v4661
  %4698 = vst.msk [vmem:[#allocation3 + $0x1f0] sm:$0xff] %vm3273, %v4663
  %4699 = vst.msk [vmem:[#allocation3 + $0x218] sm:$0xff] %vm3273, %v4665
  %4700 = vst.msk [vmem:[#allocation3 + $0x240] sm:$0xff] %vm3273, %v4667
  %4701 = vst.msk [vmem:[#allocation3 + $0x268] sm:$0xff] %vm3273, %v4669
  %v4702 = vld [vmem:[%s2890 + $0x8] sm:$0xff]
  %v4703 = vld [vmem:[%s2890 + $0x10] sm:$0xff]
  %v4704 = vld [vmem:[%s2890 + $0x18] sm:$0xff]
  %v4705 = vld [vmem:[%s2890 + $0x20] sm:$0xff]
  %v4706 = vld [vmem:[%s2890 + $0x38] sm:$0xff]
  %v4707 = vld [vmem:[%s2890 + $0x40] sm:$0xff]
  %v4708 = vld [vmem:[%s2890 + $0x48] sm:$0xff]
  %v4709 = vld [vmem:[%s2890 + $0x50] sm:$0xff]
  %v4710 = vld [vmem:[%s2890 + $0x68] sm:$0xff]
  %v4711 = vld [vmem:[%s2890 + $0x70] sm:$0xff]
  %v4712 = vld [vmem:[%s2890 + $0x78] sm:$0xff]
  %v4713 = vld [vmem:[%s2890 + $0x80] sm:$0xff]
  %v4714 = vld [vmem:[%s2890 + $0x98] sm:$0xff]
  %v4715 = vld [vmem:[%s2890 + $0xa0] sm:$0xff]
  %v4716 = vld [vmem:[%s2890 + $0xa8] sm:$0xff]
  %v4717 = vld [vmem:[%s2890 + $0xb0] sm:$0xff]
  %4734 = vrot.lane.b32.xlu0 %v4702, 64
  %v4735 = vpop.permute.xlu0 %4734
  %4736 = vrot.lane.b32.xlu0 %v4703, 64
  %v4737 = vpop.permute.xlu0 %4736
  %4738 = vrot.lane.b32.xlu0 %v4704, 64
  %v4739 = vpop.permute.xlu0 %4738
  %4740 = vrot.lane.b32.xlu0 %v4705, 64
  %v4741 = vpop.permute.xlu0 %4740
  %4742 = vrot.lane.b32.xlu0 %v4706, 64
  %v4743 = vpop.permute.xlu0 %4742
  %4744 = vrot.lane.b32.xlu0 %v4707, 64
  %v4745 = vpop.permute.xlu0 %4744
  %4746 = vrot.lane.b32.xlu0 %v4708, 64
  %v4747 = vpop.permute.xlu0 %4746
  %4748 = vrot.lane.b32.xlu0 %v4709, 64
  %v4749 = vpop.permute.xlu0 %4748
  %4750 = vrot.lane.b32.xlu0 %v4710, 64
  %v4751 = vpop.permute.xlu0 %4750
  %4752 = vrot.lane.b32.xlu0 %v4711, 64
  %v4753 = vpop.permute.xlu0 %4752
  %4754 = vrot.lane.b32.xlu0 %v4712, 64
  %v4755 = vpop.permute.xlu0 %4754
  %4756 = vrot.lane.b32.xlu0 %v4713, 64
  %v4757 = vpop.permute.xlu0 %4756
  %4758 = vrot.lane.b32.xlu0 %v4714, 64
  %v4759 = vpop.permute.xlu0 %4758
  %4760 = vrot.lane.b32.xlu0 %v4715, 64
  %v4761 = vpop.permute.xlu0 %4760
  %4762 = vrot.lane.b32.xlu0 %v4716, 64
  %v4763 = vpop.permute.xlu0 %4762
  %4764 = vrot.lane.b32.xlu0 %v4717, 64
  %v4765 = vpop.permute.xlu0 %4764
  %4782 = vst.msk [vmem:[#allocation3 + $0x10] sm:$0xff] %vm3370, %v4735
  %4783 = vst.msk [vmem:[#allocation3 + $0x38] sm:$0xff] %vm3370, %v4737
  %4784 = vst.msk [vmem:[#allocation3 + $0x60] sm:$0xff] %vm3370, %v4739
  %4785 = vst.msk [vmem:[#allocation3 + $0x88] sm:$0xff] %vm3370, %v4741
  %4786 = vst.msk [vmem:[#allocation3 + $0xb0] sm:$0xff] %vm3370, %v4743
  %4787 = vst.msk [vmem:[#allocation3 + $0xd8] sm:$0xff] %vm3370, %v4745
  %4788 = vst.msk [vmem:[#allocation3 + $0x100] sm:$0xff] %vm3370, %v4747
  %4789 = vst.msk [vmem:[#allocation3 + $0x128] sm:$0xff] %vm3370, %v4749
  %4790 = vst.msk [vmem:[#allocation3 + $0x150] sm:$0xff] %vm3370, %v4751
  %4791 = vst.msk [vmem:[#allocation3 + $0x178] sm:$0xff] %vm3370, %v4753
  %4792 = vst.msk [vmem:[#allocation3 + $0x1a0] sm:$0xff] %vm3370, %v4755
  %4793 = vst.msk [vmem:[#allocation3 + $0x1c8] sm:$0xff] %vm3370, %v4757
  %4794 = vst.msk [vmem:[#allocation3 + $0x1f0] sm:$0xff] %vm3370, %v4759
  %4795 = vst.msk [vmem:[#allocation3 + $0x218] sm:$0xff] %vm3370, %v4761
  %4796 = vst.msk [vmem:[#allocation3 + $0x240] sm:$0xff] %vm3370, %v4763
  %4797 = vst.msk [vmem:[#allocation3 + $0x268] sm:$0xff] %vm3370, %v4765
  %v4798 = vld [vmem:[%s2932 + $0x8] sm:$0xff]
  %v4799 = vld [vmem:[%s2932 + $0x10] sm:$0xff]
  %v4800 = vld [vmem:[%s2932 + $0x18] sm:$0xff]
  %v4801 = vld [vmem:[%s2932 + $0x20] sm:$0xff]
  %v4802 = vld [vmem:[%s2932 + $0x38] sm:$0xff]
  %v4803 = vld [vmem:[%s2932 + $0x40] sm:$0xff]
  %v4804 = vld [vmem:[%s2932 + $0x48] sm:$0xff]
  %v4805 = vld [vmem:[%s2932 + $0x50] sm:$0xff]
  %v4806 = vld [vmem:[%s2932 + $0x68] sm:$0xff]
  %v4807 = vld [vmem:[%s2932 + $0x70] sm:$0xff]
  %v4808 = vld [vmem:[%s2932 + $0x78] sm:$0xff]
  %v4809 = vld [vmem:[%s2932 + $0x80] sm:$0xff]
  %v4810 = vld [vmem:[%s2932 + $0x98] sm:$0xff]
  %v4811 = vld [vmem:[%s2932 + $0xa0] sm:$0xff]
  %v4812 = vld [vmem:[%s2932 + $0xa8] sm:$0xff]
  %v4813 = vld [vmem:[%s2932 + $0xb0] sm:$0xff]
  %4830 = vrot.lane.b32.xlu0 %v4798, 80
  %v4831 = vpop.permute.xlu0 %4830
  %4832 = vrot.lane.b32.xlu0 %v4799, 80
  %v4833 = vpop.permute.xlu0 %4832
  %4834 = vrot.lane.b32.xlu0 %v4800, 80
  %v4835 = vpop.permute.xlu0 %4834
  %4836 = vrot.lane.b32.xlu0 %v4801, 80
  %v4837 = vpop.permute.xlu0 %4836
  %4838 = vrot.lane.b32.xlu0 %v4802, 80
  %v4839 = vpop.permute.xlu0 %4838
  %4840 = vrot.lane.b32.xlu0 %v4803, 80
  %v4841 = vpop.permute.xlu0 %4840
  %4842 = vrot.lane.b32.xlu0 %v4804, 80
  %v4843 = vpop.permute.xlu0 %4842
  %4844 = vrot.lane.b32.xlu0 %v4805, 80
  %v4845 = vpop.permute.xlu0 %4844
  %4846 = vrot.lane.b32.xlu0 %v4806, 80
  %v4847 = vpop.permute.xlu0 %4846
  %4848 = vrot.lane.b32.xlu0 %v4807, 80
  %v4849 = vpop.permute.xlu0 %4848
  %4850 = vrot.lane.b32.xlu0 %v4808, 80
  %v4851 = vpop.permute.xlu0 %4850
  %4852 = vrot.lane.b32.xlu0 %v4809, 80
  %v4853 = vpop.permute.xlu0 %4852
  %4854 = vrot.lane.b32.xlu0 %v4810, 80
  %v4855 = vpop.permute.xlu0 %4854
  %4856 = vrot.lane.b32.xlu0 %v4811, 80
  %v4857 = vpop.permute.xlu0 %4856
  %4858 = vrot.lane.b32.xlu0 %v4812, 80
  %v4859 = vpop.permute.xlu0 %4858
  %4860 = vrot.lane.b32.xlu0 %v4813, 80
  %v4861 = vpop.permute.xlu0 %4860
  %4878 = vst.msk [vmem:[#allocation3 + $0x10] sm:$0xff] %vm3467, %v4831
  %4879 = vst.msk [vmem:[#allocation3 + $0x38] sm:$0xff] %vm3467, %v4833
  %4880 = vst.msk [vmem:[#allocation3 + $0x60] sm:$0xff] %vm3467, %v4835
  %4881 = vst.msk [vmem:[#allocation3 + $0x88] sm:$0xff] %vm3467, %v4837
  %4882 = vst.msk [vmem:[#allocation3 + $0xb0] sm:$0xff] %vm3467, %v4839
  %4883 = vst.msk [vmem:[#allocation3 + $0xd8] sm:$0xff] %vm3467, %v4841
  %4884 = vst.msk [vmem:[#allocation3 + $0x100] sm:$0xff] %vm3467, %v4843
  %4885 = vst.msk [vmem:[#allocation3 + $0x128] sm:$0xff] %vm3467, %v4845
  %4886 = vst.msk [vmem:[#allocation3 + $0x150] sm:$0xff] %vm3467, %v4847
  %4887 = vst.msk [vmem:[#allocation3 + $0x178] sm:$0xff] %vm3467, %v4849
  %4888 = vst.msk [vmem:[#allocation3 + $0x1a0] sm:$0xff] %vm3467, %v4851
  %4889 = vst.msk [vmem:[#allocation3 + $0x1c8] sm:$0xff] %vm3467, %v4853
  %4890 = vst.msk [vmem:[#allocation3 + $0x1f0] sm:$0xff] %vm3467, %v4855
  %4891 = vst.msk [vmem:[#allocation3 + $0x218] sm:$0xff] %vm3467, %v4857
  %4892 = vst.msk [vmem:[#allocation3 + $0x240] sm:$0xff] %vm3467, %v4859
  %4893 = vst.msk [vmem:[#allocation3 + $0x268] sm:$0xff] %vm3467, %v4861
  %v4894 = vld [vmem:[%s2890 + $0x10] sm:$0xff]
  %v4895 = vld [vmem:[%s2890 + $0x18] sm:$0xff]
  %v4896 = vld [vmem:[%s2890 + $0x20] sm:$0xff]
  %v4897 = vld [vmem:[%s2890 + $0x28] sm:$0xff]
  %v4898 = vld [vmem:[%s2890 + $0x40] sm:$0xff]
  %v4899 = vld [vmem:[%s2890 + $0x48] sm:$0xff]
  %v4900 = vld [vmem:[%s2890 + $0x50] sm:$0xff]
  %v4901 = vld [vmem:[%s2890 + $0x58] sm:$0xff]
  %v4902 = vld [vmem:[%s2890 + $0x70] sm:$0xff]
  %v4903 = vld [vmem:[%s2890 + $0x78] sm:$0xff]
  %v4904 = vld [vmem:[%s2890 + $0x80] sm:$0xff]
  %v4905 = vld [vmem:[%s2890 + $0x88] sm:$0xff]
  %v4906 = vld [vmem:[%s2890 + $0xa0] sm:$0xff]
  %v4907 = vld [vmem:[%s2890 + $0xa8] sm:$0xff]
  %v4908 = vld [vmem:[%s2890 + $0xb0] sm:$0xff]
  %v4909 = vld [vmem:[%s2890 + $0xb8] sm:$0xff]
  %4926 = vrot.lane.b32.xlu0 %v4894, 96
  %v4927 = vpop.permute.xlu0 %4926
  %4928 = vrot.lane.b32.xlu0 %v4895, 96
  %v4929 = vpop.permute.xlu0 %4928
  %4930 = vrot.lane.b32.xlu0 %v4896, 96
  %v4931 = vpop.permute.xlu0 %4930
  %4932 = vrot.lane.b32.xlu0 %v4897, 96
  %v4933 = vpop.permute.xlu0 %4932
  %4934 = vrot.lane.b32.xlu0 %v4898, 96
  %v4935 = vpop.permute.xlu0 %4934
  %4936 = vrot.lane.b32.xlu0 %v4899, 96
  %v4937 = vpop.permute.xlu0 %4936
  %4938 = vrot.lane.b32.xlu0 %v4900, 96
  %v4939 = vpop.permute.xlu0 %4938
  %4940 = vrot.lane.b32.xlu0 %v4901, 96
  %v4941 = vpop.permute.xlu0 %4940
  %4942 = vrot.lane.b32.xlu0 %v4902, 96
  %v4943 = vpop.permute.xlu0 %4942
  %4944 = vrot.lane.b32.xlu0 %v4903, 96
  %v4945 = vpop.permute.xlu0 %4944
  %4946 = vrot.lane.b32.xlu0 %v4904, 96
  %v4947 = vpop.permute.xlu0 %4946
  %4948 = vrot.lane.b32.xlu0 %v4905, 96
  %v4949 = vpop.permute.xlu0 %4948
  %4950 = vrot.lane.b32.xlu0 %v4906, 96
  %v4951 = vpop.permute.xlu0 %4950
  %4952 = vrot.lane.b32.xlu0 %v4907, 96
  %v4953 = vpop.permute.xlu0 %4952
  %4954 = vrot.lane.b32.xlu0 %v4908, 96
  %v4955 = vpop.permute.xlu0 %4954
  %4956 = vrot.lane.b32.xlu0 %v4909, 96
  %v4957 = vpop.permute.xlu0 %4956
  %4974 = vst.msk [vmem:[#allocation3 + $0x10] sm:$0xff] %vm3564, %v4927
  %4975 = vst.msk [vmem:[#allocation3 + $0x38] sm:$0xff] %vm3564, %v4929
  %4976 = vst.msk [vmem:[#allocation3 + $0x60] sm:$0xff] %vm3564, %v4931
  %4977 = vst.msk [vmem:[#allocation3 + $0x88] sm:$0xff] %vm3564, %v4933
  %4978 = vst.msk [vmem:[#allocation3 + $0xb0] sm:$0xff] %vm3564, %v4935
  %4979 = vst.msk [vmem:[#allocation3 + $0xd8] sm:$0xff] %vm3564, %v4937
  %4980 = vst.msk [vmem:[#allocation3 + $0x100] sm:$0xff] %vm3564, %v4939
  %4981 = vst.msk [vmem:[#allocation3 + $0x128] sm:$0xff] %vm3564, %v4941
  %4982 = vst.msk [vmem:[#allocation3 + $0x150] sm:$0xff] %vm3564, %v4943
  %4983 = vst.msk [vmem:[#allocation3 + $0x178] sm:$0xff] %vm3564, %v4945
  %4984 = vst.msk [vmem:[#allocation3 + $0x1a0] sm:$0xff] %vm3564, %v4947
  %4985 = vst.msk [vmem:[#allocation3 + $0x1c8] sm:$0xff] %vm3564, %v4949
  %4986 = vst.msk [vmem:[#allocation3 + $0x1f0] sm:$0xff] %vm3564, %v4951
  %4987 = vst.msk [vmem:[#allocation3 + $0x218] sm:$0xff] %vm3564, %v4953
  %4988 = vst.msk [vmem:[#allocation3 + $0x240] sm:$0xff] %vm3564, %v4955
  %4989 = vst.msk [vmem:[#allocation3 + $0x268] sm:$0xff] %vm3564, %v4957
  %v4990 = vld [vmem:[%s2932 + $0x10] sm:$0xff]
  %v4991 = vld [vmem:[%s2932 + $0x18] sm:$0xff]
  %v4992 = vld [vmem:[%s2932 + $0x20] sm:$0xff]
  %v4993 = vld [vmem:[%s2932 + $0x28] sm:$0xff]
  %v4994 = vld [vmem:[%s2932 + $0x40] sm:$0xff]
  %v4995 = vld [vmem:[%s2932 + $0x48] sm:$0xff]
  %v4996 = vld [vmem:[%s2932 + $0x50] sm:$0xff]
  %v4997 = vld [vmem:[%s2932 + $0x58] sm:$0xff]
  %v4998 = vld [vmem:[%s2932 + $0x70] sm:$0xff]
  %v4999 = vld [vmem:[%s2932 + $0x78] sm:$0xff]
  %v5000 = vld [vmem:[%s2932 + $0x80] sm:$0xff]
  %v5001 = vld [vmem:[%s2932 + $0x88] sm:$0xff]
  %v5002 = vld [vmem:[%s2932 + $0xa0] sm:$0xff]
  %v5003 = vld [vmem:[%s2932 + $0xa8] sm:$0xff]
  %v5004 = vld [vmem:[%s2932 + $0xb0] sm:$0xff]
  %v5005 = vld [vmem:[%s2932 + $0xb8] sm:$0xff]
  %5022 = vrot.lane.b32.xlu0 %v4990, 112
  %v5023 = vpop.permute.xlu0 %5022
  %5024 = vrot.lane.b32.xlu0 %v4991, 112
  %v5025 = vpop.permute.xlu0 %5024
  %5026 = vrot.lane.b32.xlu0 %v4992, 112
  %v5027 = vpop.permute.xlu0 %5026
  %5028 = vrot.lane.b32.xlu0 %v4993, 112
  %v5029 = vpop.permute.xlu0 %5028
  %5030 = vrot.lane.b32.xlu0 %v4994, 112
  %v5031 = vpop.permute.xlu0 %5030
  %5032 = vrot.lane.b32.xlu0 %v4995, 112
  %v5033 = vpop.permute.xlu0 %5032
  %5034 = vrot.lane.b32.xlu0 %v4996, 112
  %v5035 = vpop.permute.xlu0 %5034
  %5036 = vrot.lane.b32.xlu0 %v4997, 112
  %v5037 = vpop.permute.xlu0 %5036
  %5038 = vrot.lane.b32.xlu0 %v4998, 112
  %v5039 = vpop.permute.xlu0 %5038
  %5040 = vrot.lane.b32.xlu0 %v4999, 112
  %v5041 = vpop.permute.xlu0 %5040
  %5042 = vrot.lane.b32.xlu0 %v5000, 112
  %v5043 = vpop.permute.xlu0 %5042
  %5044 = vrot.lane.b32.xlu0 %v5001, 112
  %v5045 = vpop.permute.xlu0 %5044
  %5046 = vrot.lane.b32.xlu0 %v5002, 112
  %v5047 = vpop.permute.xlu0 %5046
  %5048 = vrot.lane.b32.xlu0 %v5003, 112
  %v5049 = vpop.permute.xlu0 %5048
  %5050 = vrot.lane.b32.xlu0 %v5004, 112
  %v5051 = vpop.permute.xlu0 %5050
  %5052 = vrot.lane.b32.xlu0 %v5005, 112
  %v5053 = vpop.permute.xlu0 %5052
  %5070 = vst.msk [vmem:[#allocation3 + $0x10] sm:$0xff] %vm3661, %v5023
  %5071 = vst.msk [vmem:[#allocation3 + $0x38] sm:$0xff] %vm3661, %v5025
  %5072 = vst.msk [vmem:[#allocation3 + $0x60] sm:$0xff] %vm3661, %v5027
  %5073 = vst.msk [vmem:[#allocation3 + $0x88] sm:$0xff] %vm3661, %v5029
  %5074 = vst.msk [vmem:[#allocation3 + $0xb0] sm:$0xff] %vm3661, %v5031
  %5075 = vst.msk [vmem:[#allocation3 + $0xd8] sm:$0xff] %vm3661, %v5033
  %5076 = vst.msk [vmem:[#allocation3 + $0x100] sm:$0xff] %vm3661, %v5035
  %5077 = vst.msk [vmem:[#allocation3 + $0x128] sm:$0xff] %vm3661, %v5037
  %5078 = vst.msk [vmem:[#allocation3 + $0x150] sm:$0xff] %vm3661, %v5039
  %5079 = vst.msk [vmem:[#allocation3 + $0x178] sm:$0xff] %vm3661, %v5041
  %5080 = vst.msk [vmem:[#allocation3 + $0x1a0] sm:$0xff] %vm3661, %v5043
  %5081 = vst.msk [vmem:[#allocation3 + $0x1c8] sm:$0xff] %vm3661, %v5045
  %5082 = vst.msk [vmem:[#allocation3 + $0x1f0] sm:$0xff] %vm3661, %v5047
  %5083 = vst.msk [vmem:[#allocation3 + $0x218] sm:$0xff] %vm3661, %v5049
  %5084 = vst.msk [vmem:[#allocation3 + $0x240] sm:$0xff] %vm3661, %v5051
  %5085 = vst.msk [vmem:[#allocation3 + $0x268] sm:$0xff] %vm3661, %v5053
  %v5086 = vld [vmem:[%s2813] sm:$0xff]
  %v5087 = vld [vmem:[%s2813 + $0x8] sm:$0xff]
  %v5088 = vld [vmem:[%s2813 + $0x10] sm:$0xff]
  %v5089 = vld [vmem:[%s2813 + $0x18] sm:$0xff]
  %v5090 = vld [vmem:[%s2813 + $0x30] sm:$0xff]
  %v5091 = vld [vmem:[%s2813 + $0x38] sm:$0xff]
  %v5092 = vld [vmem:[%s2813 + $0x40] sm:$0xff]
  %v5093 = vld [vmem:[%s2813 + $0x48] sm:$0xff]
  %v5094 = vld [vmem:[%s2813 + $0x60] sm:$0xff]
  %v5095 = vld [vmem:[%s2813 + $0x68] sm:$0xff]
  %v5096 = vld [vmem:[%s2813 + $0x70] sm:$0xff]
  %v5097 = vld [vmem:[%s2813 + $0x78] sm:$0xff]
  %v5098 = vld [vmem:[%s2813 + $0x90] sm:$0xff]
  %v5099 = vld [vmem:[%s2813 + $0x98] sm:$0xff]
  %v5100 = vld [vmem:[%s2813 + $0xa0] sm:$0xff]
  %v5101 = vld [vmem:[%s2813 + $0xa8] sm:$0xff]
  %5102 = vst.msk [vmem:[#allocation3 + $0x18] sm:$0xff] %vm2799, %v5086
  %5103 = vst.msk [vmem:[#allocation3 + $0x40] sm:$0xff] %vm2799, %v5087
  %5104 = vst.msk [vmem:[#allocation3 + $0x68] sm:$0xff] %vm2799, %v5088
  %5105 = vst.msk [vmem:[#allocation3 + $0x90] sm:$0xff] %vm2799, %v5089
  %5106 = vst.msk [vmem:[#allocation3 + $0xb8] sm:$0xff] %vm2799, %v5090
  %5107 = vst.msk [vmem:[#allocation3 + $0xe0] sm:$0xff] %vm2799, %v5091
  %5108 = vst.msk [vmem:[#allocation3 + $0x108] sm:$0xff] %vm2799, %v5092
  %5109 = vst.msk [vmem:[#allocation3 + $0x130] sm:$0xff] %vm2799, %v5093
  %5110 = vst.msk [vmem:[#allocation3 + $0x158] sm:$0xff] %vm2799, %v5094
  %5111 = vst.msk [vmem:[#allocation3 + $0x180] sm:$0xff] %vm2799, %v5095
  %5112 = vst.msk [vmem:[#allocation3 + $0x1a8] sm:$0xff] %vm2799, %v5096
  %5113 = vst.msk [vmem:[#allocation3 + $0x1d0] sm:$0xff] %vm2799, %v5097
  %5114 = vst.msk [vmem:[#allocation3 + $0x1f8] sm:$0xff] %vm2799, %v5098
  %5115 = vst.msk [vmem:[#allocation3 + $0x220] sm:$0xff] %vm2799, %v5099
  %5116 = vst.msk [vmem:[#allocation3 + $0x248] sm:$0xff] %vm2799, %v5100
  %5117 = vst.msk [vmem:[#allocation3 + $0x270] sm:$0xff] %vm2799, %v5101
  %v5118 = vld [vmem:[%s2855] sm:$0xff]
  %v5119 = vld [vmem:[%s2855 + $0x8] sm:$0xff]
  %v5120 = vld [vmem:[%s2855 + $0x10] sm:$0xff]
  %v5121 = vld [vmem:[%s2855 + $0x18] sm:$0xff]
  %v5122 = vld [vmem:[%s2855 + $0x30] sm:$0xff]
  %v5123 = vld [vmem:[%s2855 + $0x38] sm:$0xff]
  %v5124 = vld [vmem:[%s2855 + $0x40] sm:$0xff]
  %v5125 = vld [vmem:[%s2855 + $0x48] sm:$0xff]
  %v5126 = vld [vmem:[%s2855 + $0x60] sm:$0xff]
  %v5127 = vld [vmem:[%s2855 + $0x68] sm:$0xff]
  %v5128 = vld [vmem:[%s2855 + $0x70] sm:$0xff]
  %v5129 = vld [vmem:[%s2855 + $0x78] sm:$0xff]
  %v5130 = vld [vmem:[%s2855 + $0x90] sm:$0xff]
  %v5131 = vld [vmem:[%s2855 + $0x98] sm:$0xff]
  %v5132 = vld [vmem:[%s2855 + $0xa0] sm:$0xff]
  %v5133 = vld [vmem:[%s2855 + $0xa8] sm:$0xff]
  %5150 = vrot.lane.b32.xlu0 %v5118, 16
  %v5151 = vpop.permute.xlu0 %5150
  %5152 = vrot.lane.b32.xlu0 %v5119, 16
  %v5153 = vpop.permute.xlu0 %5152
  %5154 = vrot.lane.b32.xlu0 %v5120, 16
  %v5155 = vpop.permute.xlu0 %5154
  %5156 = vrot.lane.b32.xlu0 %v5121, 16
  %v5157 = vpop.permute.xlu0 %5156
  %5158 = vrot.lane.b32.xlu0 %v5122, 16
  %v5159 = vpop.permute.xlu0 %5158
  %5160 = vrot.lane.b32.xlu0 %v5123, 16
  %v5161 = vpop.permute.xlu0 %5160
  %5162 = vrot.lane.b32.xlu0 %v5124, 16
  %v5163 = vpop.permute.xlu0 %5162
  %5164 = vrot.lane.b32.xlu0 %v5125, 16
  %v5165 = vpop.permute.xlu0 %5164
  %5166 = vrot.lane.b32.xlu0 %v5126, 16
  %v5167 = vpop.permute.xlu0 %5166
  %5168 = vrot.lane.b32.xlu0 %v5127, 16
  %v5169 = vpop.permute.xlu0 %5168
  %5170 = vrot.lane.b32.xlu0 %v5128, 16
  %v5171 = vpop.permute.xlu0 %5170
  %5172 = vrot.lane.b32.xlu0 %v5129, 16
  %v5173 = vpop.permute.xlu0 %5172
  %5174 = vrot.lane.b32.xlu0 %v5130, 16
  %v5175 = vpop.permute.xlu0 %5174
  %5176 = vrot.lane.b32.xlu0 %v5131, 16
  %v5177 = vpop.permute.xlu0 %5176
  %5178 = vrot.lane.b32.xlu0 %v5132, 16
  %v5179 = vpop.permute.xlu0 %5178
  %5180 = vrot.lane.b32.xlu0 %v5133, 16
  %v5181 = vpop.permute.xlu0 %5180
  %5198 = vst.msk [vmem:[#allocation3 + $0x18] sm:$0xff] %vm3079, %v5151
  %5199 = vst.msk [vmem:[#allocation3 + $0x40] sm:$0xff] %vm3079, %v5153
  %5200 = vst.msk [vmem:[#allocation3 + $0x68] sm:$0xff] %vm3079, %v5155
  %5201 = vst.msk [vmem:[#allocation3 + $0x90] sm:$0xff] %vm3079, %v5157
  %5202 = vst.msk [vmem:[#allocation3 + $0xb8] sm:$0xff] %vm3079, %v5159
  %5203 = vst.msk [vmem:[#allocation3 + $0xe0] sm:$0xff] %vm3079, %v5161
  %5204 = vst.msk [vmem:[#allocation3 + $0x108] sm:$0xff] %vm3079, %v5163
  %5205 = vst.msk [vmem:[#allocation3 + $0x130] sm:$0xff] %vm3079, %v5165
  %5206 = vst.msk [vmem:[#allocation3 + $0x158] sm:$0xff] %vm3079, %v5167
  %5207 = vst.msk [vmem:[#allocation3 + $0x180] sm:$0xff] %vm3079, %v5169
  %5208 = vst.msk [vmem:[#allocation3 + $0x1a8] sm:$0xff] %vm3079, %v5171
  %5209 = vst.msk [vmem:[#allocation3 + $0x1d0] sm:$0xff] %vm3079, %v5173
  %5210 = vst.msk [vmem:[#allocation3 + $0x1f8] sm:$0xff] %vm3079, %v5175
  %5211 = vst.msk [vmem:[#allocation3 + $0x220] sm:$0xff] %vm3079, %v5177
  %5212 = vst.msk [vmem:[#allocation3 + $0x248] sm:$0xff] %vm3079, %v5179
  %5213 = vst.msk [vmem:[#allocation3 + $0x270] sm:$0xff] %vm3079, %v5181
  %v5214 = vld [vmem:[%s2813 + $0x8] sm:$0xff]
  %v5215 = vld [vmem:[%s2813 + $0x10] sm:$0xff]
  %v5216 = vld [vmem:[%s2813 + $0x18] sm:$0xff]
  %v5217 = vld [vmem:[%s2813 + $0x20] sm:$0xff]
  %v5218 = vld [vmem:[%s2813 + $0x38] sm:$0xff]
  %v5219 = vld [vmem:[%s2813 + $0x40] sm:$0xff]
  %v5220 = vld [vmem:[%s2813 + $0x48] sm:$0xff]
  %v5221 = vld [vmem:[%s2813 + $0x50] sm:$0xff]
  %v5222 = vld [vmem:[%s2813 + $0x68] sm:$0xff]
  %v5223 = vld [vmem:[%s2813 + $0x70] sm:$0xff]
  %v5224 = vld [vmem:[%s2813 + $0x78] sm:$0xff]
  %v5225 = vld [vmem:[%s2813 + $0x80] sm:$0xff]
  %v5226 = vld [vmem:[%s2813 + $0x98] sm:$0xff]
  %v5227 = vld [vmem:[%s2813 + $0xa0] sm:$0xff]
  %v5228 = vld [vmem:[%s2813 + $0xa8] sm:$0xff]
  %v5229 = vld [vmem:[%s2813 + $0xb0] sm:$0xff]
  %5246 = vrot.lane.b32.xlu0 %v5214, 32
  %v5247 = vpop.permute.xlu0 %5246
  %5248 = vrot.lane.b32.xlu0 %v5215, 32
  %v5249 = vpop.permute.xlu0 %5248
  %5250 = vrot.lane.b32.xlu0 %v5216, 32
  %v5251 = vpop.permute.xlu0 %5250
  %5252 = vrot.lane.b32.xlu0 %v5217, 32
  %v5253 = vpop.permute.xlu0 %5252
  %5254 = vrot.lane.b32.xlu0 %v5218, 32
  %v5255 = vpop.permute.xlu0 %5254
  %5256 = vrot.lane.b32.xlu0 %v5219, 32
  %v5257 = vpop.permute.xlu0 %5256
  %5258 = vrot.lane.b32.xlu0 %v5220, 32
  %v5259 = vpop.permute.xlu0 %5258
  %5260 = vrot.lane.b32.xlu0 %v5221, 32
  %v5261 = vpop.permute.xlu0 %5260
  %5262 = vrot.lane.b32.xlu0 %v5222, 32
  %v5263 = vpop.permute.xlu0 %5262
  %5264 = vrot.lane.b32.xlu0 %v5223, 32
  %v5265 = vpop.permute.xlu0 %5264
  %5266 = vrot.lane.b32.xlu0 %v5224, 32
  %v5267 = vpop.permute.xlu0 %5266
  %5268 = vrot.lane.b32.xlu0 %v5225, 32
  %v5269 = vpop.permute.xlu0 %5268
  %5270 = vrot.lane.b32.xlu0 %v5226, 32
  %v5271 = vpop.permute.xlu0 %5270
  %5272 = vrot.lane.b32.xlu0 %v5227, 32
  %v5273 = vpop.permute.xlu0 %5272
  %5274 = vrot.lane.b32.xlu0 %v5228, 32
  %v5275 = vpop.permute.xlu0 %5274
  %5276 = vrot.lane.b32.xlu0 %v5229, 32
  %v5277 = vpop.permute.xlu0 %5276
  %5294 = vst.msk [vmem:[#allocation3 + $0x18] sm:$0xff] %vm3176, %v5247
  %5295 = vst.msk [vmem:[#allocation3 + $0x40] sm:$0xff] %vm3176, %v5249
  %5296 = vst.msk [vmem:[#allocation3 + $0x68] sm:$0xff] %vm3176, %v5251
  %5297 = vst.msk [vmem:[#allocation3 + $0x90] sm:$0xff] %vm3176, %v5253
  %5298 = vst.msk [vmem:[#allocation3 + $0xb8] sm:$0xff] %vm3176, %v5255
  %5299 = vst.msk [vmem:[#allocation3 + $0xe0] sm:$0xff] %vm3176, %v5257
  %5300 = vst.msk [vmem:[#allocation3 + $0x108] sm:$0xff] %vm3176, %v5259
  %5301 = vst.msk [vmem:[#allocation3 + $0x130] sm:$0xff] %vm3176, %v5261
  %5302 = vst.msk [vmem:[#allocation3 + $0x158] sm:$0xff] %vm3176, %v5263
  %5303 = vst.msk [vmem:[#allocation3 + $0x180] sm:$0xff] %vm3176, %v5265
  %5304 = vst.msk [vmem:[#allocation3 + $0x1a8] sm:$0xff] %vm3176, %v5267
  %5305 = vst.msk [vmem:[#allocation3 + $0x1d0] sm:$0xff] %vm3176, %v5269
  %5306 = vst.msk [vmem:[#allocation3 + $0x1f8] sm:$0xff] %vm3176, %v5271
  %5307 = vst.msk [vmem:[#allocation3 + $0x220] sm:$0xff] %vm3176, %v5273
  %5308 = vst.msk [vmem:[#allocation3 + $0x248] sm:$0xff] %vm3176, %v5275
  %5309 = vst.msk [vmem:[#allocation3 + $0x270] sm:$0xff] %vm3176, %v5277
  %v5310 = vld [vmem:[%s2855 + $0x8] sm:$0xff]
  %v5311 = vld [vmem:[%s2855 + $0x10] sm:$0xff]
  %v5312 = vld [vmem:[%s2855 + $0x18] sm:$0xff]
  %v5313 = vld [vmem:[%s2855 + $0x20] sm:$0xff]
  %v5314 = vld [vmem:[%s2855 + $0x38] sm:$0xff]
  %v5315 = vld [vmem:[%s2855 + $0x40] sm:$0xff]
  %v5316 = vld [vmem:[%s2855 + $0x48] sm:$0xff]
  %v5317 = vld [vmem:[%s2855 + $0x50] sm:$0xff]
  %v5318 = vld [vmem:[%s2855 + $0x68] sm:$0xff]
  %v5319 = vld [vmem:[%s2855 + $0x70] sm:$0xff]
  %v5320 = vld [vmem:[%s2855 + $0x78] sm:$0xff]
  %v5321 = vld [vmem:[%s2855 + $0x80] sm:$0xff]
  %v5322 = vld [vmem:[%s2855 + $0x98] sm:$0xff]
  %v5323 = vld [vmem:[%s2855 + $0xa0] sm:$0xff]
  %v5324 = vld [vmem:[%s2855 + $0xa8] sm:$0xff]
  %v5325 = vld [vmem:[%s2855 + $0xb0] sm:$0xff]
  %5342 = vrot.lane.b32.xlu0 %v5310, 48
  %v5343 = vpop.permute.xlu0 %5342
  %5344 = vrot.lane.b32.xlu0 %v5311, 48
  %v5345 = vpop.permute.xlu0 %5344
  %5346 = vrot.lane.b32.xlu0 %v5312, 48
  %v5347 = vpop.permute.xlu0 %5346
  %5348 = vrot.lane.b32.xlu0 %v5313, 48
  %v5349 = vpop.permute.xlu0 %5348
  %5350 = vrot.lane.b32.xlu0 %v5314, 48
  %v5351 = vpop.permute.xlu0 %5350
  %5352 = vrot.lane.b32.xlu0 %v5315, 48
  %v5353 = vpop.permute.xlu0 %5352
  %5354 = vrot.lane.b32.xlu0 %v5316, 48
  %v5355 = vpop.permute.xlu0 %5354
  %5356 = vrot.lane.b32.xlu0 %v5317, 48
  %v5357 = vpop.permute.xlu0 %5356
  %5358 = vrot.lane.b32.xlu0 %v5318, 48
  %v5359 = vpop.permute.xlu0 %5358
  %5360 = vrot.lane.b32.xlu0 %v5319, 48
  %v5361 = vpop.permute.xlu0 %5360
  %5362 = vrot.lane.b32.xlu0 %v5320, 48
  %v5363 = vpop.permute.xlu0 %5362
  %5364 = vrot.lane.b32.xlu0 %v5321, 48
  %v5365 = vpop.permute.xlu0 %5364
  %5366 = vrot.lane.b32.xlu0 %v5322, 48
  %v5367 = vpop.permute.xlu0 %5366
  %5368 = vrot.lane.b32.xlu0 %v5323, 48
  %v5369 = vpop.permute.xlu0 %5368
  %5370 = vrot.lane.b32.xlu0 %v5324, 48
  %v5371 = vpop.permute.xlu0 %5370
  %5372 = vrot.lane.b32.xlu0 %v5325, 48
  %v5373 = vpop.permute.xlu0 %5372
  %5390 = vst.msk [vmem:[#allocation3 + $0x18] sm:$0xff] %vm3273, %v5343
  %5391 = vst.msk [vmem:[#allocation3 + $0x40] sm:$0xff] %vm3273, %v5345
  %5392 = vst.msk [vmem:[#allocation3 + $0x68] sm:$0xff] %vm3273, %v5347
  %5393 = vst.msk [vmem:[#allocation3 + $0x90] sm:$0xff] %vm3273, %v5349
  %5394 = vst.msk [vmem:[#allocation3 + $0xb8] sm:$0xff] %vm3273, %v5351
  %5395 = vst.msk [vmem:[#allocation3 + $0xe0] sm:$0xff] %vm3273, %v5353
  %5396 = vst.msk [vmem:[#allocation3 + $0x108] sm:$0xff] %vm3273, %v5355
  %5397 = vst.msk [vmem:[#allocation3 + $0x130] sm:$0xff] %vm3273, %v5357
  %5398 = vst.msk [vmem:[#allocation3 + $0x158] sm:$0xff] %vm3273, %v5359
  %5399 = vst.msk [vmem:[#allocation3 + $0x180] sm:$0xff] %vm3273, %v5361
  %5400 = vst.msk [vmem:[#allocation3 + $0x1a8] sm:$0xff] %vm3273, %v5363
  %5401 = vst.msk [vmem:[#allocation3 + $0x1d0] sm:$0xff] %vm3273, %v5365
  %5402 = vst.msk [vmem:[#allocation3 + $0x1f8] sm:$0xff] %vm3273, %v5367
  %5403 = vst.msk [vmem:[#allocation3 + $0x220] sm:$0xff] %vm3273, %v5369
  %5404 = vst.msk [vmem:[#allocation3 + $0x248] sm:$0xff] %vm3273, %v5371
  %5405 = vst.msk [vmem:[#allocation3 + $0x270] sm:$0xff] %vm3273, %v5373
  %v5406 = vld [vmem:[%s2813 + $0x10] sm:$0xff]
  %v5407 = vld [vmem:[%s2813 + $0x18] sm:$0xff]
  %v5408 = vld [vmem:[%s2813 + $0x20] sm:$0xff]
  %v5409 = vld [vmem:[%s2813 + $0x28] sm:$0xff]
  %v5410 = vld [vmem:[%s2813 + $0x40] sm:$0xff]
  %v5411 = vld [vmem:[%s2813 + $0x48] sm:$0xff]
  %v5412 = vld [vmem:[%s2813 + $0x50] sm:$0xff]
  %v5413 = vld [vmem:[%s2813 + $0x58] sm:$0xff]
  %v5414 = vld [vmem:[%s2813 + $0x70] sm:$0xff]
  %v5415 = vld [vmem:[%s2813 + $0x78] sm:$0xff]
  %v5416 = vld [vmem:[%s2813 + $0x80] sm:$0xff]
  %v5417 = vld [vmem:[%s2813 + $0x88] sm:$0xff]
  %v5418 = vld [vmem:[%s2813 + $0xa0] sm:$0xff]
  %v5419 = vld [vmem:[%s2813 + $0xa8] sm:$0xff]
  %v5420 = vld [vmem:[%s2813 + $0xb0] sm:$0xff]
  %v5421 = vld [vmem:[%s2813 + $0xb8] sm:$0xff]
  %5438 = vrot.lane.b32.xlu0 %v5406, 64
  %v5439 = vpop.permute.xlu0 %5438
  %5440 = vrot.lane.b32.xlu0 %v5407, 64
  %v5441 = vpop.permute.xlu0 %5440
  %5442 = vrot.lane.b32.xlu0 %v5408, 64
  %v5443 = vpop.permute.xlu0 %5442
  %5444 = vrot.lane.b32.xlu0 %v5409, 64
  %v5445 = vpop.permute.xlu0 %5444
  %5446 = vrot.lane.b32.xlu0 %v5410, 64
  %v5447 = vpop.permute.xlu0 %5446
  %5448 = vrot.lane.b32.xlu0 %v5411, 64
  %v5449 = vpop.permute.xlu0 %5448
  %5450 = vrot.lane.b32.xlu0 %v5412, 64
  %v5451 = vpop.permute.xlu0 %5450
  %5452 = vrot.lane.b32.xlu0 %v5413, 64
  %v5453 = vpop.permute.xlu0 %5452
  %5454 = vrot.lane.b32.xlu0 %v5414, 64
  %v5455 = vpop.permute.xlu0 %5454
  %5456 = vrot.lane.b32.xlu0 %v5415, 64
  %v5457 = vpop.permute.xlu0 %5456
  %5458 = vrot.lane.b32.xlu0 %v5416, 64
  %v5459 = vpop.permute.xlu0 %5458
  %5460 = vrot.lane.b32.xlu0 %v5417, 64
  %v5461 = vpop.permute.xlu0 %5460
  %5462 = vrot.lane.b32.xlu0 %v5418, 64
  %v5463 = vpop.permute.xlu0 %5462
  %5464 = vrot.lane.b32.xlu0 %v5419, 64
  %v5465 = vpop.permute.xlu0 %5464
  %5466 = vrot.lane.b32.xlu0 %v5420, 64
  %v5467 = vpop.permute.xlu0 %5466
  %5468 = vrot.lane.b32.xlu0 %v5421, 64
  %v5469 = vpop.permute.xlu0 %5468
  %5486 = vst.msk [vmem:[#allocation3 + $0x18] sm:$0xff] %vm3370, %v5439
  %5487 = vst.msk [vmem:[#allocation3 + $0x40] sm:$0xff] %vm3370, %v5441
  %5488 = vst.msk [vmem:[#allocation3 + $0x68] sm:$0xff] %vm3370, %v5443
  %5489 = vst.msk [vmem:[#allocation3 + $0x90] sm:$0xff] %vm3370, %v5445
  %5490 = vst.msk [vmem:[#allocation3 + $0xb8] sm:$0xff] %vm3370, %v5447
  %5491 = vst.msk [vmem:[#allocation3 + $0xe0] sm:$0xff] %vm3370, %v5449
  %5492 = vst.msk [vmem:[#allocation3 + $0x108] sm:$0xff] %vm3370, %v5451
  %5493 = vst.msk [vmem:[#allocation3 + $0x130] sm:$0xff] %vm3370, %v5453
  %5494 = vst.msk [vmem:[#allocation3 + $0x158] sm:$0xff] %vm3370, %v5455
  %5495 = vst.msk [vmem:[#allocation3 + $0x180] sm:$0xff] %vm3370, %v5457
  %5496 = vst.msk [vmem:[#allocation3 + $0x1a8] sm:$0xff] %vm3370, %v5459
  %5497 = vst.msk [vmem:[#allocation3 + $0x1d0] sm:$0xff] %vm3370, %v5461
  %5498 = vst.msk [vmem:[#allocation3 + $0x1f8] sm:$0xff] %vm3370, %v5463
  %5499 = vst.msk [vmem:[#allocation3 + $0x220] sm:$0xff] %vm3370, %v5465
  %5500 = vst.msk [vmem:[#allocation3 + $0x248] sm:$0xff] %vm3370, %v5467
  %5501 = vst.msk [vmem:[#allocation3 + $0x270] sm:$0xff] %vm3370, %v5469
  %v5502 = vld [vmem:[%s2855 + $0x10] sm:$0xff]
  %v5503 = vld [vmem:[%s2855 + $0x18] sm:$0xff]
  %v5504 = vld [vmem:[%s2855 + $0x20] sm:$0xff]
  %v5505 = vld [vmem:[%s2855 + $0x28] sm:$0xff]
  %v5506 = vld [vmem:[%s2855 + $0x40] sm:$0xff]
  %v5507 = vld [vmem:[%s2855 + $0x48] sm:$0xff]
  %v5508 = vld [vmem:[%s2855 + $0x50] sm:$0xff]
  %v5509 = vld [vmem:[%s2855 + $0x58] sm:$0xff]
  %v5510 = vld [vmem:[%s2855 + $0x70] sm:$0xff]
  %v5511 = vld [vmem:[%s2855 + $0x78] sm:$0xff]
  %v5512 = vld [vmem:[%s2855 + $0x80] sm:$0xff]
  %v5513 = vld [vmem:[%s2855 + $0x88] sm:$0xff]
  %v5514 = vld [vmem:[%s2855 + $0xa0] sm:$0xff]
  %v5515 = vld [vmem:[%s2855 + $0xa8] sm:$0xff]
  %v5516 = vld [vmem:[%s2855 + $0xb0] sm:$0xff]
  %v5517 = vld [vmem:[%s2855 + $0xb8] sm:$0xff]
  %5534 = vrot.lane.b32.xlu0 %v5502, 80
  %v5535 = vpop.permute.xlu0 %5534
  %5536 = vrot.lane.b32.xlu0 %v5503, 80
  %v5537 = vpop.permute.xlu0 %5536
  %5538 = vrot.lane.b32.xlu0 %v5504, 80
  %v5539 = vpop.permute.xlu0 %5538
  %5540 = vrot.lane.b32.xlu0 %v5505, 80
  %v5541 = vpop.permute.xlu0 %5540
  %5542 = vrot.lane.b32.xlu0 %v5506, 80
  %v5543 = vpop.permute.xlu0 %5542
  %5544 = vrot.lane.b32.xlu0 %v5507, 80
  %v5545 = vpop.permute.xlu0 %5544
  %5546 = vrot.lane.b32.xlu0 %v5508, 80
  %v5547 = vpop.permute.xlu0 %5546
  %5548 = vrot.lane.b32.xlu0 %v5509, 80
  %v5549 = vpop.permute.xlu0 %5548
  %5550 = vrot.lane.b32.xlu0 %v5510, 80
  %v5551 = vpop.permute.xlu0 %5550
  %5552 = vrot.lane.b32.xlu0 %v5511, 80
  %v5553 = vpop.permute.xlu0 %5552
  %5554 = vrot.lane.b32.xlu0 %v5512, 80
  %v5555 = vpop.permute.xlu0 %5554
  %5556 = vrot.lane.b32.xlu0 %v5513, 80
  %v5557 = vpop.permute.xlu0 %5556
  %5558 = vrot.lane.b32.xlu0 %v5514, 80
  %v5559 = vpop.permute.xlu0 %5558
  %5560 = vrot.lane.b32.xlu0 %v5515, 80
  %v5561 = vpop.permute.xlu0 %5560
  %5562 = vrot.lane.b32.xlu0 %v5516, 80
  %v5563 = vpop.permute.xlu0 %5562
  %5564 = vrot.lane.b32.xlu0 %v5517, 80
  %v5565 = vpop.permute.xlu0 %5564
  %5582 = vst.msk [vmem:[#allocation3 + $0x18] sm:$0xff] %vm3467, %v5535
  %5583 = vst.msk [vmem:[#allocation3 + $0x40] sm:$0xff] %vm3467, %v5537
  %5584 = vst.msk [vmem:[#allocation3 + $0x68] sm:$0xff] %vm3467, %v5539
  %5585 = vst.msk [vmem:[#allocation3 + $0x90] sm:$0xff] %vm3467, %v5541
  %5586 = vst.msk [vmem:[#allocation3 + $0xb8] sm:$0xff] %vm3467, %v5543
  %5587 = vst.msk [vmem:[#allocation3 + $0xe0] sm:$0xff] %vm3467, %v5545
  %5588 = vst.msk [vmem:[#allocation3 + $0x108] sm:$0xff] %vm3467, %v5547
  %5589 = vst.msk [vmem:[#allocation3 + $0x130] sm:$0xff] %vm3467, %v5549
  %5590 = vst.msk [vmem:[#allocation3 + $0x158] sm:$0xff] %vm3467, %v5551
  %5591 = vst.msk [vmem:[#allocation3 + $0x180] sm:$0xff] %vm3467, %v5553
  %5592 = vst.msk [vmem:[#allocation3 + $0x1a8] sm:$0xff] %vm3467, %v5555
  %5593 = vst.msk [vmem:[#allocation3 + $0x1d0] sm:$0xff] %vm3467, %v5557
  %5594 = vst.msk [vmem:[#allocation3 + $0x1f8] sm:$0xff] %vm3467, %v5559
  %5595 = vst.msk [vmem:[#allocation3 + $0x220] sm:$0xff] %vm3467, %v5561
  %5596 = vst.msk [vmem:[#allocation3 + $0x248] sm:$0xff] %vm3467, %v5563
  %5597 = vst.msk [vmem:[#allocation3 + $0x270] sm:$0xff] %vm3467, %v5565
  %v5598 = vld [vmem:[%s2897] sm:$0xff]
  %v5599 = vld [vmem:[%s2897 + $0x8] sm:$0xff]
  %v5600 = vld [vmem:[%s2897 + $0x10] sm:$0xff]
  %v5601 = vld [vmem:[%s2897 + $0x18] sm:$0xff]
  %v5602 = vld [vmem:[%s2897 + $0x30] sm:$0xff]
  %v5603 = vld [vmem:[%s2897 + $0x38] sm:$0xff]
  %v5604 = vld [vmem:[%s2897 + $0x40] sm:$0xff]
  %v5605 = vld [vmem:[%s2897 + $0x48] sm:$0xff]
  %v5606 = vld [vmem:[%s2897 + $0x60] sm:$0xff]
  %v5607 = vld [vmem:[%s2897 + $0x68] sm:$0xff]
  %v5608 = vld [vmem:[%s2897 + $0x70] sm:$0xff]
  %v5609 = vld [vmem:[%s2897 + $0x78] sm:$0xff]
  %v5610 = vld [vmem:[%s2897 + $0x90] sm:$0xff]
  %v5611 = vld [vmem:[%s2897 + $0x98] sm:$0xff]
  %v5612 = vld [vmem:[%s2897 + $0xa0] sm:$0xff]
  %v5613 = vld [vmem:[%s2897 + $0xa8] sm:$0xff]
  %5630 = vrot.lane.b32.xlu0 %v5598, 96
  %v5631 = vpop.permute.xlu0 %5630
  %5632 = vrot.lane.b32.xlu0 %v5599, 96
  %v5633 = vpop.permute.xlu0 %5632
  %5634 = vrot.lane.b32.xlu0 %v5600, 96
  %v5635 = vpop.permute.xlu0 %5634
  %5636 = vrot.lane.b32.xlu0 %v5601, 96
  %v5637 = vpop.permute.xlu0 %5636
  %5638 = vrot.lane.b32.xlu0 %v5602, 96
  %v5639 = vpop.permute.xlu0 %5638
  %5640 = vrot.lane.b32.xlu0 %v5603, 96
  %v5641 = vpop.permute.xlu0 %5640
  %5642 = vrot.lane.b32.xlu0 %v5604, 96
  %v5643 = vpop.permute.xlu0 %5642
  %5644 = vrot.lane.b32.xlu0 %v5605, 96
  %v5645 = vpop.permute.xlu0 %5644
  %5646 = vrot.lane.b32.xlu0 %v5606, 96
  %v5647 = vpop.permute.xlu0 %5646
  %5648 = vrot.lane.b32.xlu0 %v5607, 96
  %v5649 = vpop.permute.xlu0 %5648
  %5650 = vrot.lane.b32.xlu0 %v5608, 96
  %v5651 = vpop.permute.xlu0 %5650
  %5652 = vrot.lane.b32.xlu0 %v5609, 96
  %v5653 = vpop.permute.xlu0 %5652
  %5654 = vrot.lane.b32.xlu0 %v5610, 96
  %v5655 = vpop.permute.xlu0 %5654
  %5656 = vrot.lane.b32.xlu0 %v5611, 96
  %v5657 = vpop.permute.xlu0 %5656
  %5658 = vrot.lane.b32.xlu0 %v5612, 96
  %v5659 = vpop.permute.xlu0 %5658
  %5660 = vrot.lane.b32.xlu0 %v5613, 96
  %v5661 = vpop.permute.xlu0 %5660
  %5678 = vst.msk [vmem:[#allocation3 + $0x18] sm:$0xff] %vm3564, %v5631
  %5679 = vst.msk [vmem:[#allocation3 + $0x40] sm:$0xff] %vm3564, %v5633
  %5680 = vst.msk [vmem:[#allocation3 + $0x68] sm:$0xff] %vm3564, %v5635
  %5681 = vst.msk [vmem:[#allocation3 + $0x90] sm:$0xff] %vm3564, %v5637
  %5682 = vst.msk [vmem:[#allocation3 + $0xb8] sm:$0xff] %vm3564, %v5639
  %5683 = vst.msk [vmem:[#allocation3 + $0xe0] sm:$0xff] %vm3564, %v5641
  %5684 = vst.msk [vmem:[#allocation3 + $0x108] sm:$0xff] %vm3564, %v5643
  %5685 = vst.msk [vmem:[#allocation3 + $0x130] sm:$0xff] %vm3564, %v5645
  %5686 = vst.msk [vmem:[#allocation3 + $0x158] sm:$0xff] %vm3564, %v5647
  %5687 = vst.msk [vmem:[#allocation3 + $0x180] sm:$0xff] %vm3564, %v5649
  %5688 = vst.msk [vmem:[#allocation3 + $0x1a8] sm:$0xff] %vm3564, %v5651
  %5689 = vst.msk [vmem:[#allocation3 + $0x1d0] sm:$0xff] %vm3564, %v5653
  %5690 = vst.msk [vmem:[#allocation3 + $0x1f8] sm:$0xff] %vm3564, %v5655
  %5691 = vst.msk [vmem:[#allocation3 + $0x220] sm:$0xff] %vm3564, %v5657
  %5692 = vst.msk [vmem:[#allocation3 + $0x248] sm:$0xff] %vm3564, %v5659
  %5693 = vst.msk [vmem:[#allocation3 + $0x270] sm:$0xff] %vm3564, %v5661
  %v5694 = vld [vmem:[%s2939] sm:$0xff]
  %v5695 = vld [vmem:[%s2939 + $0x8] sm:$0xff]
  %v5696 = vld [vmem:[%s2939 + $0x10] sm:$0xff]
  %v5697 = vld [vmem:[%s2939 + $0x18] sm:$0xff]
  %v5698 = vld [vmem:[%s2939 + $0x30] sm:$0xff]
  %v5699 = vld [vmem:[%s2939 + $0x38] sm:$0xff]
  %v5700 = vld [vmem:[%s2939 + $0x40] sm:$0xff]
  %v5701 = vld [vmem:[%s2939 + $0x48] sm:$0xff]
  %v5702 = vld [vmem:[%s2939 + $0x60] sm:$0xff]
  %v5703 = vld [vmem:[%s2939 + $0x68] sm:$0xff]
  %v5704 = vld [vmem:[%s2939 + $0x70] sm:$0xff]
  %v5705 = vld [vmem:[%s2939 + $0x78] sm:$0xff]
  %v5706 = vld [vmem:[%s2939 + $0x90] sm:$0xff]
  %v5707 = vld [vmem:[%s2939 + $0x98] sm:$0xff]
  %v5708 = vld [vmem:[%s2939 + $0xa0] sm:$0xff]
  %v5709 = vld [vmem:[%s2939 + $0xa8] sm:$0xff]
  %5726 = vrot.lane.b32.xlu0 %v5694, 112
  %v5727 = vpop.permute.xlu0 %5726
  %5728 = vrot.lane.b32.xlu0 %v5695, 112
  %v5729 = vpop.permute.xlu0 %5728
  %5730 = vrot.lane.b32.xlu0 %v5696, 112
  %v5731 = vpop.permute.xlu0 %5730
  %5732 = vrot.lane.b32.xlu0 %v5697, 112
  %v5733 = vpop.permute.xlu0 %5732
  %5734 = vrot.lane.b32.xlu0 %v5698, 112
  %v5735 = vpop.permute.xlu0 %5734
  %5736 = vrot.lane.b32.xlu0 %v5699, 112
  %v5737 = vpop.permute.xlu0 %5736
  %5738 = vrot.lane.b32.xlu0 %v5700, 112
  %v5739 = vpop.permute.xlu0 %5738
  %5740 = vrot.lane.b32.xlu0 %v5701, 112
  %v5741 = vpop.permute.xlu0 %5740
  %5742 = vrot.lane.b32.xlu0 %v5702, 112
  %v5743 = vpop.permute.xlu0 %5742
  %5744 = vrot.lane.b32.xlu0 %v5703, 112
  %v5745 = vpop.permute.xlu0 %5744
  %5746 = vrot.lane.b32.xlu0 %v5704, 112
  %v5747 = vpop.permute.xlu0 %5746
  %5748 = vrot.lane.b32.xlu0 %v5705, 112
  %v5749 = vpop.permute.xlu0 %5748
  %5750 = vrot.lane.b32.xlu0 %v5706, 112
  %v5751 = vpop.permute.xlu0 %5750
  %5752 = vrot.lane.b32.xlu0 %v5707, 112
  %v5753 = vpop.permute.xlu0 %5752
  %5754 = vrot.lane.b32.xlu0 %v5708, 112
  %v5755 = vpop.permute.xlu0 %5754
  %5756 = vrot.lane.b32.xlu0 %v5709, 112
  %v5757 = vpop.permute.xlu0 %5756
  %5774 = vst.msk [vmem:[#allocation3 + $0x18] sm:$0xff] %vm3661, %v5727
  %5775 = vst.msk [vmem:[#allocation3 + $0x40] sm:$0xff] %vm3661, %v5729
  %5776 = vst.msk [vmem:[#allocation3 + $0x68] sm:$0xff] %vm3661, %v5731
  %5777 = vst.msk [vmem:[#allocation3 + $0x90] sm:$0xff] %vm3661, %v5733
  %5778 = vst.msk [vmem:[#allocation3 + $0xb8] sm:$0xff] %vm3661, %v5735
  %5779 = vst.msk [vmem:[#allocation3 + $0xe0] sm:$0xff] %vm3661, %v5737
  %5780 = vst.msk [vmem:[#allocation3 + $0x108] sm:$0xff] %vm3661, %v5739
  %5781 = vst.msk [vmem:[#allocation3 + $0x130] sm:$0xff] %vm3661, %v5741
  %5782 = vst.msk [vmem:[#allocation3 + $0x158] sm:$0xff] %vm3661, %v5743
  %5783 = vst.msk [vmem:[#allocation3 + $0x180] sm:$0xff] %vm3661, %v5745
  %5784 = vst.msk [vmem:[#allocation3 + $0x1a8] sm:$0xff] %vm3661, %v5747
  %5785 = vst.msk [vmem:[#allocation3 + $0x1d0] sm:$0xff] %vm3661, %v5749
  %5786 = vst.msk [vmem:[#allocation3 + $0x1f8] sm:$0xff] %vm3661, %v5751
  %5787 = vst.msk [vmem:[#allocation3 + $0x220] sm:$0xff] %vm3661, %v5753
  %5788 = vst.msk [vmem:[#allocation3 + $0x248] sm:$0xff] %vm3661, %v5755
  %5789 = vst.msk [vmem:[#allocation3 + $0x270] sm:$0xff] %vm3661, %v5757
  %v5790 = vld [vmem:[%s2897 + $0x8] sm:$0xff]
  %v5791 = vld [vmem:[%s2897 + $0x10] sm:$0xff]
  %v5792 = vld [vmem:[%s2897 + $0x18] sm:$0xff]
  %v5793 = vld [vmem:[%s2897 + $0x20] sm:$0xff]
  %v5794 = vld [vmem:[%s2897 + $0x38] sm:$0xff]
  %v5795 = vld [vmem:[%s2897 + $0x40] sm:$0xff]
  %v5796 = vld [vmem:[%s2897 + $0x48] sm:$0xff]
  %v5797 = vld [vmem:[%s2897 + $0x50] sm:$0xff]
  %v5798 = vld [vmem:[%s2897 + $0x68] sm:$0xff]
  %v5799 = vld [vmem:[%s2897 + $0x70] sm:$0xff]
  %v5800 = vld [vmem:[%s2897 + $0x78] sm:$0xff]
  %v5801 = vld [vmem:[%s2897 + $0x80] sm:$0xff]
  %v5802 = vld [vmem:[%s2897 + $0x98] sm:$0xff]
  %v5803 = vld [vmem:[%s2897 + $0xa0] sm:$0xff]
  %v5804 = vld [vmem:[%s2897 + $0xa8] sm:$0xff]
  %v5805 = vld [vmem:[%s2897 + $0xb0] sm:$0xff]
  %5806 = vst.msk [vmem:[#allocation3 + $0x20] sm:$0xff] %vm2799, %v5790
  %5807 = vst.msk [vmem:[#allocation3 + $0x48] sm:$0xff] %vm2799, %v5791
  %5808 = vst.msk [vmem:[#allocation3 + $0x70] sm:$0xff] %vm2799, %v5792
  %5809 = vst.msk [vmem:[#allocation3 + $0x98] sm:$0xff] %vm2799, %v5793
  %5810 = vst.msk [vmem:[#allocation3 + $0xc0] sm:$0xff] %vm2799, %v5794
  %5811 = vst.msk [vmem:[#allocation3 + $0xe8] sm:$0xff] %vm2799, %v5795
  %5812 = vst.msk [vmem:[#allocation3 + $0x110] sm:$0xff] %vm2799, %v5796
  %5813 = vst.msk [vmem:[#allocation3 + $0x138] sm:$0xff] %vm2799, %v5797
  %5814 = vst.msk [vmem:[#allocation3 + $0x160] sm:$0xff] %vm2799, %v5798
  %5815 = vst.msk [vmem:[#allocation3 + $0x188] sm:$0xff] %vm2799, %v5799
  %5816 = vst.msk [vmem:[#allocation3 + $0x1b0] sm:$0xff] %vm2799, %v5800
  %5817 = vst.msk [vmem:[#allocation3 + $0x1d8] sm:$0xff] %vm2799, %v5801
  %5818 = vst.msk [vmem:[#allocation3 + $0x200] sm:$0xff] %vm2799, %v5802
  %5819 = vst.msk [vmem:[#allocation3 + $0x228] sm:$0xff] %vm2799, %v5803
  %5820 = vst.msk [vmem:[#allocation3 + $0x250] sm:$0xff] %vm2799, %v5804
  %5821 = vst.msk [vmem:[#allocation3 + $0x278] sm:$0xff] %vm2799, %v5805
  %v5822 = vld [vmem:[%s2939 + $0x8] sm:$0xff]
  %v5823 = vld [vmem:[%s2939 + $0x10] sm:$0xff]
  %v5824 = vld [vmem:[%s2939 + $0x18] sm:$0xff]
  %v5825 = vld [vmem:[%s2939 + $0x20] sm:$0xff]
  %v5826 = vld [vmem:[%s2939 + $0x38] sm:$0xff]
  %v5827 = vld [vmem:[%s2939 + $0x40] sm:$0xff]
  %v5828 = vld [vmem:[%s2939 + $0x48] sm:$0xff]
  %v5829 = vld [vmem:[%s2939 + $0x50] sm:$0xff]
  %v5830 = vld [vmem:[%s2939 + $0x68] sm:$0xff]
  %v5831 = vld [vmem:[%s2939 + $0x70] sm:$0xff]
  %v5832 = vld [vmem:[%s2939 + $0x78] sm:$0xff]
  %v5833 = vld [vmem:[%s2939 + $0x80] sm:$0xff]
  %v5834 = vld [vmem:[%s2939 + $0x98] sm:$0xff]
  %v5835 = vld [vmem:[%s2939 + $0xa0] sm:$0xff]
  %v5836 = vld [vmem:[%s2939 + $0xa8] sm:$0xff]
  %v5837 = vld [vmem:[%s2939 + $0xb0] sm:$0xff]
  %5854 = vrot.lane.b32.xlu0 %v5822, 16
  %v5855 = vpop.permute.xlu0 %5854
  %5856 = vrot.lane.b32.xlu0 %v5823, 16
  %v5857 = vpop.permute.xlu0 %5856
  %5858 = vrot.lane.b32.xlu0 %v5824, 16
  %v5859 = vpop.permute.xlu0 %5858
  %5860 = vrot.lane.b32.xlu0 %v5825, 16
  %v5861 = vpop.permute.xlu0 %5860
  %5862 = vrot.lane.b32.xlu0 %v5826, 16
  %v5863 = vpop.permute.xlu0 %5862
  %5864 = vrot.lane.b32.xlu0 %v5827, 16
  %v5865 = vpop.permute.xlu0 %5864
  %5866 = vrot.lane.b32.xlu0 %v5828, 16
  %v5867 = vpop.permute.xlu0 %5866
  %5868 = vrot.lane.b32.xlu0 %v5829, 16
  %v5869 = vpop.permute.xlu0 %5868
  %5870 = vrot.lane.b32.xlu0 %v5830, 16
  %v5871 = vpop.permute.xlu0 %5870
  %5872 = vrot.lane.b32.xlu0 %v5831, 16
  %v5873 = vpop.permute.xlu0 %5872
  %5874 = vrot.lane.b32.xlu0 %v5832, 16
  %v5875 = vpop.permute.xlu0 %5874
  %5876 = vrot.lane.b32.xlu0 %v5833, 16
  %v5877 = vpop.permute.xlu0 %5876
  %5878 = vrot.lane.b32.xlu0 %v5834, 16
  %v5879 = vpop.permute.xlu0 %5878
  %5880 = vrot.lane.b32.xlu0 %v5835, 16
  %v5881 = vpop.permute.xlu0 %5880
  %5882 = vrot.lane.b32.xlu0 %v5836, 16
  %v5883 = vpop.permute.xlu0 %5882
  %5884 = vrot.lane.b32.xlu0 %v5837, 16
  %v5885 = vpop.permute.xlu0 %5884
  %5902 = vst.msk [vmem:[#allocation3 + $0x20] sm:$0xff] %vm3079, %v5855
  %5903 = vst.msk [vmem:[#allocation3 + $0x48] sm:$0xff] %vm3079, %v5857
  %5904 = vst.msk [vmem:[#allocation3 + $0x70] sm:$0xff] %vm3079, %v5859
  %5905 = vst.msk [vmem:[#allocation3 + $0x98] sm:$0xff] %vm3079, %v5861
  %5906 = vst.msk [vmem:[#allocation3 + $0xc0] sm:$0xff] %vm3079, %v5863
  %5907 = vst.msk [vmem:[#allocation3 + $0xe8] sm:$0xff] %vm3079, %v5865
  %5908 = vst.msk [vmem:[#allocation3 + $0x110] sm:$0xff] %vm3079, %v5867
  %5909 = vst.msk [vmem:[#allocation3 + $0x138] sm:$0xff] %vm3079, %v5869
  %5910 = vst.msk [vmem:[#allocation3 + $0x160] sm:$0xff] %vm3079, %v5871
  %5911 = vst.msk [vmem:[#allocation3 + $0x188] sm:$0xff] %vm3079, %v5873
  %5912 = vst.msk [vmem:[#allocation3 + $0x1b0] sm:$0xff] %vm3079, %v5875
  %5913 = vst.msk [vmem:[#allocation3 + $0x1d8] sm:$0xff] %vm3079, %v5877
  %5914 = vst.msk [vmem:[#allocation3 + $0x200] sm:$0xff] %vm3079, %v5879
  %5915 = vst.msk [vmem:[#allocation3 + $0x228] sm:$0xff] %vm3079, %v5881
  %5916 = vst.msk [vmem:[#allocation3 + $0x250] sm:$0xff] %vm3079, %v5883
  %5917 = vst.msk [vmem:[#allocation3 + $0x278] sm:$0xff] %vm3079, %v5885
  %v5918 = vld [vmem:[%s2897 + $0x10] sm:$0xff]
  %v5919 = vld [vmem:[%s2897 + $0x18] sm:$0xff]
  %v5920 = vld [vmem:[%s2897 + $0x20] sm:$0xff]
  %v5921 = vld [vmem:[%s2897 + $0x28] sm:$0xff]
  %v5922 = vld [vmem:[%s2897 + $0x40] sm:$0xff]
  %v5923 = vld [vmem:[%s2897 + $0x48] sm:$0xff]
  %v5924 = vld [vmem:[%s2897 + $0x50] sm:$0xff]
  %v5925 = vld [vmem:[%s2897 + $0x58] sm:$0xff]
  %v5926 = vld [vmem:[%s2897 + $0x70] sm:$0xff]
  %v5927 = vld [vmem:[%s2897 + $0x78] sm:$0xff]
  %v5928 = vld [vmem:[%s2897 + $0x80] sm:$0xff]
  %v5929 = vld [vmem:[%s2897 + $0x88] sm:$0xff]
  %v5930 = vld [vmem:[%s2897 + $0xa0] sm:$0xff]
  %v5931 = vld [vmem:[%s2897 + $0xa8] sm:$0xff]
  %v5932 = vld [vmem:[%s2897 + $0xb0] sm:$0xff]
  %v5933 = vld [vmem:[%s2897 + $0xb8] sm:$0xff]
  %5950 = vrot.lane.b32.xlu0 %v5918, 32
  %v5951 = vpop.permute.xlu0 %5950
  %5952 = vrot.lane.b32.xlu0 %v5919, 32
  %v5953 = vpop.permute.xlu0 %5952
  %5954 = vrot.lane.b32.xlu0 %v5920, 32
  %v5955 = vpop.permute.xlu0 %5954
  %5956 = vrot.lane.b32.xlu0 %v5921, 32
  %v5957 = vpop.permute.xlu0 %5956
  %5958 = vrot.lane.b32.xlu0 %v5922, 32
  %v5959 = vpop.permute.xlu0 %5958
  %5960 = vrot.lane.b32.xlu0 %v5923, 32
  %v5961 = vpop.permute.xlu0 %5960
  %5962 = vrot.lane.b32.xlu0 %v5924, 32
  %v5963 = vpop.permute.xlu0 %5962
  %5964 = vrot.lane.b32.xlu0 %v5925, 32
  %v5965 = vpop.permute.xlu0 %5964
  %5966 = vrot.lane.b32.xlu0 %v5926, 32
  %v5967 = vpop.permute.xlu0 %5966
  %5968 = vrot.lane.b32.xlu0 %v5927, 32
  %v5969 = vpop.permute.xlu0 %5968
  %5970 = vrot.lane.b32.xlu0 %v5928, 32
  %v5971 = vpop.permute.xlu0 %5970
  %5972 = vrot.lane.b32.xlu0 %v5929, 32
  %v5973 = vpop.permute.xlu0 %5972
  %5974 = vrot.lane.b32.xlu0 %v5930, 32
  %v5975 = vpop.permute.xlu0 %5974
  %5976 = vrot.lane.b32.xlu0 %v5931, 32
  %v5977 = vpop.permute.xlu0 %5976
  %5978 = vrot.lane.b32.xlu0 %v5932, 32
  %v5979 = vpop.permute.xlu0 %5978
  %5980 = vrot.lane.b32.xlu0 %v5933, 32
  %v5981 = vpop.permute.xlu0 %5980
  %5998 = vst.msk [vmem:[#allocation3 + $0x20] sm:$0xff] %vm3176, %v5951
  %5999 = vst.msk [vmem:[#allocation3 + $0x48] sm:$0xff] %vm3176, %v5953
  %6000 = vst.msk [vmem:[#allocation3 + $0x70] sm:$0xff] %vm3176, %v5955
  %6001 = vst.msk [vmem:[#allocation3 + $0x98] sm:$0xff] %vm3176, %v5957
  %6002 = vst.msk [vmem:[#allocation3 + $0xc0] sm:$0xff] %vm3176, %v5959
  %6003 = vst.msk [vmem:[#allocation3 + $0xe8] sm:$0xff] %vm3176, %v5961
  %6004 = vst.msk [vmem:[#allocation3 + $0x110] sm:$0xff] %vm3176, %v5963
  %6005 = vst.msk [vmem:[#allocation3 + $0x138] sm:$0xff] %vm3176, %v5965
  %6006 = vst.msk [vmem:[#allocation3 + $0x160] sm:$0xff] %vm3176, %v5967
  %6007 = vst.msk [vmem:[#allocation3 + $0x188] sm:$0xff] %vm3176, %v5969
  %6008 = vst.msk [vmem:[#allocation3 + $0x1b0] sm:$0xff] %vm3176, %v5971
  %6009 = vst.msk [vmem:[#allocation3 + $0x1d8] sm:$0xff] %vm3176, %v5973
  %6010 = vst.msk [vmem:[#allocation3 + $0x200] sm:$0xff] %vm3176, %v5975
  %6011 = vst.msk [vmem:[#allocation3 + $0x228] sm:$0xff] %vm3176, %v5977
  %6012 = vst.msk [vmem:[#allocation3 + $0x250] sm:$0xff] %vm3176, %v5979
  %6013 = vst.msk [vmem:[#allocation3 + $0x278] sm:$0xff] %vm3176, %v5981
  %v6014 = vld [vmem:[%s2939 + $0x10] sm:$0xff]
  %v6015 = vld [vmem:[%s2939 + $0x18] sm:$0xff]
  %v6016 = vld [vmem:[%s2939 + $0x20] sm:$0xff]
  %v6017 = vld [vmem:[%s2939 + $0x28] sm:$0xff]
  %v6018 = vld [vmem:[%s2939 + $0x40] sm:$0xff]
  %v6019 = vld [vmem:[%s2939 + $0x48] sm:$0xff]
  %v6020 = vld [vmem:[%s2939 + $0x50] sm:$0xff]
  %v6021 = vld [vmem:[%s2939 + $0x58] sm:$0xff]
  %v6022 = vld [vmem:[%s2939 + $0x70] sm:$0xff]
  %v6023 = vld [vmem:[%s2939 + $0x78] sm:$0xff]
  %v6024 = vld [vmem:[%s2939 + $0x80] sm:$0xff]
  %v6025 = vld [vmem:[%s2939 + $0x88] sm:$0xff]
  %v6026 = vld [vmem:[%s2939 + $0xa0] sm:$0xff]
  %v6027 = vld [vmem:[%s2939 + $0xa8] sm:$0xff]
  %v6028 = vld [vmem:[%s2939 + $0xb0] sm:$0xff]
  %v6029 = vld [vmem:[%s2939 + $0xb8] sm:$0xff]
  %6046 = vrot.lane.b32.xlu0 %v6014, 48
  %v6047 = vpop.permute.xlu0 %6046
  %6048 = vrot.lane.b32.xlu0 %v6015, 48
  %v6049 = vpop.permute.xlu0 %6048
  %6050 = vrot.lane.b32.xlu0 %v6016, 48
  %v6051 = vpop.permute.xlu0 %6050
  %6052 = vrot.lane.b32.xlu0 %v6017, 48
  %v6053 = vpop.permute.xlu0 %6052
  %6054 = vrot.lane.b32.xlu0 %v6018, 48
  %v6055 = vpop.permute.xlu0 %6054
  %6056 = vrot.lane.b32.xlu0 %v6019, 48
  %v6057 = vpop.permute.xlu0 %6056
  %6058 = vrot.lane.b32.xlu0 %v6020, 48
  %v6059 = vpop.permute.xlu0 %6058
  %6060 = vrot.lane.b32.xlu0 %v6021, 48
  %v6061 = vpop.permute.xlu0 %6060
  %6062 = vrot.lane.b32.xlu0 %v6022, 48
  %v6063 = vpop.permute.xlu0 %6062
  %6064 = vrot.lane.b32.xlu0 %v6023, 48
  %v6065 = vpop.permute.xlu0 %6064
  %6066 = vrot.lane.b32.xlu0 %v6024, 48
  %v6067 = vpop.permute.xlu0 %6066
  %6068 = vrot.lane.b32.xlu0 %v6025, 48
  %v6069 = vpop.permute.xlu0 %6068
  %6070 = vrot.lane.b32.xlu0 %v6026, 48
  %v6071 = vpop.permute.xlu0 %6070
  %6072 = vrot.lane.b32.xlu0 %v6027, 48
  %v6073 = vpop.permute.xlu0 %6072
  %6074 = vrot.lane.b32.xlu0 %v6028, 48
  %v6075 = vpop.permute.xlu0 %6074
  %6076 = vrot.lane.b32.xlu0 %v6029, 48
  %v6077 = vpop.permute.xlu0 %6076
  %6094 = vst.msk [vmem:[#allocation3 + $0x20] sm:$0xff] %vm3273, %v6047
  %6095 = vst.msk [vmem:[#allocation3 + $0x48] sm:$0xff] %vm3273, %v6049
  %6096 = vst.msk [vmem:[#allocation3 + $0x70] sm:$0xff] %vm3273, %v6051
  %6097 = vst.msk [vmem:[#allocation3 + $0x98] sm:$0xff] %vm3273, %v6053
  %6098 = vst.msk [vmem:[#allocation3 + $0xc0] sm:$0xff] %vm3273, %v6055
  %6099 = vst.msk [vmem:[#allocation3 + $0xe8] sm:$0xff] %vm3273, %v6057
  %6100 = vst.msk [vmem:[#allocation3 + $0x110] sm:$0xff] %vm3273, %v6059
  %6101 = vst.msk [vmem:[#allocation3 + $0x138] sm:$0xff] %vm3273, %v6061
  %6102 = vst.msk [vmem:[#allocation3 + $0x160] sm:$0xff] %vm3273, %v6063
  %6103 = vst.msk [vmem:[#allocation3 + $0x188] sm:$0xff] %vm3273, %v6065
  %6104 = vst.msk [vmem:[#allocation3 + $0x1b0] sm:$0xff] %vm3273, %v6067
  %6105 = vst.msk [vmem:[#allocation3 + $0x1d8] sm:$0xff] %vm3273, %v6069
  %6106 = vst.msk [vmem:[#allocation3 + $0x200] sm:$0xff] %vm3273, %v6071
  %6107 = vst.msk [vmem:[#allocation3 + $0x228] sm:$0xff] %vm3273, %v6073
  %6108 = vst.msk [vmem:[#allocation3 + $0x250] sm:$0xff] %vm3273, %v6075
  %6109 = vst.msk [vmem:[#allocation3 + $0x278] sm:$0xff] %vm3273, %v6077
  %v6110 = vld [vmem:[#allocation3] sm:$0xff]
  %v6111 = vld [vmem:[#allocation3 + $0x8] sm:$0xff]
  %v6112 = vld [vmem:[#allocation3 + $0x10] sm:$0xff]
  %v6113 = vld [vmem:[#allocation3 + $0x18] sm:$0xff]
  %v6114 = vld [vmem:[#allocation3 + $0x20] sm:$0xff]
  %v6115 = vld [vmem:[#allocation3 + $0x28] sm:$0xff]
  %v6116 = vld [vmem:[#allocation3 + $0x30] sm:$0xff]
  %v6117 = vld [vmem:[#allocation3 + $0x38] sm:$0xff]
  %v6118 = vld [vmem:[#allocation3 + $0x40] sm:$0xff]
  %v6119 = vld [vmem:[#allocation3 + $0x48] sm:$0xff]
  %v6120 = vld [vmem:[#allocation3 + $0x50] sm:$0xff]
  %v6121 = vld [vmem:[#allocation3 + $0x58] sm:$0xff]
  %v6122 = vld [vmem:[#allocation3 + $0x60] sm:$0xff]
  %v6123 = vld [vmem:[#allocation3 + $0x68] sm:$0xff]
  %v6124 = vld [vmem:[#allocation3 + $0x70] sm:$0xff]
  %v6125 = vld [vmem:[#allocation3 + $0x78] sm:$0xff]
  %v6126 = vld [vmem:[#allocation3 + $0x80] sm:$0xff]
  %v6127 = vld [vmem:[#allocation3 + $0x88] sm:$0xff]
  %v6128 = vld [vmem:[#allocation3 + $0x90] sm:$0xff]
  %v6129 = vld [vmem:[#allocation3 + $0x98] sm:$0xff]
  %s6130 = scalar_lea.vmem [#allocation3], 160
  %v6131 = vld [vmem:[%s6130] sm:$0xff]
  %v6132 = vld [vmem:[%s6130 + $0x8] sm:$0xff]
  %v6133 = vld [vmem:[%s6130 + $0x10] sm:$0xff]
  %v6134 = vld [vmem:[%s6130 + $0x18] sm:$0xff]
  %v6135 = vld [vmem:[%s6130 + $0x20] sm:$0xff]
  %v6136 = vld [vmem:[%s6130 + $0x28] sm:$0xff]
  %v6137 = vld [vmem:[%s6130 + $0x30] sm:$0xff]
  %v6138 = vld [vmem:[%s6130 + $0x38] sm:$0xff]
  %v6139 = vld [vmem:[%s6130 + $0x40] sm:$0xff]
  %v6140 = vld [vmem:[%s6130 + $0x48] sm:$0xff]
  %v6141 = vld [vmem:[%s6130 + $0x50] sm:$0xff]
  %v6142 = vld [vmem:[%s6130 + $0x58] sm:$0xff]
  %v6143 = vld [vmem:[%s6130 + $0x60] sm:$0xff]
  %v6144 = vld [vmem:[%s6130 + $0x68] sm:$0xff]
  %v6145 = vld [vmem:[%s6130 + $0x70] sm:$0xff]
  %v6146 = vld [vmem:[%s6130 + $0x78] sm:$0xff]
  %v6147 = vld [vmem:[%s6130 + $0x80] sm:$0xff]
  %v6148 = vld [vmem:[%s6130 + $0x88] sm:$0xff]
  %v6149 = vld [vmem:[%s6130 + $0x90] sm:$0xff]
  %v6150 = vld [vmem:[%s6130 + $0x98] sm:$0xff]
  %s6151 = scalar_lea.vmem [#allocation3], 320
  %v6152 = vld [vmem:[%s6151] sm:$0xff]
  %v6153 = vld [vmem:[%s6151 + $0x8] sm:$0xff]
  %v6154 = vld [vmem:[%s6151 + $0x10] sm:$0xff]
  %v6155 = vld [vmem:[%s6151 + $0x18] sm:$0xff]
  %v6156 = vld [vmem:[%s6151 + $0x20] sm:$0xff]
  %v6157 = vld [vmem:[%s6151 + $0x28] sm:$0xff]
  %v6158 = vld [vmem:[%s6151 + $0x30] sm:$0xff]
  %v6159 = vld [vmem:[%s6151 + $0x38] sm:$0xff]
  %v6160 = vld [vmem:[%s6151 + $0x40] sm:$0xff]
  %v6161 = vld [vmem:[%s6151 + $0x48] sm:$0xff]
  %v6162 = vld [vmem:[%s6151 + $0x50] sm:$0xff]
  %v6163 = vld [vmem:[%s6151 + $0x58] sm:$0xff]
  %v6164 = vld [vmem:[%s6151 + $0x60] sm:$0xff]
  %v6165 = vld [vmem:[%s6151 + $0x68] sm:$0xff]
  %v6166 = vld [vmem:[%s6151 + $0x70] sm:$0xff]
  %v6167 = vld [vmem:[%s6151 + $0x78] sm:$0xff]
  %v6168 = vld [vmem:[%s6151 + $0x80] sm:$0xff]
  %v6169 = vld [vmem:[%s6151 + $0x88] sm:$0xff]
  %v6170 = vld [vmem:[%s6151 + $0x90] sm:$0xff]
  %v6171 = vld [vmem:[%s6151 + $0x98] sm:$0xff]
  %s6172 = scalar_lea.vmem [#allocation3], 480
  %v6173 = vld [vmem:[%s6172] sm:$0xff]
  %v6174 = vld [vmem:[%s6172 + $0x8] sm:$0xff]
  %v6175 = vld [vmem:[%s6172 + $0x10] sm:$0xff]
  %v6176 = vld [vmem:[%s6172 + $0x18] sm:$0xff]
  %v6177 = vld [vmem:[%s6172 + $0x20] sm:$0xff]
  %v6178 = vld [vmem:[%s6172 + $0x28] sm:$0xff]
  %v6179 = vld [vmem:[%s6172 + $0x30] sm:$0xff]
  %v6180 = vld [vmem:[%s6172 + $0x38] sm:$0xff]
  %v6181 = vld [vmem:[%s6172 + $0x40] sm:$0xff]
  %v6182 = vld [vmem:[%s6172 + $0x48] sm:$0xff]
  %v6183 = vld [vmem:[%s6172 + $0x50] sm:$0xff]
  %v6184 = vld [vmem:[%s6172 + $0x58] sm:$0xff]
  %v6185 = vld [vmem:[%s6172 + $0x60] sm:$0xff]
  %v6186 = vld [vmem:[%s6172 + $0x68] sm:$0xff]
  %v6187 = vld [vmem:[%s6172 + $0x70] sm:$0xff]
  %v6188 = vld [vmem:[%s6172 + $0x78] sm:$0xff]
  %v6189 = vld [vmem:[%s6172 + $0x80] sm:$0xff]
  %v6190 = vld [vmem:[%s6172 + $0x88] sm:$0xff]
  %v6191 = vld [vmem:[%s6172 + $0x90] sm:$0xff]
  %v6192 = vld [vmem:[%s6172 + $0x98] sm:$0xff]
  %v6193 = vld [vmem:[%s3] sm:$0xff]
  %v6194 = vld [vmem:[%s3 + $0x8] sm:$0xff]
  %v6195 = vld [vmem:[%s3 + $0x10] sm:$0xff]
  %v6196 = vld [vmem:[%s3 + $0x18] sm:$0xff]
  %v6197 = vld [vmem:[%s3 + $0x20] sm:$0xff]
  %v6198 = vld [vmem:[%s3 + $0x28] sm:$0xff]
  %v6199 = vld [vmem:[%s3 + $0x30] sm:$0xff]
  %v6200 = vld [vmem:[%s3 + $0x38] sm:$0xff]
  %v6201 = vld [vmem:[%s3 + $0x40] sm:$0xff]
  %v6202 = vld [vmem:[%s3 + $0x48] sm:$0xff]
  %v6203 = vld [vmem:[%s3 + $0x50] sm:$0xff]
  %v6204 = vld [vmem:[%s3 + $0x58] sm:$0xff]
  %v6205 = vld [vmem:[%s3 + $0x60] sm:$0xff]
  %v6206 = vld [vmem:[%s3 + $0x68] sm:$0xff]
  %v6207 = vld [vmem:[%s3 + $0x70] sm:$0xff]
  %v6208 = vld [vmem:[%s3 + $0x78] sm:$0xff]
  %v6209 = vld [vmem:[%s3 + $0x80] sm:$0xff]
  %v6210 = vld [vmem:[%s3 + $0x88] sm:$0xff]
  %v6211 = vld [vmem:[%s3 + $0x90] sm:$0xff]
  %v6212 = vld [vmem:[%s3 + $0x98] sm:$0xff]
  %v6213 = vld [vmem:[%s3 + $0xa0] sm:$0xff]
  %v6214 = vld [vmem:[%s3 + $0xa8] sm:$0xff]
  %v6215 = vld [vmem:[%s3 + $0xb0] sm:$0xff]
  %v6216 = vld [vmem:[%s3 + $0xb8] sm:$0xff]
  %v6217 = vld [vmem:[%s3 + $0xc0] sm:$0xff]
  %v6218 = vld [vmem:[%s3 + $0xc8] sm:$0xff]
  %v6219 = vld [vmem:[%s3 + $0xd0] sm:$0xff]
  %v6220 = vld [vmem:[%s3 + $0xd8] sm:$0xff]
  %v6221 = vld [vmem:[%s3 + $0xe0] sm:$0xff]
  %v6222 = vld [vmem:[%s3 + $0xe8] sm:$0xff]
  %v6223 = vld [vmem:[%s3 + $0xf0] sm:$0xff]
  %v6224 = vld [vmem:[%s3 + $0xf8] sm:$0xff]
  %v6225 = vld [vmem:[%s3 + $0x100] sm:$0xff]
  %v6226 = vld [vmem:[%s3 + $0x108] sm:$0xff]
  %v6227 = vld [vmem:[%s3 + $0x110] sm:$0xff]
  %v6228 = vld [vmem:[%s3 + $0x118] sm:$0xff]
  %v6229 = vld [vmem:[%s3 + $0x120] sm:$0xff]
  %v6230 = vld [vmem:[%s3 + $0x128] sm:$0xff]
  %v6231 = vld [vmem:[%s3 + $0x130] sm:$0xff]
  %v6232 = vld [vmem:[%s3 + $0x138] sm:$0xff]
  %v6233 = vld [vmem:[%s3 + $0x140] sm:$0xff]
  %v6234 = vld [vmem:[%s3 + $0x148] sm:$0xff]
  %v6235 = vld [vmem:[%s3 + $0x150] sm:$0xff]
  %v6236 = vld [vmem:[%s3 + $0x158] sm:$0xff]
  %v6237 = vld [vmem:[%s3 + $0x160] sm:$0xff]
  %v6238 = vld [vmem:[%s3 + $0x168] sm:$0xff]
  %v6239 = vld [vmem:[%s3 + $0x170] sm:$0xff]
  %v6240 = vld [vmem:[%s3 + $0x178] sm:$0xff]
  %v6241 = vld [vmem:[%s3 + $0x180] sm:$0xff]
  %v6242 = vld [vmem:[%s3 + $0x188] sm:$0xff]
  %v6243 = vld [vmem:[%s3 + $0x190] sm:$0xff]
  %v6244 = vld [vmem:[%s3 + $0x198] sm:$0xff]
  %v6245 = vld [vmem:[%s3 + $0x1a0] sm:$0xff]
  %v6246 = vld [vmem:[%s3 + $0x1a8] sm:$0xff]
  %v6247 = vld [vmem:[%s3 + $0x1b0] sm:$0xff]
  %v6248 = vld [vmem:[%s3 + $0x1b8] sm:$0xff]
  %v6249 = vld [vmem:[%s3 + $0x1c0] sm:$0xff]
  %v6250 = vld [vmem:[%s3 + $0x1c8] sm:$0xff]
  %v6251 = vld [vmem:[%s3 + $0x1d0] sm:$0xff]
  %v6252 = vld [vmem:[%s3 + $0x1d8] sm:$0xff]
  %v6253 = vld [vmem:[%s3 + $0x1e0] sm:$0xff]
  %v6254 = vld [vmem:[%s3 + $0x1e8] sm:$0xff]
  %v6255 = vld [vmem:[%s3 + $0x1f0] sm:$0xff]
  %v6256 = vld [vmem:[%s3 + $0x1f8] sm:$0xff]
  %v6257 = vld [vmem:[%s3 + $0x200] sm:$0xff]
  %v6258 = vld [vmem:[%s3 + $0x208] sm:$0xff]
  %v6259 = vld [vmem:[%s3 + $0x210] sm:$0xff]
  %v6260 = vld [vmem:[%s3 + $0x218] sm:$0xff]
  %v6261 = vld [vmem:[%s3 + $0x220] sm:$0xff]
  %v6262 = vld [vmem:[%s3 + $0x228] sm:$0xff]
  %v6263 = vld [vmem:[%s3 + $0x230] sm:$0xff]
  %v6264 = vld [vmem:[%s3 + $0x238] sm:$0xff]
  %vm6265 = vcmask 523264
  %v6267 = vsel %vm6265, %v6114, 0
  %v6270 = vsel %vm6265, %v6119, 0
  %v6273 = vsel %vm6265, %v6124, 0
  %v6276 = vsel %vm6265, %v6129, 0
  %v6279 = vsel %vm6265, %v6135, 0
  %v6282 = vsel %vm6265, %v6140, 0
  %v6285 = vsel %vm6265, %v6145, 0
  %v6288 = vsel %vm6265, %v6150, 0
  %v6291 = vsel %vm6265, %v6156, 0
  %v6294 = vsel %vm6265, %v6161, 0
  %v6297 = vsel %vm6265, %v6166, 0
  %v6300 = vsel %vm6265, %v6171, 0
  %v6303 = vsel %vm6265, %v6177, 0
  %v6306 = vsel %vm6265, %v6182, 0
  %v6309 = vsel %vm6265, %v6187, 0
  %v6312 = vsel %vm6265, %v6192, 0
  %6314 = vmatpush.msra.mxu0 %v6208
  %6315 = vmatpush.msra.mxu0 %v6207
  %6316 = vmatpush.msra.mxu0 %v6206
  %6317 = vmatpush.msra.mxu0 %v6205
  %6318 = vmatpush.msra.mxu0 %v6204
  %6319 = vmatpush.msra.mxu0 %v6203
  %6320 = vmatpush.msra.mxu0 %v6202
  %6321 = vmatpush.msra.mxu0 %v6201
  %6322 = vmatpush.msra.mxu0 %v6200
  %6323 = vmatpush.msra.mxu0 %v6199
  %6324 = vmatpush.msra.mxu0 %v6198
  %6325 = vmatpush.msra.mxu0 %v6197
  %6326 = vmatpush.msra.mxu0 %v6196
  %6327 = vmatpush.msra.mxu0 %v6195
  %6328 = vmatpush.msra.mxu0 %v6194
  %6329 = vmatpush.msra.mxu0 %v6193
  %6330 = vmatmul.f32.gmra.mxu0 %v6110
  %v6331 = vpop.f32.mrf.mxu0
  %v6332 = vadd.f32 0.0, %v6331
  %6333 = vmatmul.f32.gmra.mxu0 %v6115
  %v6334 = vpop.f32.mrf.mxu0
  %v6335 = vadd.f32 0.0, %v6334
  %6336 = vmatmul.f32.gmra.mxu0 %v6120
  %v6337 = vpop.f32.mrf.mxu0
  %v6338 = vadd.f32 0.0, %v6337
  %6339 = vmatmul.f32.gmra.mxu0 %v6125
  %v6340 = vpop.f32.mrf.mxu0
  %v6341 = vadd.f32 0.0, %v6340
  %6342 = vmatmul.f32.gmra.mxu0 %v6131
  %v6343 = vpop.f32.mrf.mxu0
  %v6344 = vadd.f32 0.0, %v6343
  %6345 = vmatmul.f32.gmra.mxu0 %v6136
  %v6346 = vpop.f32.mrf.mxu0
  %v6347 = vadd.f32 0.0, %v6346
  %6348 = vmatmul.f32.gmra.mxu0 %v6141
  %v6349 = vpop.f32.mrf.mxu0
  %v6350 = vadd.f32 0.0, %v6349
  %6351 = vmatmul.f32.gmra.mxu0 %v6146
  %v6352 = vpop.f32.mrf.mxu0
  %v6353 = vadd.f32 0.0, %v6352
  %6354 = vmatmul.f32.gmra.mxu0 %v6152
  %v6355 = vpop.f32.mrf.mxu0
  %v6356 = vadd.f32 0.0, %v6355
  %6357 = vmatmul.f32.gmra.mxu0 %v6157
  %v6358 = vpop.f32.mrf.mxu0
  %v6359 = vadd.f32 0.0, %v6358
  %6360 = vmatmul.f32.gmra.mxu0 %v6162
  %v6361 = vpop.f32.mrf.mxu0
  %v6362 = vadd.f32 0.0, %v6361
  %6363 = vmatmul.f32.gmra.mxu0 %v6167
  %v6364 = vpop.f32.mrf.mxu0
  %v6365 = vadd.f32 0.0, %v6364
  %6366 = vmatmul.f32.gmra.mxu0 %v6173
  %v6367 = vpop.f32.mrf.mxu0
  %v6368 = vadd.f32 0.0, %v6367
  %6369 = vmatmul.f32.gmra.mxu0 %v6178
  %v6370 = vpop.f32.mrf.mxu0
  %v6371 = vadd.f32 0.0, %v6370
  %6372 = vmatmul.f32.gmra.mxu0 %v6183
  %v6373 = vpop.f32.mrf.mxu0
  %v6374 = vadd.f32 0.0, %v6373
  %6375 = vmatmul.f32.gmra.mxu0 %v6188
  %v6376 = vpop.f32.mrf.mxu0
  %v6377 = vadd.f32 0.0, %v6376
  %6378 = vdwg.mxu0
  %6379 = vmatpush.msra.mxu0 %v6224
  %6380 = vmatpush.msra.mxu0 %v6223
  %6381 = vmatpush.msra.mxu0 %v6222
  %6382 = vmatpush.msra.mxu0 %v6221
  %6383 = vmatpush.msra.mxu0 %v6220
  %6384 = vmatpush.msra.mxu0 %v6219
  %6385 = vmatpush.msra.mxu0 %v6218
  %6386 = vmatpush.msra.mxu0 %v6217
  %6387 = vmatpush.msra.mxu0 %v6216
  %6388 = vmatpush.msra.mxu0 %v6215
  %6389 = vmatpush.msra.mxu0 %v6214
  %6390 = vmatpush.msra.mxu0 %v6213
  %6391 = vmatpush.msra.mxu0 %v6212
  %6392 = vmatpush.msra.mxu0 %v6211
  %6393 = vmatpush.msra.mxu0 %v6210
  %6394 = vmatpush.msra.mxu0 %v6209
  %6395 = vmatmul.f32.gmra.mxu0 %v6111
  %v6396 = vpop.f32.mrf.mxu0
  %v6397 = vadd.f32 %v6332, %v6396
  %6398 = vmatmul.f32.gmra.mxu0 %v6116
  %v6399 = vpop.f32.mrf.mxu0
  %v6400 = vadd.f32 %v6335, %v6399
  %6401 = vmatmul.f32.gmra.mxu0 %v6121
  %v6402 = vpop.f32.mrf.mxu0
  %v6403 = vadd.f32 %v6338, %v6402
  %6404 = vmatmul.f32.gmra.mxu0 %v6126
  %v6405 = vpop.f32.mrf.mxu0
  %v6406 = vadd.f32 %v6341, %v6405
  %6407 = vmatmul.f32.gmra.mxu0 %v6132
  %v6408 = vpop.f32.mrf.mxu0
  %v6409 = vadd.f32 %v6344, %v6408
  %6410 = vmatmul.f32.gmra.mxu0 %v6137
  %v6411 = vpop.f32.mrf.mxu0
  %v6412 = vadd.f32 %v6347, %v6411
  %6413 = vmatmul.f32.gmra.mxu0 %v6142
  %v6414 = vpop.f32.mrf.mxu0
  %v6415 = vadd.f32 %v6350, %v6414
  %6416 = vmatmul.f32.gmra.mxu0 %v6147
  %v6417 = vpop.f32.mrf.mxu0
  %v6418 = vadd.f32 %v6353, %v6417
  %6419 = vmatmul.f32.gmra.mxu0 %v6153
  %v6420 = vpop.f32.mrf.mxu0
  %v6421 = vadd.f32 %v6356, %v6420
  %6422 = vmatmul.f32.gmra.mxu0 %v6158
  %v6423 = vpop.f32.mrf.mxu0
  %v6424 = vadd.f32 %v6359, %v6423
  %6425 = vmatmul.f32.gmra.mxu0 %v6163
  %v6426 = vpop.f32.mrf.mxu0
  %v6427 = vadd.f32 %v6362, %v6426
  %6428 = vmatmul.f32.gmra.mxu0 %v6168
  %v6429 = vpop.f32.mrf.mxu0
  %v6430 = vadd.f32 %v6365, %v6429
  %6431 = vmatmul.f32.gmra.mxu0 %v6174
  %v6432 = vpop.f32.mrf.mxu0
  %v6433 = vadd.f32 %v6368, %v6432
  %6434 = vmatmul.f32.gmra.mxu0 %v6179
  %v6435 = vpop.f32.mrf.mxu0
  %v6436 = vadd.f32 %v6371, %v6435
  %6437 = vmatmul.f32.gmra.mxu0 %v6184
  %v6438 = vpop.f32.mrf.mxu0
  %v6439 = vadd.f32 %v6374, %v6438
  %6440 = vmatmul.f32.gmra.mxu0 %v6189
  %v6441 = vpop.f32.mrf.mxu0
  %v6442 = vadd.f32 %v6377, %v6441
  %6443 = vdwg.mxu0
  %6444 = vmatpush.msra.mxu0 %v6240
  %6445 = vmatpush.msra.mxu0 %v6239
  %6446 = vmatpush.msra.mxu0 %v6238
  %6447 = vmatpush.msra.mxu0 %v6237
  %6448 = vmatpush.msra.mxu0 %v6236
  %6449 = vmatpush.msra.mxu0 %v6235
  %6450 = vmatpush.msra.mxu0 %v6234
  %6451 = vmatpush.msra.mxu0 %v6233
  %6452 = vmatpush.msra.mxu0 %v6232
  %6453 = vmatpush.msra.mxu0 %v6231
  %6454 = vmatpush.msra.mxu0 %v6230
  %6455 = vmatpush.msra.mxu0 %v6229
  %6456 = vmatpush.msra.mxu0 %v6228
  %6457 = vmatpush.msra.mxu0 %v6227
  %6458 = vmatpush.msra.mxu0 %v6226
  %6459 = vmatpush.msra.mxu0 %v6225
  %6460 = vmatmul.f32.gmra.mxu0 %v6112
  %v6461 = vpop.f32.mrf.mxu0
  %v6462 = vadd.f32 %v6397, %v6461
  %6463 = vmatmul.f32.gmra.mxu0 %v6117
  %v6464 = vpop.f32.mrf.mxu0
  %v6465 = vadd.f32 %v6400, %v6464
  %6466 = vmatmul.f32.gmra.mxu0 %v6122
  %v6467 = vpop.f32.mrf.mxu0
  %v6468 = vadd.f32 %v6403, %v6467
  %6469 = vmatmul.f32.gmra.mxu0 %v6127
  %v6470 = vpop.f32.mrf.mxu0
  %v6471 = vadd.f32 %v6406, %v6470
  %6472 = vmatmul.f32.gmra.mxu0 %v6133
  %v6473 = vpop.f32.mrf.mxu0
  %v6474 = vadd.f32 %v6409, %v6473
  %6475 = vmatmul.f32.gmra.mxu0 %v6138
  %v6476 = vpop.f32.mrf.mxu0
  %v6477 = vadd.f32 %v6412, %v6476
  %6478 = vmatmul.f32.gmra.mxu0 %v6143
  %v6479 = vpop.f32.mrf.mxu0
  %v6480 = vadd.f32 %v6415, %v6479
  %6481 = vmatmul.f32.gmra.mxu0 %v6148
  %v6482 = vpop.f32.mrf.mxu0
  %v6483 = vadd.f32 %v6418, %v6482
  %6484 = vmatmul.f32.gmra.mxu0 %v6154
  %v6485 = vpop.f32.mrf.mxu0
  %v6486 = vadd.f32 %v6421, %v6485
  %6487 = vmatmul.f32.gmra.mxu0 %v6159
  %v6488 = vpop.f32.mrf.mxu0
  %v6489 = vadd.f32 %v6424, %v6488
  %6490 = vmatmul.f32.gmra.mxu0 %v6164
  %v6491 = vpop.f32.mrf.mxu0
  %v6492 = vadd.f32 %v6427, %v6491
  %6493 = vmatmul.f32.gmra.mxu0 %v6169
  %v6494 = vpop.f32.mrf.mxu0
  %v6495 = vadd.f32 %v6430, %v6494
  %6496 = vmatmul.f32.gmra.mxu0 %v6175
  %v6497 = vpop.f32.mrf.mxu0
  %v6498 = vadd.f32 %v6433, %v6497
  %6499 = vmatmul.f32.gmra.mxu0 %v6180
  %v6500 = vpop.f32.mrf.mxu0
  %v6501 = vadd.f32 %v6436, %v6500
  %6502 = vmatmul.f32.gmra.mxu0 %v6185
  %v6503 = vpop.f32.mrf.mxu0
  %v6504 = vadd.f32 %v6439, %v6503
  %6505 = vmatmul.f32.gmra.mxu0 %v6190
  %v6506 = vpop.f32.mrf.mxu0
  %v6507 = vadd.f32 %v6442, %v6506
  %6508 = vdwg.mxu0
  %6509 = vmatpush.msra.mxu0 %v6256
  %6510 = vmatpush.msra.mxu0 %v6255
  %6511 = vmatpush.msra.mxu0 %v6254
  %6512 = vmatpush.msra.mxu0 %v6253
  %6513 = vmatpush.msra.mxu0 %v6252
  %6514 = vmatpush.msra.mxu0 %v6251
  %6515 = vmatpush.msra.mxu0 %v6250
  %6516 = vmatpush.msra.mxu0 %v6249
  %6517 = vmatpush.msra.mxu0 %v6248
  %6518 = vmatpush.msra.mxu0 %v6247
  %6519 = vmatpush.msra.mxu0 %v6246
  %6520 = vmatpush.msra.mxu0 %v6245
  %6521 = vmatpush.msra.mxu0 %v6244
  %6522 = vmatpush.msra.mxu0 %v6243
  %6523 = vmatpush.msra.mxu0 %v6242
  %6524 = vmatpush.msra.mxu0 %v6241
  %6525 = vmatmul.f32.gmra.mxu0 %v6113
  %v6526 = vpop.f32.mrf.mxu0
  %v6527 = vadd.f32 %v6462, %v6526
  %6528 = vmatmul.f32.gmra.mxu0 %v6118
  %v6529 = vpop.f32.mrf.mxu0
  %v6530 = vadd.f32 %v6465, %v6529
  %6531 = vmatmul.f32.gmra.mxu0 %v6123
  %v6532 = vpop.f32.mrf.mxu0
  %v6533 = vadd.f32 %v6468, %v6532
  %6534 = vmatmul.f32.gmra.mxu0 %v6128
  %v6535 = vpop.f32.mrf.mxu0
  %v6536 = vadd.f32 %v6471, %v6535
  %6537 = vmatmul.f32.gmra.mxu0 %v6134
  %v6538 = vpop.f32.mrf.mxu0
  %v6539 = vadd.f32 %v6474, %v6538
  %6540 = vmatmul.f32.gmra.mxu0 %v6139
  %v6541 = vpop.f32.mrf.mxu0
  %v6542 = vadd.f32 %v6477, %v6541
  %6543 = vmatmul.f32.gmra.mxu0 %v6144
  %v6544 = vpop.f32.mrf.mxu0
  %v6545 = vadd.f32 %v6480, %v6544
  %6546 = vmatmul.f32.gmra.mxu0 %v6149
  %v6547 = vpop.f32.mrf.mxu0
  %v6548 = vadd.f32 %v6483, %v6547
  %6549 = vmatmul.f32.gmra.mxu0 %v6155
  %v6550 = vpop.f32.mrf.mxu0
  %v6551 = vadd.f32 %v6486, %v6550
  %6552 = vmatmul.f32.gmra.mxu0 %v6160
  %v6553 = vpop.f32.mrf.mxu0
  %v6554 = vadd.f32 %v6489, %v6553
  %6555 = vmatmul.f32.gmra.mxu0 %v6165
  %v6556 = vpop.f32.mrf.mxu0
  %v6557 = vadd.f32 %v6492, %v6556
  %6558 = vmatmul.f32.gmra.mxu0 %v6170
  %v6559 = vpop.f32.mrf.mxu0
  %v6560 = vadd.f32 %v6495, %v6559
  %6561 = vmatmul.f32.gmra.mxu0 %v6176
  %v6562 = vpop.f32.mrf.mxu0
  %v6563 = vadd.f32 %v6498, %v6562
  %6564 = vmatmul.f32.gmra.mxu0 %v6181
  %v6565 = vpop.f32.mrf.mxu0
  %v6566 = vadd.f32 %v6501, %v6565
  %6567 = vmatmul.f32.gmra.mxu0 %v6186
  %v6568 = vpop.f32.mrf.mxu0
  %v6569 = vadd.f32 %v6504, %v6568
  %6570 = vmatmul.f32.gmra.mxu0 %v6191
  %v6571 = vpop.f32.mrf.mxu0
  %v6572 = vadd.f32 %v6507, %v6571
  %6573 = vdwg.mxu0
  %6574 = vmatpush.msra.mxu0 0.0
  %6575 = vmatpush.msra.mxu0 0.0
  %6576 = vmatpush.msra.mxu0 0.0
  %6577 = vmatpush.msra.mxu0 0.0
  %6578 = vmatpush.msra.mxu0 0.0
  %6579 = vmatpush.msra.mxu0 0.0
  %6580 = vmatpush.msra.mxu0 0.0
  %6581 = vmatpush.msra.mxu0 0.0
  %6582 = vmatpush.msra.mxu0 %v6264
  %6583 = vmatpush.msra.mxu0 %v6263
  %6584 = vmatpush.msra.mxu0 %v6262
  %6585 = vmatpush.msra.mxu0 %v6261
  %6586 = vmatpush.msra.mxu0 %v6260
  %6587 = vmatpush.msra.mxu0 %v6259
  %6588 = vmatpush.msra.mxu0 %v6258
  %6589 = vmatpush.msra.mxu0 %v6257
  %6590 = vmatmul.f32.gmra.mxu0 %v6267
  %v6591 = vpop.f32.mrf.mxu0
  %v6592 = vadd.f32 %v6527, %v6591
  %6593 = vmatmul.f32.gmra.mxu0 %v6270
  %v6594 = vpop.f32.mrf.mxu0
  %v6595 = vadd.f32 %v6530, %v6594
  %6596 = vmatmul.f32.gmra.mxu0 %v6273
  %v6597 = vpop.f32.mrf.mxu0
  %v6598 = vadd.f32 %v6533, %v6597
  %6599 = vmatmul.f32.gmra.mxu0 %v6276
  %v6600 = vpop.f32.mrf.mxu0
  %v6601 = vadd.f32 %v6536, %v6600
  %6602 = vmatmul.f32.gmra.mxu0 %v6279
  %v6603 = vpop.f32.mrf.mxu0
  %v6604 = vadd.f32 %v6539, %v6603
  %6605 = vmatmul.f32.gmra.mxu0 %v6282
  %v6606 = vpop.f32.mrf.mxu0
  %v6607 = vadd.f32 %v6542, %v6606
  %6608 = vmatmul.f32.gmra.mxu0 %v6285
  %v6609 = vpop.f32.mrf.mxu0
  %v6610 = vadd.f32 %v6545, %v6609
  %6611 = vmatmul.f32.gmra.mxu0 %v6288
  %v6612 = vpop.f32.mrf.mxu0
  %v6613 = vadd.f32 %v6548, %v6612
  %6614 = vmatmul.f32.gmra.mxu0 %v6291
  %v6615 = vpop.f32.mrf.mxu0
  %v6616 = vadd.f32 %v6551, %v6615
  %6617 = vmatmul.f32.gmra.mxu0 %v6294
  %v6618 = vpop.f32.mrf.mxu0
  %v6619 = vadd.f32 %v6554, %v6618
  %6620 = vmatmul.f32.gmra.mxu0 %v6297
  %v6621 = vpop.f32.mrf.mxu0
  %v6622 = vadd.f32 %v6557, %v6621
  %6623 = vmatmul.f32.gmra.mxu0 %v6300
  %v6624 = vpop.f32.mrf.mxu0
  %v6625 = vadd.f32 %v6560, %v6624
  %6626 = vmatmul.f32.gmra.mxu0 %v6303
  %v6627 = vpop.f32.mrf.mxu0
  %v6628 = vadd.f32 %v6563, %v6627
  %6629 = vmatmul.f32.gmra.mxu0 %v6306
  %v6630 = vpop.f32.mrf.mxu0
  %v6631 = vadd.f32 %v6566, %v6630
  %6632 = vmatmul.f32.gmra.mxu0 %v6309
  %v6633 = vpop.f32.mrf.mxu0
  %v6634 = vadd.f32 %v6569, %v6633
  %6635 = vmatmul.f32.gmra.mxu0 %v6312
  %v6636 = vpop.f32.mrf.mxu0
  %v6637 = vadd.f32 %v6572, %v6636
  %6638 = vdwg.mxu0
  %6655 = vrot.lane.b32.xlu0 %v6592, 96
  %v6656 = vpop.permute.xlu0 %6655
  %6657 = vrot.lane.b32.xlu0 %v6595, 96
  %v6658 = vpop.permute.xlu0 %6657
  %6659 = vrot.lane.b32.xlu0 %v6598, 96
  %v6660 = vpop.permute.xlu0 %6659
  %6661 = vrot.lane.b32.xlu0 %v6601, 96
  %v6662 = vpop.permute.xlu0 %6661
  %6663 = vrot.lane.b32.xlu0 %v6604, 96
  %v6664 = vpop.permute.xlu0 %6663
  %6665 = vrot.lane.b32.xlu0 %v6607, 96
  %v6666 = vpop.permute.xlu0 %6665
  %6667 = vrot.lane.b32.xlu0 %v6610, 96
  %v6668 = vpop.permute.xlu0 %6667
  %6669 = vrot.lane.b32.xlu0 %v6613, 96
  %v6670 = vpop.permute.xlu0 %6669
  %6671 = vrot.lane.b32.xlu0 %v6616, 96
  %v6672 = vpop.permute.xlu0 %6671
  %6673 = vrot.lane.b32.xlu0 %v6619, 96
  %v6674 = vpop.permute.xlu0 %6673
  %6675 = vrot.lane.b32.xlu0 %v6622, 96
  %v6676 = vpop.permute.xlu0 %6675
  %6677 = vrot.lane.b32.xlu0 %v6625, 96
  %v6678 = vpop.permute.xlu0 %6677
  %6679 = vrot.lane.b32.xlu0 %v6628, 96
  %v6680 = vpop.permute.xlu0 %6679
  %6681 = vrot.lane.b32.xlu0 %v6631, 96
  %v6682 = vpop.permute.xlu0 %6681
  %6683 = vrot.lane.b32.xlu0 %v6634, 96
  %v6684 = vpop.permute.xlu0 %6683
  %6685 = vrot.lane.b32.xlu0 %v6637, 96
  %v6686 = vpop.permute.xlu0 %6685
  %v6703 = vmax.f32 %v6592, %v6656
  %v6704 = vmax.f32 %v6595, %v6658
  %v6705 = vmax.f32 %v6598, %v6660
  %v6706 = vmax.f32 %v6601, %v6662
  %v6707 = vmax.f32 %v6604, %v6664
  %v6708 = vmax.f32 %v6607, %v6666
  %v6709 = vmax.f32 %v6610, %v6668
  %v6710 = vmax.f32 %v6613, %v6670
  %v6711 = vmax.f32 %v6616, %v6672
  %v6712 = vmax.f32 %v6619, %v6674
  %v6713 = vmax.f32 %v6622, %v6676
  %v6714 = vmax.f32 %v6625, %v6678
  %v6715 = vmax.f32 %v6628, %v6680
  %v6716 = vmax.f32 %v6631, %v6682
  %v6717 = vmax.f32 %v6634, %v6684
  %v6718 = vmax.f32 %v6637, %v6686
  %6735 = vrot.lane.b32.xlu0 %v6703, 64
  %v6736 = vpop.permute.xlu0 %6735
  %6737 = vrot.lane.b32.xlu0 %v6704, 64
  %v6738 = vpop.permute.xlu0 %6737
  %6739 = vrot.lane.b32.xlu0 %v6705, 64
  %v6740 = vpop.permute.xlu0 %6739
  %6741 = vrot.lane.b32.xlu0 %v6706, 64
  %v6742 = vpop.permute.xlu0 %6741
  %6743 = vrot.lane.b32.xlu0 %v6707, 64
  %v6744 = vpop.permute.xlu0 %6743
  %6745 = vrot.lane.b32.xlu0 %v6708, 64
  %v6746 = vpop.permute.xlu0 %6745
  %6747 = vrot.lane.b32.xlu0 %v6709, 64
  %v6748 = vpop.permute.xlu0 %6747
  %6749 = vrot.lane.b32.xlu0 %v6710, 64
  %v6750 = vpop.permute.xlu0 %6749
  %6751 = vrot.lane.b32.xlu0 %v6711, 64
  %v6752 = vpop.permute.xlu0 %6751
  %6753 = vrot.lane.b32.xlu0 %v6712, 64
  %v6754 = vpop.permute.xlu0 %6753
  %6755 = vrot.lane.b32.xlu0 %v6713, 64
  %v6756 = vpop.permute.xlu0 %6755
  %6757 = vrot.lane.b32.xlu0 %v6714, 64
  %v6758 = vpop.permute.xlu0 %6757
  %6759 = vrot.lane.b32.xlu0 %v6715, 64
  %v6760 = vpop.permute.xlu0 %6759
  %6761 = vrot.lane.b32.xlu0 %v6716, 64
  %v6762 = vpop.permute.xlu0 %6761
  %6763 = vrot.lane.b32.xlu0 %v6717, 64
  %v6764 = vpop.permute.xlu0 %6763
  %6765 = vrot.lane.b32.xlu0 %v6718, 64
  %v6766 = vpop.permute.xlu0 %6765
  %v6783 = vmax.f32 %v6703, %v6736
  %v6784 = vmax.f32 %v6704, %v6738
  %v6785 = vmax.f32 %v6705, %v6740
  %v6786 = vmax.f32 %v6706, %v6742
  %v6787 = vmax.f32 %v6707, %v6744
  %v6788 = vmax.f32 %v6708, %v6746
  %v6789 = vmax.f32 %v6709, %v6748
  %v6790 = vmax.f32 %v6710, %v6750
  %v6791 = vmax.f32 %v6711, %v6752
  %v6792 = vmax.f32 %v6712, %v6754
  %v6793 = vmax.f32 %v6713, %v6756
  %v6794 = vmax.f32 %v6714, %v6758
  %v6795 = vmax.f32 %v6715, %v6760
  %v6796 = vmax.f32 %v6716, %v6762
  %v6797 = vmax.f32 %v6717, %v6764
  %v6798 = vmax.f32 %v6718, %v6766
  %v6799 = vld [vmem:[%s4] sm:$0x1]
  %v6801 = vperm.slane %v6799, 0
  %v6803 = vadd.f32 %v6783, %v6801
  %v6804 = vadd.f32 %v6784, %v6801
  %v6805 = vadd.f32 %v6785, %v6801
  %v6806 = vadd.f32 %v6786, %v6801
  %v6807 = vadd.f32 %v6787, %v6801
  %v6808 = vadd.f32 %v6788, %v6801
  %v6809 = vadd.f32 %v6789, %v6801
  %v6810 = vadd.f32 %v6790, %v6801
  %v6811 = vadd.f32 %v6791, %v6801
  %v6812 = vadd.f32 %v6792, %v6801
  %v6813 = vadd.f32 %v6793, %v6801
  %v6814 = vadd.f32 %v6794, %v6801
  %v6815 = vadd.f32 %v6795, %v6801
  %v6816 = vadd.f32 %v6796, %v6801
  %v6817 = vadd.f32 %v6797, %v6801
  %v6818 = vadd.f32 %v6798, %v6801
  %v6819 = vmax.f32 %v6803, 0.0
  %v6820 = vmax.f32 %v6804, 0.0
  %v6821 = vmax.f32 %v6805, 0.0
  %v6822 = vmax.f32 %v6806, 0.0
  %v6823 = vmax.f32 %v6807, 0.0
  %v6824 = vmax.f32 %v6808, 0.0
  %v6825 = vmax.f32 %v6809, 0.0
  %v6826 = vmax.f32 %v6810, 0.0
  %v6827 = vmax.f32 %v6811, 0.0
  %v6828 = vmax.f32 %v6812, 0.0
  %v6829 = vmax.f32 %v6813, 0.0
  %v6830 = vmax.f32 %v6814, 0.0
  %v6831 = vmax.f32 %v6815, 0.0
  %v6832 = vmax.f32 %v6816, 0.0
  %v6833 = vmax.f32 %v6817, 0.0
  %v6834 = vmax.f32 %v6818, 0.0
  %vm6835 = vcmask 261120
  %6836 = vst.msk [vmem:[#allocation4] sm:$0xff] %vm6835, %v6819
  %6838 = vrot.lane.b32.xlu0 %v6820, 32
  %v6839 = vpop.permute.xlu0 %6838
  %vm6841 = vcmask 523520
  %6842 = vst.msk [vmem:[#allocation4] sm:$0xff] %vm6841, %v6839
  %6844 = vrot.lane.b32.xlu0 %v6821, 64
  %v6845 = vpop.permute.xlu0 %6844
  %vm6847 = vcmask 785920
  %6848 = vst.msk [vmem:[#allocation4] sm:$0xff] %vm6847, %v6845
  %6850 = vrot.lane.b32.xlu0 %v6822, 96
  %v6851 = vpop.permute.xlu0 %6850
  %vm6853 = vcmask 1048320
  %6854 = vst.msk [vmem:[#allocation4] sm:$0xff] %vm6853, %v6851
  %6855 = vst.msk [vmem:[#allocation4 + $0x8] sm:$0xff] %vm6835, %v6823
  %6857 = vrot.lane.b32.xlu0 %v6824, 32
  %v6858 = vpop.permute.xlu0 %6857
  %6860 = vst.msk [vmem:[#allocation4 + $0x8] sm:$0xff] %vm6841, %v6858
  %6862 = vrot.lane.b32.xlu0 %v6825, 64
  %v6863 = vpop.permute.xlu0 %6862
  %6865 = vst.msk [vmem:[#allocation4 + $0x8] sm:$0xff] %vm6847, %v6863
  %6867 = vrot.lane.b32.xlu0 %v6826, 96
  %v6868 = vpop.permute.xlu0 %6867
  %6870 = vst.msk [vmem:[#allocation4 + $0x8] sm:$0xff] %vm6853, %v6868
  %6871 = vst.msk [vmem:[#allocation4 + $0x10] sm:$0xff] %vm6835, %v6827
  %6873 = vrot.lane.b32.xlu0 %v6828, 32
  %v6874 = vpop.permute.xlu0 %6873
  %6876 = vst.msk [vmem:[#allocation4 + $0x10] sm:$0xff] %vm6841, %v6874
  %6878 = vrot.lane.b32.xlu0 %v6829, 64
  %v6879 = vpop.permute.xlu0 %6878
  %6881 = vst.msk [vmem:[#allocation4 + $0x10] sm:$0xff] %vm6847, %v6879
  %6883 = vrot.lane.b32.xlu0 %v6830, 96
  %v6884 = vpop.permute.xlu0 %6883
  %6886 = vst.msk [vmem:[#allocation4 + $0x10] sm:$0xff] %vm6853, %v6884
  %6887 = vst.msk [vmem:[#allocation4 + $0x18] sm:$0xff] %vm6835, %v6831
  %6889 = vrot.lane.b32.xlu0 %v6832, 32
  %v6890 = vpop.permute.xlu0 %6889
  %6892 = vst.msk [vmem:[#allocation4 + $0x18] sm:$0xff] %vm6841, %v6890
  %6894 = vrot.lane.b32.xlu0 %v6833, 64
  %v6895 = vpop.permute.xlu0 %6894
  %6897 = vst.msk [vmem:[#allocation4 + $0x18] sm:$0xff] %vm6847, %v6895
  %6899 = vrot.lane.b32.xlu0 %v6834, 96
  %v6900 = vpop.permute.xlu0 %6899
  %6902 = vst.msk [vmem:[#allocation4 + $0x18] sm:$0xff] %vm6853, %v6900
  %v6903 = vld [vmem:[#allocation4] sm:$0xff]
  %v6904 = vld [vmem:[#allocation4 + $0x8] sm:$0xff]
  %v6905 = vld [vmem:[#allocation4 + $0x10] sm:$0xff]
  %v6906 = vld [vmem:[#allocation4 + $0x18] sm:$0xff]
  %v6907 = vld [vmem:[%s5] sm:$0xff]
  %v6908 = vld [vmem:[%s5 + $0x8] sm:$0xff]
  %v6909 = vld [vmem:[%s5 + $0x10] sm:$0xff]
  %v6910 = vld [vmem:[%s5 + $0x18] sm:$0xff]
  %v6911 = vld [vmem:[%s5 + $0x20] sm:$0xff]
  %v6912 = vld [vmem:[%s5 + $0x28] sm:$0xff]
  %v6913 = vld [vmem:[%s5 + $0x30] sm:$0xff]
  %v6914 = vld [vmem:[%s5 + $0x38] sm:$0xff]
  %v6915 = vld [vmem:[%s5 + $0x40] sm:$0xff]
  %v6916 = vld [vmem:[%s5 + $0x48] sm:$0xff]
  %v6917 = vld [vmem:[%s5 + $0x50] sm:$0xff]
  %v6918 = vld [vmem:[%s5 + $0x58] sm:$0xff]
  %v6919 = vld [vmem:[%s5 + $0x60] sm:$0xff]
  %v6920 = vld [vmem:[%s5 + $0x68] sm:$0xff]
  %v6921 = vld [vmem:[%s5 + $0x70] sm:$0xff]
  %v6922 = vld [vmem:[%s5 + $0x78] sm:$0xff]
  %v6923 = vld [vmem:[%s5 + $0x80] sm:$0xff]
  %v6924 = vld [vmem:[%s5 + $0x88] sm:$0xff]
  %v6925 = vld [vmem:[%s5 + $0x90] sm:$0xff]
  %v6926 = vld [vmem:[%s5 + $0x98] sm:$0xff]
  %v6927 = vld [vmem:[%s5 + $0xa0] sm:$0xff]
  %v6928 = vld [vmem:[%s5 + $0xa8] sm:$0xff]
  %v6929 = vld [vmem:[%s5 + $0xb0] sm:$0xff]
  %v6930 = vld [vmem:[%s5 + $0xb8] sm:$0xff]
  %v6931 = vld [vmem:[%s5 + $0xc0] sm:$0xff]
  %v6932 = vld [vmem:[%s5 + $0xc8] sm:$0xff]
  %v6933 = vld [vmem:[%s5 + $0xd0] sm:$0xff]
  %v6934 = vld [vmem:[%s5 + $0xd8] sm:$0xff]
  %v6935 = vld [vmem:[%s5 + $0xe0] sm:$0xff]
  %v6936 = vld [vmem:[%s5 + $0xe8] sm:$0xff]
  %v6937 = vld [vmem:[%s5 + $0xf0] sm:$0xff]
  %v6938 = vld [vmem:[%s5 + $0xf8] sm:$0xff]
  %v6939 = vld [vmem:[%s5 + $0x100] sm:$0xff]
  %v6940 = vld [vmem:[%s5 + $0x108] sm:$0xff]
  %v6941 = vld [vmem:[%s5 + $0x110] sm:$0xff]
  %v6942 = vld [vmem:[%s5 + $0x118] sm:$0xff]
  %v6943 = vld [vmem:[%s5 + $0x120] sm:$0xff]
  %v6944 = vld [vmem:[%s5 + $0x128] sm:$0xff]
  %v6945 = vld [vmem:[%s5 + $0x130] sm:$0xff]
  %v6946 = vld [vmem:[%s5 + $0x138] sm:$0xff]
  %v6947 = vld [vmem:[%s5 + $0x140] sm:$0xff]
  %v6948 = vld [vmem:[%s5 + $0x148] sm:$0xff]
  %v6949 = vld [vmem:[%s5 + $0x150] sm:$0xff]
  %v6950 = vld [vmem:[%s5 + $0x158] sm:$0xff]
  %v6951 = vld [vmem:[%s5 + $0x160] sm:$0xff]
  %v6952 = vld [vmem:[%s5 + $0x168] sm:$0xff]
  %v6953 = vld [vmem:[%s5 + $0x170] sm:$0xff]
  %v6954 = vld [vmem:[%s5 + $0x178] sm:$0xff]
  %v6955 = vld [vmem:[%s5 + $0x180] sm:$0xff]
  %v6956 = vld [vmem:[%s5 + $0x188] sm:$0xff]
  %v6957 = vld [vmem:[%s5 + $0x190] sm:$0xff]
  %v6958 = vld [vmem:[%s5 + $0x198] sm:$0xff]
  %v6959 = vld [vmem:[%s5 + $0x1a0] sm:$0xff]
  %v6960 = vld [vmem:[%s5 + $0x1a8] sm:$0xff]
  %v6961 = vld [vmem:[%s5 + $0x1b0] sm:$0xff]
  %v6962 = vld [vmem:[%s5 + $0x1b8] sm:$0xff]
  %v6963 = vld [vmem:[%s5 + $0x1c0] sm:$0xff]
  %v6964 = vld [vmem:[%s5 + $0x1c8] sm:$0xff]
  %v6965 = vld [vmem:[%s5 + $0x1d0] sm:$0xff]
  %v6966 = vld [vmem:[%s5 + $0x1d8] sm:$0xff]
  %v6967 = vld [vmem:[%s5 + $0x1e0] sm:$0xff]
  %v6968 = vld [vmem:[%s5 + $0x1e8] sm:$0xff]
  %v6969 = vld [vmem:[%s5 + $0x1f0] sm:$0xff]
  %v6970 = vld [vmem:[%s5 + $0x1f8] sm:$0xff]
  %v6971 = vld [vmem:[%s6] sm:$0x1]
  %v6973 = vperm.slane %v6971, 0
  %6975 = vmatpush.msra.mxu0 %v6922
  %6976 = vmatpush.msra.mxu0 %v6921
  %6977 = vmatpush.msra.mxu0 %v6920
  %6978 = vmatpush.msra.mxu0 %v6919
  %6979 = vmatpush.msra.mxu0 %v6918
  %6980 = vmatpush.msra.mxu0 %v6917
  %6981 = vmatpush.msra.mxu0 %v6916
  %6982 = vmatpush.msra.mxu0 %v6915
  %6983 = vmatpush.msra.mxu0 %v6914
  %6984 = vmatpush.msra.mxu0 %v6913
  %6985 = vmatpush.msra.mxu0 %v6912
  %6986 = vmatpush.msra.mxu0 %v6911
  %6987 = vmatpush.msra.mxu0 %v6910
  %6988 = vmatpush.msra.mxu0 %v6909
  %6989 = vmatpush.msra.mxu0 %v6908
  %6990 = vmatpush.msra.mxu0 %v6907
  %6991 = vmatmul.f32.gmra.mxu0 %v6903
  %v6992 = vpop.f32.mrf.mxu0
  %v6993 = vadd.f32 %v6973, %v6992
  %6994 = vdwg.mxu0
  %6995 = vmatpush.msra.mxu0 %v6938
  %6996 = vmatpush.msra.mxu0 %v6937
  %6997 = vmatpush.msra.mxu0 %v6936
  %6998 = vmatpush.msra.mxu0 %v6935
  %6999 = vmatpush.msra.mxu0 %v6934
  %7000 = vmatpush.msra.mxu0 %v6933
  %7001 = vmatpush.msra.mxu0 %v6932
  %7002 = vmatpush.msra.mxu0 %v6931
  %7003 = vmatpush.msra.mxu0 %v6930
  %7004 = vmatpush.msra.mxu0 %v6929
  %7005 = vmatpush.msra.mxu0 %v6928
  %7006 = vmatpush.msra.mxu0 %v6927
  %7007 = vmatpush.msra.mxu0 %v6926
  %7008 = vmatpush.msra.mxu0 %v6925
  %7009 = vmatpush.msra.mxu0 %v6924
  %7010 = vmatpush.msra.mxu0 %v6923
  %7011 = vmatmul.f32.gmra.mxu0 %v6904
  %v7012 = vpop.f32.mrf.mxu0
  %v7013 = vadd.f32 %v6993, %v7012
  %7014 = vdwg.mxu0
  %7015 = vmatpush.msra.mxu0 %v6954
  %7016 = vmatpush.msra.mxu0 %v6953
  %7017 = vmatpush.msra.mxu0 %v6952
  %7018 = vmatpush.msra.mxu0 %v6951
  %7019 = vmatpush.msra.mxu0 %v6950
  %7020 = vmatpush.msra.mxu0 %v6949
  %7021 = vmatpush.msra.mxu0 %v6948
  %7022 = vmatpush.msra.mxu0 %v6947
  %7023 = vmatpush.msra.mxu0 %v6946
  %7024 = vmatpush.msra.mxu0 %v6945
  %7025 = vmatpush.msra.mxu0 %v6944
  %7026 = vmatpush.msra.mxu0 %v6943
  %7027 = vmatpush.msra.mxu0 %v6942
  %7028 = vmatpush.msra.mxu0 %v6941
  %7029 = vmatpush.msra.mxu0 %v6940
  %7030 = vmatpush.msra.mxu0 %v6939
  %7031 = vmatmul.f32.gmra.mxu0 %v6905
  %v7032 = vpop.f32.mrf.mxu0
  %v7033 = vadd.f32 %v7013, %v7032
  %7034 = vdwg.mxu0
  %7035 = vmatpush.msra.mxu0 %v6970
  %7036 = vmatpush.msra.mxu0 %v6969
  %7037 = vmatpush.msra.mxu0 %v6968
  %7038 = vmatpush.msra.mxu0 %v6967
  %7039 = vmatpush.msra.mxu0 %v6966
  %7040 = vmatpush.msra.mxu0 %v6965
  %7041 = vmatpush.msra.mxu0 %v6964
  %7042 = vmatpush.msra.mxu0 %v6963
  %7043 = vmatpush.msra.mxu0 %v6962
  %7044 = vmatpush.msra.mxu0 %v6961
  %7045 = vmatpush.msra.mxu0 %v6960
  %7046 = vmatpush.msra.mxu0 %v6959
  %7047 = vmatpush.msra.mxu0 %v6958
  %7048 = vmatpush.msra.mxu0 %v6957
  %7049 = vmatpush.msra.mxu0 %v6956
  %7050 = vmatpush.msra.mxu0 %v6955
  %7051 = vmatmul.f32.gmra.mxu0 %v6906
  %v7052 = vpop.f32.mrf.mxu0
  %v7053 = vadd.f32 %v7033, %v7052
  %7054 = vdwg.mxu0
  %v7055 = vmax.f32 %v7053, 0.0
  %v7056 = vld [vmem:[%s7] sm:$0xff]
  %v7057 = vld [vmem:[%s7 + $0x8] sm:$0xff]
  %v7058 = vld [vmem:[%s7 + $0x10] sm:$0xff]
  %v7059 = vld [vmem:[%s7 + $0x18] sm:$0xff]
  %v7060 = vld [vmem:[%s7 + $0x20] sm:$0xff]
  %v7061 = vld [vmem:[%s7 + $0x28] sm:$0xff]
  %v7062 = vld [vmem:[%s7 + $0x30] sm:$0x3]
  %v7063 = vld [vmem:[%s8] sm:$0x1]
  %v7065 = vperm.slane %v7063, 0
  %vm7067 = vcmask 408576
  %v7069 = vsel %vm7067, %v7055, 0
  %vm7071 = vcmask 1041408
  %v7073 = vsel %vm7071, %v7062, 0
  %7075 = vmatpush.msra.mxu0 0.0
  %7076 = vmatpush.msra.mxu0 0.0
  %7077 = vmatpush.msra.mxu0 0.0
  %7078 = vmatpush.msra.mxu0 0.0
  %7079 = vmatpush.msra.mxu0 0.0
  %7080 = vmatpush.msra.mxu0 0.0
  %7081 = vmatpush.msra.mxu0 0.0
  %7082 = vmatpush.msra.mxu0 0.0
  %7083 = vmatpush.msra.mxu0 0.0
  %7084 = vmatpush.msra.mxu0 %v7073
  %7085 = vmatpush.msra.mxu0 %v7061
  %7086 = vmatpush.msra.mxu0 %v7060
  %7087 = vmatpush.msra.mxu0 %v7059
  %7088 = vmatpush.msra.mxu0 %v7058
  %7089 = vmatpush.msra.mxu0 %v7057
  %7090 = vmatpush.msra.mxu0 %v7056
  %7091 = vmatmul.f32.gmra.mxu0 %v7069
  %v7092 = vpop.f32.mrf.mxu0
  %v7093 = vadd.f32 %v7065, %v7092
  %7094 = vdwg.mxu0
  %vm7095 = vcmask 80896
  %v7096 = vsel %vm7095, %v7093, -inf
  %7097 = vmax.xlane.f32.xlu0 %v7096
  %v7098 = vpop.xlane.xlu0 %7097
  %v7099 = vsub.f32 %v7093, %v7098
  %v7100 = vmul.f32 %v7099, 1.442695
  %v7101 = vpow.pop %v7100
  %v7102 = vsel %vm7095, %v7101, 0.0
  %7103 = vadd.xlane.f32.xlu0 %v7102
  %v7104 = vpop.xlane.xlu0 %7103
  %v7105 = vlog2.pop %v7104
  %v7106 = vmul.f32 %v7105, 0.6931472
  %v7107 = vadd.f32 %v7098, %v7106
  %v7108 = vsub.f32 %v7093, %v7107
  %7109 = vst.msk [vmem:[%s9] sm:$0xff] %vm7095, %v7108
  // Predicated region
  $region38: #{net_forward.1} parent=0 // pred_check
    _
  $region39: #{net_forward.1} parent=0 // pred_check_branch
    %7111 = sbr.rel (0) target = $region41
  $region40: #{net_forward.1} parent=0 // pred_region
    _
  $region41: #{net_forward.1} parent=0 // pred_fallthru
    _
  // Predicated region
  $region42: #{net_forward.1} parent=0 // pred_check
    _
  $region43: #{net_forward.1} parent=0 // pred_check_branch
    %7113 = sbr.rel (0) target = $region45
  $region44: #{net_forward.1} parent=0 // pred_region
    _
  $region45: #{net_forward.1} parent=0 // pred_fallthru
    _

</llo_original>
